<compile_context>
chip_gen: v5e
topology: v5e:2x2
jax: 0.10.0
libtpu: 0.0.40
codegen_flags: <defaults>
</compile_context>

<pallas_src>
import functools
import math

import numpy as np
import jax
import jax.numpy as jnp
from jax.experimental import pallas as pl
from jax.experimental.pallas import tpu as pltpu

# Mamba defaults (MambaConfig): d_state=16, expand=2, d_conv=4, rms_eps=1e-5
D_STATE = 16
EXPAND = 2
D_CONV = 4
RMS_EPS = 1e-5


def _round_up(x, m):
    return (x + m - 1) // m * m


def _sigmoid(x):
    return 1.0 / (1.0 + jnp.exp(-x))


def _softplus(x):
    return jnp.maximum(x, 0.0) + jnp.log(1.0 + jnp.exp(-jnp.abs(x)))


# ----------------------------------------------------------------------------
# Pallas kernel: full Mamba stack for one batch element (all layers fused)
# ----------------------------------------------------------------------------
def mamba_stack_kernel(
        x_ref, wnorm_ref, win_ref, convw_ref, convb_ref, wxbc_ref, bdt_ref,
        aflat_ref, dp_ref, wout_ref, kexp_ref, rsum_ref,
        out_ref,
        conv_s, dA_s, bx_s,
        *, n_layers, Lp, D_true, ED, EDa, N, d_conv, LC):
    NED = N * ED
    PAD = 8                                     # zero left-pad rows of conv_s
    mdt = win_ref.dtype                         # matmul operand dtype (bf16/f32)
    inv_d = 1.0 / D_true
    x = x_ref[0]                                # (Lp, Dp) activations (carried)

    # zero the causal left-pad region once per grid step
    conv_s[pl.ds(0, PAD), :] = jnp.zeros((PAD, ED), jnp.float32)

    for layer in range(n_layers):
        # ---- RMSNorm (padded channel lanes are zero; divide by true D) ------
        var = jnp.sum(x * x, axis=-1, keepdims=True) * inv_d
        xn = x * jax.lax.rsqrt(var + RMS_EPS) * wnorm_ref[pl.ds(layer, 1), :]

        # ---- fused input projection: [x_branch | gate], 128-aligned halves --
        xz = jnp.dot(xn.astype(mdt), win_ref[layer],
                     preferred_element_type=jnp.float32)
        x_in = xz[:, :ED]                       # (Lp, ED)
        z = xz[:, EDa:EDa + ED]                 # (Lp, ED), aligned start

        # ---- depthwise causal Conv1d: shifted reads of a padded buffer ------
        conv_s[pl.ds(PAD, Lp), :] = x_in
        conv = jnp.zeros((Lp, ED), jnp.float32)
        for k in range(d_conv):
            shift = d_conv - 1 - k              # conv[t] += w[k] * x_in[t-shift]
            tap = convw_ref[pl.ds(layer * d_conv + k, 1), :]
            conv = conv + conv_s[pl.ds(PAD - shift, Lp), :] * tap
        conv = conv + convb_ref[pl.ds(layer, 1), :]
        xc = conv * _sigmoid(conv)              # SiLU

        # ---- fused x_proj (dt_proj folded): delta | B | C, aligned groups ---
        dbc = jnp.dot(xc.astype(mdt), wxbc_ref[layer],
                      preferred_element_type=jnp.float32)
        delta = _softplus(dbc[:, :ED] + bdt_ref[pl.ds(layer, 1), :])  # (Lp, ED)
        Bm = dbc[:, EDa:EDa + N]                # (Lp, N)
        Cm = dbc[:, EDa + 128:EDa + 128 + N]    # (Lp, N)

        a_row = aflat_ref[pl.ds(layer, 1), :]   # (1, NED)

        # ---- L-chunked coefficient precompute + blocked scan ----------------
        y_parts = []
        h = jnp.zeros((1, NED), jnp.float32)    # scan carry across chunks
        for c0 in range(0, Lp, LC):
            cl = min(LC, Lp - c0)               # static, multiple of 8
            delta_c = delta[c0:c0 + cl]
            xc_c = xc[c0:c0 + cl]

            # flat state index j = n*ED + e; the e -> (n, e) expansion is a pure
            # lane concatenation; the n -> (n, e) broadcast is a tiny matmul.
            # TODO(synk): on v6e/v7x this (cl, NED) exp could run in bf16 to
            # relieve the single EUP slot (keep f32 on v5e).
            dA_s[pl.ds(0, cl), :] = jnp.exp(
                jnp.concatenate([delta_c] * N, axis=1) * a_row)
            bexp = jnp.dot(Bm[c0:c0 + cl].astype(mdt), kexp_ref[...],
                           preferred_element_type=jnp.float32)
            bx_s[pl.ds(0, cl), :] = (
                jnp.concatenate([delta_c * xc_c] * N, axis=1) * bexp)

            # 8-row blocked scan: unmasked (8, NED) loads/stores; Hillis-Steele
            # prefix inside the block; only the (1, NED) carry is serial.
            def scan_block(i, h_carry):
                base = pl.multiple_of(i * 8, 8)
                a = dA_s[pl.ds(base, 8), :]
                b = bx_s[pl.ds(base, 8), :]
                for d in (1, 2, 4):
                    a_p = jnp.concatenate(
                        [jnp.ones((d, NED), jnp.float32), a[:8 - d, :]], axis=0)
                    b_p = jnp.concatenate(
                        [jnp.zeros((d, NED), jnp.float32), b[:8 - d, :]], axis=0)
                    b = a * b_p + b
                    a = a * a_p
                h_all = a * h_carry + b
                bx_s[pl.ds(base, 8), :] = h_all          # one unmasked store
                return h_all[7:8, :]

            h = jax.lax.fori_loop(0, cl // 8, scan_block, h)

            # y[t, e] = sum_n h[t, n, e] * C[t, n] via one K=NED MXU matmul
            cexp = jnp.dot(Cm[c0:c0 + cl].astype(mdt), kexp_ref[...],
                           preferred_element_type=jnp.float32)
            dA_s[pl.ds(0, cl), :] = bx_s[pl.ds(0, cl), :] * cexp
            y_parts.append(jnp.dot(dA_s[pl.ds(0, cl), :].astype(mdt),
                                   rsum_ref[...],
                                   preferred_element_type=jnp.float32))

        y = y_parts[0] if len(y_parts) == 1 else jnp.concatenate(y_parts, axis=0)

        # ---- skip (D), gating, output projection, residual ------------------
        y = y + xc * dp_ref[pl.ds(layer, 1), :]
        y = y * (z * _sigmoid(z))
        x = x + jnp.dot(y.astype(mdt), wout_ref[layer],
                        preferred_element_type=jnp.float32)

    out_ref[0] = x      # lane-dense (Lp, Dp) store


_WEIGHT_ORDER = ("wnorm", "w_in", "convw", "convb", "w_xbc", "bdt", "a_flat",
                 "dp", "wout", "k_exp", "r_sum")


def mamba_stack(seq, packed):
    """Run the fused residual Mamba layer stack.  seq: (B, L, D) float32."""
    B, L, D = seq.shape
    assert D == packed["D"]
    n_layers = packed["n_layers"]
    ED, EDa, N, d_conv, Dp = (packed["ED"], packed["EDa"], packed["N"],
                              packed["d_conv"], packed["Dp"])
    NED = N * ED

    # pad L (tail of the already-flipped sequence -> causally inert) and D.
    Lp = _round_up(L, 8)
    seq_p = jnp.pad(seq.astype(jnp.float32),
                    ((0, 0), (0, Lp - L), (0, Dp - D)))

    # chunk the two (LC, NED) f32 coefficient/scan slabs so they fit VMEM on
    # every generation (v7x has only 64 MiB physical VMEM).
    slab_budget = 24 << 20
    max_rows = max(8, (slab_budget // (2 * NED * 4)) // 8 * 8)
    LC = int(min(Lp, max_rows))

    weights = [packed[k] for k in _WEIGHT_ORDER]
    kernel = functools.partial(mamba_stack_kernel, n_layers=n_layers, Lp=Lp,
                               D_true=D, ED=ED, EDa=EDa, N=N, d_conv=d_conv,
                               LC=LC)

    # TODO(synk): weights have a constant block index; single-buffer them
    # (pipeline_mode=pl.Buffered(1)) once that is uniformly supported to
    # reclaim VMEM headroom on v7x.
    def full_spec(w):
        nd = w.ndim
        return pl.BlockSpec(w.shape, lambda b, _nd=nd: (0,) * _nd)

    weight_bytes = sum(int(np.prod(w.shape)) * w.dtype.itemsize
                       for w in weights)
    vmem_bytes = (2 * LC * NED * 4                 # coefficient/scan slabs
                  + (Lp + 8) * ED * 4              # conv pad buffer
                  + 2 * 2 * Lp * Dp * 4            # in/out blocks (dbl-buffered)
                  + 2 * weight_bytes               # weights (dbl-buffered)
                  + Lp * (4 * EDa + 8 * ED + 2 * Dp + 1024) * 4)  # intermediates
    vmem_limit = int(min(max(vmem_bytes, 32 << 20), 110 << 20))

    out = pl.pallas_call(
        kernel,
        out_shape=jax.ShapeDtypeStruct((B, Lp, Dp), jnp.float32),
        grid_spec=pltpu.PrefetchScalarGridSpec(
            num_scalar_prefetch=0,
            grid=(B,),
            in_specs=[pl.BlockSpec((1, Lp, Dp), lambda b: (b, 0, 0))]
                     + [full_spec(w) for w in weights],
            out_specs=pl.BlockSpec((1, Lp, Dp), lambda b: (b, 0, 0)),
            scratch_shapes=[
                pltpu.VMEM((Lp + 8, ED), jnp.float32),   # conv pad buffer
                pltpu.VMEM((LC, NED), jnp.float32),      # exp(delta*A) / h*C
                pltpu.VMEM((LC, NED), jnp.float32),      # delta*B*x, then h_all
            ],
        ),
        # batch axis "parallel": on v7x each TensorCore takes one batch element
        # (keep B >= 2 per chip there); harmless on single-core v5e/v6e.
        compiler_params=pltpu.CompilerParams(
            dimension_semantics=("parallel",),
            vmem_limit_bytes=vmem_limit),
    )(seq_p, *weights)
    return out[:, :L, :D]


# ----------------------------------------------------------------------------
# Host-side weight folding / packing (lane-aligned, bf16 matmul operands)
# ----------------------------------------------------------------------------
def pack_mamba_params(layers, mm_dtype=jnp.bfloat16):
    n_layers = len(layers)
    p0 = layers[0]
    D, ED = p0["win_x"].shape
    N = p0["wx_B"].shape[1]
    d_conv = p0["convw"].shape[0]
    assert N <= 128
    NED = N * ED
    Dp = _round_up(D, 128)
    EDa = _round_up(ED, 128)
    xbc_cols = EDa + 256      # [delta: 0..ED | B: EDa..EDa+N | C: EDa+128..]

    def npf(a):
        return np.asarray(a, np.float32)

    wnorm = np.zeros((n_layers, Dp), np.float32)
    w_in = np.zeros((n_layers, Dp, 2 * EDa), np.float32)
    w_xbc = np.zeros((n_layers, ED, xbc_cols), np.float32)
    wout = np.zeros((n_layers, ED, Dp), np.float32)
    for li, p in enumerate(layers):
        wnorm[li, :D] = npf(p["wnorm"]).reshape(D)
        w_in[li, :D, :ED] = npf(p["win_x"])
        w_in[li, :D, EDa:EDa + ED] = npf(p["win_z"])
        # fold dt_proj into x_proj:  delta_pre = xc @ (wx_dt @ wdt)
        w_delta = (np.asarray(p["wx_dt"], np.float64)
                   @ np.asarray(p["wdt"], np.float64)).astype(np.float32)
        w_xbc[li, :, :ED] = w_delta
        w_xbc[li, :, EDa:EDa + N] = npf(p["wx_B"])
        w_xbc[li, :, EDa + 128:EDa + 128 + N] = npf(p["wx_C"])
        wout[li, :, :D] = npf(p["wout"])      # padded cols stay zero -> padded
                                              # channel lanes stay zero

    # constant 0/1 matrices: k_exp broadcasts (L,N)->(L,N*ED); r_sum reduces
    # the flat state index back to e (y = hC @ r_sum, K = N*ED on the MXU).
    k_exp = np.zeros((N, NED), np.float32)
    r_sum = np.zeros((NED, ED), np.float32)
    for n in range(N):
        k_exp[n, n * ED:(n + 1) * ED] = 1.0
        r_sum[n * ED + np.arange(ED), np.arange(ED)] = 1.0

    packed = {
        "n_layers": n_layers, "D": D, "Dp": Dp, "ED": ED, "EDa": EDa,
        "N": N, "d_conv": d_conv,
        "wnorm": wnorm,
        "w_in": w_in,
        "convw": np.concatenate([npf(p["convw"]) for p in layers], axis=0),
        "convb": np.stack([npf(p["convb"]).reshape(ED) for p in layers]),
        "w_xbc": w_xbc,
        "bdt": np.stack([npf(p["bdt"]).reshape(ED) for p in layers]),
        "a_flat": np.stack([npf(p["A"]).reshape(NED) for p in layers]),
        "dp": np.stack([npf(p["Dp"]).reshape(ED) for p in layers]),
        "wout": wout,
        "k_exp": k_exp,
        "r_sum": r_sum,
    }
    mm_keys = ("w_in", "w_xbc", "wout", "k_exp", "r_sum")   # MXU operands
    for k in _WEIGHT_ORDER:
        dt = mm_dtype if k in mm_keys else jnp.float32
        packed[k] = jnp.asarray(packed[k], dt)
    return packed


# ----------------------------------------------------------------------------
# Deterministic parameter init (synthetic; mirrors Mamba parameter shapes)
# ----------------------------------------------------------------------------
def init_mamba_params(key, d_model, n_layers):
    ED = EXPAND * d_model
    N = D_STATE
    dt_rank = math.ceil(d_model / 16)
    layers = []
    for _ in range(n_layers):
        key, k0, k1, k2, k3, k4, k5, k6, k7, k8, k9 = jax.random.split(key, 11)
        # dt bias = inverse-softplus of dt ~ LogUniform(1e-3, 1e-1)
        dt = jnp.exp(jax.random.uniform(k8, (ED,), jnp.float32)
                     * (math.log(0.1) - math.log(1e-3)) + math.log(1e-3))
        bdt = dt + jnp.log(-jnp.expm1(-dt))
        # A = -exp(A_log) with A_log = log(1..N) per inner channel
        A = -jnp.broadcast_to(jnp.arange(1, N + 1, dtype=jnp.float32), (ED, N))
        p = dict(
            wnorm=jnp.ones((1, d_model), jnp.float32),
            win_x=jax.random.normal(k0, (d_model, ED), jnp.float32) / math.sqrt(d_model),
            win_z=jax.random.normal(k1, (d_model, ED), jnp.float32) / math.sqrt(d_model),
            convw=jax.random.normal(k2, (D_CONV, ED), jnp.float32) / math.sqrt(D_CONV),
            convb=jax.random.normal(k3, (1, ED), jnp.float32) * 0.05,
            wx_dt=jax.random.normal(k4, (ED, dt_rank), jnp.float32) / math.sqrt(ED),
            wx_B=jax.random.normal(k5, (ED, N), jnp.float32) / math.sqrt(ED),
            wx_C=jax.random.normal(k6, (ED, N), jnp.float32) / math.sqrt(ED),
            wdt=jax.random.normal(k7, (dt_rank, ED), jnp.float32) * (dt_rank ** -0.5),
            bdt=bdt.reshape(1, ED),
            A=jnp.transpose(A),                 # stored as (N, ED)
            Dp=jnp.ones((1, ED), jnp.float32),
            wout=jax.random.normal(k9, (ED, d_model), jnp.float32) / math.sqrt(ED),
        )
        layers.append(p)
    return layers


# ----------------------------------------------------------------------------
# Pure-JAX reference (same math, straightforward f32 formulation)
# ----------------------------------------------------------------------------
def _mamba_block_ref(x, p):
    L = x.shape[1]
    d_conv = p["convw"].shape[0]
    var = jnp.mean(x * x, axis=-1, keepdims=True)
    xn = x * jax.lax.rsqrt(var + RMS_EPS) * p["wnorm"]
    x_in = xn @ p["win_x"]
    z = xn @ p["win_z"]
    xpad = jnp.pad(x_in, ((0, 0), (d_conv - 1, 0), (0, 0)))
    conv = p["convb"] + sum(
        xpad[:, k:k + L, :] * p["convw"][k] for k in range(d_conv))
    xc = conv * _sigmoid(conv)
    delta = _softplus(xc @ p["wx_dt"] @ p["wdt"] + p["bdt"])
    Bm = xc @ p["wx_B"]
    Cm = xc @ p["wx_C"]
    dA = jnp.exp(delta[:, :, None, :] * p["A"][None, None, :, :])  # (B,L,N,ED)
    dBx = (delta * xc)[:, :, None, :] * Bm[:, :, :, None]          # (B,L,N,ED)

    def step(h, inp):
        a_t, b_t = inp
        h = a_t * h + b_t
        return h, h

    h0 = jnp.zeros(dA.shape[:1] + dA.shape[2:], jnp.float32)       # (B,N,ED)
    _, hs = jax.lax.scan(step, h0,
                         (jnp.swapaxes(dA, 0, 1), jnp.swapaxes(dBx, 0, 1)))
    hs = jnp.swapaxes(hs, 0, 1)                                    # (B,L,N,ED)
    y = jnp.sum(hs * Cm[:, :, :, None], axis=2)
    y = y + xc * p["Dp"]
    y = y * (z * _sigmoid(z))
    return x + y @ p["wout"]


def mamba_layers_rev_ref(x, layers):
    B, C, H, W = x.shape
    seq = jnp.transpose(x.reshape(B, C, H * W), (0, 2, 1))
    seq = jnp.flip(seq, axis=1)
    for p in layers:
        seq = _mamba_block_ref(seq, p)
    seq = jnp.flip(seq, axis=1)
    return jnp.transpose(seq, (0, 2, 1)).reshape(B, C, H, W)


# ----------------------------------------------------------------------------
# MambaLayersRev.forward (Pallas)
# ----------------------------------------------------------------------------
def mamba_layers_rev_forward(x, packed):
    B, C, H, W = x.shape
    seq = jnp.transpose(x.reshape(B, C, H * W), (0, 2, 1))  # (B, L, C), d_model=C
    seq = jnp.flip(seq, axis=1)                             # torch.flip(dims=[1])
    seq = mamba_stack(seq, packed)                          # fused Mamba stack
    seq = jnp.flip(seq, axis=1)
    return jnp.transpose(seq, (0, 2, 1)).reshape(B, C, H, W)


if __name__ == "__main__":
    B, C, H, W = 2, 32, 9, 9          # d_model = C = 32, L = H*W = 81 (odd -> pad)
    n_layers = 2
    key = jax.random.PRNGKey(0)
    kx, kp = jax.random.split(key)
    x = jax.random.normal(kx, (B, C, H, W), jnp.float32)
    layers = init_mamba_params(kp, d_model=C, n_layers=n_layers)
    ref = jax.block_until_ready(mamba_layers_rev_ref(x, layers))

    def rel_err(a, b):
        return float(jnp.sqrt(jnp.sum((a - b) ** 2) / (jnp.sum(b ** 2) + 1e-12)))

    # 1) strict structural check: f32 matmul operands, tight tolerance
    packed_f32 = pack_mamba_params(layers, mm_dtype=jnp.float32)
    out_f32 = jax.block_until_ready(mamba_layers_rev_forward(x, packed_f32))
    assert out_f32.shape == (B, C, H, W)
    assert bool(jnp.all(jnp.isfinite(out_f32)))
    r32 = rel_err(out_f32, ref)
    assert r32 < 1e-3, f"f32-mode relative error vs reference too large: {r32}"

    # 2) default performance config: bf16 MXU operands (f32 accumulation/scan);
    #    looser gate only covers bf16 rounding -- structure is guarded by (1).
    packed = pack_mamba_params(layers, mm_dtype=jnp.bfloat16)
    out = jax.block_until_ready(mamba_layers_rev_forward(x, packed))
    assert out.shape == (B, C, H, W)
    assert bool(jnp.all(jnp.isfinite(out)))
    rbf = rel_err(out, ref)
    assert rbf < 4e-2, f"bf16-mode relative error vs reference too large: {rbf}"

    print("KERNEL_OK")
</pallas_src>

<mosaic_0001>
module attributes {stable_mosaic.version = 11 : i64} {
  func.func @mamba_stack_kernel(%arg0: i32, %arg1: memref<1x88x128xf32, #tpu.memory_space<vmem>>, %arg2: memref<2x128xf32, #tpu.memory_space<vmem>>, %arg3: memref<2x128x256xf32, #tpu.memory_space<vmem>>, %arg4: memref<8x64xf32, #tpu.memory_space<vmem>>, %arg5: memref<2x64xf32, #tpu.memory_space<vmem>>, %arg6: memref<2x64x384xf32, #tpu.memory_space<vmem>>, %arg7: memref<2x64xf32, #tpu.memory_space<vmem>>, %arg8: memref<2x1024xf32, #tpu.memory_space<vmem>>, %arg9: memref<2x64xf32, #tpu.memory_space<vmem>>, %arg10: memref<2x64x128xf32, #tpu.memory_space<vmem>>, %arg11: memref<16x1024xf32, #tpu.memory_space<vmem>>, %arg12: memref<1024x64xf32, #tpu.memory_space<vmem>>, %arg13: memref<1x88x128xf32, #tpu.memory_space<vmem>>, %arg14: memref<96x64xf32, #tpu.memory_space<vmem>>, %arg15: memref<88x1024xf32, #tpu.memory_space<vmem>>, %arg16: memref<88x1024xf32, #tpu.memory_space<vmem>>) attributes {dimension_semantics = [#tpu.dimension_semantics<parallel>], iteration_bounds = array<i64: 2>, scalar_prefetch = 0 : i64, scratch_operands = 3 : i64, tpu.core_type = #tpu.core_type<tc>, window_params = [{transform_indices = @transform_0, window_bounds = array<i64: 1, 88, 128>}, {pipeline_mode = #tpu.pipeline_mode<synchronous>, transform_indices = @transform_1, window_bounds = array<i64: 2, 128>}, {pipeline_mode = #tpu.pipeline_mode<synchronous>, transform_indices = @transform_2, window_bounds = array<i64: 2, 128, 256>}, {pipeline_mode = #tpu.pipeline_mode<synchronous>, transform_indices = @transform_3, window_bounds = array<i64: 8, 64>}, {pipeline_mode = #tpu.pipeline_mode<synchronous>, transform_indices = @transform_4, window_bounds = array<i64: 2, 64>}, {pipeline_mode = #tpu.pipeline_mode<synchronous>, transform_indices = @transform_5, window_bounds = array<i64: 2, 64, 384>}, {pipeline_mode = #tpu.pipeline_mode<synchronous>, transform_indices = @transform_6, window_bounds = array<i64: 2, 64>}, {pipeline_mode = #tpu.pipeline_mode<synchronous>, transform_indices = @transform_7, window_bounds = array<i64: 2, 1024>}, {pipeline_mode = #tpu.pipeline_mode<synchronous>, transform_indices = @transform_8, window_bounds = array<i64: 2, 64>}, {pipeline_mode = #tpu.pipeline_mode<synchronous>, transform_indices = @transform_9, window_bounds = array<i64: 2, 64, 128>}, {pipeline_mode = #tpu.pipeline_mode<synchronous>, transform_indices = @transform_10, window_bounds = array<i64: 16, 1024>}, {pipeline_mode = #tpu.pipeline_mode<synchronous>, transform_indices = @transform_11, window_bounds = array<i64: 1024, 64>}, {transform_indices = @transform_12, window_bounds = array<i64: 1, 88, 128>}]} {
    %c0 = arith.constant 0 : index
    %c0_0 = arith.constant 0 : index
    %c0_1 = arith.constant 0 : index
    %0 = vector.load %arg1[%c0, %c0_0, %c0_1] : memref<1x88x128xf32, #tpu.memory_space<vmem>>, vector<1x88x128xf32>
    %1 = vector.shape_cast %0 : vector<1x88x128xf32> to vector<88x128xf32>
    %cst = arith.constant 0.000000e+00 : f32
    %2 = vector.broadcast %cst : f32 to vector<8x64xf32>
    %c0_2 = arith.constant 0 : index
    %c0_3 = arith.constant 0 : index
    %3 = vector.load %arg14[%c0_2, %c0_3] : memref<96x64xf32, #tpu.memory_space<vmem>>, vector<8x64xf32>
    tpu.vector_store %arg14[%c0_2, %c0_3], %2 {strides = array<i32>} : memref<96x64xf32, #tpu.memory_space<vmem>>, vector<8x64xf32>,
    %4 = arith.mulf %1, %1 : vector<88x128xf32>
    %cst_4 = arith.constant dense<0.000000e+00> : vector<88xf32>
    %5 = vector.multi_reduction <add>, %4, %cst_4 [1] : vector<88x128xf32> to vector<88xf32>
    %6 = vector.shape_cast %5 : vector<88xf32> to vector<88x1xf32>
    %cst_5 = arith.constant 3.125000e-02 : f32
    %7 = vector.broadcast %cst_5 : f32 to vector<88x1xf32>
    %8 = arith.mulf %6, %7 : vector<88x1xf32>
    %cst_6 = arith.constant 9.99999974E-6 : f32
    %9 = vector.broadcast %cst_6 : f32 to vector<88x1xf32>
    %10 = arith.addf %8, %9 : vector<88x1xf32>
    %11 = math.rsqrt %10 : vector<88x1xf32>
    %12 = vector.broadcast %11 : vector<88x1xf32> to vector<88x128xf32>
    %13 = arith.mulf %1, %12 : vector<88x128xf32>
    %c0_7 = arith.constant 0 : index
    %c0_8 = arith.constant 0 : index
    %14 = vector.load %arg2[%c0_7, %c0_8] : memref<2x128xf32, #tpu.memory_space<vmem>>, vector<1x128xf32>
    %15 = vector.broadcast %14 : vector<1x128xf32> to vector<88x128xf32>
    %16 = arith.mulf %13, %15 : vector<88x128xf32>
    %c0_9 = arith.constant 0 : index
    %c0_10 = arith.constant 0 : index
    %c0_11 = arith.constant 0 : index
    %17 = vector.load %arg3[%c0_9, %c0_10, %c0_11] : memref<2x128x256xf32, #tpu.memory_space<vmem>>, vector<1x128x256xf32>
    %18 = vector.shape_cast %17 : vector<1x128x256xf32> to vector<128x256xf32>
    %cst_12 = arith.constant dense<0.000000e+00> : vector<88x256xf32>
    %19 = tpu.matmul %16, %18, %cst_12 {dimension_numbers = #tpu.dot_dimension_numbers<[1], [0], [0], [1], [0, 0, 1, 1], [], []>} : vector<88x128xf32>, vector<128x256xf32>, vector<88x256xf32> -> vector<88x256xf32>
    %20 = vector.extract_strided_slice %19 {offsets = [0, 0], sizes = [88, 64], strides = [1, 1]} : vector<88x256xf32> to vector<88x64xf32>
    %21 = vector.extract_strided_slice %19 {offsets = [0, 128], sizes = [88, 64], strides = [1, 1]} : vector<88x256xf32> to vector<88x64xf32>
    %c8 = arith.constant 8 : index
    %c0_13 = arith.constant 0 : index
    %22 = vector.load %arg14[%c8, %c0_13] : memref<96x64xf32, #tpu.memory_space<vmem>>, vector<88x64xf32>
    tpu.vector_store %arg14[%c8, %c0_13], %20 {strides = array<i32>} : memref<96x64xf32, #tpu.memory_space<vmem>>, vector<88x64xf32>,
    %cst_14 = arith.constant 0.000000e+00 : f32
    %23 = vector.broadcast %cst_14 : f32 to vector<88x64xf32>
    %c0_15 = arith.constant 0 : index
    %c0_16 = arith.constant 0 : index
    %24 = vector.load %arg4[%c0_15, %c0_16] : memref<8x64xf32, #tpu.memory_space<vmem>>, vector<1x64xf32>
    %c5 = arith.constant 5 : index
    %c0_17 = arith.constant 0 : index
    %25 = vector.load %arg14[%c5, %c0_17] : memref<96x64xf32, #tpu.memory_space<vmem>>, vector<88x64xf32>
    %26 = vector.broadcast %24 : vector<1x64xf32> to vector<88x64xf32>
    %27 = arith.mulf %25, %26 : vector<88x64xf32>
    %28 = arith.addf %23, %27 : vector<88x64xf32>
    %c1 = arith.constant 1 : index
    %c0_18 = arith.constant 0 : index
    %29 = vector.load %arg4[%c1, %c0_18] : memref<8x64xf32, #tpu.memory_space<vmem>>, vector<1x64xf32>
    %c6 = arith.constant 6 : index
    %c0_19 = arith.constant 0 : index
    %30 = vector.load %arg14[%c6, %c0_19] : memref<96x64xf32, #tpu.memory_space<vmem>>, vector<88x64xf32>
    %31 = vector.broadcast %29 : vector<1x64xf32> to vector<88x64xf32>
    %32 = arith.mulf %30, %31 : vector<88x64xf32>
    %33 = arith.addf %28, %32 : vector<88x64xf32>
    %c2 = arith.constant 2 : index
    %c0_20 = arith.constant 0 : index
    %34 = vector.load %arg4[%c2, %c0_20] : memref<8x64xf32, #tpu.memory_space<vmem>>, vector<1x64xf32>
    %c7 = arith.constant 7 : index
    %c0_21 = arith.constant 0 : index
    %35 = vector.load %arg14[%c7, %c0_21] : memref<96x64xf32, #tpu.memory_space<vmem>>, vector<88x64xf32>
    %36 = vector.broadcast %34 : vector<1x64xf32> to vector<88x64xf32>
    %37 = arith.mulf %35, %36 : vector<88x64xf32>
    %38 = arith.addf %33, %37 : vector<88x64xf32>
    %c3 = arith.constant 3 : index
    %c0_22 = arith.constant 0 : index
    %39 = vector.load %arg4[%c3, %c0_22] : memref<8x64xf32, #tpu.memory_space<vmem>>, vector<1x64xf32>
    %c8_23 = arith.constant 8 : index
    %c0_24 = arith.constant 0 : index
    %40 = vector.load %arg14[%c8_23, %c0_24] : memref<96x64xf32, #tpu.memory_space<vmem>>, vector<88x64xf32>
    %41 = vector.broadcast %39 : vector<1x64xf32> to vector<88x64xf32>
    %42 = arith.mulf %40, %41 : vector<88x64xf32>
    %43 = arith.addf %38, %42 : vector<88x64xf32>
    %c0_25 = arith.constant 0 : index
    %c0_26 = arith.constant 0 : index
    %44 = vector.load %arg5[%c0_25, %c0_26] : memref<2x64xf32, #tpu.memory_space<vmem>>, vector<1x64xf32>
    %45 = vector.broadcast %44 : vector<1x64xf32> to vector<88x64xf32>
    %46 = arith.addf %43, %45 : vector<88x64xf32>
    %cst_27 = arith.constant 0.000000e+00 : f32
    %47 = vector.broadcast %cst_27 : f32 to vector<88x64xf32>
    %48 = arith.subf %47, %46 : vector<88x64xf32>
    %49 = math.exp %48 : vector<88x64xf32>
    %cst_28 = arith.constant 1.000000e+00 : f32
    %50 = vector.broadcast %cst_28 : f32 to vector<88x64xf32>
    %51 = arith.addf %50, %49 : vector<88x64xf32>
    %cst_29 = arith.constant 1.000000e+00 : f32
    %52 = vector.broadcast %cst_29 : f32 to vector<88x64xf32>
    %53 = arith.divf %52, %51 : vector<88x64xf32>
    %54 = arith.mulf %46, %53 : vector<88x64xf32>
    %c0_30 = arith.constant 0 : index
    %c0_31 = arith.constant 0 : index
    %c0_32 = arith.constant 0 : index
    %55 = vector.load %arg6[%c0_30, %c0_31, %c0_32] : memref<2x64x384xf32, #tpu.memory_space<vmem>>, vector<1x64x384xf32>
    %56 = vector.shape_cast %55 : vector<1x64x384xf32> to vector<64x384xf32>
    %cst_33 = arith.constant dense<0.000000e+00> : vector<88x384xf32>
    %57 = tpu.matmul %54, %56, %cst_33 {dimension_numbers = #tpu.dot_dimension_numbers<[1], [0], [0], [1], [0, 0, 1, 1], [], []>} : vector<88x64xf32>, vector<64x384xf32>, vector<88x384xf32> -> vector<88x384xf32>
    %58 = vector.extract_strided_slice %57 {offsets = [0, 0], sizes = [88, 64], strides = [1, 1]} : vector<88x384xf32> to vector<88x64xf32>
    %c0_34 = arith.constant 0 : index
    %c0_35 = arith.constant 0 : index
    %59 = vector.load %arg7[%c0_34, %c0_35] : memref<2x64xf32, #tpu.memory_space<vmem>>, vector<1x64xf32>
    %60 = vector.broadcast %59 : vector<1x64xf32> to vector<88x64xf32>
    %61 = arith.addf %58, %60 : vector<88x64xf32>
    %cst_36 = arith.constant 0.000000e+00 : f32
    %62 = vector.broadcast %cst_36 : f32 to vector<88x64xf32>
    %63 = arith.maximumf %61, %62 : vector<88x64xf32>
    %64 = math.absf %61 : vector<88x64xf32>
    %cst_37 = arith.constant 0.000000e+00 : f32
    %65 = vector.broadcast %cst_37 : f32 to vector<88x64xf32>
    %66 = arith.subf %65, %64 : vector<88x64xf32>
    %67 = math.exp %66 : vector<88x64xf32>
    %cst_38 = arith.constant 1.000000e+00 : f32
    %68 = vector.broadcast %cst_38 : f32 to vector<88x64xf32>
    %69 = arith.addf %68, %67 : vector<88x64xf32>
    %70 = math.log %69 : vector<88x64xf32>
    %71 = arith.addf %63, %70 : vector<88x64xf32>
    %72 = vector.extract_strided_slice %57 {offsets = [0, 128], sizes = [88, 16], strides = [1, 1]} : vector<88x384xf32> to vector<88x16xf32>
    %73 = vector.extract_strided_slice %57 {offsets = [0, 256], sizes = [88, 16], strides = [1, 1]} : vector<88x384xf32> to vector<88x16xf32>
    %c0_39 = arith.constant 0 : index
    %c0_40 = arith.constant 0 : index
    %74 = vector.load %arg8[%c0_39, %c0_40] : memref<2x1024xf32, #tpu.memory_space<vmem>>, vector<1x1024xf32>
    %cst_41 = arith.constant 0.000000e+00 : f32
    %75 = vector.broadcast %cst_41 : f32 to vector<1x1024xf32>
    %76 = tpu.concatenate %71, %71, %71, %71, %71, %71, %71, %71, %71, %71, %71, %71, %71, %71, %71, %71 in 1 : vector<88x64xf32>, vector<88x64xf32>, vector<88x64xf32>, vector<88x64xf32>, vector<88x64xf32>, vector<88x64xf32>, vector<88x64xf32>, vector<88x64xf32>, vector<88x64xf32>, vector<88x64xf32>, vector<88x64xf32>, vector<88x64xf32>, vector<88x64xf32>, vector<88x64xf32>, vector<88x64xf32>, vector<88x64xf32> -> vector<88x1024xf32>
    %77 = vector.broadcast %74 : vector<1x1024xf32> to vector<88x1024xf32>
    %78 = arith.mulf %76, %77 : vector<88x1024xf32>
    %79 = math.exp %78 : vector<88x1024xf32>
    %c0_42 = arith.constant 0 : index
    %c0_43 = arith.constant 0 : index
    %80 = vector.load %arg15[%c0_42, %c0_43] : memref<88x1024xf32, #tpu.memory_space<vmem>>, vector<88x1024xf32>
    tpu.vector_store %arg15[%c0_42, %c0_43], %79 {strides = array<i32>} : memref<88x1024xf32, #tpu.memory_space<vmem>>, vector<88x1024xf32>,
    %c0_44 = arith.constant 0 : index
    %c0_45 = arith.constant 0 : index
    %81 = vector.load %arg11[%c0_44, %c0_45] : memref<16x1024xf32, #tpu.memory_space<vmem>>, vector<16x1024xf32>
    %cst_46 = arith.constant dense<0.000000e+00> : vector<88x1024xf32>
    %82 = tpu.matmul %72, %81, %cst_46 {dimension_numbers = #tpu.dot_dimension_numbers<[1], [0], [0], [1], [0, 0, 1, 1], [], []>} : vector<88x16xf32>, vector<16x1024xf32>, vector<88x1024xf32> -> vector<88x1024xf32>
    %83 = arith.mulf %71, %54 : vector<88x64xf32>
    %84 = tpu.concatenate %83, %83, %83, %83, %83, %83, %83, %83, %83, %83, %83, %83, %83, %83, %83, %83 in 1 : vector<88x64xf32>, vector<88x64xf32>, vector<88x64xf32>, vector<88x64xf32>, vector<88x64xf32>, vector<88x64xf32>, vector<88x64xf32>, vector<88x64xf32>, vector<88x64xf32>, vector<88x64xf32>, vector<88x64xf32>, vector<88x64xf32>, vector<88x64xf32>, vector<88x64xf32>, vector<88x64xf32>, vector<88x64xf32> -> vector<88x1024xf32>
    %85 = arith.mulf %84, %82 : vector<88x1024xf32>
    %c0_47 = arith.constant 0 : index
    %c0_48 = arith.constant 0 : index
    %86 = vector.load %arg16[%c0_47, %c0_48] : memref<88x1024xf32, #tpu.memory_space<vmem>>, vector<88x1024xf32>
    tpu.vector_store %arg16[%c0_47, %c0_48], %85 {strides = array<i32>} : memref<88x1024xf32, #tpu.memory_space<vmem>>, vector<88x1024xf32>,
    %c0_i32 = arith.constant 0 : i32
    %c11_i32 = arith.constant 11 : i32
    %87 = arith.addi %c0_i32, %c11_i32 : i32
    %c1_i32 = arith.constant 1 : i32
    %88 = scf.for %arg17 = %c0_i32 to %87 step %c1_i32 iter_args(%arg18 = %75) -> (vector<1x1024xf32>)  : i32 {
      %c8_i32 = arith.constant 8 : i32
      %227 = arith.muli %arg17, %c8_i32 : i32
      %228 = tpu.assume_multiple %227, 8 : i32
      %229 = arith.index_cast %228 : i32 to index
      %c0_150 = arith.constant 0 : index
      %230 = vector.load %arg15[%229, %c0_150] : memref<88x1024xf32, #tpu.memory_space<vmem>>, vector<8x1024xf32>
      %231 = arith.index_cast %228 : i32 to index
      %c0_151 = arith.constant 0 : index
      %232 = vector.load %arg16[%231, %c0_151] : memref<88x1024xf32, #tpu.memory_space<vmem>>, vector<8x1024xf32>
      %cst_152 = arith.constant 1.000000e+00 : f32
      %233 = vector.broadcast %cst_152 : f32 to vector<1x1024xf32>
      %234 = vector.extract_strided_slice %230 {offsets = [0, 0], sizes = [7, 1024], strides = [1, 1]} : vector<8x1024xf32> to vector<7x1024xf32>
      %235 = tpu.concatenate %233, %234 in 0 : vector<1x1024xf32>, vector<7x1024xf32> -> vector<8x1024xf32>
      %cst_153 = arith.constant 0.000000e+00 : f32
      %236 = vector.broadcast %cst_153 : f32 to vector<1x1024xf32>
      %237 = vector.extract_strided_slice %232 {offsets = [0, 0], sizes = [7, 1024], strides = [1, 1]} : vector<8x1024xf32> to vector<7x1024xf32>
      %238 = tpu.concatenate %236, %237 in 0 : vector<1x1024xf32>, vector<7x1024xf32> -> vector<8x1024xf32>
      %239 = arith.mulf %230, %238 : vector<8x1024xf32>
      %240 = arith.addf %239, %232 : vector<8x1024xf32>
      %241 = arith.mulf %230, %235 : vector<8x1024xf32>
      %cst_154 = arith.constant 1.000000e+00 : f32
      %242 = vector.broadcast %cst_154 : f32 to vector<2x1024xf32>
      %243 = vector.extract_strided_slice %241 {offsets = [0, 0], sizes = [6, 1024], strides = [1, 1]} : vector<8x1024xf32> to vector<6x1024xf32>
      %244 = tpu.concatenate %242, %243 in 0 : vector<2x1024xf32>, vector<6x1024xf32> -> vector<8x1024xf32>
      %cst_155 = arith.constant 0.000000e+00 : f32
      %245 = vector.broadcast %cst_155 : f32 to vector<2x1024xf32>
      %246 = vector.extract_strided_slice %240 {offsets = [0, 0], sizes = [6, 1024], strides = [1, 1]} : vector<8x1024xf32> to vector<6x1024xf32>
      %247 = tpu.concatenate %245, %246 in 0 : vector<2x1024xf32>, vector<6x1024xf32> -> vector<8x1024xf32>
      %248 = arith.mulf %241, %247 : vector<8x1024xf32>
      %249 = arith.addf %248, %240 : vector<8x1024xf32>
      %250 = arith.mulf %241, %244 : vector<8x1024xf32>
      %cst_156 = arith.constant 1.000000e+00 : f32
      %251 = vector.broadcast %cst_156 : f32 to vector<4x1024xf32>
      %252 = vector.extract_strided_slice %250 {offsets = [0, 0], sizes = [4, 1024], strides = [1, 1]} : vector<8x1024xf32> to vector<4x1024xf32>
      %253 = tpu.concatenate %251, %252 in 0 : vector<4x1024xf32>, vector<4x1024xf32> -> vector<8x1024xf32>
      %cst_157 = arith.constant 0.000000e+00 : f32
      %254 = vector.broadcast %cst_157 : f32 to vector<4x1024xf32>
      %255 = vector.extract_strided_slice %249 {offsets = [0, 0], sizes = [4, 1024], strides = [1, 1]} : vector<8x1024xf32> to vector<4x1024xf32>
      %256 = tpu.concatenate %254, %255 in 0 : vector<4x1024xf32>, vector<4x1024xf32> -> vector<8x1024xf32>
      %257 = arith.mulf %250, %256 : vector<8x1024xf32>
      %258 = arith.addf %257, %249 : vector<8x1024xf32>
      %259 = arith.mulf %250, %253 : vector<8x1024xf32>
      %260 = vector.broadcast %arg18 : vector<1x1024xf32> to vector<8x1024xf32>
      %261 = arith.mulf %259, %260 : vector<8x1024xf32>
      %262 = arith.addf %261, %258 : vector<8x1024xf32>
      %263 = arith.index_cast %228 : i32 to index
      %c0_158 = arith.constant 0 : index
      %264 = vector.load %arg16[%263, %c0_158] : memref<88x1024xf32, #tpu.memory_space<vmem>>, vector<8x1024xf32>
      tpu.vector_store %arg16[%263, %c0_158], %262 {strides = array<i32>} : memref<88x1024xf32, #tpu.memory_space<vmem>>, vector<8x1024xf32>,
      %265 = vector.extract_strided_slice %262 {offsets = [7, 0], sizes = [1, 1024], strides = [1, 1]} : vector<8x1024xf32> to vector<1x1024xf32>
      scf.yield %265 : vector<1x1024xf32>
    }
    %c11_i32_49 = arith.constant 11 : i32
    %c0_50 = arith.constant 0 : index
    %c0_51 = arith.constant 0 : index
    %89 = vector.load %arg11[%c0_50, %c0_51] : memref<16x1024xf32, #tpu.memory_space<vmem>>, vector<16x1024xf32>
    %cst_52 = arith.constant dense<0.000000e+00> : vector<88x1024xf32>
    %90 = tpu.matmul %73, %89, %cst_52 {dimension_numbers = #tpu.dot_dimension_numbers<[1], [0], [0], [1], [0, 0, 1, 1], [], []>} : vector<88x16xf32>, vector<16x1024xf32>, vector<88x1024xf32> -> vector<88x1024xf32>
    %c0_53 = arith.constant 0 : index
    %c0_54 = arith.constant 0 : index
    %91 = vector.load %arg16[%c0_53, %c0_54] : memref<88x1024xf32, #tpu.memory_space<vmem>>, vector<88x1024xf32>
    %92 = arith.mulf %91, %90 : vector<88x1024xf32>
    %c0_55 = arith.constant 0 : index
    %c0_56 = arith.constant 0 : index
    %93 = vector.load %arg15[%c0_55, %c0_56] : memref<88x1024xf32, #tpu.memory_space<vmem>>, vector<88x1024xf32>
    tpu.vector_store %arg15[%c0_55, %c0_56], %92 {strides = array<i32>} : memref<88x1024xf32, #tpu.memory_space<vmem>>, vector<88x1024xf32>,
    %c0_57 = arith.constant 0 : index
    %c0_58 = arith.constant 0 : index
    %94 = vector.load %arg15[%c0_57, %c0_58] : memref<88x1024xf32, #tpu.memory_space<vmem>>, vector<88x1024xf32>
    %c0_59 = arith.constant 0 : index
    %c0_60 = arith.constant 0 : index
    %95 = vector.load %arg12[%c0_59, %c0_60] : memref<1024x64xf32, #tpu.memory_space<vmem>>, vector<1024x64xf32>
    %cst_61 = arith.constant dense<0.000000e+00> : vector<88x64xf32>
    %96 = tpu.matmul %94, %95, %cst_61 {dimension_numbers = #tpu.dot_dimension_numbers<[1], [0], [0], [1], [0, 0, 1, 1], [], []>} : vector<88x1024xf32>, vector<1024x64xf32>, vector<88x64xf32> -> vector<88x64xf32>
    %c0_62 = arith.constant 0 : index
    %c0_63 = arith.constant 0 : index
    %97 = vector.load %arg9[%c0_62, %c0_63] : memref<2x64xf32, #tpu.memory_space<vmem>>, vector<1x64xf32>
    %98 = vector.broadcast %97 : vector<1x64xf32> to vector<88x64xf32>
    %99 = arith.mulf %54, %98 : vector<88x64xf32>
    %100 = arith.addf %96, %99 : vector<88x64xf32>
    %cst_64 = arith.constant 0.000000e+00 : f32
    %101 = vector.broadcast %cst_64 : f32 to vector<88x64xf32>
    %102 = arith.subf %101, %21 : vector<88x64xf32>
    %103 = math.exp %102 : vector<88x64xf32>
    %cst_65 = arith.constant 1.000000e+00 : f32
    %104 = vector.broadcast %cst_65 : f32 to vector<88x64xf32>
    %105 = arith.addf %104, %103 : vector<88x64xf32>
    %cst_66 = arith.constant 1.000000e+00 : f32
    %106 = vector.broadcast %cst_66 : f32 to vector<88x64xf32>
    %107 = arith.divf %106, %105 : vector<88x64xf32>
    %108 = arith.mulf %21, %107 : vector<88x64xf32>
    %109 = arith.mulf %100, %108 : vector<88x64xf32>
    %c0_67 = arith.constant 0 : index
    %c0_68 = arith.constant 0 : index
    %c0_69 = arith.constant 0 : index
    %110 = vector.load %arg10[%c0_67, %c0_68, %c0_69] : memref<2x64x128xf32, #tpu.memory_space<vmem>>, vector<1x64x128xf32>
    %111 = vector.shape_cast %110 : vector<1x64x128xf32> to vector<64x128xf32>
    %cst_70 = arith.constant dense<0.000000e+00> : vector<88x128xf32>
    %112 = tpu.matmul %109, %111, %cst_70 {dimension_numbers = #tpu.dot_dimension_numbers<[1], [0], [0], [1], [0, 0, 1, 1], [], []>} : vector<88x64xf32>, vector<64x128xf32>, vector<88x128xf32> -> vector<88x128xf32>
    %113 = arith.addf %1, %112 : vector<88x128xf32>
    %114 = arith.mulf %113, %113 : vector<88x128xf32>
    %cst_71 = arith.constant dense<0.000000e+00> : vector<88xf32>
    %115 = vector.multi_reduction <add>, %114, %cst_71 [1] : vector<88x128xf32> to vector<88xf32>
    %116 = vector.shape_cast %115 : vector<88xf32> to vector<88x1xf32>
    %cst_72 = arith.constant 3.125000e-02 : f32
    %117 = vector.broadcast %cst_72 : f32 to vector<88x1xf32>
    %118 = arith.mulf %116, %117 : vector<88x1xf32>
    %cst_73 = arith.constant 9.99999974E-6 : f32
    %119 = vector.broadcast %cst_73 : f32 to vector<88x1xf32>
    %120 = arith.addf %118, %119 : vector<88x1xf32>
    %121 = math.rsqrt %120 : vector<88x1xf32>
    %122 = vector.broadcast %121 : vector<88x1xf32> to vector<88x128xf32>
    %123 = arith.mulf %113, %122 : vector<88x128xf32>
    %c1_74 = arith.constant 1 : index
    %c0_75 = arith.constant 0 : index
    %124 = vector.load %arg2[%c1_74, %c0_75] : memref<2x128xf32, #tpu.memory_space<vmem>>, vector<1x128xf32>
    %125 = vector.broadcast %124 : vector<1x128xf32> to vector<88x128xf32>
    %126 = arith.mulf %123, %125 : vector<88x128xf32>
    %c1_76 = arith.constant 1 : index
    %c0_77 = arith.constant 0 : index
    %c0_78 = arith.constant 0 : index
    %127 = vector.load %arg3[%c1_76, %c0_77, %c0_78] : memref<2x128x256xf32, #tpu.memory_space<vmem>>, vector<1x128x256xf32>
    %128 = vector.shape_cast %127 : vector<1x128x256xf32> to vector<128x256xf32>
    %cst_79 = arith.constant dense<0.000000e+00> : vector<88x256xf32>
    %129 = tpu.matmul %126, %128, %cst_79 {dimension_numbers = #tpu.dot_dimension_numbers<[1], [0], [0], [1], [0, 0, 1, 1], [], []>} : vector<88x128xf32>, vector<128x256xf32>, vector<88x256xf32> -> vector<88x256xf32>
    %130 = vector.extract_strided_slice %129 {offsets = [0, 0], sizes = [88, 64], strides = [1, 1]} : vector<88x256xf32> to vector<88x64xf32>
    %131 = vector.extract_strided_slice %129 {offsets = [0, 128], sizes = [88, 64], strides = [1, 1]} : vector<88x256xf32> to vector<88x64xf32>
    %c8_80 = arith.constant 8 : index
    %c0_81 = arith.constant 0 : index
    %132 = vector.load %arg14[%c8_80, %c0_81] : memref<96x64xf32, #tpu.memory_space<vmem>>, vector<88x64xf32>
    tpu.vector_store %arg14[%c8_80, %c0_81], %130 {strides = array<i32>} : memref<96x64xf32, #tpu.memory_space<vmem>>, vector<88x64xf32>,
    %cst_82 = arith.constant 0.000000e+00 : f32
    %133 = vector.broadcast %cst_82 : f32 to vector<88x64xf32>
    %c4 = arith.constant 4 : index
    %c0_83 = arith.constant 0 : index
    %134 = vector.load %arg4[%c4, %c0_83] : memref<8x64xf32, #tpu.memory_space<vmem>>, vector<1x64xf32>
    %c5_84 = arith.constant 5 : index
    %c0_85 = arith.constant 0 : index
    %135 = vector.load %arg14[%c5_84, %c0_85] : memref<96x64xf32, #tpu.memory_space<vmem>>, vector<88x64xf32>
    %136 = vector.broadcast %134 : vector<1x64xf32> to vector<88x64xf32>
    %137 = arith.mulf %135, %136 : vector<88x64xf32>
    %138 = arith.addf %133, %137 : vector<88x64xf32>
    %c5_86 = arith.constant 5 : index
    %c0_87 = arith.constant 0 : index
    %139 = vector.load %arg4[%c5_86, %c0_87] : memref<8x64xf32, #tpu.memory_space<vmem>>, vector<1x64xf32>
    %c6_88 = arith.constant 6 : index
    %c0_89 = arith.constant 0 : index
    %140 = vector.load %arg14[%c6_88, %c0_89] : memref<96x64xf32, #tpu.memory_space<vmem>>, vector<88x64xf32>
    %141 = vector.broadcast %139 : vector<1x64xf32> to vector<88x64xf32>
    %142 = arith.mulf %140, %141 : vector<88x64xf32>
    %143 = arith.addf %138, %142 : vector<88x64xf32>
    %c6_90 = arith.constant 6 : index
    %c0_91 = arith.constant 0 : index
    %144 = vector.load %arg4[%c6_90, %c0_91] : memref<8x64xf32, #tpu.memory_space<vmem>>, vector<1x64xf32>
    %c7_92 = arith.constant 7 : index
    %c0_93 = arith.constant 0 : index
    %145 = vector.load %arg14[%c7_92, %c0_93] : memref<96x64xf32, #tpu.memory_space<vmem>>, vector<88x64xf32>
    %146 = vector.broadcast %144 : vector<1x64xf32> to vector<88x64xf32>
    %147 = arith.mulf %145, %146 : vector<88x64xf32>
    %148 = arith.addf %143, %147 : vector<88x64xf32>
    %c7_94 = arith.constant 7 : index
    %c0_95 = arith.constant 0 : index
    %149 = vector.load %arg4[%c7_94, %c0_95] : memref<8x64xf32, #tpu.memory_space<vmem>>, vector<1x64xf32>
    %c8_96 = arith.constant 8 : index
    %c0_97 = arith.constant 0 : index
    %150 = vector.load %arg14[%c8_96, %c0_97] : memref<96x64xf32, #tpu.memory_space<vmem>>, vector<88x64xf32>
    %151 = vector.broadcast %149 : vector<1x64xf32> to vector<88x64xf32>
    %152 = arith.mulf %150, %151 : vector<88x64xf32>
    %153 = arith.addf %148, %152 : vector<88x64xf32>
    %c1_98 = arith.constant 1 : index
    %c0_99 = arith.constant 0 : index
    %154 = vector.load %arg5[%c1_98, %c0_99] : memref<2x64xf32, #tpu.memory_space<vmem>>, vector<1x64xf32>
    %155 = vector.broadcast %154 : vector<1x64xf32> to vector<88x64xf32>
    %156 = arith.addf %153, %155 : vector<88x64xf32>
    %cst_100 = arith.constant 0.000000e+00 : f32
    %157 = vector.broadcast %cst_100 : f32 to vector<88x64xf32>
    %158 = arith.subf %157, %156 : vector<88x64xf32>
    %159 = math.exp %158 : vector<88x64xf32>
    %cst_101 = arith.constant 1.000000e+00 : f32
    %160 = vector.broadcast %cst_101 : f32 to vector<88x64xf32>
    %161 = arith.addf %160, %159 : vector<88x64xf32>
    %cst_102 = arith.constant 1.000000e+00 : f32
    %162 = vector.broadcast %cst_102 : f32 to vector<88x64xf32>
    %163 = arith.divf %162, %161 : vector<88x64xf32>
    %164 = arith.mulf %156, %163 : vector<88x64xf32>
    %c1_103 = arith.constant 1 : index
    %c0_104 = arith.constant 0 : index
    %c0_105 = arith.constant 0 : index
    %165 = vector.load %arg6[%c1_103, %c0_104, %c0_105] : memref<2x64x384xf32, #tpu.memory_space<vmem>>, vector<1x64x384xf32>
    %166 = vector.shape_cast %165 : vector<1x64x384xf32> to vector<64x384xf32>
    %cst_106 = arith.constant dense<0.000000e+00> : vector<88x384xf32>
    %167 = tpu.matmul %164, %166, %cst_106 {dimension_numbers = #tpu.dot_dimension_numbers<[1], [0], [0], [1], [0, 0, 1, 1], [], []>} : vector<88x64xf32>, vector<64x384xf32>, vector<88x384xf32> -> vector<88x384xf32>
    %168 = vector.extract_strided_slice %167 {offsets = [0, 0], sizes = [88, 64], strides = [1, 1]} : vector<88x384xf32> to vector<88x64xf32>
    %c1_107 = arith.constant 1 : index
    %c0_108 = arith.constant 0 : index
    %169 = vector.load %arg7[%c1_107, %c0_108] : memref<2x64xf32, #tpu.memory_space<vmem>>, vector<1x64xf32>
    %170 = vector.broadcast %169 : vector<1x64xf32> to vector<88x64xf32>
    %171 = arith.addf %168, %170 : vector<88x64xf32>
    %cst_109 = arith.constant 0.000000e+00 : f32
    %172 = vector.broadcast %cst_109 : f32 to vector<88x64xf32>
    %173 = arith.maximumf %171, %172 : vector<88x64xf32>
    %174 = math.absf %171 : vector<88x64xf32>
    %cst_110 = arith.constant 0.000000e+00 : f32
    %175 = vector.broadcast %cst_110 : f32 to vector<88x64xf32>
    %176 = arith.subf %175, %174 : vector<88x64xf32>
    %177 = math.exp %176 : vector<88x64xf32>
    %cst_111 = arith.constant 1.000000e+00 : f32
    %178 = vector.broadcast %cst_111 : f32 to vector<88x64xf32>
    %179 = arith.addf %178, %177 : vector<88x64xf32>
    %180 = math.log %179 : vector<88x64xf32>
    %181 = arith.addf %173, %180 : vector<88x64xf32>
    %182 = vector.extract_strided_slice %167 {offsets = [0, 128], sizes = [88, 16], strides = [1, 1]} : vector<88x384xf32> to vector<88x16xf32>
    %183 = vector.extract_strided_slice %167 {offsets = [0, 256], sizes = [88, 16], strides = [1, 1]} : vector<88x384xf32> to vector<88x16xf32>
    %c1_112 = arith.constant 1 : index
    %c0_113 = arith.constant 0 : index
    %184 = vector.load %arg8[%c1_112, %c0_113] : memref<2x1024xf32, #tpu.memory_space<vmem>>, vector<1x1024xf32>
    %cst_114 = arith.constant 0.000000e+00 : f32
    %185 = vector.broadcast %cst_114 : f32 to vector<1x1024xf32>
    %186 = tpu.concatenate %181, %181, %181, %181, %181, %181, %181, %181, %181, %181, %181, %181, %181, %181, %181, %181 in 1 : vector<88x64xf32>, vector<88x64xf32>, vector<88x64xf32>, vector<88x64xf32>, vector<88x64xf32>, vector<88x64xf32>, vector<88x64xf32>, vector<88x64xf32>, vector<88x64xf32>, vector<88x64xf32>, vector<88x64xf32>, vector<88x64xf32>, vector<88x64xf32>, vector<88x64xf32>, vector<88x64xf32>, vector<88x64xf32> -> vector<88x1024xf32>
    %187 = vector.broadcast %184 : vector<1x1024xf32> to vector<88x1024xf32>
    %188 = arith.mulf %186, %187 : vector<88x1024xf32>
    %189 = math.exp %188 : vector<88x1024xf32>
    %c0_115 = arith.constant 0 : index
    %c0_116 = arith.constant 0 : index
    %190 = vector.load %arg15[%c0_115, %c0_116] : memref<88x1024xf32, #tpu.memory_space<vmem>>, vector<88x1024xf32>
    tpu.vector_store %arg15[%c0_115, %c0_116], %189 {strides = array<i32>} : memref<88x1024xf32, #tpu.memory_space<vmem>>, vector<88x1024xf32>,
    %c0_117 = arith.constant 0 : index
    %c0_118 = arith.constant 0 : index
    %191 = vector.load %arg11[%c0_117, %c0_118] : memref<16x1024xf32, #tpu.memory_space<vmem>>, vector<16x1024xf32>
    %cst_119 = arith.constant dense<0.000000e+00> : vector<88x1024xf32>
    %192 = tpu.matmul %182, %191, %cst_119 {dimension_numbers = #tpu.dot_dimension_numbers<[1], [0], [0], [1], [0, 0, 1, 1], [], []>} : vector<88x16xf32>, vector<16x1024xf32>, vector<88x1024xf32> -> vector<88x1024xf32>
    %193 = arith.mulf %181, %164 : vector<88x64xf32>
    %194 = tpu.concatenate %193, %193, %193, %193, %193, %193, %193, %193, %193, %193, %193, %193, %193, %193, %193, %193 in 1 : vector<88x64xf32>, vector<88x64xf32>, vector<88x64xf32>, vector<88x64xf32>, vector<88x64xf32>, vector<88x64xf32>, vector<88x64xf32>, vector<88x64xf32>, vector<88x64xf32>, vector<88x64xf32>, vector<88x64xf32>, vector<88x64xf32>, vector<88x64xf32>, vector<88x64xf32>, vector<88x64xf32>, vector<88x64xf32> -> vector<88x1024xf32>
    %195 = arith.mulf %194, %192 : vector<88x1024xf32>
    %c0_120 = arith.constant 0 : index
    %c0_121 = arith.constant 0 : index
    %196 = vector.load %arg16[%c0_120, %c0_121] : memref<88x1024xf32, #tpu.memory_space<vmem>>, vector<88x1024xf32>
    tpu.vector_store %arg16[%c0_120, %c0_121], %195 {strides = array<i32>} : memref<88x1024xf32, #tpu.memory_space<vmem>>, vector<88x1024xf32>,
    %c0_i32_122 = arith.constant 0 : i32
    %c11_i32_123 = arith.constant 11 : i32
    %197 = arith.addi %c0_i32_122, %c11_i32_123 : i32
    %c1_i32_124 = arith.constant 1 : i32
    %198 = scf.for %arg17 = %c0_i32_122 to %197 step %c1_i32_124 iter_args(%arg18 = %185) -> (vector<1x1024xf32>)  : i32 {
      %c8_i32 = arith.constant 8 : i32
      %227 = arith.muli %arg17, %c8_i32 : i32
      %228 = tpu.assume_multiple %227, 8 : i32
      %229 = arith.index_cast %228 : i32 to index
      %c0_150 = arith.constant 0 : index
      %230 = vector.load %arg15[%229, %c0_150] : memref<88x1024xf32, #tpu.memory_space<vmem>>, vector<8x1024xf32>
      %231 = arith.index_cast %228 : i32 to index
      %c0_151 = arith.constant 0 : index
      %232 = vector.load %arg16[%231, %c0_151] : memref<88x1024xf32, #tpu.memory_space<vmem>>, vector<8x1024xf32>
      %cst_152 = arith.constant 1.000000e+00 : f32
      %233 = vector.broadcast %cst_152 : f32 to vector<1x1024xf32>
      %234 = vector.extract_strided_slice %230 {offsets = [0, 0], sizes = [7, 1024], strides = [1, 1]} : vector<8x1024xf32> to vector<7x1024xf32>
      %235 = tpu.concatenate %233, %234 in 0 : vector<1x1024xf32>, vector<7x1024xf32> -> vector<8x1024xf32>
      %cst_153 = arith.constant 0.000000e+00 : f32
      %236 = vector.broadcast %cst_153 : f32 to vector<1x1024xf32>
      %237 = vector.extract_strided_slice %232 {offsets = [0, 0], sizes = [7, 1024], strides = [1, 1]} : vector<8x1024xf32> to vector<7x1024xf32>
      %238 = tpu.concatenate %236, %237 in 0 : vector<1x1024xf32>, vector<7x1024xf32> -> vector<8x1024xf32>
      %239 = arith.mulf %230, %238 : vector<8x1024xf32>
      %240 = arith.addf %239, %232 : vector<8x1024xf32>
      %241 = arith.mulf %230, %235 : vector<8x1024xf32>
      %cst_154 = arith.constant 1.000000e+00 : f32
      %242 = vector.broadcast %cst_154 : f32 to vector<2x1024xf32>
      %243 = vector.extract_strided_slice %241 {offsets = [0, 0], sizes = [6, 1024], strides = [1, 1]} : vector<8x1024xf32> to vector<6x1024xf32>
      %244 = tpu.concatenate %242, %243 in 0 : vector<2x1024xf32>, vector<6x1024xf32> -> vector<8x1024xf32>
      %cst_155 = arith.constant 0.000000e+00 : f32
      %245 = vector.broadcast %cst_155 : f32 to vector<2x1024xf32>
      %246 = vector.extract_strided_slice %240 {offsets = [0, 0], sizes = [6, 1024], strides = [1, 1]} : vector<8x1024xf32> to vector<6x1024xf32>
      %247 = tpu.concatenate %245, %246 in 0 : vector<2x1024xf32>, vector<6x1024xf32> -> vector<8x1024xf32>
      %248 = arith.mulf %241, %247 : vector<8x1024xf32>
      %249 = arith.addf %248, %240 : vector<8x1024xf32>
      %250 = arith.mulf %241, %244 : vector<8x1024xf32>
      %cst_156 = arith.constant 1.000000e+00 : f32
      %251 = vector.broadcast %cst_156 : f32 to vector<4x1024xf32>
      %252 = vector.extract_strided_slice %250 {offsets = [0, 0], sizes = [4, 1024], strides = [1, 1]} : vector<8x1024xf32> to vector<4x1024xf32>
      %253 = tpu.concatenate %251, %252 in 0 : vector<4x1024xf32>, vector<4x1024xf32> -> vector<8x1024xf32>
      %cst_157 = arith.constant 0.000000e+00 : f32
      %254 = vector.broadcast %cst_157 : f32 to vector<4x1024xf32>
      %255 = vector.extract_strided_slice %249 {offsets = [0, 0], sizes = [4, 1024], strides = [1, 1]} : vector<8x1024xf32> to vector<4x1024xf32>
      %256 = tpu.concatenate %254, %255 in 0 : vector<4x1024xf32>, vector<4x1024xf32> -> vector<8x1024xf32>
      %257 = arith.mulf %250, %256 : vector<8x1024xf32>
      %258 = arith.addf %257, %249 : vector<8x1024xf32>
      %259 = arith.mulf %250, %253 : vector<8x1024xf32>
      %260 = vector.broadcast %arg18 : vector<1x1024xf32> to vector<8x1024xf32>
      %261 = arith.mulf %259, %260 : vector<8x1024xf32>
      %262 = arith.addf %261, %258 : vector<8x1024xf32>
      %263 = arith.index_cast %228 : i32 to index
      %c0_158 = arith.constant 0 : index
      %264 = vector.load %arg16[%263, %c0_158] : memref<88x1024xf32, #tpu.memory_space<vmem>>, vector<8x1024xf32>
      tpu.vector_store %arg16[%263, %c0_158], %262 {strides = array<i32>} : memref<88x1024xf32, #tpu.memory_space<vmem>>, vector<8x1024xf32>,
      %265 = vector.extract_strided_slice %262 {offsets = [7, 0], sizes = [1, 1024], strides = [1, 1]} : vector<8x1024xf32> to vector<1x1024xf32>
      scf.yield %265 : vector<1x1024xf32>
    }
    %c11_i32_125 = arith.constant 11 : i32
    %c0_126 = arith.constant 0 : index
    %c0_127 = arith.constant 0 : index
    %199 = vector.load %arg11[%c0_126, %c0_127] : memref<16x1024xf32, #tpu.memory_space<vmem>>, vector<16x1024xf32>
    %cst_128 = arith.constant dense<0.000000e+00> : vector<88x1024xf32>
    %200 = tpu.matmul %183, %199, %cst_128 {dimension_numbers = #tpu.dot_dimension_numbers<[1], [0], [0], [1], [0, 0, 1, 1], [], []>} : vector<88x16xf32>, vector<16x1024xf32>, vector<88x1024xf32> -> vector<88x1024xf32>
    %c0_129 = arith.constant 0 : index
    %c0_130 = arith.constant 0 : index
    %201 = vector.load %arg16[%c0_129, %c0_130] : memref<88x1024xf32, #tpu.memory_space<vmem>>, vector<88x1024xf32>
    %202 = arith.mulf %201, %200 : vector<88x1024xf32>
    %c0_131 = arith.constant 0 : index
    %c0_132 = arith.constant 0 : index
    %203 = vector.load %arg15[%c0_131, %c0_132] : memref<88x1024xf32, #tpu.memory_space<vmem>>, vector<88x1024xf32>
    tpu.vector_store %arg15[%c0_131, %c0_132], %202 {strides = array<i32>} : memref<88x1024xf32, #tpu.memory_space<vmem>>, vector<88x1024xf32>,
    %c0_133 = arith.constant 0 : index
    %c0_134 = arith.constant 0 : index
    %204 = vector.load %arg15[%c0_133, %c0_134] : memref<88x1024xf32, #tpu.memory_space<vmem>>, vector<88x1024xf32>
    %c0_135 = arith.constant 0 : index
    %c0_136 = arith.constant 0 : index
    %205 = vector.load %arg12[%c0_135, %c0_136] : memref<1024x64xf32, #tpu.memory_space<vmem>>, vector<1024x64xf32>
    %cst_137 = arith.constant dense<0.000000e+00> : vector<88x64xf32>
    %206 = tpu.matmul %204, %205, %cst_137 {dimension_numbers = #tpu.dot_dimension_numbers<[1], [0], [0], [1], [0, 0, 1, 1], [], []>} : vector<88x1024xf32>, vector<1024x64xf32>, vector<88x64xf32> -> vector<88x64xf32>
    %c1_138 = arith.constant 1 : index
    %c0_139 = arith.constant 0 : index
    %207 = vector.load %arg9[%c1_138, %c0_139] : memref<2x64xf32, #tpu.memory_space<vmem>>, vector<1x64xf32>
    %208 = vector.broadcast %207 : vector<1x64xf32> to vector<88x64xf32>
    %209 = arith.mulf %164, %208 : vector<88x64xf32>
    %210 = arith.addf %206, %209 : vector<88x64xf32>
    %cst_140 = arith.constant 0.000000e+00 : f32
    %211 = vector.broadcast %cst_140 : f32 to vector<88x64xf32>
    %212 = arith.subf %211, %131 : vector<88x64xf32>
    %213 = math.exp %212 : vector<88x64xf32>
    %cst_141 = arith.constant 1.000000e+00 : f32
    %214 = vector.broadcast %cst_141 : f32 to vector<88x64xf32>
    %215 = arith.addf %214, %213 : vector<88x64xf32>
    %cst_142 = arith.constant 1.000000e+00 : f32
    %216 = vector.broadcast %cst_142 : f32 to vector<88x64xf32>
    %217 = arith.divf %216, %215 : vector<88x64xf32>
    %218 = arith.mulf %131, %217 : vector<88x64xf32>
    %219 = arith.mulf %210, %218 : vector<88x64xf32>
    %c1_143 = arith.constant 1 : index
    %c0_144 = arith.constant 0 : index
    %c0_145 = arith.constant 0 : index
    %220 = vector.load %arg10[%c1_143, %c0_144, %c0_145] : memref<2x64x128xf32, #tpu.memory_space<vmem>>, vector<1x64x128xf32>
    %221 = vector.shape_cast %220 : vector<1x64x128xf32> to vector<64x128xf32>
    %cst_146 = arith.constant dense<0.000000e+00> : vector<88x128xf32>
    %222 = tpu.matmul %219, %221, %cst_146 {dimension_numbers = #tpu.dot_dimension_numbers<[1], [0], [0], [1], [0, 0, 1, 1], [], []>} : vector<88x64xf32>, vector<64x128xf32>, vector<88x128xf32> -> vector<88x128xf32>
    %223 = arith.addf %113, %222 : vector<88x128xf32>
    %c0_147 = arith.constant 0 : index
    %c0_148 = arith.constant 0 : index
    %c0_149 = arith.constant 0 : index
    %224 = vector.load %arg13[%c0_147, %c0_148, %c0_149] : memref<1x88x128xf32, #tpu.memory_space<vmem>>, vector<1x88x128xf32>
    %225 = vector.shape_cast %224 : vector<1x88x128xf32> to vector<88x128xf32>
    %226 = vector.shape_cast %223 : vector<88x128xf32> to vector<1x88x128xf32>
    tpu.vector_store %arg13[%c0_147, %c0_148, %c0_149], %226 {strides = array<i32>} : memref<1x88x128xf32, #tpu.memory_space<vmem>>, vector<1x88x128xf32>,
    return
  }
  func.func @transform_0(%arg0: i32) -> (i32, i32, i32) {
    %c0_i32 = arith.constant 0 : i32
    %c0_i32_0 = arith.constant 0 : i32
    %c0_i32_1 = arith.constant 0 : i32
    return %arg0, %c0_i32, %c0_i32_0 : i32, i32, i32
  }
  func.func @transform_1(%arg0: i32) -> (i32, i32) {
    %c0_i32 = arith.constant 0 : i32
    %c0_i32_0 = arith.constant 0 : i32
    %c0_i32_1 = arith.constant 0 : i32
    return %c0_i32, %c0_i32_0 : i32, i32
  }
  func.func @transform_2(%arg0: i32) -> (i32, i32, i32) {
    %c0_i32 = arith.constant 0 : i32
    %c0_i32_0 = arith.constant 0 : i32
    %c0_i32_1 = arith.constant 0 : i32
    %c0_i32_2 = arith.constant 0 : i32
    return %c0_i32, %c0_i32_0, %c0_i32_1 : i32, i32, i32
  }
  func.func @transform_3(%arg0: i32) -> (i32, i32) {
    %c0_i32 = arith.constant 0 : i32
    %c0_i32_0 = arith.constant 0 : i32
    %c0_i32_1 = arith.constant 0 : i32
    return %c0_i32, %c0_i32_0 : i32, i32
  }
  func.func @transform_4(%arg0: i32) -> (i32, i32) {
    %c0_i32 = arith.constant 0 : i32
    %c0_i32_0 = arith.constant 0 : i32
    %c0_i32_1 = arith.constant 0 : i32
    return %c0_i32, %c0_i32_0 : i32, i32
  }
  func.func @transform_5(%arg0: i32) -> (i32, i32, i32) {
    %c0_i32 = arith.constant 0 : i32
    %c0_i32_0 = arith.constant 0 : i32
    %c0_i32_1 = arith.constant 0 : i32
    %c0_i32_2 = arith.constant 0 : i32
    return %c0_i32, %c0_i32_0, %c0_i32_1 : i32, i32, i32
  }
  func.func @transform_6(%arg0: i32) -> (i32, i32) {
    %c0_i32 = arith.constant 0 : i32
    %c0_i32_0 = arith.constant 0 : i32
    %c0_i32_1 = arith.constant 0 : i32
    return %c0_i32, %c0_i32_0 : i32, i32
  }
  func.func @transform_7(%arg0: i32) -> (i32, i32) {
    %c0_i32 = arith.constant 0 : i32
    %c0_i32_0 = arith.constant 0 : i32
    %c0_i32_1 = arith.constant 0 : i32
    return %c0_i32, %c0_i32_0 : i32, i32
  }
  func.func @transform_8(%arg0: i32) -> (i32, i32) {
    %c0_i32 = arith.constant 0 : i32
    %c0_i32_0 = arith.constant 0 : i32
    %c0_i32_1 = arith.constant 0 : i32
    return %c0_i32, %c0_i32_0 : i32, i32
  }
  func.func @transform_9(%arg0: i32) -> (i32, i32, i32) {
    %c0_i32 = arith.constant 0 : i32
    %c0_i32_0 = arith.constant 0 : i32
    %c0_i32_1 = arith.constant 0 : i32
    %c0_i32_2 = arith.constant 0 : i32
    return %c0_i32, %c0_i32_0, %c0_i32_1 : i32, i32, i32
  }
  func.func @transform_10(%arg0: i32) -> (i32, i32) {
    %c0_i32 = arith.constant 0 : i32
    %c0_i32_0 = arith.constant 0 : i32
    %c0_i32_1 = arith.constant 0 : i32
    return %c0_i32, %c0_i32_0 : i32, i32
  }
  func.func @transform_11(%arg0: i32) -> (i32, i32) {
    %c0_i32 = arith.constant 0 : i32
    %c0_i32_0 = arith.constant 0 : i32
    %c0_i32_1 = arith.constant 0 : i32
    return %c0_i32, %c0_i32_0 : i32, i32
  }
  func.func @transform_12(%arg0: i32) -> (i32, i32, i32) {
    %c0_i32 = arith.constant 0 : i32
    %c0_i32_0 = arith.constant 0 : i32
    %c0_i32_1 = arith.constant 0 : i32
    return %arg0, %c0_i32, %c0_i32_0 : i32, i32, i32
  }
}

</mosaic_0001>

<llo_original>
// kernel: tpu_custom_call.1
$region0: #{tpu_custom_call.1}
  #allocation0 [shape = 'u32[]', space=smem, size = 0x4, offset = 0x4, fixed_abs, tag = 'smem constant byte address 0x4 - core index']
  #allocation1 [shape = 'u32[72,128]{1,0:T(1,128)}', space=vmem, size = 0x9000, scoped, tag = 'internal scratch']
  #allocation2 [shape = 'f32[96,64]{1,0:T(8,128)}', space=vmem, size = 0xc000, scoped, tag = 'scratch operand']
  #allocation3 [shape = 'f32[88,1024]{1,0:T(8,128)}', space=vmem, size = 0x58000, scoped, tag = 'scratch operand']
  #allocation4 [shape = 'f32[88,1024]{1,0:T(8,128)}', space=vmem, size = 0x58000, scoped, tag = 'scratch operand']
  %s0 = inlined_call_operand.vmem [shape: f32[2,88,128], index: 0, kind: input, shape index: {}]
  %s1 = inlined_call_operand.vmem [shape: f32[2,128], index: 1, kind: input, shape index: {}]
  %s2 = inlined_call_operand.vmem [shape: f32[2,128,256], index: 2, kind: input, shape index: {}]
  %s3 = inlined_call_operand.vmem [shape: f32[8,64], index: 3, kind: input, shape index: {}]
  %s4 = inlined_call_operand.vmem [shape: f32[2,64], index: 4, kind: input, shape index: {}]
  %s5 = inlined_call_operand.vmem [shape: f32[2,64,384], index: 5, kind: input, shape index: {}]
  %s6 = inlined_call_operand.vmem [shape: f32[2,64], index: 6, kind: input, shape index: {}]
  %s7 = inlined_call_operand.vmem [shape: f32[2,1024], index: 7, kind: input, shape index: {}]
  %s8 = inlined_call_operand.vmem [shape: f32[2,64], index: 8, kind: input, shape index: {}]
  %s9 = inlined_call_operand.vmem [shape: f32[2,64,128], index: 9, kind: input, shape index: {}]
  %s10 = inlined_call_operand.vmem [shape: f32[16,1024], index: 10, kind: input, shape index: {}]
  %s11 = inlined_call_operand.vmem [shape: f32[1024,64], index: 11, kind: input, shape index: {}]
  %s12 = inlined_call_operand.hbm [shape: f32[2,88,128], index: 12, kind: output, shape index: {}]
  %s13 = sld [smem:[#allocation0]]
  $region95: #{tpu_custom_call.1} parent=0
    _
  %s15 = ssub.s32 1, %s13
  %s16 = scalar_select 0, %s15, %s13
  $region1: #{tpu_custom_call.1} parent=0
    #allocation5 [shape = 'u8[90112]{0}', space=vmem, size = 0x16000, scoped, tag = 'output window, operand 0']
    #allocation6 [shape = 's32[2]{0}', space=sflag, size = 0x8, scoped, tag = 'scoped memory for tpu_custom_call.1']
    %17 = vsyncpa [#allocation6], 0
    %s18 = scalar_lea.sflag [#allocation6], 1
    %19 = vsyncpa %s18, 0
    loop: start=0, step=1, limit=4
    $region2: #{tpu_custom_call.1} parent=1 // loop_pre_header
      _
    $region3: #{tpu_custom_call.1} parent=1 // loop_header
      %s21 = sphi 0, %s25
      %p22 = scmp.ge.s32.totalorder %s21, 4
      %s31 = sphi 0, %s33
      %s34 = sphi 0, %s31
      %s35 = sphi 0, %s34
      %s51 = sphi 0, %s35
      %s55 = sphi 0, %s55
      %s57 = sphi 0, %s55
      %s58 = sphi 0, %s57
      %s72 = sphi 0, %s58
      %s76 = sphi 0, %s76
      %s78 = sphi 0, %s76
      %s79 = sphi 0, %s78
      %s93 = sphi 0, %s79
      %s97 = sphi 0, %s97
      %s99 = sphi 0, %s97
      %s100 = sphi 0, %s99
      %s114 = sphi 0, %s100
      %s118 = sphi 0, %s118
      %s120 = sphi 0, %s118
      %s121 = sphi 0, %s120
      %s135 = sphi 0, %s121
      %s139 = sphi 0, %s139
      %s141 = sphi 0, %s139
      %s142 = sphi 0, %s141
      %s156 = sphi 0, %s142
      %s160 = sphi 0, %s160
      %s162 = sphi 0, %s160
      %s163 = sphi 0, %s162
      %s177 = sphi 0, %s163
      %s181 = sphi 0, %s181
      %s183 = sphi 0, %s181
      %s184 = sphi 0, %s183
      %s198 = sphi 0, %s184
      %s202 = sphi 0, %s202
      %s204 = sphi 0, %s202
      %s205 = sphi 0, %s204
      %s219 = sphi 0, %s205
      %s223 = sphi 0, %s223
      %s225 = sphi 0, %s223
      %s226 = sphi 0, %s225
      %s240 = sphi 0, %s226
      %s244 = sphi 0, %s244
      %s246 = sphi 0, %s244
      %s247 = sphi 0, %s246
      %s261 = sphi 0, %s247
      %s265 = sphi 0, %s265
      %s267 = sphi 0, %s265
      %s268 = sphi 0, %s267
      %s282 = sphi 0, %s268
      %s288 = sphi 0, %s290
      %s291 = sphi 0, %s288
      %s292 = sphi 0, %s291
      %s308 = sphi 0, %s292
    $region4: #{tpu_custom_call.1} parent=1 // loop_header_branch
      %24 = sbr.rel (%p22) target = $region8
    $region5: #{tpu_custom_call.1} parent=1 // loop_body
      %s26 = ssub.s32 %s21, 1
      %s27 = ssub.s32 %s21, 2
      %s28 = sadd.s32 %s21, 1
      %s29 = ssub.s32 %s21, %s28
      %p30 = scmp.eq.s32.totalorder %s29, 0
      %s32 = sadd.s32 %s31, 1
      %s33 = scalar_select %p30, %s31, %s32
      %p36 = pneg %p30
      %p37 = scmp.eq.s32.totalorder %s21, 1
      %p38 = por %p36, %p37
      %p39 = scmp.ne.s32.totalorder %s31, %s34
      %p40 = scmp.eq.s32.totalorder %s21, 0
      %p41 = por %p39, %p40
      %p42 = scmp.ne.s32.totalorder %s31, %s34
      %p43 = scmp.eq.s32.totalorder %s26, 1
      %p44 = por %p42, %p43
      %p45 = scmp.ne.s32.totalorder %s34, %s35
      %p46 = scmp.eq.s32.totalorder %s26, 0
      %p47 = por %p45, %p46
      %p48 = scmp.ne.s32.totalorder %s34, %s35
      %p49 = scmp.eq.s32.totalorder %s27, 1
      %p50 = por %p48, %p49
      %p52 = scmp.ne.s32.totalorder %s35, %s51
      %p53 = scmp.eq.s32.totalorder %s27, 0
      %p54 = por %p52, %p53
      %s56 = sadd.s32 %s55, 1
      %p59 = scmp.eq.s32.totalorder %s21, 1
      %p60 = scmp.ne.s32.totalorder %s55, %s57
      %p61 = scmp.eq.s32.totalorder %s21, 0
      %p62 = por %p60, %p61
      %p63 = scmp.ne.s32.totalorder %s55, %s57
      %p64 = scmp.eq.s32.totalorder %s26, 1
      %p65 = por %p63, %p64
      %p66 = scmp.ne.s32.totalorder %s57, %s58
      %p67 = scmp.eq.s32.totalorder %s26, 0
      %p68 = por %p66, %p67
      %p69 = scmp.ne.s32.totalorder %s57, %s58
      %p70 = scmp.eq.s32.totalorder %s27, 1
      %p71 = por %p69, %p70
      %p73 = scmp.ne.s32.totalorder %s58, %s72
      %p74 = scmp.eq.s32.totalorder %s27, 0
      %p75 = por %p73, %p74
      %s77 = sadd.s32 %s76, 1
      %p80 = scmp.eq.s32.totalorder %s21, 1
      %p81 = scmp.ne.s32.totalorder %s76, %s78
      %p82 = scmp.eq.s32.totalorder %s21, 0
      %p83 = por %p81, %p82
      %p84 = scmp.ne.s32.totalorder %s76, %s78
      %p85 = scmp.eq.s32.totalorder %s26, 1
      %p86 = por %p84, %p85
      %p87 = scmp.ne.s32.totalorder %s78, %s79
      %p88 = scmp.eq.s32.totalorder %s26, 0
      %p89 = por %p87, %p88
      %p90 = scmp.ne.s32.totalorder %s78, %s79
      %p91 = scmp.eq.s32.totalorder %s27, 1
      %p92 = por %p90, %p91
      %p94 = scmp.ne.s32.totalorder %s79, %s93
      %p95 = scmp.eq.s32.totalorder %s27, 0
      %p96 = por %p94, %p95
      %s98 = sadd.s32 %s97, 1
      %p101 = scmp.eq.s32.totalorder %s21, 1
      %p102 = scmp.ne.s32.totalorder %s97, %s99
      %p103 = scmp.eq.s32.totalorder %s21, 0
      %p104 = por %p102, %p103
      %p105 = scmp.ne.s32.totalorder %s97, %s99
      %p106 = scmp.eq.s32.totalorder %s26, 1
      %p107 = por %p105, %p106
      %p108 = scmp.ne.s32.totalorder %s99, %s100
      %p109 = scmp.eq.s32.totalorder %s26, 0
      %p110 = por %p108, %p109
      %p111 = scmp.ne.s32.totalorder %s99, %s100
      %p112 = scmp.eq.s32.totalorder %s27, 1
      %p113 = por %p111, %p112
      %p115 = scmp.ne.s32.totalorder %s100, %s114
      %p116 = scmp.eq.s32.totalorder %s27, 0
      %p117 = por %p115, %p116
      %s119 = sadd.s32 %s118, 1
      %p122 = scmp.eq.s32.totalorder %s21, 1
      %p123 = scmp.ne.s32.totalorder %s118, %s120
      %p124 = scmp.eq.s32.totalorder %s21, 0
      %p125 = por %p123, %p124
      %p126 = scmp.ne.s32.totalorder %s118, %s120
      %p127 = scmp.eq.s32.totalorder %s26, 1
      %p128 = por %p126, %p127
      %p129 = scmp.ne.s32.totalorder %s120, %s121
      %p130 = scmp.eq.s32.totalorder %s26, 0
      %p131 = por %p129, %p130
      %p132 = scmp.ne.s32.totalorder %s120, %s121
      %p133 = scmp.eq.s32.totalorder %s27, 1
      %p134 = por %p132, %p133
      %p136 = scmp.ne.s32.totalorder %s121, %s135
      %p137 = scmp.eq.s32.totalorder %s27, 0
      %p138 = por %p136, %p137
      %s140 = sadd.s32 %s139, 1
      %p143 = scmp.eq.s32.totalorder %s21, 1
      %p144 = scmp.ne.s32.totalorder %s139, %s141
      %p145 = scmp.eq.s32.totalorder %s21, 0
      %p146 = por %p144, %p145
      %p147 = scmp.ne.s32.totalorder %s139, %s141
      %p148 = scmp.eq.s32.totalorder %s26, 1
      %p149 = por %p147, %p148
      %p150 = scmp.ne.s32.totalorder %s141, %s142
      %p151 = scmp.eq.s32.totalorder %s26, 0
      %p152 = por %p150, %p151
      %p153 = scmp.ne.s32.totalorder %s141, %s142
      %p154 = scmp.eq.s32.totalorder %s27, 1
      %p155 = por %p153, %p154
      %p157 = scmp.ne.s32.totalorder %s142, %s156
      %p158 = scmp.eq.s32.totalorder %s27, 0
      %p159 = por %p157, %p158
      %s161 = sadd.s32 %s160, 1
      %p164 = scmp.eq.s32.totalorder %s21, 1
      %p165 = scmp.ne.s32.totalorder %s160, %s162
      %p166 = scmp.eq.s32.totalorder %s21, 0
      %p167 = por %p165, %p166
      %p168 = scmp.ne.s32.totalorder %s160, %s162
      %p169 = scmp.eq.s32.totalorder %s26, 1
      %p170 = por %p168, %p169
      %p171 = scmp.ne.s32.totalorder %s162, %s163
      %p172 = scmp.eq.s32.totalorder %s26, 0
      %p173 = por %p171, %p172
      %p174 = scmp.ne.s32.totalorder %s162, %s163
      %p175 = scmp.eq.s32.totalorder %s27, 1
      %p176 = por %p174, %p175
      %p178 = scmp.ne.s32.totalorder %s163, %s177
      %p179 = scmp.eq.s32.totalorder %s27, 0
      %p180 = por %p178, %p179
      %s182 = sadd.s32 %s181, 1
      %p185 = scmp.eq.s32.totalorder %s21, 1
      %p186 = scmp.ne.s32.totalorder %s181, %s183
      %p187 = scmp.eq.s32.totalorder %s21, 0
      %p188 = por %p186, %p187
      %p189 = scmp.ne.s32.totalorder %s181, %s183
      %p190 = scmp.eq.s32.totalorder %s26, 1
      %p191 = por %p189, %p190
      %p192 = scmp.ne.s32.totalorder %s183, %s184
      %p193 = scmp.eq.s32.totalorder %s26, 0
      %p194 = por %p192, %p193
      %p195 = scmp.ne.s32.totalorder %s183, %s184
      %p196 = scmp.eq.s32.totalorder %s27, 1
      %p197 = por %p195, %p196
      %p199 = scmp.ne.s32.totalorder %s184, %s198
      %p200 = scmp.eq.s32.totalorder %s27, 0
      %p201 = por %p199, %p200
      %s203 = sadd.s32 %s202, 1
      %p206 = scmp.eq.s32.totalorder %s21, 1
      %p207 = scmp.ne.s32.totalorder %s202, %s204
      %p208 = scmp.eq.s32.totalorder %s21, 0
      %p209 = por %p207, %p208
      %p210 = scmp.ne.s32.totalorder %s202, %s204
      %p211 = scmp.eq.s32.totalorder %s26, 1
      %p212 = por %p210, %p211
      %p213 = scmp.ne.s32.totalorder %s204, %s205
      %p214 = scmp.eq.s32.totalorder %s26, 0
      %p215 = por %p213, %p214
      %p216 = scmp.ne.s32.totalorder %s204, %s205
      %p217 = scmp.eq.s32.totalorder %s27, 1
      %p218 = por %p216, %p217
      %p220 = scmp.ne.s32.totalorder %s205, %s219
      %p221 = scmp.eq.s32.totalorder %s27, 0
      %p222 = por %p220, %p221
      %s224 = sadd.s32 %s223, 1
      %p227 = scmp.eq.s32.totalorder %s21, 1
      %p228 = scmp.ne.s32.totalorder %s223, %s225
      %p229 = scmp.eq.s32.totalorder %s21, 0
      %p230 = por %p228, %p229
      %p231 = scmp.ne.s32.totalorder %s223, %s225
      %p232 = scmp.eq.s32.totalorder %s26, 1
      %p233 = por %p231, %p232
      %p234 = scmp.ne.s32.totalorder %s225, %s226
      %p235 = scmp.eq.s32.totalorder %s26, 0
      %p236 = por %p234, %p235
      %p237 = scmp.ne.s32.totalorder %s225, %s226
      %p238 = scmp.eq.s32.totalorder %s27, 1
      %p239 = por %p237, %p238
      %p241 = scmp.ne.s32.totalorder %s226, %s240
      %p242 = scmp.eq.s32.totalorder %s27, 0
      %p243 = por %p241, %p242
      %s245 = sadd.s32 %s244, 1
      %p248 = scmp.eq.s32.totalorder %s21, 1
      %p249 = scmp.ne.s32.totalorder %s244, %s246
      %p250 = scmp.eq.s32.totalorder %s21, 0
      %p251 = por %p249, %p250
      %p252 = scmp.ne.s32.totalorder %s244, %s246
      %p253 = scmp.eq.s32.totalorder %s26, 1
      %p254 = por %p252, %p253
      %p255 = scmp.ne.s32.totalorder %s246, %s247
      %p256 = scmp.eq.s32.totalorder %s26, 0
      %p257 = por %p255, %p256
      %p258 = scmp.ne.s32.totalorder %s246, %s247
      %p259 = scmp.eq.s32.totalorder %s27, 1
      %p260 = por %p258, %p259
      %p262 = scmp.ne.s32.totalorder %s247, %s261
      %p263 = scmp.eq.s32.totalorder %s27, 0
      %p264 = por %p262, %p263
      %s266 = sadd.s32 %s265, 1
      %p269 = scmp.eq.s32.totalorder %s21, 1
      %p270 = scmp.ne.s32.totalorder %s265, %s267
      %p271 = scmp.eq.s32.totalorder %s21, 0
      %p272 = por %p270, %p271
      %p273 = scmp.ne.s32.totalorder %s265, %s267
      %p274 = scmp.eq.s32.totalorder %s26, 1
      %p275 = por %p273, %p274
      %p276 = scmp.ne.s32.totalorder %s267, %s268
      %p277 = scmp.eq.s32.totalorder %s26, 0
      %p278 = por %p276, %p277
      %p279 = scmp.ne.s32.totalorder %s267, %s268
      %p280 = scmp.eq.s32.totalorder %s27, 1
      %p281 = por %p279, %p280
      %p283 = scmp.ne.s32.totalorder %s268, %s282
      %p284 = scmp.eq.s32.totalorder %s27, 0
      %p285 = por %p283, %p284
      %s286 = ssub.s32 %s21, %s28
      %p287 = scmp.eq.s32.totalorder %s286, 0
      %s289 = sadd.s32 %s288, 1
      %s290 = scalar_select %p287, %s288, %s289
      %p293 = pneg %p287
      %p294 = scmp.eq.s32.totalorder %s21, 1
      %p295 = por %p293, %p294
      %p296 = scmp.ne.s32.totalorder %s288, %s291
      %p297 = scmp.eq.s32.totalorder %s21, 0
      %p298 = por %p296, %p297
      %p299 = scmp.ne.s32.totalorder %s288, %s291
      %p300 = scmp.eq.s32.totalorder %s26, 1
      %p301 = por %p299, %p300
      %p302 = scmp.ne.s32.totalorder %s291, %s292
      %p303 = scmp.eq.s32.totalorder %s26, 0
      %p304 = por %p302, %p303
      %p305 = scmp.ne.s32.totalorder %s291, %s292
      %p306 = scmp.eq.s32.totalorder %s27, 1
      %p307 = por %p305, %p306
      %p309 = scmp.ne.s32.totalorder %s292, %s308
      %p310 = scmp.eq.s32.totalorder %s27, 0
      %p311 = por %p309, %p310
      %p312 = scmp.le.s32.totalorder 1, %s21
      %p313 = scmp.lt.s32.totalorder %s21, 3
      %p314 = pnand %p312, %p313
      %p315 = pneg %p314
      // Predicated region
      $region9: #{tpu_custom_call.1} parent=5 // pred_check
        _
      $region10: #{tpu_custom_call.1} parent=5 // pred_check_branch
        %317 = sbr.rel (%p314) target = $region12
      $region11: #{tpu_custom_call.1} parent=5 // pred_region
        %s318 = ssub.s32 %s21, 1
        // Predicated region
        $region13: #{tpu_custom_call.1} parent=11 // pred_check
          %p319 = pneg %p68
        $region14: #{tpu_custom_call.1} parent=11 // pred_check_branch
          %321 = sbr.rel (%p319) target = $region16
        $region15: #{tpu_custom_call.1} parent=11 // pred_region
          _
        $region16: #{tpu_custom_call.1} parent=11 // pred_fallthru
          _
        // Predicated region
        $region17: #{tpu_custom_call.1} parent=11 // pred_check
          %p322 = pneg %p89
        $region18: #{tpu_custom_call.1} parent=11 // pred_check_branch
          %324 = sbr.rel (%p322) target = $region20
        $region19: #{tpu_custom_call.1} parent=11 // pred_region
          _
        $region20: #{tpu_custom_call.1} parent=11 // pred_fallthru
          _
        // Predicated region
        $region21: #{tpu_custom_call.1} parent=11 // pred_check
          %p325 = pneg %p110
        $region22: #{tpu_custom_call.1} parent=11 // pred_check_branch
          %327 = sbr.rel (%p325) target = $region24
        $region23: #{tpu_custom_call.1} parent=11 // pred_region
          _
        $region24: #{tpu_custom_call.1} parent=11 // pred_fallthru
          _
        // Predicated region
        $region25: #{tpu_custom_call.1} parent=11 // pred_check
          %p328 = pneg %p131
        $region26: #{tpu_custom_call.1} parent=11 // pred_check_branch
          %330 = sbr.rel (%p328) target = $region28
        $region27: #{tpu_custom_call.1} parent=11 // pred_region
          _
        $region28: #{tpu_custom_call.1} parent=11 // pred_fallthru
          _
        // Predicated region
        $region29: #{tpu_custom_call.1} parent=11 // pred_check
          %p331 = pneg %p152
        $region30: #{tpu_custom_call.1} parent=11 // pred_check_branch
          %333 = sbr.rel (%p331) target = $region32
        $region31: #{tpu_custom_call.1} parent=11 // pred_region
          _
        $region32: #{tpu_custom_call.1} parent=11 // pred_fallthru
          _
        // Predicated region
        $region33: #{tpu_custom_call.1} parent=11 // pred_check
          %p334 = pneg %p173
        $region34: #{tpu_custom_call.1} parent=11 // pred_check_branch
          %336 = sbr.rel (%p334) target = $region36
        $region35: #{tpu_custom_call.1} parent=11 // pred_region
          _
        $region36: #{tpu_custom_call.1} parent=11 // pred_fallthru
          _
        // Predicated region
        $region37: #{tpu_custom_call.1} parent=11 // pred_check
          %p337 = pneg %p194
        $region38: #{tpu_custom_call.1} parent=11 // pred_check_branch
          %339 = sbr.rel (%p337) target = $region40
        $region39: #{tpu_custom_call.1} parent=11 // pred_region
          _
        $region40: #{tpu_custom_call.1} parent=11 // pred_fallthru
          _
        // Predicated region
        $region41: #{tpu_custom_call.1} parent=11 // pred_check
          %p340 = pneg %p215
        $region42: #{tpu_custom_call.1} parent=11 // pred_check_branch
          %342 = sbr.rel (%p340) target = $region44
        $region43: #{tpu_custom_call.1} parent=11 // pred_region
          _
        $region44: #{tpu_custom_call.1} parent=11 // pred_fallthru
          _
        // Predicated region
        $region45: #{tpu_custom_call.1} parent=11 // pred_check
          %p343 = pneg %p236
        $region46: #{tpu_custom_call.1} parent=11 // pred_check_branch
          %345 = sbr.rel (%p343) target = $region48
        $region47: #{tpu_custom_call.1} parent=11 // pred_region
          _
        $region48: #{tpu_custom_call.1} parent=11 // pred_fallthru
          _
        // Predicated region
        $region49: #{tpu_custom_call.1} parent=11 // pred_check
          %p346 = pneg %p257
        $region50: #{tpu_custom_call.1} parent=11 // pred_check_branch
          %348 = sbr.rel (%p346) target = $region52
        $region51: #{tpu_custom_call.1} parent=11 // pred_region
          _
        $region52: #{tpu_custom_call.1} parent=11 // pred_fallthru
          _
        // Predicated region
        $region53: #{tpu_custom_call.1} parent=11 // pred_check
          %p349 = pneg %p278
        $region54: #{tpu_custom_call.1} parent=11 // pred_check_branch
          %351 = sbr.rel (%p349) target = $region56
        $region55: #{tpu_custom_call.1} parent=11 // pred_region
          _
        $region56: #{tpu_custom_call.1} parent=11 // pred_fallthru
          _
      $region12: #{tpu_custom_call.1} parent=5 // pred_fallthru
        _
      %p352 = scmp.lt.s32.totalorder %s21, 2
      // Predicated region
      $region57: #{tpu_custom_call.1} parent=5 // pred_check
        %p353 = pneg %p352
      $region58: #{tpu_custom_call.1} parent=5 // pred_check_branch
        %355 = sbr.rel (%p353) target = $region60
      $region59: #{tpu_custom_call.1} parent=5 // pred_region
        // Predicated region
        $region61: #{tpu_custom_call.1} parent=59 // pred_check
          %p356 = pneg %p41
        $region62: #{tpu_custom_call.1} parent=59 // pred_check_branch
          %358 = sbr.rel (%p356) target = $region64
        $region63: #{tpu_custom_call.1} parent=59 // pred_region
          %p359 = scmp.lt.s32.totalorder %s21, 1
          %s360 = scalar_select %p359, %s21, 1
          %s361 = smul.addr %s360, 11
          %s362 = smul.addr %s361, 8
          %s363 = scalar_lea.vmem %s0, %s362
        $region64: #{tpu_custom_call.1} parent=59 // pred_fallthru
          _
      $region60: #{tpu_custom_call.1} parent=5 // pred_fallthru
        _
      %p364 = scmp.le.s32.totalorder 1, %s21
      %p365 = scmp.lt.s32.totalorder %s21, 3
      %p366 = pnand %p364, %p365
      %p367 = pneg %p366
      // Predicated region
      $region65: #{tpu_custom_call.1} parent=5 // pred_check
        _
      $region66: #{tpu_custom_call.1} parent=5 // pred_check_branch
        %369 = sbr.rel (%p366) target = $region68
      $region67: #{tpu_custom_call.1} parent=5 // pred_region
        %s370 = ssub.s32 %s21, 1
        %p371 = scmp.lt.s32.totalorder %s26, 1
        %s372 = scalar_select %p371, %s26, 1
        %s373 = smul.addr %s372, 11
        %s374 = smul.addr %s373, 8
        %s375 = scalar_lea.vmem %s0, %s374
        %p376 = pneg %p47
        %p377 = pneg %p44
        %p378 = pneg %p68
        %p379 = pneg %p65
        %p380 = pneg %p89
        %p381 = pneg %p86
        %p382 = pneg %p110
        %p383 = pneg %p107
        %p384 = pneg %p131
        %p385 = pneg %p128
        %p386 = pneg %p152
        %p387 = pneg %p149
        %p388 = pneg %p173
        %p389 = pneg %p170
        %p390 = pneg %p194
        %p391 = pneg %p191
        %p392 = pneg %p215
        %p393 = pneg %p212
        %p394 = pneg %p236
        %p395 = pneg %p233
        %p396 = pneg %p257
        %p397 = pneg %p254
        %p398 = pneg %p278
        %p399 = pneg %p275
        %p400 = pneg %p304
        %p401 = pneg %p301
        %s402 = sand.u32 %s291, 1
        %s403 = scalar_lea.sflag [#allocation6], %s402
        %s404 = sand.u32 %s291, 1
        %s405 = smul.addr %s404, 88
        %s406 = scalar_lea.vmem [#allocation5], %s405
        %p407 = scmp.lt.s32.totalorder %s26, 1
        %s408 = scalar_select %p407, %s26, 1
        %s409 = smul.addr %s408, 11
        %s410 = smul.addr %s409, 8
        %s411 = scalar_lea.vmem %s0, %s410
        %v412 = vld [vmem:[%s411] sm:$0xff]
        %v413 = vld [vmem:[%s411 + $0x8] sm:$0xff]
        %v414 = vld [vmem:[%s411 + $0x10] sm:$0xff]
        %v415 = vld [vmem:[%s411 + $0x18] sm:$0xff]
        %v416 = vld [vmem:[%s411 + $0x20] sm:$0xff]
        %v417 = vld [vmem:[%s411 + $0x28] sm:$0xff]
        %v418 = vld [vmem:[%s411 + $0x30] sm:$0xff]
        %v419 = vld [vmem:[%s411 + $0x38] sm:$0xff]
        %v420 = vld [vmem:[%s411 + $0x40] sm:$0xff]
        %v421 = vld [vmem:[%s411 + $0x48] sm:$0xff]
        %v422 = vld [vmem:[%s411 + $0x50] sm:$0xff]
        %vm423 = vcmask 523264
        %424 = vst.msk [vmem:[#allocation2] sm:$0xff] %vm423, 0.0
        %v425 = vmul.f32 %v412, %v412
        %v426 = vmul.f32 %v413, %v413
        %v427 = vmul.f32 %v414, %v414
        %v428 = vmul.f32 %v415, %v415
        %v429 = vmul.f32 %v416, %v416
        %v430 = vmul.f32 %v417, %v417
        %v431 = vmul.f32 %v418, %v418
        %v432 = vmul.f32 %v419, %v419
        %v433 = vmul.f32 %v420, %v420
        %v434 = vmul.f32 %v421, %v421
        %v435 = vmul.f32 %v422, %v422
        %436 = vadd.xlane.f32.xlu0 %v425
        %v437 = vpop.xlane.xlu0 %436
        %438 = vadd.xlane.f32.xlu0 %v426
        %v439 = vpop.xlane.xlu0 %438
        %440 = vadd.xlane.f32.xlu0 %v427
        %v441 = vpop.xlane.xlu0 %440
        %442 = vadd.xlane.f32.xlu0 %v428
        %v443 = vpop.xlane.xlu0 %442
        %444 = vadd.xlane.f32.xlu0 %v429
        %v445 = vpop.xlane.xlu0 %444
        %446 = vadd.xlane.f32.xlu0 %v430
        %v447 = vpop.xlane.xlu0 %446
        %448 = vadd.xlane.f32.xlu0 %v431
        %v449 = vpop.xlane.xlu0 %448
        %450 = vadd.xlane.f32.xlu0 %v432
        %v451 = vpop.xlane.xlu0 %450
        %452 = vadd.xlane.f32.xlu0 %v433
        %v453 = vpop.xlane.xlu0 %452
        %454 = vadd.xlane.f32.xlu0 %v434
        %v455 = vpop.xlane.xlu0 %454
        %456 = vadd.xlane.f32.xlu0 %v435
        %v457 = vpop.xlane.xlu0 %456
        %v458 = vmul.f32 %v437, 0.03125
        %v459 = vmul.f32 %v439, 0.03125
        %v460 = vmul.f32 %v441, 0.03125
        %v461 = vmul.f32 %v443, 0.03125
        %v462 = vmul.f32 %v445, 0.03125
        %v463 = vmul.f32 %v447, 0.03125
        %v464 = vmul.f32 %v449, 0.03125
        %v465 = vmul.f32 %v451, 0.03125
        %v466 = vmul.f32 %v453, 0.03125
        %v467 = vmul.f32 %v455, 0.03125
        %v468 = vmul.f32 %v457, 0.03125
        %v469 = vadd.f32 %v458, 1e-05
        %v470 = vadd.f32 %v459, 1e-05
        %v471 = vadd.f32 %v460, 1e-05
        %v472 = vadd.f32 %v461, 1e-05
        %v473 = vadd.f32 %v462, 1e-05
        %v474 = vadd.f32 %v463, 1e-05
        %v475 = vadd.f32 %v464, 1e-05
        %v476 = vadd.f32 %v465, 1e-05
        %v477 = vadd.f32 %v466, 1e-05
        %v478 = vadd.f32 %v467, 1e-05
        %v479 = vadd.f32 %v468, 1e-05
        %v480 = vrsqrt.pop %v469
        %v481 = vmul.f32 %v480, %v469
        %v482 = vmul.f32 %v481, %v480
        %v483 = vmul.f32 0.5, %v482
        %v484 = vsub.f32 1.5, %v483
        %v485 = vmul.f32 %v480, %v484
        %vm486 = vweird.f32 %v469
        %vm487 = vweird.f32 %v480
        %vm488 = vmor %vm486, %vm487
        %v489 = vsel %vm488, %v480, %v485
        %v490 = vrsqrt.pop %v470
        %v491 = vmul.f32 %v490, %v470
        %v492 = vmul.f32 %v491, %v490
        %v493 = vmul.f32 0.5, %v492
        %v494 = vsub.f32 1.5, %v493
        %v495 = vmul.f32 %v490, %v494
        %vm496 = vweird.f32 %v470
        %vm497 = vweird.f32 %v490
        %vm498 = vmor %vm496, %vm497
        %v499 = vsel %vm498, %v490, %v495
        %v500 = vrsqrt.pop %v471
        %v501 = vmul.f32 %v500, %v471
        %v502 = vmul.f32 %v501, %v500
        %v503 = vmul.f32 0.5, %v502
        %v504 = vsub.f32 1.5, %v503
        %v505 = vmul.f32 %v500, %v504
        %vm506 = vweird.f32 %v471
        %vm507 = vweird.f32 %v500
        %vm508 = vmor %vm506, %vm507
        %v509 = vsel %vm508, %v500, %v505
        %v510 = vrsqrt.pop %v472
        %v511 = vmul.f32 %v510, %v472
        %v512 = vmul.f32 %v511, %v510
        %v513 = vmul.f32 0.5, %v512
        %v514 = vsub.f32 1.5, %v513
        %v515 = vmul.f32 %v510, %v514
        %vm516 = vweird.f32 %v472
        %vm517 = vweird.f32 %v510
        %vm518 = vmor %vm516, %vm517
        %v519 = vsel %vm518, %v510, %v515
        %v520 = vrsqrt.pop %v473
        %v521 = vmul.f32 %v520, %v473
        %v522 = vmul.f32 %v521, %v520
        %v523 = vmul.f32 0.5, %v522
        %v524 = vsub.f32 1.5, %v523
        %v525 = vmul.f32 %v520, %v524
        %vm526 = vweird.f32 %v473
        %vm527 = vweird.f32 %v520
        %vm528 = vmor %vm526, %vm527
        %v529 = vsel %vm528, %v520, %v525
        %v530 = vrsqrt.pop %v474
        %v531 = vmul.f32 %v530, %v474
        %v532 = vmul.f32 %v531, %v530
        %v533 = vmul.f32 0.5, %v532
        %v534 = vsub.f32 1.5, %v533
        %v535 = vmul.f32 %v530, %v534
        %vm536 = vweird.f32 %v474
        %vm537 = vweird.f32 %v530
        %vm538 = vmor %vm536, %vm537
        %v539 = vsel %vm538, %v530, %v535
        %v540 = vrsqrt.pop %v475
        %v541 = vmul.f32 %v540, %v475
        %v542 = vmul.f32 %v541, %v540
        %v543 = vmul.f32 0.5, %v542
        %v544 = vsub.f32 1.5, %v543
        %v545 = vmul.f32 %v540, %v544
        %vm546 = vweird.f32 %v475
        %vm547 = vweird.f32 %v540
        %vm548 = vmor %vm546, %vm547
        %v549 = vsel %vm548, %v540, %v545
        %v550 = vrsqrt.pop %v476
        %v551 = vmul.f32 %v550, %v476
        %v552 = vmul.f32 %v551, %v550
        %v553 = vmul.f32 0.5, %v552
        %v554 = vsub.f32 1.5, %v553
        %v555 = vmul.f32 %v550, %v554
        %vm556 = vweird.f32 %v476
        %vm557 = vweird.f32 %v550
        %vm558 = vmor %vm556, %vm557
        %v559 = vsel %vm558, %v550, %v555
        %v560 = vrsqrt.pop %v477
        %v561 = vmul.f32 %v560, %v477
        %v562 = vmul.f32 %v561, %v560
        %v563 = vmul.f32 0.5, %v562
        %v564 = vsub.f32 1.5, %v563
        %v565 = vmul.f32 %v560, %v564
        %vm566 = vweird.f32 %v477
        %vm567 = vweird.f32 %v560
        %vm568 = vmor %vm566, %vm567
        %v569 = vsel %vm568, %v560, %v565
        %v570 = vrsqrt.pop %v478
        %v571 = vmul.f32 %v570, %v478
        %v572 = vmul.f32 %v571, %v570
        %v573 = vmul.f32 0.5, %v572
        %v574 = vsub.f32 1.5, %v573
        %v575 = vmul.f32 %v570, %v574
        %vm576 = vweird.f32 %v478
        %vm577 = vweird.f32 %v570
        %vm578 = vmor %vm576, %vm577
        %v579 = vsel %vm578, %v570, %v575
        %v580 = vrsqrt.pop %v479
        %v581 = vmul.f32 %v580, %v479
        %v582 = vmul.f32 %v581, %v580
        %v583 = vmul.f32 0.5, %v582
        %v584 = vsub.f32 1.5, %v583
        %v585 = vmul.f32 %v580, %v584
        %vm586 = vweird.f32 %v479
        %vm587 = vweird.f32 %v580
        %vm588 = vmor %vm586, %vm587
        %v589 = vsel %vm588, %v580, %v585
        %v590 = vmul.f32 %v412, %v489
        %v591 = vmul.f32 %v413, %v499
        %v592 = vmul.f32 %v414, %v509
        %v593 = vmul.f32 %v415, %v519
        %v594 = vmul.f32 %v416, %v529
        %v595 = vmul.f32 %v417, %v539
        %v596 = vmul.f32 %v418, %v549
        %v597 = vmul.f32 %v419, %v559
        %v598 = vmul.f32 %v420, %v569
        %v599 = vmul.f32 %v421, %v579
        %v600 = vmul.f32 %v422, %v589
        %v601 = vld [vmem:[%s1] sm:$0x1]
        %v602 = vperm.slane %v601, 0
        %v603 = vmul.f32 %v590, %v602
        %v604 = vmul.f32 %v591, %v602
        %v605 = vmul.f32 %v592, %v602
        %v606 = vmul.f32 %v593, %v602
        %v607 = vmul.f32 %v594, %v602
        %v608 = vmul.f32 %v595, %v602
        %v609 = vmul.f32 %v596, %v602
        %v610 = vmul.f32 %v597, %v602
        %v611 = vmul.f32 %v598, %v602
        %v612 = vmul.f32 %v599, %v602
        %v613 = vmul.f32 %v600, %v602
        %v614 = vld [vmem:[%s2] sm:$0xff]
        %v615 = vld [vmem:[%s2 + $0x8] sm:$0xff]
        %v616 = vld [vmem:[%s2 + $0x10] sm:$0xff]
        %v617 = vld [vmem:[%s2 + $0x18] sm:$0xff]
        %v618 = vld [vmem:[%s2 + $0x20] sm:$0xff]
        %v619 = vld [vmem:[%s2 + $0x28] sm:$0xff]
        %v620 = vld [vmem:[%s2 + $0x30] sm:$0xff]
        %v621 = vld [vmem:[%s2 + $0x38] sm:$0xff]
        %v622 = vld [vmem:[%s2 + $0x40] sm:$0xff]
        %v623 = vld [vmem:[%s2 + $0x48] sm:$0xff]
        %v624 = vld [vmem:[%s2 + $0x50] sm:$0xff]
        %v625 = vld [vmem:[%s2 + $0x58] sm:$0xff]
        %v626 = vld [vmem:[%s2 + $0x60] sm:$0xff]
        %v627 = vld [vmem:[%s2 + $0x68] sm:$0xff]
        %v628 = vld [vmem:[%s2 + $0x70] sm:$0xff]
        %v629 = vld [vmem:[%s2 + $0x78] sm:$0xff]
        %v630 = vld [vmem:[%s2 + $0x80] sm:$0xff]
        %v631 = vld [vmem:[%s2 + $0x88] sm:$0xff]
        %v632 = vld [vmem:[%s2 + $0x90] sm:$0xff]
        %v633 = vld [vmem:[%s2 + $0x98] sm:$0xff]
        %v634 = vld [vmem:[%s2 + $0xa0] sm:$0xff]
        %v635 = vld [vmem:[%s2 + $0xa8] sm:$0xff]
        %v636 = vld [vmem:[%s2 + $0xb0] sm:$0xff]
        %v637 = vld [vmem:[%s2 + $0xb8] sm:$0xff]
        %v638 = vld [vmem:[%s2 + $0xc0] sm:$0xff]
        %v639 = vld [vmem:[%s2 + $0xc8] sm:$0xff]
        %v640 = vld [vmem:[%s2 + $0xd0] sm:$0xff]
        %v641 = vld [vmem:[%s2 + $0xd8] sm:$0xff]
        %v642 = vld [vmem:[%s2 + $0xe0] sm:$0xff]
        %v643 = vld [vmem:[%s2 + $0xe8] sm:$0xff]
        %v644 = vld [vmem:[%s2 + $0xf0] sm:$0xff]
        %v645 = vld [vmem:[%s2 + $0xf8] sm:$0xff]
        %646 = vmatpush.msra.mxu0 %v644
        %647 = vmatpush.msra.mxu0 %v642
        %648 = vmatpush.msra.mxu0 %v640
        %649 = vmatpush.msra.mxu0 %v638
        %650 = vmatpush.msra.mxu0 %v636
        %651 = vmatpush.msra.mxu0 %v634
        %652 = vmatpush.msra.mxu0 %v632
        %653 = vmatpush.msra.mxu0 %v630
        %654 = vmatpush.msra.mxu0 %v628
        %655 = vmatpush.msra.mxu0 %v626
        %656 = vmatpush.msra.mxu0 %v624
        %657 = vmatpush.msra.mxu0 %v622
        %658 = vmatpush.msra.mxu0 %v620
        %659 = vmatpush.msra.mxu0 %v618
        %660 = vmatpush.msra.mxu0 %v616
        %661 = vmatpush.msra.mxu0 %v614
        %662 = vmatmul.f32.gmra.mxu0 %v603
        %v663 = vpop.f32.mrf.mxu0
        %v664 = vadd.f32 0.0, %v663
        %665 = vmatmul.f32.gmra.mxu0 %v604
        %v666 = vpop.f32.mrf.mxu0
        %v667 = vadd.f32 0.0, %v666
        %668 = vmatmul.f32.gmra.mxu0 %v605
        %v669 = vpop.f32.mrf.mxu0
        %v670 = vadd.f32 0.0, %v669
        %671 = vmatmul.f32.gmra.mxu0 %v606
        %v672 = vpop.f32.mrf.mxu0
        %v673 = vadd.f32 0.0, %v672
        %674 = vmatmul.f32.gmra.mxu0 %v607
        %v675 = vpop.f32.mrf.mxu0
        %v676 = vadd.f32 0.0, %v675
        %677 = vmatmul.f32.gmra.mxu0 %v608
        %v678 = vpop.f32.mrf.mxu0
        %v679 = vadd.f32 0.0, %v678
        %680 = vmatmul.f32.gmra.mxu0 %v609
        %v681 = vpop.f32.mrf.mxu0
        %v682 = vadd.f32 0.0, %v681
        %683 = vmatmul.f32.gmra.mxu0 %v610
        %v684 = vpop.f32.mrf.mxu0
        %v685 = vadd.f32 0.0, %v684
        %686 = vmatmul.f32.gmra.mxu0 %v611
        %v687 = vpop.f32.mrf.mxu0
        %v688 = vadd.f32 0.0, %v687
        %689 = vmatmul.f32.gmra.mxu0 %v612
        %v690 = vpop.f32.mrf.mxu0
        %v691 = vadd.f32 0.0, %v690
        %692 = vmatmul.f32.gmra.mxu0 %v613
        %v693 = vpop.f32.mrf.mxu0
        %v694 = vadd.f32 0.0, %v693
        %695 = vdwg.mxu0
        %696 = vmatpush.msra.mxu0 %v645
        %697 = vmatpush.msra.mxu0 %v643
        %698 = vmatpush.msra.mxu0 %v641
        %699 = vmatpush.msra.mxu0 %v639
        %700 = vmatpush.msra.mxu0 %v637
        %701 = vmatpush.msra.mxu0 %v635
        %702 = vmatpush.msra.mxu0 %v633
        %703 = vmatpush.msra.mxu0 %v631
        %704 = vmatpush.msra.mxu0 %v629
        %705 = vmatpush.msra.mxu0 %v627
        %706 = vmatpush.msra.mxu0 %v625
        %707 = vmatpush.msra.mxu0 %v623
        %708 = vmatpush.msra.mxu0 %v621
        %709 = vmatpush.msra.mxu0 %v619
        %710 = vmatpush.msra.mxu0 %v617
        %711 = vmatpush.msra.mxu0 %v615
        %712 = vmatmul.f32.gmra.mxu0 %v603
        %v713 = vpop.f32.mrf.mxu0
        %v714 = vadd.f32 0.0, %v713
        %715 = vmatmul.f32.gmra.mxu0 %v604
        %v716 = vpop.f32.mrf.mxu0
        %v717 = vadd.f32 0.0, %v716
        %718 = vmatmul.f32.gmra.mxu0 %v605
        %v719 = vpop.f32.mrf.mxu0
        %v720 = vadd.f32 0.0, %v719
        %721 = vmatmul.f32.gmra.mxu0 %v606
        %v722 = vpop.f32.mrf.mxu0
        %v723 = vadd.f32 0.0, %v722
        %724 = vmatmul.f32.gmra.mxu0 %v607
        %v725 = vpop.f32.mrf.mxu0
        %v726 = vadd.f32 0.0, %v725
        %727 = vmatmul.f32.gmra.mxu0 %v608
        %v728 = vpop.f32.mrf.mxu0
        %v729 = vadd.f32 0.0, %v728
        %730 = vmatmul.f32.gmra.mxu0 %v609
        %v731 = vpop.f32.mrf.mxu0
        %v732 = vadd.f32 0.0, %v731
        %733 = vmatmul.f32.gmra.mxu0 %v610
        %v734 = vpop.f32.mrf.mxu0
        %v735 = vadd.f32 0.0, %v734
        %736 = vmatmul.f32.gmra.mxu0 %v611
        %v737 = vpop.f32.mrf.mxu0
        %v738 = vadd.f32 0.0, %v737
        %739 = vmatmul.f32.gmra.mxu0 %v612
        %v740 = vpop.f32.mrf.mxu0
        %v741 = vadd.f32 0.0, %v740
        %742 = vmatmul.f32.gmra.mxu0 %v613
        %v743 = vpop.f32.mrf.mxu0
        %v744 = vadd.f32 0.0, %v743
        %745 = vdwg.mxu0
        %746 = vst.msk [vmem:[#allocation2 + $0x8] sm:$0xff] %vm423, %v664
        %747 = vst.msk [vmem:[#allocation2 + $0x10] sm:$0xff] %vm423, %v667
        %748 = vst.msk [vmem:[#allocation2 + $0x18] sm:$0xff] %vm423, %v670
        %749 = vst.msk [vmem:[#allocation2 + $0x20] sm:$0xff] %vm423, %v673
        %750 = vst.msk [vmem:[#allocation2 + $0x28] sm:$0xff] %vm423, %v676
        %751 = vst.msk [vmem:[#allocation2 + $0x30] sm:$0xff] %vm423, %v679
        %752 = vst.msk [vmem:[#allocation2 + $0x38] sm:$0xff] %vm423, %v682
        %753 = vst.msk [vmem:[#allocation2 + $0x40] sm:$0xff] %vm423, %v685
        %754 = vst.msk [vmem:[#allocation2 + $0x48] sm:$0xff] %vm423, %v688
        %755 = vst.msk [vmem:[#allocation2 + $0x50] sm:$0xff] %vm423, %v691
        %756 = vst.msk [vmem:[#allocation2 + $0x58] sm:$0xff] %vm423, %v694
        %v757 = vld [vmem:[%s3] sm:$0x1]
        %v758 = vld [vmem:[#allocation2 + $0x5] sm:$0xff]
        %v759 = vld [vmem:[#allocation2 + $0xd] sm:$0xff]
        %v760 = vld [vmem:[#allocation2 + $0x15] sm:$0xff]
        %v761 = vld [vmem:[#allocation2 + $0x1d] sm:$0xff]
        %v762 = vld [vmem:[#allocation2 + $0x25] sm:$0xff]
        %v763 = vld [vmem:[#allocation2 + $0x2d] sm:$0xff]
        %v764 = vld [vmem:[#allocation2 + $0x35] sm:$0xff]
        %v765 = vld [vmem:[#allocation2 + $0x3d] sm:$0xff]
        %v766 = vld [vmem:[#allocation2 + $0x45] sm:$0xff]
        %v767 = vld [vmem:[#allocation2 + $0x4d] sm:$0xff]
        %v768 = vld [vmem:[#allocation2 + $0x55] sm:$0xff]
        %v769 = vperm.slane %v757, 0
        %v770 = vmul.f32 %v758, %v769
        %v771 = vmul.f32 %v759, %v769
        %v772 = vmul.f32 %v760, %v769
        %v773 = vmul.f32 %v761, %v769
        %v774 = vmul.f32 %v762, %v769
        %v775 = vmul.f32 %v763, %v769
        %v776 = vmul.f32 %v764, %v769
        %v777 = vmul.f32 %v765, %v769
        %v778 = vmul.f32 %v766, %v769
        %v779 = vmul.f32 %v767, %v769
        %v780 = vmul.f32 %v768, %v769
        %v781 = vadd.f32 %v770, 0.0
        %v782 = vadd.f32 %v771, 0.0
        %v783 = vadd.f32 %v772, 0.0
        %v784 = vadd.f32 %v773, 0.0
        %v785 = vadd.f32 %v774, 0.0
        %v786 = vadd.f32 %v775, 0.0
        %v787 = vadd.f32 %v776, 0.0
        %v788 = vadd.f32 %v777, 0.0
        %v789 = vadd.f32 %v778, 0.0
        %v790 = vadd.f32 %v779, 0.0
        %v791 = vadd.f32 %v780, 0.0
        %v792 = vld [vmem:[%s3 + $0x1] sm:$0x1]
        %v793 = vld [vmem:[#allocation2 + $0x6] sm:$0xff]
        %v794 = vld [vmem:[#allocation2 + $0xe] sm:$0xff]
        %v795 = vld [vmem:[#allocation2 + $0x16] sm:$0xff]
        %v796 = vld [vmem:[#allocation2 + $0x1e] sm:$0xff]
        %v797 = vld [vmem:[#allocation2 + $0x26] sm:$0xff]
        %v798 = vld [vmem:[#allocation2 + $0x2e] sm:$0xff]
        %v799 = vld [vmem:[#allocation2 + $0x36] sm:$0xff]
        %v800 = vld [vmem:[#allocation2 + $0x3e] sm:$0xff]
        %v801 = vld [vmem:[#allocation2 + $0x46] sm:$0xff]
        %v802 = vld [vmem:[#allocation2 + $0x4e] sm:$0xff]
        %v803 = vld [vmem:[#allocation2 + $0x56] sm:$0xff]
        %v804 = vperm.slane %v792, 0
        %v805 = vmul.f32 %v793, %v804
        %v806 = vmul.f32 %v794, %v804
        %v807 = vmul.f32 %v795, %v804
        %v808 = vmul.f32 %v796, %v804
        %v809 = vmul.f32 %v797, %v804
        %v810 = vmul.f32 %v798, %v804
        %v811 = vmul.f32 %v799, %v804
        %v812 = vmul.f32 %v800, %v804
        %v813 = vmul.f32 %v801, %v804
        %v814 = vmul.f32 %v802, %v804
        %v815 = vmul.f32 %v803, %v804
        %v816 = vadd.f32 %v781, %v805
        %v817 = vadd.f32 %v782, %v806
        %v818 = vadd.f32 %v783, %v807
        %v819 = vadd.f32 %v784, %v808
        %v820 = vadd.f32 %v785, %v809
        %v821 = vadd.f32 %v786, %v810
        %v822 = vadd.f32 %v787, %v811
        %v823 = vadd.f32 %v788, %v812
        %v824 = vadd.f32 %v789, %v813
        %v825 = vadd.f32 %v790, %v814
        %v826 = vadd.f32 %v791, %v815
        %v827 = vld [vmem:[%s3 + $0x2] sm:$0x1]
        %v828 = vld [vmem:[#allocation2 + $0x7] sm:$0xff]
        %v829 = vld [vmem:[#allocation2 + $0xf] sm:$0xff]
        %v830 = vld [vmem:[#allocation2 + $0x17] sm:$0xff]
        %v831 = vld [vmem:[#allocation2 + $0x1f] sm:$0xff]
        %v832 = vld [vmem:[#allocation2 + $0x27] sm:$0xff]
        %v833 = vld [vmem:[#allocation2 + $0x2f] sm:$0xff]
        %v834 = vld [vmem:[#allocation2 + $0x37] sm:$0xff]
        %v835 = vld [vmem:[#allocation2 + $0x3f] sm:$0xff]
        %v836 = vld [vmem:[#allocation2 + $0x47] sm:$0xff]
        %v837 = vld [vmem:[#allocation2 + $0x4f] sm:$0xff]
        %v838 = vld [vmem:[#allocation2 + $0x57] sm:$0xff]
        %v839 = vperm.slane %v827, 0
        %v840 = vmul.f32 %v828, %v839
        %v841 = vmul.f32 %v829, %v839
        %v842 = vmul.f32 %v830, %v839
        %v843 = vmul.f32 %v831, %v839
        %v844 = vmul.f32 %v832, %v839
        %v845 = vmul.f32 %v833, %v839
        %v846 = vmul.f32 %v834, %v839
        %v847 = vmul.f32 %v835, %v839
        %v848 = vmul.f32 %v836, %v839
        %v849 = vmul.f32 %v837, %v839
        %v850 = vmul.f32 %v838, %v839
        %v851 = vadd.f32 %v816, %v840
        %v852 = vadd.f32 %v817, %v841
        %v853 = vadd.f32 %v818, %v842
        %v854 = vadd.f32 %v819, %v843
        %v855 = vadd.f32 %v820, %v844
        %v856 = vadd.f32 %v821, %v845
        %v857 = vadd.f32 %v822, %v846
        %v858 = vadd.f32 %v823, %v847
        %v859 = vadd.f32 %v824, %v848
        %v860 = vadd.f32 %v825, %v849
        %v861 = vadd.f32 %v826, %v850
        %v862 = vld [vmem:[%s3 + $0x3] sm:$0x1]
        %v863 = vld [vmem:[#allocation2 + $0x8] sm:$0xff]
        %v864 = vld [vmem:[#allocation2 + $0x10] sm:$0xff]
        %v865 = vld [vmem:[#allocation2 + $0x18] sm:$0xff]
        %v866 = vld [vmem:[#allocation2 + $0x20] sm:$0xff]
        %v867 = vld [vmem:[#allocation2 + $0x28] sm:$0xff]
        %v868 = vld [vmem:[#allocation2 + $0x30] sm:$0xff]
        %v869 = vld [vmem:[#allocation2 + $0x38] sm:$0xff]
        %v870 = vld [vmem:[#allocation2 + $0x40] sm:$0xff]
        %v871 = vld [vmem:[#allocation2 + $0x48] sm:$0xff]
        %v872 = vld [vmem:[#allocation2 + $0x50] sm:$0xff]
        %v873 = vld [vmem:[#allocation2 + $0x58] sm:$0xff]
        %v874 = vperm.slane %v862, 0
        %v875 = vmul.f32 %v863, %v874
        %v876 = vmul.f32 %v864, %v874
        %v877 = vmul.f32 %v865, %v874
        %v878 = vmul.f32 %v866, %v874
        %v879 = vmul.f32 %v867, %v874
        %v880 = vmul.f32 %v868, %v874
        %v881 = vmul.f32 %v869, %v874
        %v882 = vmul.f32 %v870, %v874
        %v883 = vmul.f32 %v871, %v874
        %v884 = vmul.f32 %v872, %v874
        %v885 = vmul.f32 %v873, %v874
        %v886 = vadd.f32 %v851, %v875
        %v887 = vadd.f32 %v852, %v876
        %v888 = vadd.f32 %v853, %v877
        %v889 = vadd.f32 %v854, %v878
        %v890 = vadd.f32 %v855, %v879
        %v891 = vadd.f32 %v856, %v880
        %v892 = vadd.f32 %v857, %v881
        %v893 = vadd.f32 %v858, %v882
        %v894 = vadd.f32 %v859, %v883
        %v895 = vadd.f32 %v860, %v884
        %v896 = vadd.f32 %v861, %v885
        %v897 = vld [vmem:[%s4] sm:$0x1]
        %v898 = vperm.slane %v897, 0
        %v899 = vadd.f32 %v886, %v898
        %v900 = vadd.f32 %v887, %v898
        %v901 = vadd.f32 %v888, %v898
        %v902 = vadd.f32 %v889, %v898
        %v903 = vadd.f32 %v890, %v898
        %v904 = vadd.f32 %v891, %v898
        %v905 = vadd.f32 %v892, %v898
        %v906 = vadd.f32 %v893, %v898
        %v907 = vadd.f32 %v894, %v898
        %v908 = vadd.f32 %v895, %v898
        %v909 = vadd.f32 %v896, %v898
        %v910 = vsub.f32 0.0, %v899
        %v911 = vsub.f32 0.0, %v900
        %v912 = vsub.f32 0.0, %v901
        %v913 = vsub.f32 0.0, %v902
        %v914 = vsub.f32 0.0, %v903
        %v915 = vsub.f32 0.0, %v904
        %v916 = vsub.f32 0.0, %v905
        %v917 = vsub.f32 0.0, %v906
        %v918 = vsub.f32 0.0, %v907
        %v919 = vsub.f32 0.0, %v908
        %v920 = vsub.f32 0.0, %v909
        %v921 = vmul.f32 %v910, 1.442695
        %v922 = vpow.pop %v921
        %v923 = vmul.f32 %v911, 1.442695
        %v924 = vpow.pop %v923
        %v925 = vmul.f32 %v912, 1.442695
        %v926 = vpow.pop %v925
        %v927 = vmul.f32 %v913, 1.442695
        %v928 = vpow.pop %v927
        %v929 = vmul.f32 %v914, 1.442695
        %v930 = vpow.pop %v929
        %v931 = vmul.f32 %v915, 1.442695
        %v932 = vpow.pop %v931
        %v933 = vmul.f32 %v916, 1.442695
        %v934 = vpow.pop %v933
        %v935 = vmul.f32 %v917, 1.442695
        %v936 = vpow.pop %v935
        %v937 = vmul.f32 %v918, 1.442695
        %v938 = vpow.pop %v937
        %v939 = vmul.f32 %v919, 1.442695
        %v940 = vpow.pop %v939
        %v941 = vmul.f32 %v920, 1.442695
        %v942 = vpow.pop %v941
        %v943 = vadd.f32 %v922, 1.0
        %v944 = vadd.f32 %v924, 1.0
        %v945 = vadd.f32 %v926, 1.0
        %v946 = vadd.f32 %v928, 1.0
        %v947 = vadd.f32 %v930, 1.0
        %v948 = vadd.f32 %v932, 1.0
        %v949 = vadd.f32 %v934, 1.0
        %v950 = vadd.f32 %v936, 1.0
        %v951 = vadd.f32 %v938, 1.0
        %v952 = vadd.f32 %v940, 1.0
        %v953 = vadd.f32 %v942, 1.0
        %v954 = vrcp.pop %v943
        %v955 = vmul.f32 %v943, %v954
        %v956 = vsub.f32 1.0, %v955
        %v957 = vmul.f32 %v954, %v956
        %v958 = vadd.f32 %v954, %v957
        %vm959 = vweird.f32 %v943
        %vm960 = vweird.f32 %v954
        %vm961 = vmor %vm959, %vm960
        %v962 = vsel %vm961, %v954, %v958
        %v963 = vand.u32 2147483647, %v943
        %vm964 = vcmp.eq.f32.partialorder %v963, 8.507059e+37
        %v965 = vand.u32 %v943, 2147483648
        %v966 = vor.u32 1.1754944e-38, %v965
        %v967 = vsel %vm964, %v966, %v962
        %v968 = vmul.f32 1.0, %v967
        %v969 = vrcp.pop %v944
        %v970 = vmul.f32 %v944, %v969
        %v971 = vsub.f32 1.0, %v970
        %v972 = vmul.f32 %v969, %v971
        %v973 = vadd.f32 %v969, %v972
        %vm974 = vweird.f32 %v944
        %vm975 = vweird.f32 %v969
        %vm976 = vmor %vm974, %vm975
        %v977 = vsel %vm976, %v969, %v973
        %v978 = vand.u32 2147483647, %v944
        %vm979 = vcmp.eq.f32.partialorder %v978, 8.507059e+37
        %v980 = vand.u32 %v944, 2147483648
        %v981 = vor.u32 1.1754944e-38, %v980
        %v982 = vsel %vm979, %v981, %v977
        %v983 = vmul.f32 1.0, %v982
        %v984 = vrcp.pop %v945
        %v985 = vmul.f32 %v945, %v984
        %v986 = vsub.f32 1.0, %v985
        %v987 = vmul.f32 %v984, %v986
        %v988 = vadd.f32 %v984, %v987
        %vm989 = vweird.f32 %v945
        %vm990 = vweird.f32 %v984
        %vm991 = vmor %vm989, %vm990
        %v992 = vsel %vm991, %v984, %v988
        %v993 = vand.u32 2147483647, %v945
        %vm994 = vcmp.eq.f32.partialorder %v993, 8.507059e+37
        %v995 = vand.u32 %v945, 2147483648
        %v996 = vor.u32 1.1754944e-38, %v995
        %v997 = vsel %vm994, %v996, %v992
        %v998 = vmul.f32 1.0, %v997
        %v999 = vrcp.pop %v946
        %v1000 = vmul.f32 %v946, %v999
        %v1001 = vsub.f32 1.0, %v1000
        %v1002 = vmul.f32 %v999, %v1001
        %v1003 = vadd.f32 %v999, %v1002
        %vm1004 = vweird.f32 %v946
        %vm1005 = vweird.f32 %v999
        %vm1006 = vmor %vm1004, %vm1005
        %v1007 = vsel %vm1006, %v999, %v1003
        %v1008 = vand.u32 2147483647, %v946
        %vm1009 = vcmp.eq.f32.partialorder %v1008, 8.507059e+37
        %v1010 = vand.u32 %v946, 2147483648
        %v1011 = vor.u32 1.1754944e-38, %v1010
        %v1012 = vsel %vm1009, %v1011, %v1007
        %v1013 = vmul.f32 1.0, %v1012
        %v1014 = vrcp.pop %v947
        %v1015 = vmul.f32 %v947, %v1014
        %v1016 = vsub.f32 1.0, %v1015
        %v1017 = vmul.f32 %v1014, %v1016
        %v1018 = vadd.f32 %v1014, %v1017
        %vm1019 = vweird.f32 %v947
        %vm1020 = vweird.f32 %v1014
        %vm1021 = vmor %vm1019, %vm1020
        %v1022 = vsel %vm1021, %v1014, %v1018
        %v1023 = vand.u32 2147483647, %v947
        %vm1024 = vcmp.eq.f32.partialorder %v1023, 8.507059e+37
        %v1025 = vand.u32 %v947, 2147483648
        %v1026 = vor.u32 1.1754944e-38, %v1025
        %v1027 = vsel %vm1024, %v1026, %v1022
        %v1028 = vmul.f32 1.0, %v1027
        %v1029 = vrcp.pop %v948
        %v1030 = vmul.f32 %v948, %v1029
        %v1031 = vsub.f32 1.0, %v1030
        %v1032 = vmul.f32 %v1029, %v1031
        %v1033 = vadd.f32 %v1029, %v1032
        %vm1034 = vweird.f32 %v948
        %vm1035 = vweird.f32 %v1029
        %vm1036 = vmor %vm1034, %vm1035
        %v1037 = vsel %vm1036, %v1029, %v1033
        %v1038 = vand.u32 2147483647, %v948
        %vm1039 = vcmp.eq.f32.partialorder %v1038, 8.507059e+37
        %v1040 = vand.u32 %v948, 2147483648
        %v1041 = vor.u32 1.1754944e-38, %v1040
        %v1042 = vsel %vm1039, %v1041, %v1037
        %v1043 = vmul.f32 1.0, %v1042
        %v1044 = vrcp.pop %v949
        %v1045 = vmul.f32 %v949, %v1044
        %v1046 = vsub.f32 1.0, %v1045
        %v1047 = vmul.f32 %v1044, %v1046
        %v1048 = vadd.f32 %v1044, %v1047
        %vm1049 = vweird.f32 %v949
        %vm1050 = vweird.f32 %v1044
        %vm1051 = vmor %vm1049, %vm1050
        %v1052 = vsel %vm1051, %v1044, %v1048
        %v1053 = vand.u32 2147483647, %v949
        %vm1054 = vcmp.eq.f32.partialorder %v1053, 8.507059e+37
        %v1055 = vand.u32 %v949, 2147483648
        %v1056 = vor.u32 1.1754944e-38, %v1055
        %v1057 = vsel %vm1054, %v1056, %v1052
        %v1058 = vmul.f32 1.0, %v1057
        %v1059 = vrcp.pop %v950
        %v1060 = vmul.f32 %v950, %v1059
        %v1061 = vsub.f32 1.0, %v1060
        %v1062 = vmul.f32 %v1059, %v1061
        %v1063 = vadd.f32 %v1059, %v1062
        %vm1064 = vweird.f32 %v950
        %vm1065 = vweird.f32 %v1059
        %vm1066 = vmor %vm1064, %vm1065
        %v1067 = vsel %vm1066, %v1059, %v1063
        %v1068 = vand.u32 2147483647, %v950
        %vm1069 = vcmp.eq.f32.partialorder %v1068, 8.507059e+37
        %v1070 = vand.u32 %v950, 2147483648
        %v1071 = vor.u32 1.1754944e-38, %v1070
        %v1072 = vsel %vm1069, %v1071, %v1067
        %v1073 = vmul.f32 1.0, %v1072
        %v1074 = vrcp.pop %v951
        %v1075 = vmul.f32 %v951, %v1074
        %v1076 = vsub.f32 1.0, %v1075
        %v1077 = vmul.f32 %v1074, %v1076
        %v1078 = vadd.f32 %v1074, %v1077
        %vm1079 = vweird.f32 %v951
        %vm1080 = vweird.f32 %v1074
        %vm1081 = vmor %vm1079, %vm1080
        %v1082 = vsel %vm1081, %v1074, %v1078
        %v1083 = vand.u32 2147483647, %v951
        %vm1084 = vcmp.eq.f32.partialorder %v1083, 8.507059e+37
        %v1085 = vand.u32 %v951, 2147483648
        %v1086 = vor.u32 1.1754944e-38, %v1085
        %v1087 = vsel %vm1084, %v1086, %v1082
        %v1088 = vmul.f32 1.0, %v1087
        %v1089 = vrcp.pop %v952
        %v1090 = vmul.f32 %v952, %v1089
        %v1091 = vsub.f32 1.0, %v1090
        %v1092 = vmul.f32 %v1089, %v1091
        %v1093 = vadd.f32 %v1089, %v1092
        %vm1094 = vweird.f32 %v952
        %vm1095 = vweird.f32 %v1089
        %vm1096 = vmor %vm1094, %vm1095
        %v1097 = vsel %vm1096, %v1089, %v1093
        %v1098 = vand.u32 2147483647, %v952
        %vm1099 = vcmp.eq.f32.partialorder %v1098, 8.507059e+37
        %v1100 = vand.u32 %v952, 2147483648
        %v1101 = vor.u32 1.1754944e-38, %v1100
        %v1102 = vsel %vm1099, %v1101, %v1097
        %v1103 = vmul.f32 1.0, %v1102
        %v1104 = vrcp.pop %v953
        %v1105 = vmul.f32 %v953, %v1104
        %v1106 = vsub.f32 1.0, %v1105
        %v1107 = vmul.f32 %v1104, %v1106
        %v1108 = vadd.f32 %v1104, %v1107
        %vm1109 = vweird.f32 %v953
        %vm1110 = vweird.f32 %v1104
        %vm1111 = vmor %vm1109, %vm1110
        %v1112 = vsel %vm1111, %v1104, %v1108
        %v1113 = vand.u32 2147483647, %v953
        %vm1114 = vcmp.eq.f32.partialorder %v1113, 8.507059e+37
        %v1115 = vand.u32 %v953, 2147483648
        %v1116 = vor.u32 1.1754944e-38, %v1115
        %v1117 = vsel %vm1114, %v1116, %v1112
        %v1118 = vmul.f32 1.0, %v1117
        %v1119 = vmul.f32 %v899, %v968
        %v1120 = vmul.f32 %v900, %v983
        %v1121 = vmul.f32 %v901, %v998
        %v1122 = vmul.f32 %v902, %v1013
        %v1123 = vmul.f32 %v903, %v1028
        %v1124 = vmul.f32 %v904, %v1043
        %v1125 = vmul.f32 %v905, %v1058
        %v1126 = vmul.f32 %v906, %v1073
        %v1127 = vmul.f32 %v907, %v1088
        %v1128 = vmul.f32 %v908, %v1103
        %v1129 = vmul.f32 %v909, %v1118
        %v1130 = vld [vmem:[%s5] sm:$0xff]
        %v1131 = vld [vmem:[%s5 + $0x8] sm:$0xff]
        %v1132 = vld [vmem:[%s5 + $0x10] sm:$0xff]
        %v1133 = vld [vmem:[%s5 + $0x18] sm:$0xff]
        %v1134 = vld [vmem:[%s5 + $0x20] sm:$0xff]
        %v1135 = vld [vmem:[%s5 + $0x28] sm:$0xff]
        %v1136 = vld [vmem:[%s5 + $0x30] sm:$0xff]
        %v1137 = vld [vmem:[%s5 + $0x38] sm:$0xff]
        %v1138 = vld [vmem:[%s5 + $0x40] sm:$0xff]
        %v1139 = vld [vmem:[%s5 + $0x48] sm:$0xff]
        %v1140 = vld [vmem:[%s5 + $0x50] sm:$0xff]
        %v1141 = vld [vmem:[%s5 + $0x58] sm:$0xff]
        %v1142 = vld [vmem:[%s5 + $0x60] sm:$0xff]
        %v1143 = vld [vmem:[%s5 + $0x68] sm:$0xff]
        %v1144 = vld [vmem:[%s5 + $0x70] sm:$0xff]
        %v1145 = vld [vmem:[%s5 + $0x78] sm:$0xff]
        %v1146 = vld [vmem:[%s5 + $0x80] sm:$0xff]
        %v1147 = vld [vmem:[%s5 + $0x88] sm:$0xff]
        %v1148 = vld [vmem:[%s5 + $0x90] sm:$0xff]
        %v1149 = vld [vmem:[%s5 + $0x98] sm:$0xff]
        %v1150 = vld [vmem:[%s5 + $0xa0] sm:$0xff]
        %v1151 = vld [vmem:[%s5 + $0xa8] sm:$0xff]
        %v1152 = vld [vmem:[%s5 + $0xb0] sm:$0xff]
        %v1153 = vld [vmem:[%s5 + $0xb8] sm:$0xff]
        %v1155 = vsel %vm423, %v1119, 0
        %v1158 = vsel %vm423, %v1120, 0
        %v1161 = vsel %vm423, %v1121, 0
        %v1164 = vsel %vm423, %v1122, 0
        %v1167 = vsel %vm423, %v1123, 0
        %v1170 = vsel %vm423, %v1124, 0
        %v1173 = vsel %vm423, %v1125, 0
        %v1176 = vsel %vm423, %v1126, 0
        %v1179 = vsel %vm423, %v1127, 0
        %v1182 = vsel %vm423, %v1128, 0
        %v1185 = vsel %vm423, %v1129, 0
        %1187 = vmatpush.msra.mxu0 0.0
        %1188 = vmatpush.msra.mxu0 0.0
        %1189 = vmatpush.msra.mxu0 0.0
        %1190 = vmatpush.msra.mxu0 0.0
        %1191 = vmatpush.msra.mxu0 0.0
        %1192 = vmatpush.msra.mxu0 0.0
        %1193 = vmatpush.msra.mxu0 0.0
        %1194 = vmatpush.msra.mxu0 0.0
        %1195 = vmatpush.msra.mxu0 %v1151
        %1196 = vmatpush.msra.mxu0 %v1148
        %1197 = vmatpush.msra.mxu0 %v1145
        %1198 = vmatpush.msra.mxu0 %v1142
        %1199 = vmatpush.msra.mxu0 %v1139
        %1200 = vmatpush.msra.mxu0 %v1136
        %1201 = vmatpush.msra.mxu0 %v1133
        %1202 = vmatpush.msra.mxu0 %v1130
        %1203 = vmatmul.f32.gmra.mxu0 %v1155
        %v1204 = vpop.f32.mrf.mxu0
        %v1205 = vadd.f32 0.0, %v1204
        %1206 = vmatmul.f32.gmra.mxu0 %v1158
        %v1207 = vpop.f32.mrf.mxu0
        %v1208 = vadd.f32 0.0, %v1207
        %1209 = vmatmul.f32.gmra.mxu0 %v1161
        %v1210 = vpop.f32.mrf.mxu0
        %v1211 = vadd.f32 0.0, %v1210
        %1212 = vmatmul.f32.gmra.mxu0 %v1164
        %v1213 = vpop.f32.mrf.mxu0
        %v1214 = vadd.f32 0.0, %v1213
        %1215 = vmatmul.f32.gmra.mxu0 %v1167
        %v1216 = vpop.f32.mrf.mxu0
        %v1217 = vadd.f32 0.0, %v1216
        %1218 = vmatmul.f32.gmra.mxu0 %v1170
        %v1219 = vpop.f32.mrf.mxu0
        %v1220 = vadd.f32 0.0, %v1219
        %1221 = vmatmul.f32.gmra.mxu0 %v1173
        %v1222 = vpop.f32.mrf.mxu0
        %v1223 = vadd.f32 0.0, %v1222
        %1224 = vmatmul.f32.gmra.mxu0 %v1176
        %v1225 = vpop.f32.mrf.mxu0
        %v1226 = vadd.f32 0.0, %v1225
        %1227 = vmatmul.f32.gmra.mxu0 %v1179
        %v1228 = vpop.f32.mrf.mxu0
        %v1229 = vadd.f32 0.0, %v1228
        %1230 = vmatmul.f32.gmra.mxu0 %v1182
        %v1231 = vpop.f32.mrf.mxu0
        %v1232 = vadd.f32 0.0, %v1231
        %1233 = vmatmul.f32.gmra.mxu0 %v1185
        %v1234 = vpop.f32.mrf.mxu0
        %v1235 = vadd.f32 0.0, %v1234
        %1236 = vdwg.mxu0
        %1237 = vmatpush.msra.mxu0 0.0
        %1238 = vmatpush.msra.mxu0 0.0
        %1239 = vmatpush.msra.mxu0 0.0
        %1240 = vmatpush.msra.mxu0 0.0
        %1241 = vmatpush.msra.mxu0 0.0
        %1242 = vmatpush.msra.mxu0 0.0
        %1243 = vmatpush.msra.mxu0 0.0
        %1244 = vmatpush.msra.mxu0 0.0
        %1245 = vmatpush.msra.mxu0 %v1152
        %1246 = vmatpush.msra.mxu0 %v1149
        %1247 = vmatpush.msra.mxu0 %v1146
        %1248 = vmatpush.msra.mxu0 %v1143
        %1249 = vmatpush.msra.mxu0 %v1140
        %1250 = vmatpush.msra.mxu0 %v1137
        %1251 = vmatpush.msra.mxu0 %v1134
        %1252 = vmatpush.msra.mxu0 %v1131
        %1253 = vmatmul.f32.gmra.mxu0 %v1155
        %v1254 = vpop.f32.mrf.mxu0
        %v1255 = vadd.f32 0.0, %v1254
        %1256 = vmatmul.f32.gmra.mxu0 %v1158
        %v1257 = vpop.f32.mrf.mxu0
        %v1258 = vadd.f32 0.0, %v1257
        %1259 = vmatmul.f32.gmra.mxu0 %v1161
        %v1260 = vpop.f32.mrf.mxu0
        %v1261 = vadd.f32 0.0, %v1260
        %1262 = vmatmul.f32.gmra.mxu0 %v1164
        %v1263 = vpop.f32.mrf.mxu0
        %v1264 = vadd.f32 0.0, %v1263
        %1265 = vmatmul.f32.gmra.mxu0 %v1167
        %v1266 = vpop.f32.mrf.mxu0
        %v1267 = vadd.f32 0.0, %v1266
        %1268 = vmatmul.f32.gmra.mxu0 %v1170
        %v1269 = vpop.f32.mrf.mxu0
        %v1270 = vadd.f32 0.0, %v1269
        %1271 = vmatmul.f32.gmra.mxu0 %v1173
        %v1272 = vpop.f32.mrf.mxu0
        %v1273 = vadd.f32 0.0, %v1272
        %1274 = vmatmul.f32.gmra.mxu0 %v1176
        %v1275 = vpop.f32.mrf.mxu0
        %v1276 = vadd.f32 0.0, %v1275
        %1277 = vmatmul.f32.gmra.mxu0 %v1179
        %v1278 = vpop.f32.mrf.mxu0
        %v1279 = vadd.f32 0.0, %v1278
        %1280 = vmatmul.f32.gmra.mxu0 %v1182
        %v1281 = vpop.f32.mrf.mxu0
        %v1282 = vadd.f32 0.0, %v1281
        %1283 = vmatmul.f32.gmra.mxu0 %v1185
        %v1284 = vpop.f32.mrf.mxu0
        %v1285 = vadd.f32 0.0, %v1284
        %1286 = vdwg.mxu0
        %1287 = vmatpush.msra.mxu0 0.0
        %1288 = vmatpush.msra.mxu0 0.0
        %1289 = vmatpush.msra.mxu0 0.0
        %1290 = vmatpush.msra.mxu0 0.0
        %1291 = vmatpush.msra.mxu0 0.0
        %1292 = vmatpush.msra.mxu0 0.0
        %1293 = vmatpush.msra.mxu0 0.0
        %1294 = vmatpush.msra.mxu0 0.0
        %1295 = vmatpush.msra.mxu0 %v1153
        %1296 = vmatpush.msra.mxu0 %v1150
        %1297 = vmatpush.msra.mxu0 %v1147
        %1298 = vmatpush.msra.mxu0 %v1144
        %1299 = vmatpush.msra.mxu0 %v1141
        %1300 = vmatpush.msra.mxu0 %v1138
        %1301 = vmatpush.msra.mxu0 %v1135
        %1302 = vmatpush.msra.mxu0 %v1132
        %1303 = vmatmul.f32.gmra.mxu0 %v1155
        %v1304 = vpop.f32.mrf.mxu0
        %v1305 = vadd.f32 0.0, %v1304
        %1306 = vmatmul.f32.gmra.mxu0 %v1158
        %v1307 = vpop.f32.mrf.mxu0
        %v1308 = vadd.f32 0.0, %v1307
        %1309 = vmatmul.f32.gmra.mxu0 %v1161
        %v1310 = vpop.f32.mrf.mxu0
        %v1311 = vadd.f32 0.0, %v1310
        %1312 = vmatmul.f32.gmra.mxu0 %v1164
        %v1313 = vpop.f32.mrf.mxu0
        %v1314 = vadd.f32 0.0, %v1313
        %1315 = vmatmul.f32.gmra.mxu0 %v1167
        %v1316 = vpop.f32.mrf.mxu0
        %v1317 = vadd.f32 0.0, %v1316
        %1318 = vmatmul.f32.gmra.mxu0 %v1170
        %v1319 = vpop.f32.mrf.mxu0
        %v1320 = vadd.f32 0.0, %v1319
        %1321 = vmatmul.f32.gmra.mxu0 %v1173
        %v1322 = vpop.f32.mrf.mxu0
        %v1323 = vadd.f32 0.0, %v1322
        %1324 = vmatmul.f32.gmra.mxu0 %v1176
        %v1325 = vpop.f32.mrf.mxu0
        %v1326 = vadd.f32 0.0, %v1325
        %1327 = vmatmul.f32.gmra.mxu0 %v1179
        %v1328 = vpop.f32.mrf.mxu0
        %v1329 = vadd.f32 0.0, %v1328
        %1330 = vmatmul.f32.gmra.mxu0 %v1182
        %v1331 = vpop.f32.mrf.mxu0
        %v1332 = vadd.f32 0.0, %v1331
        %1333 = vmatmul.f32.gmra.mxu0 %v1185
        %v1334 = vpop.f32.mrf.mxu0
        %v1335 = vadd.f32 0.0, %v1334
        %1336 = vdwg.mxu0
        %v1337 = vld [vmem:[%s6] sm:$0x1]
        %v1338 = vperm.slane %v1337, 0
        %v1339 = vadd.f32 %v1205, %v1338
        %v1340 = vadd.f32 %v1208, %v1338
        %v1341 = vadd.f32 %v1211, %v1338
        %v1342 = vadd.f32 %v1214, %v1338
        %v1343 = vadd.f32 %v1217, %v1338
        %v1344 = vadd.f32 %v1220, %v1338
        %v1345 = vadd.f32 %v1223, %v1338
        %v1346 = vadd.f32 %v1226, %v1338
        %v1347 = vadd.f32 %v1229, %v1338
        %v1348 = vadd.f32 %v1232, %v1338
        %v1349 = vadd.f32 %v1235, %v1338
        %v1350 = vmax.f32 %v1339, 0.0
        %v1351 = vmax.f32 %v1340, 0.0
        %v1352 = vmax.f32 %v1341, 0.0
        %v1353 = vmax.f32 %v1342, 0.0
        %v1354 = vmax.f32 %v1343, 0.0
        %v1355 = vmax.f32 %v1344, 0.0
        %v1356 = vmax.f32 %v1345, 0.0
        %v1357 = vmax.f32 %v1346, 0.0
        %v1358 = vmax.f32 %v1347, 0.0
        %v1359 = vmax.f32 %v1348, 0.0
        %v1360 = vmax.f32 %v1349, 0.0
        %v1361 = vand.u32 2147483647, %v1339
        %v1362 = vand.u32 2147483647, %v1340
        %v1363 = vand.u32 2147483647, %v1341
        %v1364 = vand.u32 2147483647, %v1342
        %v1365 = vand.u32 2147483647, %v1343
        %v1366 = vand.u32 2147483647, %v1344
        %v1367 = vand.u32 2147483647, %v1345
        %v1368 = vand.u32 2147483647, %v1346
        %v1369 = vand.u32 2147483647, %v1347
        %v1370 = vand.u32 2147483647, %v1348
        %v1371 = vand.u32 2147483647, %v1349
        %v1372 = vsub.f32 0.0, %v1361
        %v1373 = vsub.f32 0.0, %v1362
        %v1374 = vsub.f32 0.0, %v1363
        %v1375 = vsub.f32 0.0, %v1364
        %v1376 = vsub.f32 0.0, %v1365
        %v1377 = vsub.f32 0.0, %v1366
        %v1378 = vsub.f32 0.0, %v1367
        %v1379 = vsub.f32 0.0, %v1368
        %v1380 = vsub.f32 0.0, %v1369
        %v1381 = vsub.f32 0.0, %v1370
        %v1382 = vsub.f32 0.0, %v1371
        %v1383 = vmul.f32 %v1372, 1.442695
        %v1384 = vpow.pop %v1383
        %v1385 = vmul.f32 %v1373, 1.442695
        %v1386 = vpow.pop %v1385
        %v1387 = vmul.f32 %v1374, 1.442695
        %v1388 = vpow.pop %v1387
        %v1389 = vmul.f32 %v1375, 1.442695
        %v1390 = vpow.pop %v1389
        %v1391 = vmul.f32 %v1376, 1.442695
        %v1392 = vpow.pop %v1391
        %v1393 = vmul.f32 %v1377, 1.442695
        %v1394 = vpow.pop %v1393
        %v1395 = vmul.f32 %v1378, 1.442695
        %v1396 = vpow.pop %v1395
        %v1397 = vmul.f32 %v1379, 1.442695
        %v1398 = vpow.pop %v1397
        %v1399 = vmul.f32 %v1380, 1.442695
        %v1400 = vpow.pop %v1399
        %v1401 = vmul.f32 %v1381, 1.442695
        %v1402 = vpow.pop %v1401
        %v1403 = vmul.f32 %v1382, 1.442695
        %v1404 = vpow.pop %v1403
        %v1405 = vadd.f32 %v1384, 1.0
        %v1406 = vadd.f32 %v1386, 1.0
        %v1407 = vadd.f32 %v1388, 1.0
        %v1408 = vadd.f32 %v1390, 1.0
        %v1409 = vadd.f32 %v1392, 1.0
        %v1410 = vadd.f32 %v1394, 1.0
        %v1411 = vadd.f32 %v1396, 1.0
        %v1412 = vadd.f32 %v1398, 1.0
        %v1413 = vadd.f32 %v1400, 1.0
        %v1414 = vadd.f32 %v1402, 1.0
        %v1415 = vadd.f32 %v1404, 1.0
        %v1416 = vlog2.pop %v1405
        %v1417 = vmul.f32 %v1416, 0.6931472
        %v1418 = vlog2.pop %v1406
        %v1419 = vmul.f32 %v1418, 0.6931472
        %v1420 = vlog2.pop %v1407
        %v1421 = vmul.f32 %v1420, 0.6931472
        %v1422 = vlog2.pop %v1408
        %v1423 = vmul.f32 %v1422, 0.6931472
        %v1424 = vlog2.pop %v1409
        %v1425 = vmul.f32 %v1424, 0.6931472
        %v1426 = vlog2.pop %v1410
        %v1427 = vmul.f32 %v1426, 0.6931472
        %v1428 = vlog2.pop %v1411
        %v1429 = vmul.f32 %v1428, 0.6931472
        %v1430 = vlog2.pop %v1412
        %v1431 = vmul.f32 %v1430, 0.6931472
        %v1432 = vlog2.pop %v1413
        %v1433 = vmul.f32 %v1432, 0.6931472
        %v1434 = vlog2.pop %v1414
        %v1435 = vmul.f32 %v1434, 0.6931472
        %v1436 = vlog2.pop %v1415
        %v1437 = vmul.f32 %v1436, 0.6931472
        %v1438 = vadd.f32 %v1350, %v1417
        %v1439 = vadd.f32 %v1351, %v1419
        %v1440 = vadd.f32 %v1352, %v1421
        %v1441 = vadd.f32 %v1353, %v1423
        %v1442 = vadd.f32 %v1354, %v1425
        %v1443 = vadd.f32 %v1355, %v1427
        %v1444 = vadd.f32 %v1356, %v1429
        %v1445 = vadd.f32 %v1357, %v1431
        %v1446 = vadd.f32 %v1358, %v1433
        %v1447 = vadd.f32 %v1359, %v1435
        %v1448 = vadd.f32 %v1360, %v1437
        %v1449 = vld [vmem:[%s7] ss:$2 sm:$0xff]
        %1461 = vrot.lane.b32.xlu0 %v1438, 64
        %v1462 = vpop.permute.xlu0 %1461
        %1463 = vrot.lane.b32.xlu0 %v1439, 64
        %v1464 = vpop.permute.xlu0 %1463
        %1465 = vrot.lane.b32.xlu0 %v1440, 64
        %v1466 = vpop.permute.xlu0 %1465
        %1467 = vrot.lane.b32.xlu0 %v1441, 64
        %v1468 = vpop.permute.xlu0 %1467
        %1469 = vrot.lane.b32.xlu0 %v1442, 64
        %v1470 = vpop.permute.xlu0 %1469
        %1471 = vrot.lane.b32.xlu0 %v1443, 64
        %v1472 = vpop.permute.xlu0 %1471
        %1473 = vrot.lane.b32.xlu0 %v1444, 64
        %v1474 = vpop.permute.xlu0 %1473
        %1475 = vrot.lane.b32.xlu0 %v1445, 64
        %v1476 = vpop.permute.xlu0 %1475
        %1477 = vrot.lane.b32.xlu0 %v1446, 64
        %v1478 = vpop.permute.xlu0 %1477
        %1479 = vrot.lane.b32.xlu0 %v1447, 64
        %v1480 = vpop.permute.xlu0 %1479
        %1481 = vrot.lane.b32.xlu0 %v1448, 64
        %v1482 = vpop.permute.xlu0 %1481
        %v1494 = vsel %vm423, %v1438, %v1462
        %v1495 = vsel %vm423, %v1439, %v1464
        %v1496 = vsel %vm423, %v1440, %v1466
        %v1497 = vsel %vm423, %v1441, %v1468
        %v1498 = vsel %vm423, %v1442, %v1470
        %v1499 = vsel %vm423, %v1443, %v1472
        %v1500 = vsel %vm423, %v1444, %v1474
        %v1501 = vsel %vm423, %v1445, %v1476
        %v1502 = vsel %vm423, %v1446, %v1478
        %v1503 = vsel %vm423, %v1447, %v1480
        %v1504 = vsel %vm423, %v1448, %v1482
        %v1506 = vperm.slane %v1449, 0
        %v1507 = vperm.slane %v1449, 1
        %v1508 = vperm.slane %v1449, 2
        %v1509 = vperm.slane %v1449, 3
        %v1510 = vperm.slane %v1449, 4
        %v1511 = vperm.slane %v1449, 5
        %v1512 = vperm.slane %v1449, 6
        %v1513 = vperm.slane %v1449, 7
        %v1522 = vmul.f32 %v1494, %v1506
        %v1523 = vmul.f32 %v1494, %v1507
        %v1524 = vmul.f32 %v1494, %v1508
        %v1525 = vmul.f32 %v1494, %v1509
        %v1526 = vmul.f32 %v1494, %v1510
        %v1527 = vmul.f32 %v1494, %v1511
        %v1528 = vmul.f32 %v1494, %v1512
        %v1529 = vmul.f32 %v1494, %v1513
        %v1530 = vmul.f32 %v1495, %v1506
        %v1531 = vmul.f32 %v1495, %v1507
        %v1532 = vmul.f32 %v1495, %v1508
        %v1533 = vmul.f32 %v1495, %v1509
        %v1534 = vmul.f32 %v1495, %v1510
        %v1535 = vmul.f32 %v1495, %v1511
        %v1536 = vmul.f32 %v1495, %v1512
        %v1537 = vmul.f32 %v1495, %v1513
        %v1538 = vmul.f32 %v1496, %v1506
        %v1539 = vmul.f32 %v1496, %v1507
        %v1540 = vmul.f32 %v1496, %v1508
        %v1541 = vmul.f32 %v1496, %v1509
        %v1542 = vmul.f32 %v1496, %v1510
        %v1543 = vmul.f32 %v1496, %v1511
        %v1544 = vmul.f32 %v1496, %v1512
        %v1545 = vmul.f32 %v1496, %v1513
        %v1546 = vmul.f32 %v1497, %v1506
        %v1547 = vmul.f32 %v1497, %v1507
        %v1548 = vmul.f32 %v1497, %v1508
        %v1549 = vmul.f32 %v1497, %v1509
        %v1550 = vmul.f32 %v1497, %v1510
        %v1551 = vmul.f32 %v1497, %v1511
        %v1552 = vmul.f32 %v1497, %v1512
        %v1553 = vmul.f32 %v1497, %v1513
        %v1554 = vmul.f32 %v1498, %v1506
        %v1555 = vmul.f32 %v1498, %v1507
        %v1556 = vmul.f32 %v1498, %v1508
        %v1557 = vmul.f32 %v1498, %v1509
        %v1558 = vmul.f32 %v1498, %v1510
        %v1559 = vmul.f32 %v1498, %v1511
        %v1560 = vmul.f32 %v1498, %v1512
        %v1561 = vmul.f32 %v1498, %v1513
        %v1562 = vmul.f32 %v1499, %v1506
        %v1563 = vmul.f32 %v1499, %v1507
        %v1564 = vmul.f32 %v1499, %v1508
        %v1565 = vmul.f32 %v1499, %v1509
        %v1566 = vmul.f32 %v1499, %v1510
        %v1567 = vmul.f32 %v1499, %v1511
        %v1568 = vmul.f32 %v1499, %v1512
        %v1569 = vmul.f32 %v1499, %v1513
        %v1570 = vmul.f32 %v1500, %v1506
        %v1571 = vmul.f32 %v1500, %v1507
        %v1572 = vmul.f32 %v1500, %v1508
        %v1573 = vmul.f32 %v1500, %v1509
        %v1574 = vmul.f32 %v1500, %v1510
        %v1575 = vmul.f32 %v1500, %v1511
        %v1576 = vmul.f32 %v1500, %v1512
        %v1577 = vmul.f32 %v1500, %v1513
        %v1578 = vmul.f32 %v1501, %v1506
        %v1579 = vmul.f32 %v1501, %v1507
        %v1580 = vmul.f32 %v1501, %v1508
        %v1581 = vmul.f32 %v1501, %v1509
        %v1582 = vmul.f32 %v1501, %v1510
        %v1583 = vmul.f32 %v1501, %v1511
        %v1584 = vmul.f32 %v1501, %v1512
        %v1585 = vmul.f32 %v1501, %v1513
        %v1586 = vmul.f32 %v1502, %v1506
        %v1587 = vmul.f32 %v1502, %v1507
        %v1588 = vmul.f32 %v1502, %v1508
        %v1589 = vmul.f32 %v1502, %v1509
        %v1590 = vmul.f32 %v1502, %v1510
        %v1591 = vmul.f32 %v1502, %v1511
        %v1592 = vmul.f32 %v1502, %v1512
        %v1593 = vmul.f32 %v1502, %v1513
        %v1594 = vmul.f32 %v1503, %v1506
        %v1595 = vmul.f32 %v1503, %v1507
        %v1596 = vmul.f32 %v1503, %v1508
        %v1597 = vmul.f32 %v1503, %v1509
        %v1598 = vmul.f32 %v1503, %v1510
        %v1599 = vmul.f32 %v1503, %v1511
        %v1600 = vmul.f32 %v1503, %v1512
        %v1601 = vmul.f32 %v1503, %v1513
        %v1602 = vmul.f32 %v1504, %v1506
        %v1603 = vmul.f32 %v1504, %v1507
        %v1604 = vmul.f32 %v1504, %v1508
        %v1605 = vmul.f32 %v1504, %v1509
        %v1606 = vmul.f32 %v1504, %v1510
        %v1607 = vmul.f32 %v1504, %v1511
        %v1608 = vmul.f32 %v1504, %v1512
        %v1609 = vmul.f32 %v1504, %v1513
        %v1610 = vmul.f32 %v1522, 1.442695
        %v1611 = vpow.pop %v1610
        %v1612 = vmul.f32 %v1523, 1.442695
        %v1613 = vpow.pop %v1612
        %v1614 = vmul.f32 %v1524, 1.442695
        %v1615 = vpow.pop %v1614
        %v1616 = vmul.f32 %v1525, 1.442695
        %v1617 = vpow.pop %v1616
        %v1618 = vmul.f32 %v1526, 1.442695
        %v1619 = vpow.pop %v1618
        %v1620 = vmul.f32 %v1527, 1.442695
        %v1621 = vpow.pop %v1620
        %v1622 = vmul.f32 %v1528, 1.442695
        %v1623 = vpow.pop %v1622
        %v1624 = vmul.f32 %v1529, 1.442695
        %v1625 = vpow.pop %v1624
        %v1626 = vmul.f32 %v1530, 1.442695
        %v1627 = vpow.pop %v1626
        %v1628 = vmul.f32 %v1531, 1.442695
        %v1629 = vpow.pop %v1628
        %v1630 = vmul.f32 %v1532, 1.442695
        %v1631 = vpow.pop %v1630
        %v1632 = vmul.f32 %v1533, 1.442695
        %v1633 = vpow.pop %v1632
        %v1634 = vmul.f32 %v1534, 1.442695
        %v1635 = vpow.pop %v1634
        %v1636 = vmul.f32 %v1535, 1.442695
        %v1637 = vpow.pop %v1636
        %v1638 = vmul.f32 %v1536, 1.442695
        %v1639 = vpow.pop %v1638
        %v1640 = vmul.f32 %v1537, 1.442695
        %v1641 = vpow.pop %v1640
        %v1642 = vmul.f32 %v1538, 1.442695
        %v1643 = vpow.pop %v1642
        %v1644 = vmul.f32 %v1539, 1.442695
        %v1645 = vpow.pop %v1644
        %v1646 = vmul.f32 %v1540, 1.442695
        %v1647 = vpow.pop %v1646
        %v1648 = vmul.f32 %v1541, 1.442695
        %v1649 = vpow.pop %v1648
        %v1650 = vmul.f32 %v1542, 1.442695
        %v1651 = vpow.pop %v1650
        %v1652 = vmul.f32 %v1543, 1.442695
        %v1653 = vpow.pop %v1652
        %v1654 = vmul.f32 %v1544, 1.442695
        %v1655 = vpow.pop %v1654
        %v1656 = vmul.f32 %v1545, 1.442695
        %v1657 = vpow.pop %v1656
        %v1658 = vmul.f32 %v1546, 1.442695
        %v1659 = vpow.pop %v1658
        %v1660 = vmul.f32 %v1547, 1.442695
        %v1661 = vpow.pop %v1660
        %v1662 = vmul.f32 %v1548, 1.442695
        %v1663 = vpow.pop %v1662
        %v1664 = vmul.f32 %v1549, 1.442695
        %v1665 = vpow.pop %v1664
        %v1666 = vmul.f32 %v1550, 1.442695
        %v1667 = vpow.pop %v1666
        %v1668 = vmul.f32 %v1551, 1.442695
        %v1669 = vpow.pop %v1668
        %v1670 = vmul.f32 %v1552, 1.442695
        %v1671 = vpow.pop %v1670
        %v1672 = vmul.f32 %v1553, 1.442695
        %v1673 = vpow.pop %v1672
        %v1674 = vmul.f32 %v1554, 1.442695
        %v1675 = vpow.pop %v1674
        %v1676 = vmul.f32 %v1555, 1.442695
        %v1677 = vpow.pop %v1676
        %v1678 = vmul.f32 %v1556, 1.442695
        %v1679 = vpow.pop %v1678
        %v1680 = vmul.f32 %v1557, 1.442695
        %v1681 = vpow.pop %v1680
        %v1682 = vmul.f32 %v1558, 1.442695
        %v1683 = vpow.pop %v1682
        %v1684 = vmul.f32 %v1559, 1.442695
        %v1685 = vpow.pop %v1684
        %v1686 = vmul.f32 %v1560, 1.442695
        %v1687 = vpow.pop %v1686
        %v1688 = vmul.f32 %v1561, 1.442695
        %v1689 = vpow.pop %v1688
        %v1690 = vmul.f32 %v1562, 1.442695
        %v1691 = vpow.pop %v1690
        %v1692 = vmul.f32 %v1563, 1.442695
        %v1693 = vpow.pop %v1692
        %v1694 = vmul.f32 %v1564, 1.442695
        %v1695 = vpow.pop %v1694
        %v1696 = vmul.f32 %v1565, 1.442695
        %v1697 = vpow.pop %v1696
        %v1698 = vmul.f32 %v1566, 1.442695
        %v1699 = vpow.pop %v1698
        %v1700 = vmul.f32 %v1567, 1.442695
        %v1701 = vpow.pop %v1700
        %v1702 = vmul.f32 %v1568, 1.442695
        %v1703 = vpow.pop %v1702
        %v1704 = vmul.f32 %v1569, 1.442695
        %v1705 = vpow.pop %v1704
        %v1706 = vmul.f32 %v1570, 1.442695
        %v1707 = vpow.pop %v1706
        %v1708 = vmul.f32 %v1571, 1.442695
        %v1709 = vpow.pop %v1708
        %v1710 = vmul.f32 %v1572, 1.442695
        %v1711 = vpow.pop %v1710
        %v1712 = vmul.f32 %v1573, 1.442695
        %v1713 = vpow.pop %v1712
        %v1714 = vmul.f32 %v1574, 1.442695
        %v1715 = vpow.pop %v1714
        %v1716 = vmul.f32 %v1575, 1.442695
        %v1717 = vpow.pop %v1716
        %v1718 = vmul.f32 %v1576, 1.442695
        %v1719 = vpow.pop %v1718
        %v1720 = vmul.f32 %v1577, 1.442695
        %v1721 = vpow.pop %v1720
        %v1722 = vmul.f32 %v1578, 1.442695
        %v1723 = vpow.pop %v1722
        %v1724 = vmul.f32 %v1579, 1.442695
        %v1725 = vpow.pop %v1724
        %v1726 = vmul.f32 %v1580, 1.442695
        %v1727 = vpow.pop %v1726
        %v1728 = vmul.f32 %v1581, 1.442695
        %v1729 = vpow.pop %v1728
        %v1730 = vmul.f32 %v1582, 1.442695
        %v1731 = vpow.pop %v1730
        %v1732 = vmul.f32 %v1583, 1.442695
        %v1733 = vpow.pop %v1732
        %v1734 = vmul.f32 %v1584, 1.442695
        %v1735 = vpow.pop %v1734
        %v1736 = vmul.f32 %v1585, 1.442695
        %v1737 = vpow.pop %v1736
        %v1738 = vmul.f32 %v1586, 1.442695
        %v1739 = vpow.pop %v1738
        %v1740 = vmul.f32 %v1587, 1.442695
        %v1741 = vpow.pop %v1740
        %v1742 = vmul.f32 %v1588, 1.442695
        %v1743 = vpow.pop %v1742
        %v1744 = vmul.f32 %v1589, 1.442695
        %v1745 = vpow.pop %v1744
        %v1746 = vmul.f32 %v1590, 1.442695
        %v1747 = vpow.pop %v1746
        %v1748 = vmul.f32 %v1591, 1.442695
        %v1749 = vpow.pop %v1748
        %v1750 = vmul.f32 %v1592, 1.442695
        %v1751 = vpow.pop %v1750
        %v1752 = vmul.f32 %v1593, 1.442695
        %v1753 = vpow.pop %v1752
        %v1754 = vmul.f32 %v1594, 1.442695
        %v1755 = vpow.pop %v1754
        %v1756 = vmul.f32 %v1595, 1.442695
        %v1757 = vpow.pop %v1756
        %v1758 = vmul.f32 %v1596, 1.442695
        %v1759 = vpow.pop %v1758
        %v1760 = vmul.f32 %v1597, 1.442695
        %v1761 = vpow.pop %v1760
        %v1762 = vmul.f32 %v1598, 1.442695
        %v1763 = vpow.pop %v1762
        %v1764 = vmul.f32 %v1599, 1.442695
        %v1765 = vpow.pop %v1764
        %v1766 = vmul.f32 %v1600, 1.442695
        %v1767 = vpow.pop %v1766
        %v1768 = vmul.f32 %v1601, 1.442695
        %v1769 = vpow.pop %v1768
        %v1770 = vmul.f32 %v1602, 1.442695
        %v1771 = vpow.pop %v1770
        %v1772 = vmul.f32 %v1603, 1.442695
        %v1773 = vpow.pop %v1772
        %v1774 = vmul.f32 %v1604, 1.442695
        %v1775 = vpow.pop %v1774
        %v1776 = vmul.f32 %v1605, 1.442695
        %v1777 = vpow.pop %v1776
        %v1778 = vmul.f32 %v1606, 1.442695
        %v1779 = vpow.pop %v1778
        %v1780 = vmul.f32 %v1607, 1.442695
        %v1781 = vpow.pop %v1780
        %v1782 = vmul.f32 %v1608, 1.442695
        %v1783 = vpow.pop %v1782
        %v1784 = vmul.f32 %v1609, 1.442695
        %v1785 = vpow.pop %v1784
        %1786 = vst [vmem:[#allocation3] sm:$0xff] %v1611
        %1787 = vst [vmem:[#allocation3 + $0x8] sm:$0xff] %v1613
        %1788 = vst [vmem:[#allocation3 + $0x10] sm:$0xff] %v1615
        %1789 = vst [vmem:[#allocation3 + $0x18] sm:$0xff] %v1617
        %1790 = vst [vmem:[#allocation3 + $0x20] sm:$0xff] %v1619
        %1791 = vst [vmem:[#allocation3 + $0x28] sm:$0xff] %v1621
        %1792 = vst [vmem:[#allocation3 + $0x30] sm:$0xff] %v1623
        %1793 = vst [vmem:[#allocation3 + $0x38] sm:$0xff] %v1625
        %1794 = vst [vmem:[#allocation3 + $0x40] sm:$0xff] %v1627
        %1795 = vst [vmem:[#allocation3 + $0x48] sm:$0xff] %v1629
        %1796 = vst [vmem:[#allocation3 + $0x50] sm:$0xff] %v1631
        %1797 = vst [vmem:[#allocation3 + $0x58] sm:$0xff] %v1633
        %1798 = vst [vmem:[#allocation3 + $0x60] sm:$0xff] %v1635
        %1799 = vst [vmem:[#allocation3 + $0x68] sm:$0xff] %v1637
        %1800 = vst [vmem:[#allocation3 + $0x70] sm:$0xff] %v1639
        %1801 = vst [vmem:[#allocation3 + $0x78] sm:$0xff] %v1641
        %1802 = vst [vmem:[#allocation3 + $0x80] sm:$0xff] %v1643
        %1803 = vst [vmem:[#allocation3 + $0x88] sm:$0xff] %v1645
        %1804 = vst [vmem:[#allocation3 + $0x90] sm:$0xff] %v1647
        %1805 = vst [vmem:[#allocation3 + $0x98] sm:$0xff] %v1649
        %1806 = vst [vmem:[#allocation3 + $0xa0] sm:$0xff] %v1651
        %1807 = vst [vmem:[#allocation3 + $0xa8] sm:$0xff] %v1653
        %1808 = vst [vmem:[#allocation3 + $0xb0] sm:$0xff] %v1655
        %1809 = vst [vmem:[#allocation3 + $0xb8] sm:$0xff] %v1657
        %1810 = vst [vmem:[#allocation3 + $0xc0] sm:$0xff] %v1659
        %1811 = vst [vmem:[#allocation3 + $0xc8] sm:$0xff] %v1661
        %1812 = vst [vmem:[#allocation3 + $0xd0] sm:$0xff] %v1663
        %1813 = vst [vmem:[#allocation3 + $0xd8] sm:$0xff] %v1665
        %1814 = vst [vmem:[#allocation3 + $0xe0] sm:$0xff] %v1667
        %1815 = vst [vmem:[#allocation3 + $0xe8] sm:$0xff] %v1669
        %1816 = vst [vmem:[#allocation3 + $0xf0] sm:$0xff] %v1671
        %1817 = vst [vmem:[#allocation3 + $0xf8] sm:$0xff] %v1673
        %1818 = vst [vmem:[#allocation3 + $0x100] sm:$0xff] %v1675
        %1819 = vst [vmem:[#allocation3 + $0x108] sm:$0xff] %v1677
        %1820 = vst [vmem:[#allocation3 + $0x110] sm:$0xff] %v1679
        %1821 = vst [vmem:[#allocation3 + $0x118] sm:$0xff] %v1681
        %1822 = vst [vmem:[#allocation3 + $0x120] sm:$0xff] %v1683
        %1823 = vst [vmem:[#allocation3 + $0x128] sm:$0xff] %v1685
        %1824 = vst [vmem:[#allocation3 + $0x130] sm:$0xff] %v1687
        %1825 = vst [vmem:[#allocation3 + $0x138] sm:$0xff] %v1689
        %1826 = vst [vmem:[#allocation3 + $0x140] sm:$0xff] %v1691
        %1827 = vst [vmem:[#allocation3 + $0x148] sm:$0xff] %v1693
        %1828 = vst [vmem:[#allocation3 + $0x150] sm:$0xff] %v1695
        %1829 = vst [vmem:[#allocation3 + $0x158] sm:$0xff] %v1697
        %1830 = vst [vmem:[#allocation3 + $0x160] sm:$0xff] %v1699
        %1831 = vst [vmem:[#allocation3 + $0x168] sm:$0xff] %v1701
        %1832 = vst [vmem:[#allocation3 + $0x170] sm:$0xff] %v1703
        %1833 = vst [vmem:[#allocation3 + $0x178] sm:$0xff] %v1705
        %1834 = vst [vmem:[#allocation3 + $0x180] sm:$0xff] %v1707
        %1835 = vst [vmem:[#allocation3 + $0x188] sm:$0xff] %v1709
        %1836 = vst [vmem:[#allocation3 + $0x190] sm:$0xff] %v1711
        %1837 = vst [vmem:[#allocation3 + $0x198] sm:$0xff] %v1713
        %1838 = vst [vmem:[#allocation3 + $0x1a0] sm:$0xff] %v1715
        %1839 = vst [vmem:[#allocation3 + $0x1a8] sm:$0xff] %v1717
        %1840 = vst [vmem:[#allocation3 + $0x1b0] sm:$0xff] %v1719
        %1841 = vst [vmem:[#allocation3 + $0x1b8] sm:$0xff] %v1721
        %1842 = vst [vmem:[#allocation3 + $0x1c0] sm:$0xff] %v1723
        %1843 = vst [vmem:[#allocation3 + $0x1c8] sm:$0xff] %v1725
        %1844 = vst [vmem:[#allocation3 + $0x1d0] sm:$0xff] %v1727
        %1845 = vst [vmem:[#allocation3 + $0x1d8] sm:$0xff] %v1729
        %1846 = vst [vmem:[#allocation3 + $0x1e0] sm:$0xff] %v1731
        %1847 = vst [vmem:[#allocation3 + $0x1e8] sm:$0xff] %v1733
        %1848 = vst [vmem:[#allocation3 + $0x1f0] sm:$0xff] %v1735
        %1849 = vst [vmem:[#allocation3 + $0x1f8] sm:$0xff] %v1737
        %1850 = vst [vmem:[#allocation3 + $0x200] sm:$0xff] %v1739
        %1851 = vst [vmem:[#allocation3 + $0x208] sm:$0xff] %v1741
        %1852 = vst [vmem:[#allocation3 + $0x210] sm:$0xff] %v1743
        %1853 = vst [vmem:[#allocation3 + $0x218] sm:$0xff] %v1745
        %1854 = vst [vmem:[#allocation3 + $0x220] sm:$0xff] %v1747
        %1855 = vst [vmem:[#allocation3 + $0x228] sm:$0xff] %v1749
        %1856 = vst [vmem:[#allocation3 + $0x230] sm:$0xff] %v1751
        %1857 = vst [vmem:[#allocation3 + $0x238] sm:$0xff] %v1753
        %1858 = vst [vmem:[#allocation3 + $0x240] sm:$0xff] %v1755
        %1859 = vst [vmem:[#allocation3 + $0x248] sm:$0xff] %v1757
        %1860 = vst [vmem:[#allocation3 + $0x250] sm:$0xff] %v1759
        %1861 = vst [vmem:[#allocation3 + $0x258] sm:$0xff] %v1761
        %1862 = vst [vmem:[#allocation3 + $0x260] sm:$0xff] %v1763
        %1863 = vst [vmem:[#allocation3 + $0x268] sm:$0xff] %v1765
        %1864 = vst [vmem:[#allocation3 + $0x270] sm:$0xff] %v1767
        %1865 = vst [vmem:[#allocation3 + $0x278] sm:$0xff] %v1769
        %1866 = vst [vmem:[#allocation3 + $0x280] sm:$0xff] %v1771
        %1867 = vst [vmem:[#allocation3 + $0x288] sm:$0xff] %v1773
        %1868 = vst [vmem:[#allocation3 + $0x290] sm:$0xff] %v1775
        %1869 = vst [vmem:[#allocation3 + $0x298] sm:$0xff] %v1777
        %1870 = vst [vmem:[#allocation3 + $0x2a0] sm:$0xff] %v1779
        %1871 = vst [vmem:[#allocation3 + $0x2a8] sm:$0xff] %v1781
        %1872 = vst [vmem:[#allocation3 + $0x2b0] sm:$0xff] %v1783
        %1873 = vst [vmem:[#allocation3 + $0x2b8] sm:$0xff] %v1785
        %v1874 = vld [vmem:[%s10] sm:$0xff]
        %v1875 = vld [vmem:[%s10 + $0x8] sm:$0xff]
        %v1876 = vld [vmem:[%s10 + $0x10] sm:$0xff]
        %v1877 = vld [vmem:[%s10 + $0x18] sm:$0xff]
        %v1878 = vld [vmem:[%s10 + $0x20] sm:$0xff]
        %v1879 = vld [vmem:[%s10 + $0x28] sm:$0xff]
        %v1880 = vld [vmem:[%s10 + $0x30] sm:$0xff]
        %v1881 = vld [vmem:[%s10 + $0x38] sm:$0xff]
        %v1882 = vld [vmem:[%s10 + $0x40] sm:$0xff]
        %v1883 = vld [vmem:[%s10 + $0x48] sm:$0xff]
        %v1884 = vld [vmem:[%s10 + $0x50] sm:$0xff]
        %v1885 = vld [vmem:[%s10 + $0x58] sm:$0xff]
        %v1886 = vld [vmem:[%s10 + $0x60] sm:$0xff]
        %v1887 = vld [vmem:[%s10 + $0x68] sm:$0xff]
        %v1888 = vld [vmem:[%s10 + $0x70] sm:$0xff]
        %v1889 = vld [vmem:[%s10 + $0x78] sm:$0xff]
        %vm1890 = vcmask 130048
        %v1892 = vsel %vm1890, %v1255, 0
        %v1895 = vsel %vm1890, %v1258, 0
        %v1898 = vsel %vm1890, %v1261, 0
        %v1901 = vsel %vm1890, %v1264, 0
        %v1904 = vsel %vm1890, %v1267, 0
        %v1907 = vsel %vm1890, %v1270, 0
        %v1910 = vsel %vm1890, %v1273, 0
        %v1913 = vsel %vm1890, %v1276, 0
        %v1916 = vsel %vm1890, %v1279, 0
        %v1919 = vsel %vm1890, %v1282, 0
        %v1922 = vsel %vm1890, %v1285, 0
        %1924 = vmatpush.msra.mxu0 0.0
        %1925 = vmatpush.msra.mxu0 0.0
        %1926 = vmatpush.msra.mxu0 0.0
        %1927 = vmatpush.msra.mxu0 0.0
        %1928 = vmatpush.msra.mxu0 0.0
        %1929 = vmatpush.msra.mxu0 0.0
        %1930 = vmatpush.msra.mxu0 0.0
        %1931 = vmatpush.msra.mxu0 0.0
        %1932 = vmatpush.msra.mxu0 0.0
        %1933 = vmatpush.msra.mxu0 0.0
        %1934 = vmatpush.msra.mxu0 0.0
        %1935 = vmatpush.msra.mxu0 0.0
        %1936 = vmatpush.msra.mxu0 0.0
        %1937 = vmatpush.msra.mxu0 0.0
        %1938 = vmatpush.msra.mxu0 %v1882
        %1939 = vmatpush.msra.mxu0 %v1874
        %1940 = vmatmul.f32.gmra.mxu0 %v1892
        %v1941 = vpop.f32.mrf.mxu0
        %v1942 = vadd.f32 0.0, %v1941
        %1943 = vmatmul.f32.gmra.mxu0 %v1895
        %v1944 = vpop.f32.mrf.mxu0
        %v1945 = vadd.f32 0.0, %v1944
        %1946 = vmatmul.f32.gmra.mxu0 %v1898
        %v1947 = vpop.f32.mrf.mxu0
        %v1948 = vadd.f32 0.0, %v1947
        %1949 = vmatmul.f32.gmra.mxu0 %v1901
        %v1950 = vpop.f32.mrf.mxu0
        %v1951 = vadd.f32 0.0, %v1950
        %1952 = vmatmul.f32.gmra.mxu0 %v1904
        %v1953 = vpop.f32.mrf.mxu0
        %v1954 = vadd.f32 0.0, %v1953
        %1955 = vmatmul.f32.gmra.mxu0 %v1907
        %v1956 = vpop.f32.mrf.mxu0
        %v1957 = vadd.f32 0.0, %v1956
        %1958 = vmatmul.f32.gmra.mxu0 %v1910
        %v1959 = vpop.f32.mrf.mxu0
        %v1960 = vadd.f32 0.0, %v1959
        %1961 = vmatmul.f32.gmra.mxu0 %v1913
        %v1962 = vpop.f32.mrf.mxu0
        %v1963 = vadd.f32 0.0, %v1962
        %1964 = vmatmul.f32.gmra.mxu0 %v1916
        %v1965 = vpop.f32.mrf.mxu0
        %v1966 = vadd.f32 0.0, %v1965
        %1967 = vmatmul.f32.gmra.mxu0 %v1919
        %v1968 = vpop.f32.mrf.mxu0
        %v1969 = vadd.f32 0.0, %v1968
        %1970 = vmatmul.f32.gmra.mxu0 %v1922
        %v1971 = vpop.f32.mrf.mxu0
        %v1972 = vadd.f32 0.0, %v1971
        %1973 = vdwg.mxu0
        %1974 = vmatpush.msra.mxu0 0.0
        %1975 = vmatpush.msra.mxu0 0.0
        %1976 = vmatpush.msra.mxu0 0.0
        %1977 = vmatpush.msra.mxu0 0.0
        %1978 = vmatpush.msra.mxu0 0.0
        %1979 = vmatpush.msra.mxu0 0.0
        %1980 = vmatpush.msra.mxu0 0.0
        %1981 = vmatpush.msra.mxu0 0.0
        %1982 = vmatpush.msra.mxu0 0.0
        %1983 = vmatpush.msra.mxu0 0.0
        %1984 = vmatpush.msra.mxu0 0.0
        %1985 = vmatpush.msra.mxu0 0.0
        %1986 = vmatpush.msra.mxu0 0.0
        %1987 = vmatpush.msra.mxu0 0.0
        %1988 = vmatpush.msra.mxu0 %v1883
        %1989 = vmatpush.msra.mxu0 %v1875
        %1990 = vmatmul.f32.gmra.mxu0 %v1892
        %v1991 = vpop.f32.mrf.mxu0
        %v1992 = vadd.f32 0.0, %v1991
        %1993 = vmatmul.f32.gmra.mxu0 %v1895
        %v1994 = vpop.f32.mrf.mxu0
        %v1995 = vadd.f32 0.0, %v1994
        %1996 = vmatmul.f32.gmra.mxu0 %v1898
        %v1997 = vpop.f32.mrf.mxu0
        %v1998 = vadd.f32 0.0, %v1997
        %1999 = vmatmul.f32.gmra.mxu0 %v1901
        %v2000 = vpop.f32.mrf.mxu0
        %v2001 = vadd.f32 0.0, %v2000
        %2002 = vmatmul.f32.gmra.mxu0 %v1904
        %v2003 = vpop.f32.mrf.mxu0
        %v2004 = vadd.f32 0.0, %v2003
        %2005 = vmatmul.f32.gmra.mxu0 %v1907
        %v2006 = vpop.f32.mrf.mxu0
        %v2007 = vadd.f32 0.0, %v2006
        %2008 = vmatmul.f32.gmra.mxu0 %v1910
        %v2009 = vpop.f32.mrf.mxu0
        %v2010 = vadd.f32 0.0, %v2009
        %2011 = vmatmul.f32.gmra.mxu0 %v1913
        %v2012 = vpop.f32.mrf.mxu0
        %v2013 = vadd.f32 0.0, %v2012
        %2014 = vmatmul.f32.gmra.mxu0 %v1916
        %v2015 = vpop.f32.mrf.mxu0
        %v2016 = vadd.f32 0.0, %v2015
        %2017 = vmatmul.f32.gmra.mxu0 %v1919
        %v2018 = vpop.f32.mrf.mxu0
        %v2019 = vadd.f32 0.0, %v2018
        %2020 = vmatmul.f32.gmra.mxu0 %v1922
        %v2021 = vpop.f32.mrf.mxu0
        %v2022 = vadd.f32 0.0, %v2021
        %2023 = vdwg.mxu0
        %2024 = vmatpush.msra.mxu0 0.0
        %2025 = vmatpush.msra.mxu0 0.0
        %2026 = vmatpush.msra.mxu0 0.0
        %2027 = vmatpush.msra.mxu0 0.0
        %2028 = vmatpush.msra.mxu0 0.0
        %2029 = vmatpush.msra.mxu0 0.0
        %2030 = vmatpush.msra.mxu0 0.0
        %2031 = vmatpush.msra.mxu0 0.0
        %2032 = vmatpush.msra.mxu0 0.0
        %2033 = vmatpush.msra.mxu0 0.0
        %2034 = vmatpush.msra.mxu0 0.0
        %2035 = vmatpush.msra.mxu0 0.0
        %2036 = vmatpush.msra.mxu0 0.0
        %2037 = vmatpush.msra.mxu0 0.0
        %2038 = vmatpush.msra.mxu0 %v1884
        %2039 = vmatpush.msra.mxu0 %v1876
        %2040 = vmatmul.f32.gmra.mxu0 %v1892
        %v2041 = vpop.f32.mrf.mxu0
        %v2042 = vadd.f32 0.0, %v2041
        %2043 = vmatmul.f32.gmra.mxu0 %v1895
        %v2044 = vpop.f32.mrf.mxu0
        %v2045 = vadd.f32 0.0, %v2044
        %2046 = vmatmul.f32.gmra.mxu0 %v1898
        %v2047 = vpop.f32.mrf.mxu0
        %v2048 = vadd.f32 0.0, %v2047
        %2049 = vmatmul.f32.gmra.mxu0 %v1901
        %v2050 = vpop.f32.mrf.mxu0
        %v2051 = vadd.f32 0.0, %v2050
        %2052 = vmatmul.f32.gmra.mxu0 %v1904
        %v2053 = vpop.f32.mrf.mxu0
        %v2054 = vadd.f32 0.0, %v2053
        %2055 = vmatmul.f32.gmra.mxu0 %v1907
        %v2056 = vpop.f32.mrf.mxu0
        %v2057 = vadd.f32 0.0, %v2056
        %2058 = vmatmul.f32.gmra.mxu0 %v1910
        %v2059 = vpop.f32.mrf.mxu0
        %v2060 = vadd.f32 0.0, %v2059
        %2061 = vmatmul.f32.gmra.mxu0 %v1913
        %v2062 = vpop.f32.mrf.mxu0
        %v2063 = vadd.f32 0.0, %v2062
        %2064 = vmatmul.f32.gmra.mxu0 %v1916
        %v2065 = vpop.f32.mrf.mxu0
        %v2066 = vadd.f32 0.0, %v2065
        %2067 = vmatmul.f32.gmra.mxu0 %v1919
        %v2068 = vpop.f32.mrf.mxu0
        %v2069 = vadd.f32 0.0, %v2068
        %2070 = vmatmul.f32.gmra.mxu0 %v1922
        %v2071 = vpop.f32.mrf.mxu0
        %v2072 = vadd.f32 0.0, %v2071
        %2073 = vdwg.mxu0
        %2074 = vmatpush.msra.mxu0 0.0
        %2075 = vmatpush.msra.mxu0 0.0
        %2076 = vmatpush.msra.mxu0 0.0
        %2077 = vmatpush.msra.mxu0 0.0
        %2078 = vmatpush.msra.mxu0 0.0
        %2079 = vmatpush.msra.mxu0 0.0
        %2080 = vmatpush.msra.mxu0 0.0
        %2081 = vmatpush.msra.mxu0 0.0
        %2082 = vmatpush.msra.mxu0 0.0
        %2083 = vmatpush.msra.mxu0 0.0
        %2084 = vmatpush.msra.mxu0 0.0
        %2085 = vmatpush.msra.mxu0 0.0
        %2086 = vmatpush.msra.mxu0 0.0
        %2087 = vmatpush.msra.mxu0 0.0
        %2088 = vmatpush.msra.mxu0 %v1885
        %2089 = vmatpush.msra.mxu0 %v1877
        %2090 = vmatmul.f32.gmra.mxu0 %v1892
        %v2091 = vpop.f32.mrf.mxu0
        %v2092 = vadd.f32 0.0, %v2091
        %2093 = vmatmul.f32.gmra.mxu0 %v1895
        %v2094 = vpop.f32.mrf.mxu0
        %v2095 = vadd.f32 0.0, %v2094
        %2096 = vmatmul.f32.gmra.mxu0 %v1898
        %v2097 = vpop.f32.mrf.mxu0
        %v2098 = vadd.f32 0.0, %v2097
        %2099 = vmatmul.f32.gmra.mxu0 %v1901
        %v2100 = vpop.f32.mrf.mxu0
        %v2101 = vadd.f32 0.0, %v2100
        %2102 = vmatmul.f32.gmra.mxu0 %v1904
        %v2103 = vpop.f32.mrf.mxu0
        %v2104 = vadd.f32 0.0, %v2103
        %2105 = vmatmul.f32.gmra.mxu0 %v1907
        %v2106 = vpop.f32.mrf.mxu0
        %v2107 = vadd.f32 0.0, %v2106
        %2108 = vmatmul.f32.gmra.mxu0 %v1910
        %v2109 = vpop.f32.mrf.mxu0
        %v2110 = vadd.f32 0.0, %v2109
        %2111 = vmatmul.f32.gmra.mxu0 %v1913
        %v2112 = vpop.f32.mrf.mxu0
        %v2113 = vadd.f32 0.0, %v2112
        %2114 = vmatmul.f32.gmra.mxu0 %v1916
        %v2115 = vpop.f32.mrf.mxu0
        %v2116 = vadd.f32 0.0, %v2115
        %2117 = vmatmul.f32.gmra.mxu0 %v1919
        %v2118 = vpop.f32.mrf.mxu0
        %v2119 = vadd.f32 0.0, %v2118
        %2120 = vmatmul.f32.gmra.mxu0 %v1922
        %v2121 = vpop.f32.mrf.mxu0
        %v2122 = vadd.f32 0.0, %v2121
        %2123 = vdwg.mxu0
        %2124 = vmatpush.msra.mxu0 0.0
        %2125 = vmatpush.msra.mxu0 0.0
        %2126 = vmatpush.msra.mxu0 0.0
        %2127 = vmatpush.msra.mxu0 0.0
        %2128 = vmatpush.msra.mxu0 0.0
        %2129 = vmatpush.msra.mxu0 0.0
        %2130 = vmatpush.msra.mxu0 0.0
        %2131 = vmatpush.msra.mxu0 0.0
        %2132 = vmatpush.msra.mxu0 0.0
        %2133 = vmatpush.msra.mxu0 0.0
        %2134 = vmatpush.msra.mxu0 0.0
        %2135 = vmatpush.msra.mxu0 0.0
        %2136 = vmatpush.msra.mxu0 0.0
        %2137 = vmatpush.msra.mxu0 0.0
        %2138 = vmatpush.msra.mxu0 %v1886
        %2139 = vmatpush.msra.mxu0 %v1878
        %2140 = vmatmul.f32.gmra.mxu0 %v1892
        %v2141 = vpop.f32.mrf.mxu0
        %v2142 = vadd.f32 0.0, %v2141
        %2143 = vmatmul.f32.gmra.mxu0 %v1895
        %v2144 = vpop.f32.mrf.mxu0
        %v2145 = vadd.f32 0.0, %v2144
        %2146 = vmatmul.f32.gmra.mxu0 %v1898
        %v2147 = vpop.f32.mrf.mxu0
        %v2148 = vadd.f32 0.0, %v2147
        %2149 = vmatmul.f32.gmra.mxu0 %v1901
        %v2150 = vpop.f32.mrf.mxu0
        %v2151 = vadd.f32 0.0, %v2150
        %2152 = vmatmul.f32.gmra.mxu0 %v1904
        %v2153 = vpop.f32.mrf.mxu0
        %v2154 = vadd.f32 0.0, %v2153
        %2155 = vmatmul.f32.gmra.mxu0 %v1907
        %v2156 = vpop.f32.mrf.mxu0
        %v2157 = vadd.f32 0.0, %v2156
        %2158 = vmatmul.f32.gmra.mxu0 %v1910
        %v2159 = vpop.f32.mrf.mxu0
        %v2160 = vadd.f32 0.0, %v2159
        %2161 = vmatmul.f32.gmra.mxu0 %v1913
        %v2162 = vpop.f32.mrf.mxu0
        %v2163 = vadd.f32 0.0, %v2162
        %2164 = vmatmul.f32.gmra.mxu0 %v1916
        %v2165 = vpop.f32.mrf.mxu0
        %v2166 = vadd.f32 0.0, %v2165
        %2167 = vmatmul.f32.gmra.mxu0 %v1919
        %v2168 = vpop.f32.mrf.mxu0
        %v2169 = vadd.f32 0.0, %v2168
        %2170 = vmatmul.f32.gmra.mxu0 %v1922
        %v2171 = vpop.f32.mrf.mxu0
        %v2172 = vadd.f32 0.0, %v2171
        %2173 = vdwg.mxu0
        %2174 = vmatpush.msra.mxu0 0.0
        %2175 = vmatpush.msra.mxu0 0.0
        %2176 = vmatpush.msra.mxu0 0.0
        %2177 = vmatpush.msra.mxu0 0.0
        %2178 = vmatpush.msra.mxu0 0.0
        %2179 = vmatpush.msra.mxu0 0.0
        %2180 = vmatpush.msra.mxu0 0.0
        %2181 = vmatpush.msra.mxu0 0.0
        %2182 = vmatpush.msra.mxu0 0.0
        %2183 = vmatpush.msra.mxu0 0.0
        %2184 = vmatpush.msra.mxu0 0.0
        %2185 = vmatpush.msra.mxu0 0.0
        %2186 = vmatpush.msra.mxu0 0.0
        %2187 = vmatpush.msra.mxu0 0.0
        %2188 = vmatpush.msra.mxu0 %v1887
        %2189 = vmatpush.msra.mxu0 %v1879
        %2190 = vmatmul.f32.gmra.mxu0 %v1892
        %v2191 = vpop.f32.mrf.mxu0
        %v2192 = vadd.f32 0.0, %v2191
        %2193 = vmatmul.f32.gmra.mxu0 %v1895
        %v2194 = vpop.f32.mrf.mxu0
        %v2195 = vadd.f32 0.0, %v2194
        %2196 = vmatmul.f32.gmra.mxu0 %v1898
        %v2197 = vpop.f32.mrf.mxu0
        %v2198 = vadd.f32 0.0, %v2197
        %2199 = vmatmul.f32.gmra.mxu0 %v1901
        %v2200 = vpop.f32.mrf.mxu0
        %v2201 = vadd.f32 0.0, %v2200
        %2202 = vmatmul.f32.gmra.mxu0 %v1904
        %v2203 = vpop.f32.mrf.mxu0
        %v2204 = vadd.f32 0.0, %v2203
        %2205 = vmatmul.f32.gmra.mxu0 %v1907
        %v2206 = vpop.f32.mrf.mxu0
        %v2207 = vadd.f32 0.0, %v2206
        %2208 = vmatmul.f32.gmra.mxu0 %v1910
        %v2209 = vpop.f32.mrf.mxu0
        %v2210 = vadd.f32 0.0, %v2209
        %2211 = vmatmul.f32.gmra.mxu0 %v1913
        %v2212 = vpop.f32.mrf.mxu0
        %v2213 = vadd.f32 0.0, %v2212
        %2214 = vmatmul.f32.gmra.mxu0 %v1916
        %v2215 = vpop.f32.mrf.mxu0
        %v2216 = vadd.f32 0.0, %v2215
        %2217 = vmatmul.f32.gmra.mxu0 %v1919
        %v2218 = vpop.f32.mrf.mxu0
        %v2219 = vadd.f32 0.0, %v2218
        %2220 = vmatmul.f32.gmra.mxu0 %v1922
        %v2221 = vpop.f32.mrf.mxu0
        %v2222 = vadd.f32 0.0, %v2221
        %2223 = vdwg.mxu0
        %2224 = vmatpush.msra.mxu0 0.0
        %2225 = vmatpush.msra.mxu0 0.0
        %2226 = vmatpush.msra.mxu0 0.0
        %2227 = vmatpush.msra.mxu0 0.0
        %2228 = vmatpush.msra.mxu0 0.0
        %2229 = vmatpush.msra.mxu0 0.0
        %2230 = vmatpush.msra.mxu0 0.0
        %2231 = vmatpush.msra.mxu0 0.0
        %2232 = vmatpush.msra.mxu0 0.0
        %2233 = vmatpush.msra.mxu0 0.0
        %2234 = vmatpush.msra.mxu0 0.0
        %2235 = vmatpush.msra.mxu0 0.0
        %2236 = vmatpush.msra.mxu0 0.0
        %2237 = vmatpush.msra.mxu0 0.0
        %2238 = vmatpush.msra.mxu0 %v1888
        %2239 = vmatpush.msra.mxu0 %v1880
        %2240 = vmatmul.f32.gmra.mxu0 %v1892
        %v2241 = vpop.f32.mrf.mxu0
        %v2242 = vadd.f32 0.0, %v2241
        %2243 = vmatmul.f32.gmra.mxu0 %v1895
        %v2244 = vpop.f32.mrf.mxu0
        %v2245 = vadd.f32 0.0, %v2244
        %2246 = vmatmul.f32.gmra.mxu0 %v1898
        %v2247 = vpop.f32.mrf.mxu0
        %v2248 = vadd.f32 0.0, %v2247
        %2249 = vmatmul.f32.gmra.mxu0 %v1901
        %v2250 = vpop.f32.mrf.mxu0
        %v2251 = vadd.f32 0.0, %v2250
        %2252 = vmatmul.f32.gmra.mxu0 %v1904
        %v2253 = vpop.f32.mrf.mxu0
        %v2254 = vadd.f32 0.0, %v2253
        %2255 = vmatmul.f32.gmra.mxu0 %v1907
        %v2256 = vpop.f32.mrf.mxu0
        %v2257 = vadd.f32 0.0, %v2256
        %2258 = vmatmul.f32.gmra.mxu0 %v1910
        %v2259 = vpop.f32.mrf.mxu0
        %v2260 = vadd.f32 0.0, %v2259
        %2261 = vmatmul.f32.gmra.mxu0 %v1913
        %v2262 = vpop.f32.mrf.mxu0
        %v2263 = vadd.f32 0.0, %v2262
        %2264 = vmatmul.f32.gmra.mxu0 %v1916
        %v2265 = vpop.f32.mrf.mxu0
        %v2266 = vadd.f32 0.0, %v2265
        %2267 = vmatmul.f32.gmra.mxu0 %v1919
        %v2268 = vpop.f32.mrf.mxu0
        %v2269 = vadd.f32 0.0, %v2268
        %2270 = vmatmul.f32.gmra.mxu0 %v1922
        %v2271 = vpop.f32.mrf.mxu0
        %v2272 = vadd.f32 0.0, %v2271
        %2273 = vdwg.mxu0
        %2274 = vmatpush.msra.mxu0 0.0
        %2275 = vmatpush.msra.mxu0 0.0
        %2276 = vmatpush.msra.mxu0 0.0
        %2277 = vmatpush.msra.mxu0 0.0
        %2278 = vmatpush.msra.mxu0 0.0
        %2279 = vmatpush.msra.mxu0 0.0
        %2280 = vmatpush.msra.mxu0 0.0
        %2281 = vmatpush.msra.mxu0 0.0
        %2282 = vmatpush.msra.mxu0 0.0
        %2283 = vmatpush.msra.mxu0 0.0
        %2284 = vmatpush.msra.mxu0 0.0
        %2285 = vmatpush.msra.mxu0 0.0
        %2286 = vmatpush.msra.mxu0 0.0
        %2287 = vmatpush.msra.mxu0 0.0
        %2288 = vmatpush.msra.mxu0 %v1889
        %2289 = vmatpush.msra.mxu0 %v1881
        %2290 = vmatmul.f32.gmra.mxu0 %v1892
        %v2291 = vpop.f32.mrf.mxu0
        %v2292 = vadd.f32 0.0, %v2291
        %2293 = vmatmul.f32.gmra.mxu0 %v1895
        %v2294 = vpop.f32.mrf.mxu0
        %v2295 = vadd.f32 0.0, %v2294
        %2296 = vmatmul.f32.gmra.mxu0 %v1898
        %v2297 = vpop.f32.mrf.mxu0
        %v2298 = vadd.f32 0.0, %v2297
        %2299 = vmatmul.f32.gmra.mxu0 %v1901
        %v2300 = vpop.f32.mrf.mxu0
        %v2301 = vadd.f32 0.0, %v2300
        %2302 = vmatmul.f32.gmra.mxu0 %v1904
        %v2303 = vpop.f32.mrf.mxu0
        %v2304 = vadd.f32 0.0, %v2303
        %2305 = vmatmul.f32.gmra.mxu0 %v1907
        %v2306 = vpop.f32.mrf.mxu0
        %v2307 = vadd.f32 0.0, %v2306
        %2308 = vmatmul.f32.gmra.mxu0 %v1910
        %v2309 = vpop.f32.mrf.mxu0
        %v2310 = vadd.f32 0.0, %v2309
        %2311 = vmatmul.f32.gmra.mxu0 %v1913
        %v2312 = vpop.f32.mrf.mxu0
        %v2313 = vadd.f32 0.0, %v2312
        %2314 = vmatmul.f32.gmra.mxu0 %v1916
        %v2315 = vpop.f32.mrf.mxu0
        %v2316 = vadd.f32 0.0, %v2315
        %2317 = vmatmul.f32.gmra.mxu0 %v1919
        %v2318 = vpop.f32.mrf.mxu0
        %v2319 = vadd.f32 0.0, %v2318
        %2320 = vmatmul.f32.gmra.mxu0 %v1922
        %v2321 = vpop.f32.mrf.mxu0
        %v2322 = vadd.f32 0.0, %v2321
        %2323 = vdwg.mxu0
        %v2324 = vmul.f32 %v1438, %v1119
        %v2325 = vmul.f32 %v1439, %v1120
        %v2326 = vmul.f32 %v1440, %v1121
        %v2327 = vmul.f32 %v1441, %v1122
        %v2328 = vmul.f32 %v1442, %v1123
        %v2329 = vmul.f32 %v1443, %v1124
        %v2330 = vmul.f32 %v1444, %v1125
        %v2331 = vmul.f32 %v1445, %v1126
        %v2332 = vmul.f32 %v1446, %v1127
        %v2333 = vmul.f32 %v1447, %v1128
        %v2334 = vmul.f32 %v1448, %v1129
        %2346 = vrot.lane.b32.xlu0 %v2324, 64
        %v2347 = vpop.permute.xlu0 %2346
        %2348 = vrot.lane.b32.xlu0 %v2325, 64
        %v2349 = vpop.permute.xlu0 %2348
        %2350 = vrot.lane.b32.xlu0 %v2326, 64
        %v2351 = vpop.permute.xlu0 %2350
        %2352 = vrot.lane.b32.xlu0 %v2327, 64
        %v2353 = vpop.permute.xlu0 %2352
        %2354 = vrot.lane.b32.xlu0 %v2328, 64
        %v2355 = vpop.permute.xlu0 %2354
        %2356 = vrot.lane.b32.xlu0 %v2329, 64
        %v2357 = vpop.permute.xlu0 %2356
        %2358 = vrot.lane.b32.xlu0 %v2330, 64
        %v2359 = vpop.permute.xlu0 %2358
        %2360 = vrot.lane.b32.xlu0 %v2331, 64
        %v2361 = vpop.permute.xlu0 %2360
        %2362 = vrot.lane.b32.xlu0 %v2332, 64
        %v2363 = vpop.permute.xlu0 %2362
        %2364 = vrot.lane.b32.xlu0 %v2333, 64
        %v2365 = vpop.permute.xlu0 %2364
        %2366 = vrot.lane.b32.xlu0 %v2334, 64
        %v2367 = vpop.permute.xlu0 %2366
        %v2379 = vsel %vm423, %v2324, %v2347
        %v2380 = vsel %vm423, %v2325, %v2349
        %v2381 = vsel %vm423, %v2326, %v2351
        %v2382 = vsel %vm423, %v2327, %v2353
        %v2383 = vsel %vm423, %v2328, %v2355
        %v2384 = vsel %vm423, %v2329, %v2357
        %v2385 = vsel %vm423, %v2330, %v2359
        %v2386 = vsel %vm423, %v2331, %v2361
        %v2387 = vsel %vm423, %v2332, %v2363
        %v2388 = vsel %vm423, %v2333, %v2365
        %v2389 = vsel %vm423, %v2334, %v2367
        %v2390 = vmul.f32 %v2379, %v1942
        %v2391 = vmul.f32 %v2379, %v1992
        %v2392 = vmul.f32 %v2379, %v2042
        %v2393 = vmul.f32 %v2379, %v2092
        %v2394 = vmul.f32 %v2379, %v2142
        %v2395 = vmul.f32 %v2379, %v2192
        %v2396 = vmul.f32 %v2379, %v2242
        %v2397 = vmul.f32 %v2379, %v2292
        %v2398 = vmul.f32 %v2380, %v1945
        %v2399 = vmul.f32 %v2380, %v1995
        %v2400 = vmul.f32 %v2380, %v2045
        %v2401 = vmul.f32 %v2380, %v2095
        %v2402 = vmul.f32 %v2380, %v2145
        %v2403 = vmul.f32 %v2380, %v2195
        %v2404 = vmul.f32 %v2380, %v2245
        %v2405 = vmul.f32 %v2380, %v2295
        %v2406 = vmul.f32 %v2381, %v1948
        %v2407 = vmul.f32 %v2381, %v1998
        %v2408 = vmul.f32 %v2381, %v2048
        %v2409 = vmul.f32 %v2381, %v2098
        %v2410 = vmul.f32 %v2381, %v2148
        %v2411 = vmul.f32 %v2381, %v2198
        %v2412 = vmul.f32 %v2381, %v2248
        %v2413 = vmul.f32 %v2381, %v2298
        %v2414 = vmul.f32 %v2382, %v1951
        %v2415 = vmul.f32 %v2382, %v2001
        %v2416 = vmul.f32 %v2382, %v2051
        %v2417 = vmul.f32 %v2382, %v2101
        %v2418 = vmul.f32 %v2382, %v2151
        %v2419 = vmul.f32 %v2382, %v2201
        %v2420 = vmul.f32 %v2382, %v2251
        %v2421 = vmul.f32 %v2382, %v2301
        %v2422 = vmul.f32 %v2383, %v1954
        %v2423 = vmul.f32 %v2383, %v2004
        %v2424 = vmul.f32 %v2383, %v2054
        %v2425 = vmul.f32 %v2383, %v2104
        %v2426 = vmul.f32 %v2383, %v2154
        %v2427 = vmul.f32 %v2383, %v2204
        %v2428 = vmul.f32 %v2383, %v2254
        %v2429 = vmul.f32 %v2383, %v2304
        %v2430 = vmul.f32 %v2384, %v1957
        %v2431 = vmul.f32 %v2384, %v2007
        %v2432 = vmul.f32 %v2384, %v2057
        %v2433 = vmul.f32 %v2384, %v2107
        %v2434 = vmul.f32 %v2384, %v2157
        %v2435 = vmul.f32 %v2384, %v2207
        %v2436 = vmul.f32 %v2384, %v2257
        %v2437 = vmul.f32 %v2384, %v2307
        %v2438 = vmul.f32 %v2385, %v1960
        %v2439 = vmul.f32 %v2385, %v2010
        %v2440 = vmul.f32 %v2385, %v2060
        %v2441 = vmul.f32 %v2385, %v2110
        %v2442 = vmul.f32 %v2385, %v2160
        %v2443 = vmul.f32 %v2385, %v2210
        %v2444 = vmul.f32 %v2385, %v2260
        %v2445 = vmul.f32 %v2385, %v2310
        %v2446 = vmul.f32 %v2386, %v1963
        %v2447 = vmul.f32 %v2386, %v2013
        %v2448 = vmul.f32 %v2386, %v2063
        %v2449 = vmul.f32 %v2386, %v2113
        %v2450 = vmul.f32 %v2386, %v2163
        %v2451 = vmul.f32 %v2386, %v2213
        %v2452 = vmul.f32 %v2386, %v2263
        %v2453 = vmul.f32 %v2386, %v2313
        %v2454 = vmul.f32 %v2387, %v1966
        %v2455 = vmul.f32 %v2387, %v2016
        %v2456 = vmul.f32 %v2387, %v2066
        %v2457 = vmul.f32 %v2387, %v2116
        %v2458 = vmul.f32 %v2387, %v2166
        %v2459 = vmul.f32 %v2387, %v2216
        %v2460 = vmul.f32 %v2387, %v2266
        %v2461 = vmul.f32 %v2387, %v2316
        %v2462 = vmul.f32 %v2388, %v1969
        %v2463 = vmul.f32 %v2388, %v2019
        %v2464 = vmul.f32 %v2388, %v2069
        %v2465 = vmul.f32 %v2388, %v2119
        %v2466 = vmul.f32 %v2388, %v2169
        %v2467 = vmul.f32 %v2388, %v2219
        %v2468 = vmul.f32 %v2388, %v2269
        %v2469 = vmul.f32 %v2388, %v2319
        %v2470 = vmul.f32 %v2389, %v1972
        %v2471 = vmul.f32 %v2389, %v2022
        %v2472 = vmul.f32 %v2389, %v2072
        %v2473 = vmul.f32 %v2389, %v2122
        %v2474 = vmul.f32 %v2389, %v2172
        %v2475 = vmul.f32 %v2389, %v2222
        %v2476 = vmul.f32 %v2389, %v2272
        %v2477 = vmul.f32 %v2389, %v2322
        %2478 = vst [vmem:[#allocation4] sm:$0xff] %v2390
        %2479 = vst [vmem:[#allocation4 + $0x8] sm:$0xff] %v2391
        %2480 = vst [vmem:[#allocation4 + $0x10] sm:$0xff] %v2392
        %2481 = vst [vmem:[#allocation4 + $0x18] sm:$0xff] %v2393
        %2482 = vst [vmem:[#allocation4 + $0x20] sm:$0xff] %v2394
        %2483 = vst [vmem:[#allocation4 + $0x28] sm:$0xff] %v2395
        %2484 = vst [vmem:[#allocation4 + $0x30] sm:$0xff] %v2396
        %2485 = vst [vmem:[#allocation4 + $0x38] sm:$0xff] %v2397
        %2486 = vst [vmem:[#allocation4 + $0x40] sm:$0xff] %v2398
        %2487 = vst [vmem:[#allocation4 + $0x48] sm:$0xff] %v2399
        %2488 = vst [vmem:[#allocation4 + $0x50] sm:$0xff] %v2400
        %2489 = vst [vmem:[#allocation4 + $0x58] sm:$0xff] %v2401
        %2490 = vst [vmem:[#allocation4 + $0x60] sm:$0xff] %v2402
        %2491 = vst [vmem:[#allocation4 + $0x68] sm:$0xff] %v2403
        %2492 = vst [vmem:[#allocation4 + $0x70] sm:$0xff] %v2404
        %2493 = vst [vmem:[#allocation4 + $0x78] sm:$0xff] %v2405
        %2494 = vst [vmem:[#allocation4 + $0x80] sm:$0xff] %v2406
        %2495 = vst [vmem:[#allocation4 + $0x88] sm:$0xff] %v2407
        %2496 = vst [vmem:[#allocation4 + $0x90] sm:$0xff] %v2408
        %2497 = vst [vmem:[#allocation4 + $0x98] sm:$0xff] %v2409
        %2498 = vst [vmem:[#allocation4 + $0xa0] sm:$0xff] %v2410
        %2499 = vst [vmem:[#allocation4 + $0xa8] sm:$0xff] %v2411
        %2500 = vst [vmem:[#allocation4 + $0xb0] sm:$0xff] %v2412
        %2501 = vst [vmem:[#allocation4 + $0xb8] sm:$0xff] %v2413
        %2502 = vst [vmem:[#allocation4 + $0xc0] sm:$0xff] %v2414
        %2503 = vst [vmem:[#allocation4 + $0xc8] sm:$0xff] %v2415
        %2504 = vst [vmem:[#allocation4 + $0xd0] sm:$0xff] %v2416
        %2505 = vst [vmem:[#allocation4 + $0xd8] sm:$0xff] %v2417
        %2506 = vst [vmem:[#allocation4 + $0xe0] sm:$0xff] %v2418
        %2507 = vst [vmem:[#allocation4 + $0xe8] sm:$0xff] %v2419
        %2508 = vst [vmem:[#allocation4 + $0xf0] sm:$0xff] %v2420
        %2509 = vst [vmem:[#allocation4 + $0xf8] sm:$0xff] %v2421
        %2510 = vst [vmem:[#allocation4 + $0x100] sm:$0xff] %v2422
        %2511 = vst [vmem:[#allocation4 + $0x108] sm:$0xff] %v2423
        %2512 = vst [vmem:[#allocation4 + $0x110] sm:$0xff] %v2424
        %2513 = vst [vmem:[#allocation4 + $0x118] sm:$0xff] %v2425
        %2514 = vst [vmem:[#allocation4 + $0x120] sm:$0xff] %v2426
        %2515 = vst [vmem:[#allocation4 + $0x128] sm:$0xff] %v2427
        %2516 = vst [vmem:[#allocation4 + $0x130] sm:$0xff] %v2428
        %2517 = vst [vmem:[#allocation4 + $0x138] sm:$0xff] %v2429
        %2518 = vst [vmem:[#allocation4 + $0x140] sm:$0xff] %v2430
        %2519 = vst [vmem:[#allocation4 + $0x148] sm:$0xff] %v2431
        %2520 = vst [vmem:[#allocation4 + $0x150] sm:$0xff] %v2432
        %2521 = vst [vmem:[#allocation4 + $0x158] sm:$0xff] %v2433
        %2522 = vst [vmem:[#allocation4 + $0x160] sm:$0xff] %v2434
        %2523 = vst [vmem:[#allocation4 + $0x168] sm:$0xff] %v2435
        %2524 = vst [vmem:[#allocation4 + $0x170] sm:$0xff] %v2436
        %2525 = vst [vmem:[#allocation4 + $0x178] sm:$0xff] %v2437
        %2526 = vst [vmem:[#allocation4 + $0x180] sm:$0xff] %v2438
        %2527 = vst [vmem:[#allocation4 + $0x188] sm:$0xff] %v2439
        %2528 = vst [vmem:[#allocation4 + $0x190] sm:$0xff] %v2440
        %2529 = vst [vmem:[#allocation4 + $0x198] sm:$0xff] %v2441
        %2530 = vst [vmem:[#allocation4 + $0x1a0] sm:$0xff] %v2442
        %2531 = vst [vmem:[#allocation4 + $0x1a8] sm:$0xff] %v2443
        %2532 = vst [vmem:[#allocation4 + $0x1b0] sm:$0xff] %v2444
        %2533 = vst [vmem:[#allocation4 + $0x1b8] sm:$0xff] %v2445
        %2534 = vst [vmem:[#allocation4 + $0x1c0] sm:$0xff] %v2446
        %2535 = vst [vmem:[#allocation4 + $0x1c8] sm:$0xff] %v2447
        %2536 = vst [vmem:[#allocation4 + $0x1d0] sm:$0xff] %v2448
        %2537 = vst [vmem:[#allocation4 + $0x1d8] sm:$0xff] %v2449
        %2538 = vst [vmem:[#allocation4 + $0x1e0] sm:$0xff] %v2450
        %2539 = vst [vmem:[#allocation4 + $0x1e8] sm:$0xff] %v2451
        %2540 = vst [vmem:[#allocation4 + $0x1f0] sm:$0xff] %v2452
        %2541 = vst [vmem:[#allocation4 + $0x1f8] sm:$0xff] %v2453
        %2542 = vst [vmem:[#allocation4 + $0x200] sm:$0xff] %v2454
        %2543 = vst [vmem:[#allocation4 + $0x208] sm:$0xff] %v2455
        %2544 = vst [vmem:[#allocation4 + $0x210] sm:$0xff] %v2456
        %2545 = vst [vmem:[#allocation4 + $0x218] sm:$0xff] %v2457
        %2546 = vst [vmem:[#allocation4 + $0x220] sm:$0xff] %v2458
        %2547 = vst [vmem:[#allocation4 + $0x228] sm:$0xff] %v2459
        %2548 = vst [vmem:[#allocation4 + $0x230] sm:$0xff] %v2460
        %2549 = vst [vmem:[#allocation4 + $0x238] sm:$0xff] %v2461
        %2550 = vst [vmem:[#allocation4 + $0x240] sm:$0xff] %v2462
        %2551 = vst [vmem:[#allocation4 + $0x248] sm:$0xff] %v2463
        %2552 = vst [vmem:[#allocation4 + $0x250] sm:$0xff] %v2464
        %2553 = vst [vmem:[#allocation4 + $0x258] sm:$0xff] %v2465
        %2554 = vst [vmem:[#allocation4 + $0x260] sm:$0xff] %v2466
        %2555 = vst [vmem:[#allocation4 + $0x268] sm:$0xff] %v2467
        %2556 = vst [vmem:[#allocation4 + $0x270] sm:$0xff] %v2468
        %2557 = vst [vmem:[#allocation4 + $0x278] sm:$0xff] %v2469
        %2558 = vst [vmem:[#allocation4 + $0x280] sm:$0xff] %v2470
        %2559 = vst [vmem:[#allocation4 + $0x288] sm:$0xff] %v2471
        %2560 = vst [vmem:[#allocation4 + $0x290] sm:$0xff] %v2472
        %2561 = vst [vmem:[#allocation4 + $0x298] sm:$0xff] %v2473
        %2562 = vst [vmem:[#allocation4 + $0x2a0] sm:$0xff] %v2474
        %2563 = vst [vmem:[#allocation4 + $0x2a8] sm:$0xff] %v2475
        %2564 = vst [vmem:[#allocation4 + $0x2b0] sm:$0xff] %v2476
        %2565 = vst [vmem:[#allocation4 + $0x2b8] sm:$0xff] %v2477
        loop: start=0, step=1, limit=11
        $region69: #{tpu_custom_call.1} parent=67 // loop_pre_header
          _
        $region70: #{tpu_custom_call.1} parent=67 // loop_header
          %s2567 = sphi 0, %s2571
          %p2568 = scmp.ge.s32.totalorder %s2567, 11
          %v2572 = vphi 0.0, %v2887
          %v2573 = vphi 0.0, %v2888
          %v2574 = vphi 0.0, %v2889
          %v2575 = vphi 0.0, %v2890
          %v2576 = vphi 0.0, %v2891
          %v2577 = vphi 0.0, %v2892
          %v2578 = vphi 0.0, %v2893
          %v2579 = vphi 0.0, %v2894
        $region71: #{tpu_custom_call.1} parent=67 // loop_header_branch
          %2570 = sbr.rel (%p2568) target = $region75
        $region72: #{tpu_custom_call.1} parent=67 // loop_body
          %s2580 = smul.u32 %s2567, 8
          %s2581 = sshra.s32 %s2580, 3
          %s2582 = sand.u32 %s2580, 7
          %s2583 = smul.u32 %s2581, 8
          %s2584 = smul.addr %s2583, 8
          %s2585 = scalar_lea.vmem [#allocation3], %s2584
          %v2586 = vld [vmem:[%s2585] sm:$0xff]
          %v2587 = vld [vmem:[%s2585 + $0x8] sm:$0xff]
          %v2588 = vld [vmem:[%s2585 + $0x10] sm:$0xff]
          %v2589 = vld [vmem:[%s2585 + $0x18] sm:$0xff]
          %v2590 = vld [vmem:[%s2585 + $0x20] sm:$0xff]
          %v2591 = vld [vmem:[%s2585 + $0x28] sm:$0xff]
          %v2592 = vld [vmem:[%s2585 + $0x30] sm:$0xff]
          %v2593 = vld [vmem:[%s2585 + $0x38] sm:$0xff]
          %s2594 = smul.addr %s2583, 8
          %s2595 = scalar_lea.vmem [#allocation4], %s2594
          %v2596 = vld [vmem:[%s2595] sm:$0xff]
          %v2597 = vld [vmem:[%s2595 + $0x8] sm:$0xff]
          %v2598 = vld [vmem:[%s2595 + $0x10] sm:$0xff]
          %v2599 = vld [vmem:[%s2595 + $0x18] sm:$0xff]
          %v2600 = vld [vmem:[%s2595 + $0x20] sm:$0xff]
          %v2601 = vld [vmem:[%s2595 + $0x28] sm:$0xff]
          %v2602 = vld [vmem:[%s2595 + $0x30] sm:$0xff]
          %v2603 = vld [vmem:[%s2595 + $0x38] sm:$0xff]
          %v2612 = vrot.slane %v2586, 7
          %v2613 = vrot.slane %v2587, 7
          %v2614 = vrot.slane %v2588, 7
          %v2615 = vrot.slane %v2589, 7
          %v2616 = vrot.slane %v2590, 7
          %v2617 = vrot.slane %v2591, 7
          %v2618 = vrot.slane %v2592, 7
          %v2619 = vrot.slane %v2593, 7
          %vm2628 = vcmask 1040384
          %v2629 = vsel %vm2628, 1.0, %v2612
          %v2630 = vsel %vm2628, 1.0, %v2613
          %v2631 = vsel %vm2628, 1.0, %v2614
          %v2632 = vsel %vm2628, 1.0, %v2615
          %v2633 = vsel %vm2628, 1.0, %v2616
          %v2634 = vsel %vm2628, 1.0, %v2617
          %v2635 = vsel %vm2628, 1.0, %v2618
          %v2636 = vsel %vm2628, 1.0, %v2619
          %v2645 = vrot.slane %v2596, 7
          %v2646 = vrot.slane %v2597, 7
          %v2647 = vrot.slane %v2598, 7
          %v2648 = vrot.slane %v2599, 7
          %v2649 = vrot.slane %v2600, 7
          %v2650 = vrot.slane %v2601, 7
          %v2651 = vrot.slane %v2602, 7
          %v2652 = vrot.slane %v2603, 7
          %v2661 = vsel %vm2628, 0.0, %v2645
          %v2662 = vsel %vm2628, 0.0, %v2646
          %v2663 = vsel %vm2628, 0.0, %v2647
          %v2664 = vsel %vm2628, 0.0, %v2648
          %v2665 = vsel %vm2628, 0.0, %v2649
          %v2666 = vsel %vm2628, 0.0, %v2650
          %v2667 = vsel %vm2628, 0.0, %v2651
          %v2668 = vsel %vm2628, 0.0, %v2652
          %v2669 = vmul.f32 %v2586, %v2661
          %v2670 = vmul.f32 %v2587, %v2662
          %v2671 = vmul.f32 %v2588, %v2663
          %v2672 = vmul.f32 %v2589, %v2664
          %v2673 = vmul.f32 %v2590, %v2665
          %v2674 = vmul.f32 %v2591, %v2666
          %v2675 = vmul.f32 %v2592, %v2667
          %v2676 = vmul.f32 %v2593, %v2668
          %v2677 = vadd.f32 %v2669, %v2596
          %v2678 = vadd.f32 %v2670, %v2597
          %v2679 = vadd.f32 %v2671, %v2598
          %v2680 = vadd.f32 %v2672, %v2599
          %v2681 = vadd.f32 %v2673, %v2600
          %v2682 = vadd.f32 %v2674, %v2601
          %v2683 = vadd.f32 %v2675, %v2602
          %v2684 = vadd.f32 %v2676, %v2603
          %v2685 = vmul.f32 %v2586, %v2629
          %v2686 = vmul.f32 %v2587, %v2630
          %v2687 = vmul.f32 %v2588, %v2631
          %v2688 = vmul.f32 %v2589, %v2632
          %v2689 = vmul.f32 %v2590, %v2633
          %v2690 = vmul.f32 %v2591, %v2634
          %v2691 = vmul.f32 %v2592, %v2635
          %v2692 = vmul.f32 %v2593, %v2636
          %v2701 = vrot.slane %v2685, 6
          %v2702 = vrot.slane %v2686, 6
          %v2703 = vrot.slane %v2687, 6
          %v2704 = vrot.slane %v2688, 6
          %v2705 = vrot.slane %v2689, 6
          %v2706 = vrot.slane %v2690, 6
          %v2707 = vrot.slane %v2691, 6
          %v2708 = vrot.slane %v2692, 6
          %vm2717 = vcmask 1041408
          %v2718 = vsel %vm2717, 1.0, %v2701
          %v2719 = vsel %vm2717, 1.0, %v2702
          %v2720 = vsel %vm2717, 1.0, %v2703
          %v2721 = vsel %vm2717, 1.0, %v2704
          %v2722 = vsel %vm2717, 1.0, %v2705
          %v2723 = vsel %vm2717, 1.0, %v2706
          %v2724 = vsel %vm2717, 1.0, %v2707
          %v2725 = vsel %vm2717, 1.0, %v2708
          %v2734 = vrot.slane %v2677, 6
          %v2735 = vrot.slane %v2678, 6
          %v2736 = vrot.slane %v2679, 6
          %v2737 = vrot.slane %v2680, 6
          %v2738 = vrot.slane %v2681, 6
          %v2739 = vrot.slane %v2682, 6
          %v2740 = vrot.slane %v2683, 6
          %v2741 = vrot.slane %v2684, 6
          %v2750 = vsel %vm2717, 0.0, %v2734
          %v2751 = vsel %vm2717, 0.0, %v2735
          %v2752 = vsel %vm2717, 0.0, %v2736
          %v2753 = vsel %vm2717, 0.0, %v2737
          %v2754 = vsel %vm2717, 0.0, %v2738
          %v2755 = vsel %vm2717, 0.0, %v2739
          %v2756 = vsel %vm2717, 0.0, %v2740
          %v2757 = vsel %vm2717, 0.0, %v2741
          %v2758 = vmul.f32 %v2685, %v2750
          %v2759 = vmul.f32 %v2686, %v2751
          %v2760 = vmul.f32 %v2687, %v2752
          %v2761 = vmul.f32 %v2688, %v2753
          %v2762 = vmul.f32 %v2689, %v2754
          %v2763 = vmul.f32 %v2690, %v2755
          %v2764 = vmul.f32 %v2691, %v2756
          %v2765 = vmul.f32 %v2692, %v2757
          %v2766 = vadd.f32 %v2758, %v2677
          %v2767 = vadd.f32 %v2759, %v2678
          %v2768 = vadd.f32 %v2760, %v2679
          %v2769 = vadd.f32 %v2761, %v2680
          %v2770 = vadd.f32 %v2762, %v2681
          %v2771 = vadd.f32 %v2763, %v2682
          %v2772 = vadd.f32 %v2764, %v2683
          %v2773 = vadd.f32 %v2765, %v2684
          %v2774 = vmul.f32 %v2685, %v2718
          %v2775 = vmul.f32 %v2686, %v2719
          %v2776 = vmul.f32 %v2687, %v2720
          %v2777 = vmul.f32 %v2688, %v2721
          %v2778 = vmul.f32 %v2689, %v2722
          %v2779 = vmul.f32 %v2690, %v2723
          %v2780 = vmul.f32 %v2691, %v2724
          %v2781 = vmul.f32 %v2692, %v2725
          %v2790 = vrot.slane %v2774, 4
          %v2791 = vrot.slane %v2775, 4
          %v2792 = vrot.slane %v2776, 4
          %v2793 = vrot.slane %v2777, 4
          %v2794 = vrot.slane %v2778, 4
          %v2795 = vrot.slane %v2779, 4
          %v2796 = vrot.slane %v2780, 4
          %v2797 = vrot.slane %v2781, 4
          %vm2806 = vcmask 1043456
          %v2807 = vsel %vm2806, 1.0, %v2790
          %v2808 = vsel %vm2806, 1.0, %v2791
          %v2809 = vsel %vm2806, 1.0, %v2792
          %v2810 = vsel %vm2806, 1.0, %v2793
          %v2811 = vsel %vm2806, 1.0, %v2794
          %v2812 = vsel %vm2806, 1.0, %v2795
          %v2813 = vsel %vm2806, 1.0, %v2796
          %v2814 = vsel %vm2806, 1.0, %v2797
          %v2823 = vrot.slane %v2766, 4
          %v2824 = vrot.slane %v2767, 4
          %v2825 = vrot.slane %v2768, 4
          %v2826 = vrot.slane %v2769, 4
          %v2827 = vrot.slane %v2770, 4
          %v2828 = vrot.slane %v2771, 4
          %v2829 = vrot.slane %v2772, 4
          %v2830 = vrot.slane %v2773, 4
          %v2839 = vsel %vm2806, 0.0, %v2823
          %v2840 = vsel %vm2806, 0.0, %v2824
          %v2841 = vsel %vm2806, 0.0, %v2825
          %v2842 = vsel %vm2806, 0.0, %v2826
          %v2843 = vsel %vm2806, 0.0, %v2827
          %v2844 = vsel %vm2806, 0.0, %v2828
          %v2845 = vsel %vm2806, 0.0, %v2829
          %v2846 = vsel %vm2806, 0.0, %v2830
          %v2847 = vmul.f32 %v2774, %v2839
          %v2848 = vmul.f32 %v2775, %v2840
          %v2849 = vmul.f32 %v2776, %v2841
          %v2850 = vmul.f32 %v2777, %v2842
          %v2851 = vmul.f32 %v2778, %v2843
          %v2852 = vmul.f32 %v2779, %v2844
          %v2853 = vmul.f32 %v2780, %v2845
          %v2854 = vmul.f32 %v2781, %v2846
          %v2855 = vadd.f32 %v2847, %v2766
          %v2856 = vadd.f32 %v2848, %v2767
          %v2857 = vadd.f32 %v2849, %v2768
          %v2858 = vadd.f32 %v2850, %v2769
          %v2859 = vadd.f32 %v2851, %v2770
          %v2860 = vadd.f32 %v2852, %v2771
          %v2861 = vadd.f32 %v2853, %v2772
          %v2862 = vadd.f32 %v2854, %v2773
          %v2863 = vmul.f32 %v2774, %v2807
          %v2864 = vmul.f32 %v2775, %v2808
          %v2865 = vmul.f32 %v2776, %v2809
          %v2866 = vmul.f32 %v2777, %v2810
          %v2867 = vmul.f32 %v2778, %v2811
          %v2868 = vmul.f32 %v2779, %v2812
          %v2869 = vmul.f32 %v2780, %v2813
          %v2870 = vmul.f32 %v2781, %v2814
          %v2871 = vperm.slane %v2572, 7
          %v2872 = vperm.slane %v2573, 7
          %v2873 = vperm.slane %v2574, 7
          %v2874 = vperm.slane %v2575, 7
          %v2875 = vperm.slane %v2576, 7
          %v2876 = vperm.slane %v2577, 7
          %v2877 = vperm.slane %v2578, 7
          %v2878 = vperm.slane %v2579, 7
          %v2879 = vmul.f32 %v2863, %v2871
          %v2880 = vmul.f32 %v2864, %v2872
          %v2881 = vmul.f32 %v2865, %v2873
          %v2882 = vmul.f32 %v2866, %v2874
          %v2883 = vmul.f32 %v2867, %v2875
          %v2884 = vmul.f32 %v2868, %v2876
          %v2885 = vmul.f32 %v2869, %v2877
          %v2886 = vmul.f32 %v2870, %v2878
          %v2887 = vadd.f32 %v2879, %v2855
          %v2888 = vadd.f32 %v2880, %v2856
          %v2889 = vadd.f32 %v2881, %v2857
          %v2890 = vadd.f32 %v2882, %v2858
          %v2891 = vadd.f32 %v2883, %v2859
          %v2892 = vadd.f32 %v2884, %v2860
          %v2893 = vadd.f32 %v2885, %v2861
          %v2894 = vadd.f32 %v2886, %v2862
          %2895 = vst [vmem:[%s2595] sm:$0xff] %v2887
          %2896 = vst [vmem:[%s2595 + $0x8] sm:$0xff] %v2888
          %2897 = vst [vmem:[%s2595 + $0x10] sm:$0xff] %v2889
          %2898 = vst [vmem:[%s2595 + $0x18] sm:$0xff] %v2890
          %2899 = vst [vmem:[%s2595 + $0x20] sm:$0xff] %v2891
          %2900 = vst [vmem:[%s2595 + $0x28] sm:$0xff] %v2892
          %2901 = vst [vmem:[%s2595 + $0x30] sm:$0xff] %v2893
          %2902 = vst [vmem:[%s2595 + $0x38] sm:$0xff] %v2894
        $region73: #{tpu_custom_call.1} parent=67 // loop_footer
          %s2571 = sadd.s32 1, %s2567
        $region74: #{tpu_custom_call.1} parent=67 // loop_footer_branch
          %2566 = sbr.rel target = $region70
        $region75: #{tpu_custom_call.1} parent=67 // loop_exit
          _
        %v2903 = vld [vmem:[%s10] sm:$0xff]
        %v2904 = vld [vmem:[%s10 + $0x8] sm:$0xff]
        %v2905 = vld [vmem:[%s10 + $0x10] sm:$0xff]
        %v2906 = vld [vmem:[%s10 + $0x18] sm:$0xff]
        %v2907 = vld [vmem:[%s10 + $0x20] sm:$0xff]
        %v2908 = vld [vmem:[%s10 + $0x28] sm:$0xff]
        %v2909 = vld [vmem:[%s10 + $0x30] sm:$0xff]
        %v2910 = vld [vmem:[%s10 + $0x38] sm:$0xff]
        %v2911 = vld [vmem:[%s10 + $0x40] sm:$0xff]
        %v2912 = vld [vmem:[%s10 + $0x48] sm:$0xff]
        %v2913 = vld [vmem:[%s10 + $0x50] sm:$0xff]
        %v2914 = vld [vmem:[%s10 + $0x58] sm:$0xff]
        %v2915 = vld [vmem:[%s10 + $0x60] sm:$0xff]
        %v2916 = vld [vmem:[%s10 + $0x68] sm:$0xff]
        %v2917 = vld [vmem:[%s10 + $0x70] sm:$0xff]
        %v2918 = vld [vmem:[%s10 + $0x78] sm:$0xff]
        %v2920 = vsel %vm1890, %v1305, 0
        %v2923 = vsel %vm1890, %v1308, 0
        %v2926 = vsel %vm1890, %v1311, 0
        %v2929 = vsel %vm1890, %v1314, 0
        %v2932 = vsel %vm1890, %v1317, 0
        %v2935 = vsel %vm1890, %v1320, 0
        %v2938 = vsel %vm1890, %v1323, 0
        %v2941 = vsel %vm1890, %v1326, 0
        %v2944 = vsel %vm1890, %v1329, 0
        %v2947 = vsel %vm1890, %v1332, 0
        %v2950 = vsel %vm1890, %v1335, 0
        %2952 = vmatpush.msra.mxu0 0.0
        %2953 = vmatpush.msra.mxu0 0.0
        %2954 = vmatpush.msra.mxu0 0.0
        %2955 = vmatpush.msra.mxu0 0.0
        %2956 = vmatpush.msra.mxu0 0.0
        %2957 = vmatpush.msra.mxu0 0.0
        %2958 = vmatpush.msra.mxu0 0.0
        %2959 = vmatpush.msra.mxu0 0.0
        %2960 = vmatpush.msra.mxu0 0.0
        %2961 = vmatpush.msra.mxu0 0.0
        %2962 = vmatpush.msra.mxu0 0.0
        %2963 = vmatpush.msra.mxu0 0.0
        %2964 = vmatpush.msra.mxu0 0.0
        %2965 = vmatpush.msra.mxu0 0.0
        %2966 = vmatpush.msra.mxu0 %v2911
        %2967 = vmatpush.msra.mxu0 %v2903
        %2968 = vmatmul.f32.gmra.mxu0 %v2920
        %v2969 = vpop.f32.mrf.mxu0
        %v2970 = vadd.f32 0.0, %v2969
        %2971 = vmatmul.f32.gmra.mxu0 %v2923
        %v2972 = vpop.f32.mrf.mxu0
        %v2973 = vadd.f32 0.0, %v2972
        %2974 = vmatmul.f32.gmra.mxu0 %v2926
        %v2975 = vpop.f32.mrf.mxu0
        %v2976 = vadd.f32 0.0, %v2975
        %2977 = vmatmul.f32.gmra.mxu0 %v2929
        %v2978 = vpop.f32.mrf.mxu0
        %v2979 = vadd.f32 0.0, %v2978
        %2980 = vmatmul.f32.gmra.mxu0 %v2932
        %v2981 = vpop.f32.mrf.mxu0
        %v2982 = vadd.f32 0.0, %v2981
        %2983 = vmatmul.f32.gmra.mxu0 %v2935
        %v2984 = vpop.f32.mrf.mxu0
        %v2985 = vadd.f32 0.0, %v2984
        %2986 = vmatmul.f32.gmra.mxu0 %v2938
        %v2987 = vpop.f32.mrf.mxu0
        %v2988 = vadd.f32 0.0, %v2987
        %2989 = vmatmul.f32.gmra.mxu0 %v2941
        %v2990 = vpop.f32.mrf.mxu0
        %v2991 = vadd.f32 0.0, %v2990
        %2992 = vmatmul.f32.gmra.mxu0 %v2944
        %v2993 = vpop.f32.mrf.mxu0
        %v2994 = vadd.f32 0.0, %v2993
        %2995 = vmatmul.f32.gmra.mxu0 %v2947
        %v2996 = vpop.f32.mrf.mxu0
        %v2997 = vadd.f32 0.0, %v2996
        %2998 = vmatmul.f32.gmra.mxu0 %v2950
        %v2999 = vpop.f32.mrf.mxu0
        %v3000 = vadd.f32 0.0, %v2999
        %3001 = vdwg.mxu0
        %3002 = vmatpush.msra.mxu0 0.0
        %3003 = vmatpush.msra.mxu0 0.0
        %3004 = vmatpush.msra.mxu0 0.0
        %3005 = vmatpush.msra.mxu0 0.0
        %3006 = vmatpush.msra.mxu0 0.0
        %3007 = vmatpush.msra.mxu0 0.0
        %3008 = vmatpush.msra.mxu0 0.0
        %3009 = vmatpush.msra.mxu0 0.0
        %3010 = vmatpush.msra.mxu0 0.0
        %3011 = vmatpush.msra.mxu0 0.0
        %3012 = vmatpush.msra.mxu0 0.0
        %3013 = vmatpush.msra.mxu0 0.0
        %3014 = vmatpush.msra.mxu0 0.0
        %3015 = vmatpush.msra.mxu0 0.0
        %3016 = vmatpush.msra.mxu0 %v2912
        %3017 = vmatpush.msra.mxu0 %v2904
        %3018 = vmatmul.f32.gmra.mxu0 %v2920
        %v3019 = vpop.f32.mrf.mxu0
        %v3020 = vadd.f32 0.0, %v3019
        %3021 = vmatmul.f32.gmra.mxu0 %v2923
        %v3022 = vpop.f32.mrf.mxu0
        %v3023 = vadd.f32 0.0, %v3022
        %3024 = vmatmul.f32.gmra.mxu0 %v2926
        %v3025 = vpop.f32.mrf.mxu0
        %v3026 = vadd.f32 0.0, %v3025
        %3027 = vmatmul.f32.gmra.mxu0 %v2929
        %v3028 = vpop.f32.mrf.mxu0
        %v3029 = vadd.f32 0.0, %v3028
        %3030 = vmatmul.f32.gmra.mxu0 %v2932
        %v3031 = vpop.f32.mrf.mxu0
        %v3032 = vadd.f32 0.0, %v3031
        %3033 = vmatmul.f32.gmra.mxu0 %v2935
        %v3034 = vpop.f32.mrf.mxu0
        %v3035 = vadd.f32 0.0, %v3034
        %3036 = vmatmul.f32.gmra.mxu0 %v2938
        %v3037 = vpop.f32.mrf.mxu0
        %v3038 = vadd.f32 0.0, %v3037
        %3039 = vmatmul.f32.gmra.mxu0 %v2941
        %v3040 = vpop.f32.mrf.mxu0
        %v3041 = vadd.f32 0.0, %v3040
        %3042 = vmatmul.f32.gmra.mxu0 %v2944
        %v3043 = vpop.f32.mrf.mxu0
        %v3044 = vadd.f32 0.0, %v3043
        %3045 = vmatmul.f32.gmra.mxu0 %v2947
        %v3046 = vpop.f32.mrf.mxu0
        %v3047 = vadd.f32 0.0, %v3046
        %3048 = vmatmul.f32.gmra.mxu0 %v2950
        %v3049 = vpop.f32.mrf.mxu0
        %v3050 = vadd.f32 0.0, %v3049
        %3051 = vdwg.mxu0
        %3052 = vmatpush.msra.mxu0 0.0
        %3053 = vmatpush.msra.mxu0 0.0
        %3054 = vmatpush.msra.mxu0 0.0
        %3055 = vmatpush.msra.mxu0 0.0
        %3056 = vmatpush.msra.mxu0 0.0
        %3057 = vmatpush.msra.mxu0 0.0
        %3058 = vmatpush.msra.mxu0 0.0
        %3059 = vmatpush.msra.mxu0 0.0
        %3060 = vmatpush.msra.mxu0 0.0
        %3061 = vmatpush.msra.mxu0 0.0
        %3062 = vmatpush.msra.mxu0 0.0
        %3063 = vmatpush.msra.mxu0 0.0
        %3064 = vmatpush.msra.mxu0 0.0
        %3065 = vmatpush.msra.mxu0 0.0
        %3066 = vmatpush.msra.mxu0 %v2913
        %3067 = vmatpush.msra.mxu0 %v2905
        %3068 = vmatmul.f32.gmra.mxu0 %v2920
        %v3069 = vpop.f32.mrf.mxu0
        %v3070 = vadd.f32 0.0, %v3069
        %3071 = vmatmul.f32.gmra.mxu0 %v2923
        %v3072 = vpop.f32.mrf.mxu0
        %v3073 = vadd.f32 0.0, %v3072
        %3074 = vmatmul.f32.gmra.mxu0 %v2926
        %v3075 = vpop.f32.mrf.mxu0
        %v3076 = vadd.f32 0.0, %v3075
        %3077 = vmatmul.f32.gmra.mxu0 %v2929
        %v3078 = vpop.f32.mrf.mxu0
        %v3079 = vadd.f32 0.0, %v3078
        %3080 = vmatmul.f32.gmra.mxu0 %v2932
        %v3081 = vpop.f32.mrf.mxu0
        %v3082 = vadd.f32 0.0, %v3081
        %3083 = vmatmul.f32.gmra.mxu0 %v2935
        %v3084 = vpop.f32.mrf.mxu0
        %v3085 = vadd.f32 0.0, %v3084
        %3086 = vmatmul.f32.gmra.mxu0 %v2938
        %v3087 = vpop.f32.mrf.mxu0
        %v3088 = vadd.f32 0.0, %v3087
        %3089 = vmatmul.f32.gmra.mxu0 %v2941
        %v3090 = vpop.f32.mrf.mxu0
        %v3091 = vadd.f32 0.0, %v3090
        %3092 = vmatmul.f32.gmra.mxu0 %v2944
        %v3093 = vpop.f32.mrf.mxu0
        %v3094 = vadd.f32 0.0, %v3093
        %3095 = vmatmul.f32.gmra.mxu0 %v2947
        %v3096 = vpop.f32.mrf.mxu0
        %v3097 = vadd.f32 0.0, %v3096
        %3098 = vmatmul.f32.gmra.mxu0 %v2950
        %v3099 = vpop.f32.mrf.mxu0
        %v3100 = vadd.f32 0.0, %v3099
        %3101 = vdwg.mxu0
        %3102 = vmatpush.msra.mxu0 0.0
        %3103 = vmatpush.msra.mxu0 0.0
        %3104 = vmatpush.msra.mxu0 0.0
        %3105 = vmatpush.msra.mxu0 0.0
        %3106 = vmatpush.msra.mxu0 0.0
        %3107 = vmatpush.msra.mxu0 0.0
        %3108 = vmatpush.msra.mxu0 0.0
        %3109 = vmatpush.msra.mxu0 0.0
        %3110 = vmatpush.msra.mxu0 0.0
        %3111 = vmatpush.msra.mxu0 0.0
        %3112 = vmatpush.msra.mxu0 0.0
        %3113 = vmatpush.msra.mxu0 0.0
        %3114 = vmatpush.msra.mxu0 0.0
        %3115 = vmatpush.msra.mxu0 0.0
        %3116 = vmatpush.msra.mxu0 %v2914
        %3117 = vmatpush.msra.mxu0 %v2906
        %3118 = vmatmul.f32.gmra.mxu0 %v2920
        %v3119 = vpop.f32.mrf.mxu0
        %v3120 = vadd.f32 0.0, %v3119
        %3121 = vmatmul.f32.gmra.mxu0 %v2923
        %v3122 = vpop.f32.mrf.mxu0
        %v3123 = vadd.f32 0.0, %v3122
        %3124 = vmatmul.f32.gmra.mxu0 %v2926
        %v3125 = vpop.f32.mrf.mxu0
        %v3126 = vadd.f32 0.0, %v3125
        %3127 = vmatmul.f32.gmra.mxu0 %v2929
        %v3128 = vpop.f32.mrf.mxu0
        %v3129 = vadd.f32 0.0, %v3128
        %3130 = vmatmul.f32.gmra.mxu0 %v2932
        %v3131 = vpop.f32.mrf.mxu0
        %v3132 = vadd.f32 0.0, %v3131
        %3133 = vmatmul.f32.gmra.mxu0 %v2935
        %v3134 = vpop.f32.mrf.mxu0
        %v3135 = vadd.f32 0.0, %v3134
        %3136 = vmatmul.f32.gmra.mxu0 %v2938
        %v3137 = vpop.f32.mrf.mxu0
        %v3138 = vadd.f32 0.0, %v3137
        %3139 = vmatmul.f32.gmra.mxu0 %v2941
        %v3140 = vpop.f32.mrf.mxu0
        %v3141 = vadd.f32 0.0, %v3140
        %3142 = vmatmul.f32.gmra.mxu0 %v2944
        %v3143 = vpop.f32.mrf.mxu0
        %v3144 = vadd.f32 0.0, %v3143
        %3145 = vmatmul.f32.gmra.mxu0 %v2947
        %v3146 = vpop.f32.mrf.mxu0
        %v3147 = vadd.f32 0.0, %v3146
        %3148 = vmatmul.f32.gmra.mxu0 %v2950
        %v3149 = vpop.f32.mrf.mxu0
        %v3150 = vadd.f32 0.0, %v3149
        %3151 = vdwg.mxu0
        %3152 = vmatpush.msra.mxu0 0.0
        %3153 = vmatpush.msra.mxu0 0.0
        %3154 = vmatpush.msra.mxu0 0.0
        %3155 = vmatpush.msra.mxu0 0.0
        %3156 = vmatpush.msra.mxu0 0.0
        %3157 = vmatpush.msra.mxu0 0.0
        %3158 = vmatpush.msra.mxu0 0.0
        %3159 = vmatpush.msra.mxu0 0.0
        %3160 = vmatpush.msra.mxu0 0.0
        %3161 = vmatpush.msra.mxu0 0.0
        %3162 = vmatpush.msra.mxu0 0.0
        %3163 = vmatpush.msra.mxu0 0.0
        %3164 = vmatpush.msra.mxu0 0.0
        %3165 = vmatpush.msra.mxu0 0.0
        %3166 = vmatpush.msra.mxu0 %v2915
        %3167 = vmatpush.msra.mxu0 %v2907
        %3168 = vmatmul.f32.gmra.mxu0 %v2920
        %v3169 = vpop.f32.mrf.mxu0
        %v3170 = vadd.f32 0.0, %v3169
        %3171 = vmatmul.f32.gmra.mxu0 %v2923
        %v3172 = vpop.f32.mrf.mxu0
        %v3173 = vadd.f32 0.0, %v3172
        %3174 = vmatmul.f32.gmra.mxu0 %v2926
        %v3175 = vpop.f32.mrf.mxu0
        %v3176 = vadd.f32 0.0, %v3175
        %3177 = vmatmul.f32.gmra.mxu0 %v2929
        %v3178 = vpop.f32.mrf.mxu0
        %v3179 = vadd.f32 0.0, %v3178
        %3180 = vmatmul.f32.gmra.mxu0 %v2932
        %v3181 = vpop.f32.mrf.mxu0
        %v3182 = vadd.f32 0.0, %v3181
        %3183 = vmatmul.f32.gmra.mxu0 %v2935
        %v3184 = vpop.f32.mrf.mxu0
        %v3185 = vadd.f32 0.0, %v3184
        %3186 = vmatmul.f32.gmra.mxu0 %v2938
        %v3187 = vpop.f32.mrf.mxu0
        %v3188 = vadd.f32 0.0, %v3187
        %3189 = vmatmul.f32.gmra.mxu0 %v2941
        %v3190 = vpop.f32.mrf.mxu0
        %v3191 = vadd.f32 0.0, %v3190
        %3192 = vmatmul.f32.gmra.mxu0 %v2944
        %v3193 = vpop.f32.mrf.mxu0
        %v3194 = vadd.f32 0.0, %v3193
        %3195 = vmatmul.f32.gmra.mxu0 %v2947
        %v3196 = vpop.f32.mrf.mxu0
        %v3197 = vadd.f32 0.0, %v3196
        %3198 = vmatmul.f32.gmra.mxu0 %v2950
        %v3199 = vpop.f32.mrf.mxu0
        %v3200 = vadd.f32 0.0, %v3199
        %3201 = vdwg.mxu0
        %3202 = vmatpush.msra.mxu0 0.0
        %3203 = vmatpush.msra.mxu0 0.0
        %3204 = vmatpush.msra.mxu0 0.0
        %3205 = vmatpush.msra.mxu0 0.0
        %3206 = vmatpush.msra.mxu0 0.0
        %3207 = vmatpush.msra.mxu0 0.0
        %3208 = vmatpush.msra.mxu0 0.0
        %3209 = vmatpush.msra.mxu0 0.0
        %3210 = vmatpush.msra.mxu0 0.0
        %3211 = vmatpush.msra.mxu0 0.0
        %3212 = vmatpush.msra.mxu0 0.0
        %3213 = vmatpush.msra.mxu0 0.0
        %3214 = vmatpush.msra.mxu0 0.0
        %3215 = vmatpush.msra.mxu0 0.0
        %3216 = vmatpush.msra.mxu0 %v2916
        %3217 = vmatpush.msra.mxu0 %v2908
        %3218 = vmatmul.f32.gmra.mxu0 %v2920
        %v3219 = vpop.f32.mrf.mxu0
        %v3220 = vadd.f32 0.0, %v3219
        %3221 = vmatmul.f32.gmra.mxu0 %v2923
        %v3222 = vpop.f32.mrf.mxu0
        %v3223 = vadd.f32 0.0, %v3222
        %3224 = vmatmul.f32.gmra.mxu0 %v2926
        %v3225 = vpop.f32.mrf.mxu0
        %v3226 = vadd.f32 0.0, %v3225
        %3227 = vmatmul.f32.gmra.mxu0 %v2929
        %v3228 = vpop.f32.mrf.mxu0
        %v3229 = vadd.f32 0.0, %v3228
        %3230 = vmatmul.f32.gmra.mxu0 %v2932
        %v3231 = vpop.f32.mrf.mxu0
        %v3232 = vadd.f32 0.0, %v3231
        %3233 = vmatmul.f32.gmra.mxu0 %v2935
        %v3234 = vpop.f32.mrf.mxu0
        %v3235 = vadd.f32 0.0, %v3234
        %3236 = vmatmul.f32.gmra.mxu0 %v2938
        %v3237 = vpop.f32.mrf.mxu0
        %v3238 = vadd.f32 0.0, %v3237
        %3239 = vmatmul.f32.gmra.mxu0 %v2941
        %v3240 = vpop.f32.mrf.mxu0
        %v3241 = vadd.f32 0.0, %v3240
        %3242 = vmatmul.f32.gmra.mxu0 %v2944
        %v3243 = vpop.f32.mrf.mxu0
        %v3244 = vadd.f32 0.0, %v3243
        %3245 = vmatmul.f32.gmra.mxu0 %v2947
        %v3246 = vpop.f32.mrf.mxu0
        %v3247 = vadd.f32 0.0, %v3246
        %3248 = vmatmul.f32.gmra.mxu0 %v2950
        %v3249 = vpop.f32.mrf.mxu0
        %v3250 = vadd.f32 0.0, %v3249
        %3251 = vdwg.mxu0
        %3252 = vmatpush.msra.mxu0 0.0
        %3253 = vmatpush.msra.mxu0 0.0
        %3254 = vmatpush.msra.mxu0 0.0
        %3255 = vmatpush.msra.mxu0 0.0
        %3256 = vmatpush.msra.mxu0 0.0
        %3257 = vmatpush.msra.mxu0 0.0
        %3258 = vmatpush.msra.mxu0 0.0
        %3259 = vmatpush.msra.mxu0 0.0
        %3260 = vmatpush.msra.mxu0 0.0
        %3261 = vmatpush.msra.mxu0 0.0
        %3262 = vmatpush.msra.mxu0 0.0
        %3263 = vmatpush.msra.mxu0 0.0
        %3264 = vmatpush.msra.mxu0 0.0
        %3265 = vmatpush.msra.mxu0 0.0
        %3266 = vmatpush.msra.mxu0 %v2917
        %3267 = vmatpush.msra.mxu0 %v2909
        %3268 = vmatmul.f32.gmra.mxu0 %v2920
        %v3269 = vpop.f32.mrf.mxu0
        %v3270 = vadd.f32 0.0, %v3269
        %3271 = vmatmul.f32.gmra.mxu0 %v2923
        %v3272 = vpop.f32.mrf.mxu0
        %v3273 = vadd.f32 0.0, %v3272
        %3274 = vmatmul.f32.gmra.mxu0 %v2926
        %v3275 = vpop.f32.mrf.mxu0
        %v3276 = vadd.f32 0.0, %v3275
        %3277 = vmatmul.f32.gmra.mxu0 %v2929
        %v3278 = vpop.f32.mrf.mxu0
        %v3279 = vadd.f32 0.0, %v3278
        %3280 = vmatmul.f32.gmra.mxu0 %v2932
        %v3281 = vpop.f32.mrf.mxu0
        %v3282 = vadd.f32 0.0, %v3281
        %3283 = vmatmul.f32.gmra.mxu0 %v2935
        %v3284 = vpop.f32.mrf.mxu0
        %v3285 = vadd.f32 0.0, %v3284
        %3286 = vmatmul.f32.gmra.mxu0 %v2938
        %v3287 = vpop.f32.mrf.mxu0
        %v3288 = vadd.f32 0.0, %v3287
        %3289 = vmatmul.f32.gmra.mxu0 %v2941
        %v3290 = vpop.f32.mrf.mxu0
        %v3291 = vadd.f32 0.0, %v3290
        %3292 = vmatmul.f32.gmra.mxu0 %v2944
        %v3293 = vpop.f32.mrf.mxu0
        %v3294 = vadd.f32 0.0, %v3293
        %3295 = vmatmul.f32.gmra.mxu0 %v2947
        %v3296 = vpop.f32.mrf.mxu0
        %v3297 = vadd.f32 0.0, %v3296
        %3298 = vmatmul.f32.gmra.mxu0 %v2950
        %v3299 = vpop.f32.mrf.mxu0
        %v3300 = vadd.f32 0.0, %v3299
        %3301 = vdwg.mxu0
        %3302 = vmatpush.msra.mxu0 0.0
        %3303 = vmatpush.msra.mxu0 0.0
        %3304 = vmatpush.msra.mxu0 0.0
        %3305 = vmatpush.msra.mxu0 0.0
        %3306 = vmatpush.msra.mxu0 0.0
        %3307 = vmatpush.msra.mxu0 0.0
        %3308 = vmatpush.msra.mxu0 0.0
        %3309 = vmatpush.msra.mxu0 0.0
        %3310 = vmatpush.msra.mxu0 0.0
        %3311 = vmatpush.msra.mxu0 0.0
        %3312 = vmatpush.msra.mxu0 0.0
        %3313 = vmatpush.msra.mxu0 0.0
        %3314 = vmatpush.msra.mxu0 0.0
        %3315 = vmatpush.msra.mxu0 0.0
        %3316 = vmatpush.msra.mxu0 %v2918
        %3317 = vmatpush.msra.mxu0 %v2910
        %3318 = vmatmul.f32.gmra.mxu0 %v2920
        %v3319 = vpop.f32.mrf.mxu0
        %v3320 = vadd.f32 0.0, %v3319
        %3321 = vmatmul.f32.gmra.mxu0 %v2923
        %v3322 = vpop.f32.mrf.mxu0
        %v3323 = vadd.f32 0.0, %v3322
        %3324 = vmatmul.f32.gmra.mxu0 %v2926
        %v3325 = vpop.f32.mrf.mxu0
        %v3326 = vadd.f32 0.0, %v3325
        %3327 = vmatmul.f32.gmra.mxu0 %v2929
        %v3328 = vpop.f32.mrf.mxu0
        %v3329 = vadd.f32 0.0, %v3328
        %3330 = vmatmul.f32.gmra.mxu0 %v2932
        %v3331 = vpop.f32.mrf.mxu0
        %v3332 = vadd.f32 0.0, %v3331
        %3333 = vmatmul.f32.gmra.mxu0 %v2935
        %v3334 = vpop.f32.mrf.mxu0
        %v3335 = vadd.f32 0.0, %v3334
        %3336 = vmatmul.f32.gmra.mxu0 %v2938
        %v3337 = vpop.f32.mrf.mxu0
        %v3338 = vadd.f32 0.0, %v3337
        %3339 = vmatmul.f32.gmra.mxu0 %v2941
        %v3340 = vpop.f32.mrf.mxu0
        %v3341 = vadd.f32 0.0, %v3340
        %3342 = vmatmul.f32.gmra.mxu0 %v2944
        %v3343 = vpop.f32.mrf.mxu0
        %v3344 = vadd.f32 0.0, %v3343
        %3345 = vmatmul.f32.gmra.mxu0 %v2947
        %v3346 = vpop.f32.mrf.mxu0
        %v3347 = vadd.f32 0.0, %v3346
        %3348 = vmatmul.f32.gmra.mxu0 %v2950
        %v3349 = vpop.f32.mrf.mxu0
        %v3350 = vadd.f32 0.0, %v3349
        %3351 = vdwg.mxu0
        %v3352 = vld [vmem:[#allocation4] sm:$0xff]
        %v3353 = vld [vmem:[#allocation4 + $0x8] sm:$0xff]
        %v3354 = vld [vmem:[#allocation4 + $0x10] sm:$0xff]
        %v3355 = vld [vmem:[#allocation4 + $0x18] sm:$0xff]
        %v3356 = vld [vmem:[#allocation4 + $0x20] sm:$0xff]
        %v3357 = vld [vmem:[#allocation4 + $0x28] sm:$0xff]
        %v3358 = vld [vmem:[#allocation4 + $0x30] sm:$0xff]
        %v3359 = vld [vmem:[#allocation4 + $0x38] sm:$0xff]
        %v3360 = vld [vmem:[#allocation4 + $0x40] sm:$0xff]
        %v3361 = vld [vmem:[#allocation4 + $0x48] sm:$0xff]
        %v3362 = vld [vmem:[#allocation4 + $0x50] sm:$0xff]
        %v3363 = vld [vmem:[#allocation4 + $0x58] sm:$0xff]
        %v3364 = vld [vmem:[#allocation4 + $0x60] sm:$0xff]
        %v3365 = vld [vmem:[#allocation4 + $0x68] sm:$0xff]
        %v3366 = vld [vmem:[#allocation4 + $0x70] sm:$0xff]
        %v3367 = vld [vmem:[#allocation4 + $0x78] sm:$0xff]
        %v3368 = vld [vmem:[#allocation4 + $0x80] sm:$0xff]
        %v3369 = vld [vmem:[#allocation4 + $0x88] sm:$0xff]
        %v3370 = vld [vmem:[#allocation4 + $0x90] sm:$0xff]
        %v3371 = vld [vmem:[#allocation4 + $0x98] sm:$0xff]
        %v3372 = vld [vmem:[#allocation4 + $0xa0] sm:$0xff]
        %v3373 = vld [vmem:[#allocation4 + $0xa8] sm:$0xff]
        %v3374 = vld [vmem:[#allocation4 + $0xb0] sm:$0xff]
        %v3375 = vld [vmem:[#allocation4 + $0xb8] sm:$0xff]
        %v3376 = vld [vmem:[#allocation4 + $0xc0] sm:$0xff]
        %v3377 = vld [vmem:[#allocation4 + $0xc8] sm:$0xff]
        %v3378 = vld [vmem:[#allocation4 + $0xd0] sm:$0xff]
        %v3379 = vld [vmem:[#allocation4 + $0xd8] sm:$0xff]
        %v3380 = vld [vmem:[#allocation4 + $0xe0] sm:$0xff]
        %v3381 = vld [vmem:[#allocation4 + $0xe8] sm:$0xff]
        %v3382 = vld [vmem:[#allocation4 + $0xf0] sm:$0xff]
        %v3383 = vld [vmem:[#allocation4 + $0xf8] sm:$0xff]
        %v3384 = vld [vmem:[#allocation4 + $0x100] sm:$0xff]
        %v3385 = vld [vmem:[#allocation4 + $0x108] sm:$0xff]
        %v3386 = vld [vmem:[#allocation4 + $0x110] sm:$0xff]
        %v3387 = vld [vmem:[#allocation4 + $0x118] sm:$0xff]
        %v3388 = vld [vmem:[#allocation4 + $0x120] sm:$0xff]
        %v3389 = vld [vmem:[#allocation4 + $0x128] sm:$0xff]
        %v3390 = vld [vmem:[#allocation4 + $0x130] sm:$0xff]
        %v3391 = vld [vmem:[#allocation4 + $0x138] sm:$0xff]
        %v3392 = vld [vmem:[#allocation4 + $0x140] sm:$0xff]
        %v3393 = vld [vmem:[#allocation4 + $0x148] sm:$0xff]
        %v3394 = vld [vmem:[#allocation4 + $0x150] sm:$0xff]
        %v3395 = vld [vmem:[#allocation4 + $0x158] sm:$0xff]
        %v3396 = vld [vmem:[#allocation4 + $0x160] sm:$0xff]
        %v3397 = vld [vmem:[#allocation4 + $0x168] sm:$0xff]
        %v3398 = vld [vmem:[#allocation4 + $0x170] sm:$0xff]
        %v3399 = vld [vmem:[#allocation4 + $0x178] sm:$0xff]
        %v3400 = vld [vmem:[#allocation4 + $0x180] sm:$0xff]
        %v3401 = vld [vmem:[#allocation4 + $0x188] sm:$0xff]
        %v3402 = vld [vmem:[#allocation4 + $0x190] sm:$0xff]
        %v3403 = vld [vmem:[#allocation4 + $0x198] sm:$0xff]
        %v3404 = vld [vmem:[#allocation4 + $0x1a0] sm:$0xff]
        %v3405 = vld [vmem:[#allocation4 + $0x1a8] sm:$0xff]
        %v3406 = vld [vmem:[#allocation4 + $0x1b0] sm:$0xff]
        %v3407 = vld [vmem:[#allocation4 + $0x1b8] sm:$0xff]
        %v3408 = vld [vmem:[#allocation4 + $0x1c0] sm:$0xff]
        %v3409 = vld [vmem:[#allocation4 + $0x1c8] sm:$0xff]
        %v3410 = vld [vmem:[#allocation4 + $0x1d0] sm:$0xff]
        %v3411 = vld [vmem:[#allocation4 + $0x1d8] sm:$0xff]
        %v3412 = vld [vmem:[#allocation4 + $0x1e0] sm:$0xff]
        %v3413 = vld [vmem:[#allocation4 + $0x1e8] sm:$0xff]
        %v3414 = vld [vmem:[#allocation4 + $0x1f0] sm:$0xff]
        %v3415 = vld [vmem:[#allocation4 + $0x1f8] sm:$0xff]
        %v3416 = vld [vmem:[#allocation4 + $0x200] sm:$0xff]
        %v3417 = vld [vmem:[#allocation4 + $0x208] sm:$0xff]
        %v3418 = vld [vmem:[#allocation4 + $0x210] sm:$0xff]
        %v3419 = vld [vmem:[#allocation4 + $0x218] sm:$0xff]
        %v3420 = vld [vmem:[#allocation4 + $0x220] sm:$0xff]
        %v3421 = vld [vmem:[#allocation4 + $0x228] sm:$0xff]
        %v3422 = vld [vmem:[#allocation4 + $0x230] sm:$0xff]
        %v3423 = vld [vmem:[#allocation4 + $0x238] sm:$0xff]
        %v3424 = vld [vmem:[#allocation4 + $0x240] sm:$0xff]
        %v3425 = vld [vmem:[#allocation4 + $0x248] sm:$0xff]
        %v3426 = vld [vmem:[#allocation4 + $0x250] sm:$0xff]
        %v3427 = vld [vmem:[#allocation4 + $0x258] sm:$0xff]
        %v3428 = vld [vmem:[#allocation4 + $0x260] sm:$0xff]
        %v3429 = vld [vmem:[#allocation4 + $0x268] sm:$0xff]
        %v3430 = vld [vmem:[#allocation4 + $0x270] sm:$0xff]
        %v3431 = vld [vmem:[#allocation4 + $0x278] sm:$0xff]
        %v3432 = vld [vmem:[#allocation4 + $0x280] sm:$0xff]
        %v3433 = vld [vmem:[#allocation4 + $0x288] sm:$0xff]
        %v3434 = vld [vmem:[#allocation4 + $0x290] sm:$0xff]
        %v3435 = vld [vmem:[#allocation4 + $0x298] sm:$0xff]
        %v3436 = vld [vmem:[#allocation4 + $0x2a0] sm:$0xff]
        %v3437 = vld [vmem:[#allocation4 + $0x2a8] sm:$0xff]
        %v3438 = vld [vmem:[#allocation4 + $0x2b0] sm:$0xff]
        %v3439 = vld [vmem:[#allocation4 + $0x2b8] sm:$0xff]
        %v3440 = vmul.f32 %v3352, %v2970
        %v3441 = vmul.f32 %v3353, %v3020
        %v3442 = vmul.f32 %v3354, %v3070
        %v3443 = vmul.f32 %v3355, %v3120
        %v3444 = vmul.f32 %v3356, %v3170
        %v3445 = vmul.f32 %v3357, %v3220
        %v3446 = vmul.f32 %v3358, %v3270
        %v3447 = vmul.f32 %v3359, %v3320
        %v3448 = vmul.f32 %v3360, %v2973
        %v3449 = vmul.f32 %v3361, %v3023
        %v3450 = vmul.f32 %v3362, %v3073
        %v3451 = vmul.f32 %v3363, %v3123
        %v3452 = vmul.f32 %v3364, %v3173
        %v3453 = vmul.f32 %v3365, %v3223
        %v3454 = vmul.f32 %v3366, %v3273
        %v3455 = vmul.f32 %v3367, %v3323
        %v3456 = vmul.f32 %v3368, %v2976
        %v3457 = vmul.f32 %v3369, %v3026
        %v3458 = vmul.f32 %v3370, %v3076
        %v3459 = vmul.f32 %v3371, %v3126
        %v3460 = vmul.f32 %v3372, %v3176
        %v3461 = vmul.f32 %v3373, %v3226
        %v3462 = vmul.f32 %v3374, %v3276
        %v3463 = vmul.f32 %v3375, %v3326
        %v3464 = vmul.f32 %v3376, %v2979
        %v3465 = vmul.f32 %v3377, %v3029
        %v3466 = vmul.f32 %v3378, %v3079
        %v3467 = vmul.f32 %v3379, %v3129
        %v3468 = vmul.f32 %v3380, %v3179
        %v3469 = vmul.f32 %v3381, %v3229
        %v3470 = vmul.f32 %v3382, %v3279
        %v3471 = vmul.f32 %v3383, %v3329
        %v3472 = vmul.f32 %v3384, %v2982
        %v3473 = vmul.f32 %v3385, %v3032
        %v3474 = vmul.f32 %v3386, %v3082
        %v3475 = vmul.f32 %v3387, %v3132
        %v3476 = vmul.f32 %v3388, %v3182
        %v3477 = vmul.f32 %v3389, %v3232
        %v3478 = vmul.f32 %v3390, %v3282
        %v3479 = vmul.f32 %v3391, %v3332
        %v3480 = vmul.f32 %v3392, %v2985
        %v3481 = vmul.f32 %v3393, %v3035
        %v3482 = vmul.f32 %v3394, %v3085
        %v3483 = vmul.f32 %v3395, %v3135
        %v3484 = vmul.f32 %v3396, %v3185
        %v3485 = vmul.f32 %v3397, %v3235
        %v3486 = vmul.f32 %v3398, %v3285
        %v3487 = vmul.f32 %v3399, %v3335
        %v3488 = vmul.f32 %v3400, %v2988
        %v3489 = vmul.f32 %v3401, %v3038
        %v3490 = vmul.f32 %v3402, %v3088
        %v3491 = vmul.f32 %v3403, %v3138
        %v3492 = vmul.f32 %v3404, %v3188
        %v3493 = vmul.f32 %v3405, %v3238
        %v3494 = vmul.f32 %v3406, %v3288
        %v3495 = vmul.f32 %v3407, %v3338
        %v3496 = vmul.f32 %v3408, %v2991
        %v3497 = vmul.f32 %v3409, %v3041
        %v3498 = vmul.f32 %v3410, %v3091
        %v3499 = vmul.f32 %v3411, %v3141
        %v3500 = vmul.f32 %v3412, %v3191
        %v3501 = vmul.f32 %v3413, %v3241
        %v3502 = vmul.f32 %v3414, %v3291
        %v3503 = vmul.f32 %v3415, %v3341
        %v3504 = vmul.f32 %v3416, %v2994
        %v3505 = vmul.f32 %v3417, %v3044
        %v3506 = vmul.f32 %v3418, %v3094
        %v3507 = vmul.f32 %v3419, %v3144
        %v3508 = vmul.f32 %v3420, %v3194
        %v3509 = vmul.f32 %v3421, %v3244
        %v3510 = vmul.f32 %v3422, %v3294
        %v3511 = vmul.f32 %v3423, %v3344
        %v3512 = vmul.f32 %v3424, %v2997
        %v3513 = vmul.f32 %v3425, %v3047
        %v3514 = vmul.f32 %v3426, %v3097
        %v3515 = vmul.f32 %v3427, %v3147
        %v3516 = vmul.f32 %v3428, %v3197
        %v3517 = vmul.f32 %v3429, %v3247
        %v3518 = vmul.f32 %v3430, %v3297
        %v3519 = vmul.f32 %v3431, %v3347
        %v3520 = vmul.f32 %v3432, %v3000
        %v3521 = vmul.f32 %v3433, %v3050
        %v3522 = vmul.f32 %v3434, %v3100
        %v3523 = vmul.f32 %v3435, %v3150
        %v3524 = vmul.f32 %v3436, %v3200
        %v3525 = vmul.f32 %v3437, %v3250
        %v3526 = vmul.f32 %v3438, %v3300
        %v3527 = vmul.f32 %v3439, %v3350
        %3528 = vst [vmem:[#allocation3] sm:$0xff] %v3440
        %3529 = vst [vmem:[#allocation3 + $0x8] sm:$0xff] %v3441
        %3530 = vst [vmem:[#allocation3 + $0x10] sm:$0xff] %v3442
        %3531 = vst [vmem:[#allocation3 + $0x18] sm:$0xff] %v3443
        %3532 = vst [vmem:[#allocation3 + $0x20] sm:$0xff] %v3444
        %3533 = vst [vmem:[#allocation3 + $0x28] sm:$0xff] %v3445
        %3534 = vst [vmem:[#allocation3 + $0x30] sm:$0xff] %v3446
        %3535 = vst [vmem:[#allocation3 + $0x38] sm:$0xff] %v3447
        %3536 = vst [vmem:[#allocation3 + $0x40] sm:$0xff] %v3448
        %3537 = vst [vmem:[#allocation3 + $0x48] sm:$0xff] %v3449
        %3538 = vst [vmem:[#allocation3 + $0x50] sm:$0xff] %v3450
        %3539 = vst [vmem:[#allocation3 + $0x58] sm:$0xff] %v3451
        %3540 = vst [vmem:[#allocation3 + $0x60] sm:$0xff] %v3452
        %3541 = vst [vmem:[#allocation3 + $0x68] sm:$0xff] %v3453
        %3542 = vst [vmem:[#allocation3 + $0x70] sm:$0xff] %v3454
        %3543 = vst [vmem:[#allocation3 + $0x78] sm:$0xff] %v3455
        %3544 = vst [vmem:[#allocation3 + $0x80] sm:$0xff] %v3456
        %3545 = vst [vmem:[#allocation3 + $0x88] sm:$0xff] %v3457
        %3546 = vst [vmem:[#allocation3 + $0x90] sm:$0xff] %v3458
        %3547 = vst [vmem:[#allocation3 + $0x98] sm:$0xff] %v3459
        %3548 = vst [vmem:[#allocation3 + $0xa0] sm:$0xff] %v3460
        %3549 = vst [vmem:[#allocation3 + $0xa8] sm:$0xff] %v3461
        %3550 = vst [vmem:[#allocation3 + $0xb0] sm:$0xff] %v3462
        %3551 = vst [vmem:[#allocation3 + $0xb8] sm:$0xff] %v3463
        %3552 = vst [vmem:[#allocation3 + $0xc0] sm:$0xff] %v3464
        %3553 = vst [vmem:[#allocation3 + $0xc8] sm:$0xff] %v3465
        %3554 = vst [vmem:[#allocation3 + $0xd0] sm:$0xff] %v3466
        %3555 = vst [vmem:[#allocation3 + $0xd8] sm:$0xff] %v3467
        %3556 = vst [vmem:[#allocation3 + $0xe0] sm:$0xff] %v3468
        %3557 = vst [vmem:[#allocation3 + $0xe8] sm:$0xff] %v3469
        %3558 = vst [vmem:[#allocation3 + $0xf0] sm:$0xff] %v3470
        %3559 = vst [vmem:[#allocation3 + $0xf8] sm:$0xff] %v3471
        %3560 = vst [vmem:[#allocation3 + $0x100] sm:$0xff] %v3472
        %3561 = vst [vmem:[#allocation3 + $0x108] sm:$0xff] %v3473
        %3562 = vst [vmem:[#allocation3 + $0x110] sm:$0xff] %v3474
        %3563 = vst [vmem:[#allocation3 + $0x118] sm:$0xff] %v3475
        %3564 = vst [vmem:[#allocation3 + $0x120] sm:$0xff] %v3476
        %3565 = vst [vmem:[#allocation3 + $0x128] sm:$0xff] %v3477
        %3566 = vst [vmem:[#allocation3 + $0x130] sm:$0xff] %v3478
        %3567 = vst [vmem:[#allocation3 + $0x138] sm:$0xff] %v3479
        %3568 = vst [vmem:[#allocation3 + $0x140] sm:$0xff] %v3480
        %3569 = vst [vmem:[#allocation3 + $0x148] sm:$0xff] %v3481
        %3570 = vst [vmem:[#allocation3 + $0x150] sm:$0xff] %v3482
        %3571 = vst [vmem:[#allocation3 + $0x158] sm:$0xff] %v3483
        %3572 = vst [vmem:[#allocation3 + $0x160] sm:$0xff] %v3484
        %3573 = vst [vmem:[#allocation3 + $0x168] sm:$0xff] %v3485
        %3574 = vst [vmem:[#allocation3 + $0x170] sm:$0xff] %v3486
        %3575 = vst [vmem:[#allocation3 + $0x178] sm:$0xff] %v3487
        %3576 = vst [vmem:[#allocation3 + $0x180] sm:$0xff] %v3488
        %3577 = vst [vmem:[#allocation3 + $0x188] sm:$0xff] %v3489
        %3578 = vst [vmem:[#allocation3 + $0x190] sm:$0xff] %v3490
        %3579 = vst [vmem:[#allocation3 + $0x198] sm:$0xff] %v3491
        %3580 = vst [vmem:[#allocation3 + $0x1a0] sm:$0xff] %v3492
        %3581 = vst [vmem:[#allocation3 + $0x1a8] sm:$0xff] %v3493
        %3582 = vst [vmem:[#allocation3 + $0x1b0] sm:$0xff] %v3494
        %3583 = vst [vmem:[#allocation3 + $0x1b8] sm:$0xff] %v3495
        %3584 = vst [vmem:[#allocation3 + $0x1c0] sm:$0xff] %v3496
        %3585 = vst [vmem:[#allocation3 + $0x1c8] sm:$0xff] %v3497
        %3586 = vst [vmem:[#allocation3 + $0x1d0] sm:$0xff] %v3498
        %3587 = vst [vmem:[#allocation3 + $0x1d8] sm:$0xff] %v3499
        %3588 = vst [vmem:[#allocation3 + $0x1e0] sm:$0xff] %v3500
        %3589 = vst [vmem:[#allocation3 + $0x1e8] sm:$0xff] %v3501
        %3590 = vst [vmem:[#allocation3 + $0x1f0] sm:$0xff] %v3502
        %3591 = vst [vmem:[#allocation3 + $0x1f8] sm:$0xff] %v3503
        %3592 = vst [vmem:[#allocation3 + $0x200] sm:$0xff] %v3504
        %3593 = vst [vmem:[#allocation3 + $0x208] sm:$0xff] %v3505
        %3594 = vst [vmem:[#allocation3 + $0x210] sm:$0xff] %v3506
        %3595 = vst [vmem:[#allocation3 + $0x218] sm:$0xff] %v3507
        %3596 = vst [vmem:[#allocation3 + $0x220] sm:$0xff] %v3508
        %3597 = vst [vmem:[#allocation3 + $0x228] sm:$0xff] %v3509
        %3598 = vst [vmem:[#allocation3 + $0x230] sm:$0xff] %v3510
        %3599 = vst [vmem:[#allocation3 + $0x238] sm:$0xff] %v3511
        %3600 = vst [vmem:[#allocation3 + $0x240] sm:$0xff] %v3512
        %3601 = vst [vmem:[#allocation3 + $0x248] sm:$0xff] %v3513
        %3602 = vst [vmem:[#allocation3 + $0x250] sm:$0xff] %v3514
        %3603 = vst [vmem:[#allocation3 + $0x258] sm:$0xff] %v3515
        %3604 = vst [vmem:[#allocation3 + $0x260] sm:$0xff] %v3516
        %3605 = vst [vmem:[#allocation3 + $0x268] sm:$0xff] %v3517
        %3606 = vst [vmem:[#allocation3 + $0x270] sm:$0xff] %v3518
        %3607 = vst [vmem:[#allocation3 + $0x278] sm:$0xff] %v3519
        %3608 = vst [vmem:[#allocation3 + $0x280] sm:$0xff] %v3520
        %3609 = vst [vmem:[#allocation3 + $0x288] sm:$0xff] %v3521
        %3610 = vst [vmem:[#allocation3 + $0x290] sm:$0xff] %v3522
        %3611 = vst [vmem:[#allocation3 + $0x298] sm:$0xff] %v3523
        %3612 = vst [vmem:[#allocation3 + $0x2a0] sm:$0xff] %v3524
        %3613 = vst [vmem:[#allocation3 + $0x2a8] sm:$0xff] %v3525
        %3614 = vst [vmem:[#allocation3 + $0x2b0] sm:$0xff] %v3526
        %3615 = vst [vmem:[#allocation3 + $0x2b8] sm:$0xff] %v3527
        %v3616 = vld [vmem:[#allocation3] sm:$0xff]
        %v3617 = vld [vmem:[#allocation3 + $0x8] sm:$0xff]
        %v3618 = vld [vmem:[#allocation3 + $0x10] sm:$0xff]
        %v3619 = vld [vmem:[#allocation3 + $0x18] sm:$0xff]
        %v3620 = vld [vmem:[#allocation3 + $0x20] sm:$0xff]
        %v3621 = vld [vmem:[#allocation3 + $0x28] sm:$0xff]
        %v3622 = vld [vmem:[#allocation3 + $0x30] sm:$0xff]
        %v3623 = vld [vmem:[#allocation3 + $0x38] sm:$0xff]
        %v3624 = vld [vmem:[#allocation3 + $0x40] sm:$0xff]
        %v3625 = vld [vmem:[#allocation3 + $0x48] sm:$0xff]
        %v3626 = vld [vmem:[#allocation3 + $0x50] sm:$0xff]
        %v3627 = vld [vmem:[#allocation3 + $0x58] sm:$0xff]
        %v3628 = vld [vmem:[#allocation3 + $0x60] sm:$0xff]
        %v3629 = vld [vmem:[#allocation3 + $0x68] sm:$0xff]
        %v3630 = vld [vmem:[#allocation3 + $0x70] sm:$0xff]
        %v3631 = vld [vmem:[#allocation3 + $0x78] sm:$0xff]
        %v3632 = vld [vmem:[#allocation3 + $0x80] sm:$0xff]
        %v3633 = vld [vmem:[#allocation3 + $0x88] sm:$0xff]
        %v3634 = vld [vmem:[#allocation3 + $0x90] sm:$0xff]
        %v3635 = vld [vmem:[#allocation3 + $0x98] sm:$0xff]
        %v3636 = vld [vmem:[#allocation3 + $0xa0] sm:$0xff]
        %v3637 = vld [vmem:[#allocation3 + $0xa8] sm:$0xff]
        %v3638 = vld [vmem:[#allocation3 + $0xb0] sm:$0xff]
        %v3639 = vld [vmem:[#allocation3 + $0xb8] sm:$0xff]
        %v3640 = vld [vmem:[#allocation3 + $0xc0] sm:$0xff]
        %v3641 = vld [vmem:[#allocation3 + $0xc8] sm:$0xff]
        %v3642 = vld [vmem:[#allocation3 + $0xd0] sm:$0xff]
        %v3643 = vld [vmem:[#allocation3 + $0xd8] sm:$0xff]
        %v3644 = vld [vmem:[#allocation3 + $0xe0] sm:$0xff]
        %v3645 = vld [vmem:[#allocation3 + $0xe8] sm:$0xff]
        %v3646 = vld [vmem:[#allocation3 + $0xf0] sm:$0xff]
        %v3647 = vld [vmem:[#allocation3 + $0xf8] sm:$0xff]
        %v3648 = vld [vmem:[#allocation3 + $0x100] sm:$0xff]
        %v3649 = vld [vmem:[#allocation3 + $0x108] sm:$0xff]
        %v3650 = vld [vmem:[#allocation3 + $0x110] sm:$0xff]
        %v3651 = vld [vmem:[#allocation3 + $0x118] sm:$0xff]
        %v3652 = vld [vmem:[#allocation3 + $0x120] sm:$0xff]
        %v3653 = vld [vmem:[#allocation3 + $0x128] sm:$0xff]
        %v3654 = vld [vmem:[#allocation3 + $0x130] sm:$0xff]
        %v3655 = vld [vmem:[#allocation3 + $0x138] sm:$0xff]
        %v3656 = vld [vmem:[#allocation3 + $0x140] sm:$0xff]
        %v3657 = vld [vmem:[#allocation3 + $0x148] sm:$0xff]
        %v3658 = vld [vmem:[#allocation3 + $0x150] sm:$0xff]
        %v3659 = vld [vmem:[#allocation3 + $0x158] sm:$0xff]
        %v3660 = vld [vmem:[#allocation3 + $0x160] sm:$0xff]
        %v3661 = vld [vmem:[#allocation3 + $0x168] sm:$0xff]
        %v3662 = vld [vmem:[#allocation3 + $0x170] sm:$0xff]
        %v3663 = vld [vmem:[#allocation3 + $0x178] sm:$0xff]
        %v3664 = vld [vmem:[#allocation3 + $0x180] sm:$0xff]
        %v3665 = vld [vmem:[#allocation3 + $0x188] sm:$0xff]
        %v3666 = vld [vmem:[#allocation3 + $0x190] sm:$0xff]
        %v3667 = vld [vmem:[#allocation3 + $0x198] sm:$0xff]
        %v3668 = vld [vmem:[#allocation3 + $0x1a0] sm:$0xff]
        %v3669 = vld [vmem:[#allocation3 + $0x1a8] sm:$0xff]
        %v3670 = vld [vmem:[#allocation3 + $0x1b0] sm:$0xff]
        %v3671 = vld [vmem:[#allocation3 + $0x1b8] sm:$0xff]
        %v3672 = vld [vmem:[#allocation3 + $0x1c0] sm:$0xff]
        %v3673 = vld [vmem:[#allocation3 + $0x1c8] sm:$0xff]
        %v3674 = vld [vmem:[#allocation3 + $0x1d0] sm:$0xff]
        %v3675 = vld [vmem:[#allocation3 + $0x1d8] sm:$0xff]
        %v3676 = vld [vmem:[#allocation3 + $0x1e0] sm:$0xff]
        %v3677 = vld [vmem:[#allocation3 + $0x1e8] sm:$0xff]
        %v3678 = vld [vmem:[#allocation3 + $0x1f0] sm:$0xff]
        %v3679 = vld [vmem:[#allocation3 + $0x1f8] sm:$0xff]
        %v3680 = vld [vmem:[#allocation3 + $0x200] sm:$0xff]
        %v3681 = vld [vmem:[#allocation3 + $0x208] sm:$0xff]
        %v3682 = vld [vmem:[#allocation3 + $0x210] sm:$0xff]
        %v3683 = vld [vmem:[#allocation3 + $0x218] sm:$0xff]
        %v3684 = vld [vmem:[#allocation3 + $0x220] sm:$0xff]
        %v3685 = vld [vmem:[#allocation3 + $0x228] sm:$0xff]
        %v3686 = vld [vmem:[#allocation3 + $0x230] sm:$0xff]
        %v3687 = vld [vmem:[#allocation3 + $0x238] sm:$0xff]
        %v3688 = vld [vmem:[#allocation3 + $0x240] sm:$0xff]
        %v3689 = vld [vmem:[#allocation3 + $0x248] sm:$0xff]
        %v3690 = vld [vmem:[#allocation3 + $0x250] sm:$0xff]
        %v3691 = vld [vmem:[#allocation3 + $0x258] sm:$0xff]
        %v3692 = vld [vmem:[#allocation3 + $0x260] sm:$0xff]
        %v3693 = vld [vmem:[#allocation3 + $0x268] sm:$0xff]
        %v3694 = vld [vmem:[#allocation3 + $0x270] sm:$0xff]
        %v3695 = vld [vmem:[#allocation3 + $0x278] sm:$0xff]
        %v3696 = vld [vmem:[#allocation3 + $0x280] sm:$0xff]
        %v3697 = vld [vmem:[#allocation3 + $0x288] sm:$0xff]
        %v3698 = vld [vmem:[#allocation3 + $0x290] sm:$0xff]
        %v3699 = vld [vmem:[#allocation3 + $0x298] sm:$0xff]
        %v3700 = vld [vmem:[#allocation3 + $0x2a0] sm:$0xff]
        %v3701 = vld [vmem:[#allocation3 + $0x2a8] sm:$0xff]
        %v3702 = vld [vmem:[#allocation3 + $0x2b0] sm:$0xff]
        %v3703 = vld [vmem:[#allocation3 + $0x2b8] sm:$0xff]
        %v3704 = vld [vmem:[%s11] sm:$0xff]
        %v3705 = vld [vmem:[%s11 + $0x8] sm:$0xff]
        %v3706 = vld [vmem:[%s11 + $0x10] sm:$0xff]
        %v3707 = vld [vmem:[%s11 + $0x18] sm:$0xff]
        %v3708 = vld [vmem:[%s11 + $0x20] sm:$0xff]
        %v3709 = vld [vmem:[%s11 + $0x28] sm:$0xff]
        %v3710 = vld [vmem:[%s11 + $0x30] sm:$0xff]
        %v3711 = vld [vmem:[%s11 + $0x38] sm:$0xff]
        %v3712 = vld [vmem:[%s11 + $0x40] sm:$0xff]
        %v3713 = vld [vmem:[%s11 + $0x48] sm:$0xff]
        %v3714 = vld [vmem:[%s11 + $0x50] sm:$0xff]
        %v3715 = vld [vmem:[%s11 + $0x58] sm:$0xff]
        %v3716 = vld [vmem:[%s11 + $0x60] sm:$0xff]
        %v3717 = vld [vmem:[%s11 + $0x68] sm:$0xff]
        %v3718 = vld [vmem:[%s11 + $0x70] sm:$0xff]
        %v3719 = vld [vmem:[%s11 + $0x78] sm:$0xff]
        %v3720 = vld [vmem:[%s11 + $0x80] sm:$0xff]
        %v3721 = vld [vmem:[%s11 + $0x88] sm:$0xff]
        %v3722 = vld [vmem:[%s11 + $0x90] sm:$0xff]
        %v3723 = vld [vmem:[%s11 + $0x98] sm:$0xff]
        %v3724 = vld [vmem:[%s11 + $0xa0] sm:$0xff]
        %v3725 = vld [vmem:[%s11 + $0xa8] sm:$0xff]
        %v3726 = vld [vmem:[%s11 + $0xb0] sm:$0xff]
        %v3727 = vld [vmem:[%s11 + $0xb8] sm:$0xff]
        %v3728 = vld [vmem:[%s11 + $0xc0] sm:$0xff]
        %v3729 = vld [vmem:[%s11 + $0xc8] sm:$0xff]
        %v3730 = vld [vmem:[%s11 + $0xd0] sm:$0xff]
        %v3731 = vld [vmem:[%s11 + $0xd8] sm:$0xff]
        %v3732 = vld [vmem:[%s11 + $0xe0] sm:$0xff]
        %v3733 = vld [vmem:[%s11 + $0xe8] sm:$0xff]
        %v3734 = vld [vmem:[%s11 + $0xf0] sm:$0xff]
        %v3735 = vld [vmem:[%s11 + $0xf8] sm:$0xff]
        %v3736 = vld [vmem:[%s11 + $0x100] sm:$0xff]
        %v3737 = vld [vmem:[%s11 + $0x108] sm:$0xff]
        %v3738 = vld [vmem:[%s11 + $0x110] sm:$0xff]
        %v3739 = vld [vmem:[%s11 + $0x118] sm:$0xff]
        %v3740 = vld [vmem:[%s11 + $0x120] sm:$0xff]
        %v3741 = vld [vmem:[%s11 + $0x128] sm:$0xff]
        %v3742 = vld [vmem:[%s11 + $0x130] sm:$0xff]
        %v3743 = vld [vmem:[%s11 + $0x138] sm:$0xff]
        %v3744 = vld [vmem:[%s11 + $0x140] sm:$0xff]
        %v3745 = vld [vmem:[%s11 + $0x148] sm:$0xff]
        %v3746 = vld [vmem:[%s11 + $0x150] sm:$0xff]
        %v3747 = vld [vmem:[%s11 + $0x158] sm:$0xff]
        %v3748 = vld [vmem:[%s11 + $0x160] sm:$0xff]
        %v3749 = vld [vmem:[%s11 + $0x168] sm:$0xff]
        %v3750 = vld [vmem:[%s11 + $0x170] sm:$0xff]
        %v3751 = vld [vmem:[%s11 + $0x178] sm:$0xff]
        %v3752 = vld [vmem:[%s11 + $0x180] sm:$0xff]
        %v3753 = vld [vmem:[%s11 + $0x188] sm:$0xff]
        %v3754 = vld [vmem:[%s11 + $0x190] sm:$0xff]
        %v3755 = vld [vmem:[%s11 + $0x198] sm:$0xff]
        %v3756 = vld [vmem:[%s11 + $0x1a0] sm:$0xff]
        %v3757 = vld [vmem:[%s11 + $0x1a8] sm:$0xff]
        %v3758 = vld [vmem:[%s11 + $0x1b0] sm:$0xff]
        %v3759 = vld [vmem:[%s11 + $0x1b8] sm:$0xff]
        %v3760 = vld [vmem:[%s11 + $0x1c0] sm:$0xff]
        %v3761 = vld [vmem:[%s11 + $0x1c8] sm:$0xff]
        %v3762 = vld [vmem:[%s11 + $0x1d0] sm:$0xff]
        %v3763 = vld [vmem:[%s11 + $0x1d8] sm:$0xff]
        %v3764 = vld [vmem:[%s11 + $0x1e0] sm:$0xff]
        %v3765 = vld [vmem:[%s11 + $0x1e8] sm:$0xff]
        %v3766 = vld [vmem:[%s11 + $0x1f0] sm:$0xff]
        %v3767 = vld [vmem:[%s11 + $0x1f8] sm:$0xff]
        %v3768 = vld [vmem:[%s11 + $0x200] sm:$0xff]
        %v3769 = vld [vmem:[%s11 + $0x208] sm:$0xff]
        %v3770 = vld [vmem:[%s11 + $0x210] sm:$0xff]
        %v3771 = vld [vmem:[%s11 + $0x218] sm:$0xff]
        %v3772 = vld [vmem:[%s11 + $0x220] sm:$0xff]
        %v3773 = vld [vmem:[%s11 + $0x228] sm:$0xff]
        %v3774 = vld [vmem:[%s11 + $0x230] sm:$0xff]
        %v3775 = vld [vmem:[%s11 + $0x238] sm:$0xff]
        %v3776 = vld [vmem:[%s11 + $0x240] sm:$0xff]
        %v3777 = vld [vmem:[%s11 + $0x248] sm:$0xff]
        %v3778 = vld [vmem:[%s11 + $0x250] sm:$0xff]
        %v3779 = vld [vmem:[%s11 + $0x258] sm:$0xff]
        %v3780 = vld [vmem:[%s11 + $0x260] sm:$0xff]
        %v3781 = vld [vmem:[%s11 + $0x268] sm:$0xff]
        %v3782 = vld [vmem:[%s11 + $0x270] sm:$0xff]
        %v3783 = vld [vmem:[%s11 + $0x278] sm:$0xff]
        %v3784 = vld [vmem:[%s11 + $0x280] sm:$0xff]
        %v3785 = vld [vmem:[%s11 + $0x288] sm:$0xff]
        %v3786 = vld [vmem:[%s11 + $0x290] sm:$0xff]
        %v3787 = vld [vmem:[%s11 + $0x298] sm:$0xff]
        %v3788 = vld [vmem:[%s11 + $0x2a0] sm:$0xff]
        %v3789 = vld [vmem:[%s11 + $0x2a8] sm:$0xff]
        %v3790 = vld [vmem:[%s11 + $0x2b0] sm:$0xff]
        %v3791 = vld [vmem:[%s11 + $0x2b8] sm:$0xff]
        %v3792 = vld [vmem:[%s11 + $0x2c0] sm:$0xff]
        %v3793 = vld [vmem:[%s11 + $0x2c8] sm:$0xff]
        %v3794 = vld [vmem:[%s11 + $0x2d0] sm:$0xff]
        %v3795 = vld [vmem:[%s11 + $0x2d8] sm:$0xff]
        %v3796 = vld [vmem:[%s11 + $0x2e0] sm:$0xff]
        %v3797 = vld [vmem:[%s11 + $0x2e8] sm:$0xff]
        %v3798 = vld [vmem:[%s11 + $0x2f0] sm:$0xff]
        %v3799 = vld [vmem:[%s11 + $0x2f8] sm:$0xff]
        %v3800 = vld [vmem:[%s11 + $0x300] sm:$0xff]
        %v3801 = vld [vmem:[%s11 + $0x308] sm:$0xff]
        %v3802 = vld [vmem:[%s11 + $0x310] sm:$0xff]
        %v3803 = vld [vmem:[%s11 + $0x318] sm:$0xff]
        %v3804 = vld [vmem:[%s11 + $0x320] sm:$0xff]
        %v3805 = vld [vmem:[%s11 + $0x328] sm:$0xff]
        %v3806 = vld [vmem:[%s11 + $0x330] sm:$0xff]
        %v3807 = vld [vmem:[%s11 + $0x338] sm:$0xff]
        %v3808 = vld [vmem:[%s11 + $0x340] sm:$0xff]
        %v3809 = vld [vmem:[%s11 + $0x348] sm:$0xff]
        %v3810 = vld [vmem:[%s11 + $0x350] sm:$0xff]
        %v3811 = vld [vmem:[%s11 + $0x358] sm:$0xff]
        %v3812 = vld [vmem:[%s11 + $0x360] sm:$0xff]
        %v3813 = vld [vmem:[%s11 + $0x368] sm:$0xff]
        %v3814 = vld [vmem:[%s11 + $0x370] sm:$0xff]
        %v3815 = vld [vmem:[%s11 + $0x378] sm:$0xff]
        %v3816 = vld [vmem:[%s11 + $0x380] sm:$0xff]
        %v3817 = vld [vmem:[%s11 + $0x388] sm:$0xff]
        %v3818 = vld [vmem:[%s11 + $0x390] sm:$0xff]
        %v3819 = vld [vmem:[%s11 + $0x398] sm:$0xff]
        %v3820 = vld [vmem:[%s11 + $0x3a0] sm:$0xff]
        %v3821 = vld [vmem:[%s11 + $0x3a8] sm:$0xff]
        %v3822 = vld [vmem:[%s11 + $0x3b0] sm:$0xff]
        %v3823 = vld [vmem:[%s11 + $0x3b8] sm:$0xff]
        %v3824 = vld [vmem:[%s11 + $0x3c0] sm:$0xff]
        %v3825 = vld [vmem:[%s11 + $0x3c8] sm:$0xff]
        %v3826 = vld [vmem:[%s11 + $0x3d0] sm:$0xff]
        %v3827 = vld [vmem:[%s11 + $0x3d8] sm:$0xff]
        %v3828 = vld [vmem:[%s11 + $0x3e0] sm:$0xff]
        %v3829 = vld [vmem:[%s11 + $0x3e8] sm:$0xff]
        %v3830 = vld [vmem:[%s11 + $0x3f0] sm:$0xff]
        %v3831 = vld [vmem:[%s11 + $0x3f8] sm:$0xff]
        %v3832 = vld [vmem:[%s8] sm:$0x1]
        %v3833 = vperm.slane %v3832, 0
        %v3834 = vmul.f32 %v1119, %v3833
        %v3835 = vmul.f32 %v1120, %v3833
        %v3836 = vmul.f32 %v1121, %v3833
        %v3837 = vmul.f32 %v1122, %v3833
        %v3838 = vmul.f32 %v1123, %v3833
        %v3839 = vmul.f32 %v1124, %v3833
        %v3840 = vmul.f32 %v1125, %v3833
        %v3841 = vmul.f32 %v1126, %v3833
        %v3842 = vmul.f32 %v1127, %v3833
        %v3843 = vmul.f32 %v1128, %v3833
        %v3844 = vmul.f32 %v1129, %v3833
        %3845 = vmatpush.msra.mxu0 %v3719
        %3846 = vmatpush.msra.mxu0 %v3718
        %3847 = vmatpush.msra.mxu0 %v3717
        %3848 = vmatpush.msra.mxu0 %v3716
        %3849 = vmatpush.msra.mxu0 %v3715
        %3850 = vmatpush.msra.mxu0 %v3714
        %3851 = vmatpush.msra.mxu0 %v3713
        %3852 = vmatpush.msra.mxu0 %v3712
        %3853 = vmatpush.msra.mxu0 %v3711
        %3854 = vmatpush.msra.mxu0 %v3710
        %3855 = vmatpush.msra.mxu0 %v3709
        %3856 = vmatpush.msra.mxu0 %v3708
        %3857 = vmatpush.msra.mxu0 %v3707
        %3858 = vmatpush.msra.mxu0 %v3706
        %3859 = vmatpush.msra.mxu0 %v3705
        %3860 = vmatpush.msra.mxu0 %v3704
        %3861 = vmatmul.f32.gmra.mxu0 %v3616
        %v3862 = vpop.f32.mrf.mxu0
        %v3863 = vadd.f32 %v3834, %v3862
        %3864 = vmatmul.f32.gmra.mxu0 %v3624
        %v3865 = vpop.f32.mrf.mxu0
        %v3866 = vadd.f32 %v3835, %v3865
        %3867 = vmatmul.f32.gmra.mxu0 %v3632
        %v3868 = vpop.f32.mrf.mxu0
        %v3869 = vadd.f32 %v3836, %v3868
        %3870 = vmatmul.f32.gmra.mxu0 %v3640
        %v3871 = vpop.f32.mrf.mxu0
        %v3872 = vadd.f32 %v3837, %v3871
        %3873 = vmatmul.f32.gmra.mxu0 %v3648
        %v3874 = vpop.f32.mrf.mxu0
        %v3875 = vadd.f32 %v3838, %v3874
        %3876 = vmatmul.f32.gmra.mxu0 %v3656
        %v3877 = vpop.f32.mrf.mxu0
        %v3878 = vadd.f32 %v3839, %v3877
        %3879 = vmatmul.f32.gmra.mxu0 %v3664
        %v3880 = vpop.f32.mrf.mxu0
        %v3881 = vadd.f32 %v3840, %v3880
        %3882 = vmatmul.f32.gmra.mxu0 %v3672
        %v3883 = vpop.f32.mrf.mxu0
        %v3884 = vadd.f32 %v3841, %v3883
        %3885 = vmatmul.f32.gmra.mxu0 %v3680
        %v3886 = vpop.f32.mrf.mxu0
        %v3887 = vadd.f32 %v3842, %v3886
        %3888 = vmatmul.f32.gmra.mxu0 %v3688
        %v3889 = vpop.f32.mrf.mxu0
        %v3890 = vadd.f32 %v3843, %v3889
        %3891 = vmatmul.f32.gmra.mxu0 %v3696
        %v3892 = vpop.f32.mrf.mxu0
        %v3893 = vadd.f32 %v3844, %v3892
        %3894 = vdwg.mxu0
        %3895 = vmatpush.msra.mxu0 %v3735
        %3896 = vmatpush.msra.mxu0 %v3734
        %3897 = vmatpush.msra.mxu0 %v3733
        %3898 = vmatpush.msra.mxu0 %v3732
        %3899 = vmatpush.msra.mxu0 %v3731
        %3900 = vmatpush.msra.mxu0 %v3730
        %3901 = vmatpush.msra.mxu0 %v3729
        %3902 = vmatpush.msra.mxu0 %v3728
        %3903 = vmatpush.msra.mxu0 %v3727
        %3904 = vmatpush.msra.mxu0 %v3726
        %3905 = vmatpush.msra.mxu0 %v3725
        %3906 = vmatpush.msra.mxu0 %v3724
        %3907 = vmatpush.msra.mxu0 %v3723
        %3908 = vmatpush.msra.mxu0 %v3722
        %3909 = vmatpush.msra.mxu0 %v3721
        %3910 = vmatpush.msra.mxu0 %v3720
        %3911 = vmatmul.f32.gmra.mxu0 %v3617
        %v3912 = vpop.f32.mrf.mxu0
        %v3913 = vadd.f32 %v3863, %v3912
        %3914 = vmatmul.f32.gmra.mxu0 %v3625
        %v3915 = vpop.f32.mrf.mxu0
        %v3916 = vadd.f32 %v3866, %v3915
        %3917 = vmatmul.f32.gmra.mxu0 %v3633
        %v3918 = vpop.f32.mrf.mxu0
        %v3919 = vadd.f32 %v3869, %v3918
        %3920 = vmatmul.f32.gmra.mxu0 %v3641
        %v3921 = vpop.f32.mrf.mxu0
        %v3922 = vadd.f32 %v3872, %v3921
        %3923 = vmatmul.f32.gmra.mxu0 %v3649
        %v3924 = vpop.f32.mrf.mxu0
        %v3925 = vadd.f32 %v3875, %v3924
        %3926 = vmatmul.f32.gmra.mxu0 %v3657
        %v3927 = vpop.f32.mrf.mxu0
        %v3928 = vadd.f32 %v3878, %v3927
        %3929 = vmatmul.f32.gmra.mxu0 %v3665
        %v3930 = vpop.f32.mrf.mxu0
        %v3931 = vadd.f32 %v3881, %v3930
        %3932 = vmatmul.f32.gmra.mxu0 %v3673
        %v3933 = vpop.f32.mrf.mxu0
        %v3934 = vadd.f32 %v3884, %v3933
        %3935 = vmatmul.f32.gmra.mxu0 %v3681
        %v3936 = vpop.f32.mrf.mxu0
        %v3937 = vadd.f32 %v3887, %v3936
        %3938 = vmatmul.f32.gmra.mxu0 %v3689
        %v3939 = vpop.f32.mrf.mxu0
        %v3940 = vadd.f32 %v3890, %v3939
        %3941 = vmatmul.f32.gmra.mxu0 %v3697
        %v3942 = vpop.f32.mrf.mxu0
        %v3943 = vadd.f32 %v3893, %v3942
        %3944 = vdwg.mxu0
        %3945 = vmatpush.msra.mxu0 %v3751
        %3946 = vmatpush.msra.mxu0 %v3750
        %3947 = vmatpush.msra.mxu0 %v3749
        %3948 = vmatpush.msra.mxu0 %v3748
        %3949 = vmatpush.msra.mxu0 %v3747
        %3950 = vmatpush.msra.mxu0 %v3746
        %3951 = vmatpush.msra.mxu0 %v3745
        %3952 = vmatpush.msra.mxu0 %v3744
        %3953 = vmatpush.msra.mxu0 %v3743
        %3954 = vmatpush.msra.mxu0 %v3742
        %3955 = vmatpush.msra.mxu0 %v3741
        %3956 = vmatpush.msra.mxu0 %v3740
        %3957 = vmatpush.msra.mxu0 %v3739
        %3958 = vmatpush.msra.mxu0 %v3738
        %3959 = vmatpush.msra.mxu0 %v3737
        %3960 = vmatpush.msra.mxu0 %v3736
        %3961 = vmatmul.f32.gmra.mxu0 %v3618
        %v3962 = vpop.f32.mrf.mxu0
        %v3963 = vadd.f32 %v3913, %v3962
        %3964 = vmatmul.f32.gmra.mxu0 %v3626
        %v3965 = vpop.f32.mrf.mxu0
        %v3966 = vadd.f32 %v3916, %v3965
        %3967 = vmatmul.f32.gmra.mxu0 %v3634
        %v3968 = vpop.f32.mrf.mxu0
        %v3969 = vadd.f32 %v3919, %v3968
        %3970 = vmatmul.f32.gmra.mxu0 %v3642
        %v3971 = vpop.f32.mrf.mxu0
        %v3972 = vadd.f32 %v3922, %v3971
        %3973 = vmatmul.f32.gmra.mxu0 %v3650
        %v3974 = vpop.f32.mrf.mxu0
        %v3975 = vadd.f32 %v3925, %v3974
        %3976 = vmatmul.f32.gmra.mxu0 %v3658
        %v3977 = vpop.f32.mrf.mxu0
        %v3978 = vadd.f32 %v3928, %v3977
        %3979 = vmatmul.f32.gmra.mxu0 %v3666
        %v3980 = vpop.f32.mrf.mxu0
        %v3981 = vadd.f32 %v3931, %v3980
        %3982 = vmatmul.f32.gmra.mxu0 %v3674
        %v3983 = vpop.f32.mrf.mxu0
        %v3984 = vadd.f32 %v3934, %v3983
        %3985 = vmatmul.f32.gmra.mxu0 %v3682
        %v3986 = vpop.f32.mrf.mxu0
        %v3987 = vadd.f32 %v3937, %v3986
        %3988 = vmatmul.f32.gmra.mxu0 %v3690
        %v3989 = vpop.f32.mrf.mxu0
        %v3990 = vadd.f32 %v3940, %v3989
        %3991 = vmatmul.f32.gmra.mxu0 %v3698
        %v3992 = vpop.f32.mrf.mxu0
        %v3993 = vadd.f32 %v3943, %v3992
        %3994 = vdwg.mxu0
        %3995 = vmatpush.msra.mxu0 %v3767
        %3996 = vmatpush.msra.mxu0 %v3766
        %3997 = vmatpush.msra.mxu0 %v3765
        %3998 = vmatpush.msra.mxu0 %v3764
        %3999 = vmatpush.msra.mxu0 %v3763
        %4000 = vmatpush.msra.mxu0 %v3762
        %4001 = vmatpush.msra.mxu0 %v3761
        %4002 = vmatpush.msra.mxu0 %v3760
        %4003 = vmatpush.msra.mxu0 %v3759
        %4004 = vmatpush.msra.mxu0 %v3758
        %4005 = vmatpush.msra.mxu0 %v3757
        %4006 = vmatpush.msra.mxu0 %v3756
        %4007 = vmatpush.msra.mxu0 %v3755
        %4008 = vmatpush.msra.mxu0 %v3754
        %4009 = vmatpush.msra.mxu0 %v3753
        %4010 = vmatpush.msra.mxu0 %v3752
        %4011 = vmatmul.f32.gmra.mxu0 %v3619
        %v4012 = vpop.f32.mrf.mxu0
        %v4013 = vadd.f32 %v3963, %v4012
        %4014 = vmatmul.f32.gmra.mxu0 %v3627
        %v4015 = vpop.f32.mrf.mxu0
        %v4016 = vadd.f32 %v3966, %v4015
        %4017 = vmatmul.f32.gmra.mxu0 %v3635
        %v4018 = vpop.f32.mrf.mxu0
        %v4019 = vadd.f32 %v3969, %v4018
        %4020 = vmatmul.f32.gmra.mxu0 %v3643
        %v4021 = vpop.f32.mrf.mxu0
        %v4022 = vadd.f32 %v3972, %v4021
        %4023 = vmatmul.f32.gmra.mxu0 %v3651
        %v4024 = vpop.f32.mrf.mxu0
        %v4025 = vadd.f32 %v3975, %v4024
        %4026 = vmatmul.f32.gmra.mxu0 %v3659
        %v4027 = vpop.f32.mrf.mxu0
        %v4028 = vadd.f32 %v3978, %v4027
        %4029 = vmatmul.f32.gmra.mxu0 %v3667
        %v4030 = vpop.f32.mrf.mxu0
        %v4031 = vadd.f32 %v3981, %v4030
        %4032 = vmatmul.f32.gmra.mxu0 %v3675
        %v4033 = vpop.f32.mrf.mxu0
        %v4034 = vadd.f32 %v3984, %v4033
        %4035 = vmatmul.f32.gmra.mxu0 %v3683
        %v4036 = vpop.f32.mrf.mxu0
        %v4037 = vadd.f32 %v3987, %v4036
        %4038 = vmatmul.f32.gmra.mxu0 %v3691
        %v4039 = vpop.f32.mrf.mxu0
        %v4040 = vadd.f32 %v3990, %v4039
        %4041 = vmatmul.f32.gmra.mxu0 %v3699
        %v4042 = vpop.f32.mrf.mxu0
        %v4043 = vadd.f32 %v3993, %v4042
        %4044 = vdwg.mxu0
        %4045 = vmatpush.msra.mxu0 %v3783
        %4046 = vmatpush.msra.mxu0 %v3782
        %4047 = vmatpush.msra.mxu0 %v3781
        %4048 = vmatpush.msra.mxu0 %v3780
        %4049 = vmatpush.msra.mxu0 %v3779
        %4050 = vmatpush.msra.mxu0 %v3778
        %4051 = vmatpush.msra.mxu0 %v3777
        %4052 = vmatpush.msra.mxu0 %v3776
        %4053 = vmatpush.msra.mxu0 %v3775
        %4054 = vmatpush.msra.mxu0 %v3774
        %4055 = vmatpush.msra.mxu0 %v3773
        %4056 = vmatpush.msra.mxu0 %v3772
        %4057 = vmatpush.msra.mxu0 %v3771
        %4058 = vmatpush.msra.mxu0 %v3770
        %4059 = vmatpush.msra.mxu0 %v3769
        %4060 = vmatpush.msra.mxu0 %v3768
        %4061 = vmatmul.f32.gmra.mxu0 %v3620
        %v4062 = vpop.f32.mrf.mxu0
        %v4063 = vadd.f32 %v4013, %v4062
        %4064 = vmatmul.f32.gmra.mxu0 %v3628
        %v4065 = vpop.f32.mrf.mxu0
        %v4066 = vadd.f32 %v4016, %v4065
        %4067 = vmatmul.f32.gmra.mxu0 %v3636
        %v4068 = vpop.f32.mrf.mxu0
        %v4069 = vadd.f32 %v4019, %v4068
        %4070 = vmatmul.f32.gmra.mxu0 %v3644
        %v4071 = vpop.f32.mrf.mxu0
        %v4072 = vadd.f32 %v4022, %v4071
        %4073 = vmatmul.f32.gmra.mxu0 %v3652
        %v4074 = vpop.f32.mrf.mxu0
        %v4075 = vadd.f32 %v4025, %v4074
        %4076 = vmatmul.f32.gmra.mxu0 %v3660
        %v4077 = vpop.f32.mrf.mxu0
        %v4078 = vadd.f32 %v4028, %v4077
        %4079 = vmatmul.f32.gmra.mxu0 %v3668
        %v4080 = vpop.f32.mrf.mxu0
        %v4081 = vadd.f32 %v4031, %v4080
        %4082 = vmatmul.f32.gmra.mxu0 %v3676
        %v4083 = vpop.f32.mrf.mxu0
        %v4084 = vadd.f32 %v4034, %v4083
        %4085 = vmatmul.f32.gmra.mxu0 %v3684
        %v4086 = vpop.f32.mrf.mxu0
        %v4087 = vadd.f32 %v4037, %v4086
        %4088 = vmatmul.f32.gmra.mxu0 %v3692
        %v4089 = vpop.f32.mrf.mxu0
        %v4090 = vadd.f32 %v4040, %v4089
        %4091 = vmatmul.f32.gmra.mxu0 %v3700
        %v4092 = vpop.f32.mrf.mxu0
        %v4093 = vadd.f32 %v4043, %v4092
        %4094 = vdwg.mxu0
        %4095 = vmatpush.msra.mxu0 %v3799
        %4096 = vmatpush.msra.mxu0 %v3798
        %4097 = vmatpush.msra.mxu0 %v3797
        %4098 = vmatpush.msra.mxu0 %v3796
        %4099 = vmatpush.msra.mxu0 %v3795
        %4100 = vmatpush.msra.mxu0 %v3794
        %4101 = vmatpush.msra.mxu0 %v3793
        %4102 = vmatpush.msra.mxu0 %v3792
        %4103 = vmatpush.msra.mxu0 %v3791
        %4104 = vmatpush.msra.mxu0 %v3790
        %4105 = vmatpush.msra.mxu0 %v3789
        %4106 = vmatpush.msra.mxu0 %v3788
        %4107 = vmatpush.msra.mxu0 %v3787
        %4108 = vmatpush.msra.mxu0 %v3786
        %4109 = vmatpush.msra.mxu0 %v3785
        %4110 = vmatpush.msra.mxu0 %v3784
        %4111 = vmatmul.f32.gmra.mxu0 %v3621
        %v4112 = vpop.f32.mrf.mxu0
        %v4113 = vadd.f32 %v4063, %v4112
        %4114 = vmatmul.f32.gmra.mxu0 %v3629
        %v4115 = vpop.f32.mrf.mxu0
        %v4116 = vadd.f32 %v4066, %v4115
        %4117 = vmatmul.f32.gmra.mxu0 %v3637
        %v4118 = vpop.f32.mrf.mxu0
        %v4119 = vadd.f32 %v4069, %v4118
        %4120 = vmatmul.f32.gmra.mxu0 %v3645
        %v4121 = vpop.f32.mrf.mxu0
        %v4122 = vadd.f32 %v4072, %v4121
        %4123 = vmatmul.f32.gmra.mxu0 %v3653
        %v4124 = vpop.f32.mrf.mxu0
        %v4125 = vadd.f32 %v4075, %v4124
        %4126 = vmatmul.f32.gmra.mxu0 %v3661
        %v4127 = vpop.f32.mrf.mxu0
        %v4128 = vadd.f32 %v4078, %v4127
        %4129 = vmatmul.f32.gmra.mxu0 %v3669
        %v4130 = vpop.f32.mrf.mxu0
        %v4131 = vadd.f32 %v4081, %v4130
        %4132 = vmatmul.f32.gmra.mxu0 %v3677
        %v4133 = vpop.f32.mrf.mxu0
        %v4134 = vadd.f32 %v4084, %v4133
        %4135 = vmatmul.f32.gmra.mxu0 %v3685
        %v4136 = vpop.f32.mrf.mxu0
        %v4137 = vadd.f32 %v4087, %v4136
        %4138 = vmatmul.f32.gmra.mxu0 %v3693
        %v4139 = vpop.f32.mrf.mxu0
        %v4140 = vadd.f32 %v4090, %v4139
        %4141 = vmatmul.f32.gmra.mxu0 %v3701
        %v4142 = vpop.f32.mrf.mxu0
        %v4143 = vadd.f32 %v4093, %v4142
        %4144 = vdwg.mxu0
        %4145 = vmatpush.msra.mxu0 %v3815
        %4146 = vmatpush.msra.mxu0 %v3814
        %4147 = vmatpush.msra.mxu0 %v3813
        %4148 = vmatpush.msra.mxu0 %v3812
        %4149 = vmatpush.msra.mxu0 %v3811
        %4150 = vmatpush.msra.mxu0 %v3810
        %4151 = vmatpush.msra.mxu0 %v3809
        %4152 = vmatpush.msra.mxu0 %v3808
        %4153 = vmatpush.msra.mxu0 %v3807
        %4154 = vmatpush.msra.mxu0 %v3806
        %4155 = vmatpush.msra.mxu0 %v3805
        %4156 = vmatpush.msra.mxu0 %v3804
        %4157 = vmatpush.msra.mxu0 %v3803
        %4158 = vmatpush.msra.mxu0 %v3802
        %4159 = vmatpush.msra.mxu0 %v3801
        %4160 = vmatpush.msra.mxu0 %v3800
        %4161 = vmatmul.f32.gmra.mxu0 %v3622
        %v4162 = vpop.f32.mrf.mxu0
        %v4163 = vadd.f32 %v4113, %v4162
        %4164 = vmatmul.f32.gmra.mxu0 %v3630
        %v4165 = vpop.f32.mrf.mxu0
        %v4166 = vadd.f32 %v4116, %v4165
        %4167 = vmatmul.f32.gmra.mxu0 %v3638
        %v4168 = vpop.f32.mrf.mxu0
        %v4169 = vadd.f32 %v4119, %v4168
        %4170 = vmatmul.f32.gmra.mxu0 %v3646
        %v4171 = vpop.f32.mrf.mxu0
        %v4172 = vadd.f32 %v4122, %v4171
        %4173 = vmatmul.f32.gmra.mxu0 %v3654
        %v4174 = vpop.f32.mrf.mxu0
        %v4175 = vadd.f32 %v4125, %v4174
        %4176 = vmatmul.f32.gmra.mxu0 %v3662
        %v4177 = vpop.f32.mrf.mxu0
        %v4178 = vadd.f32 %v4128, %v4177
        %4179 = vmatmul.f32.gmra.mxu0 %v3670
        %v4180 = vpop.f32.mrf.mxu0
        %v4181 = vadd.f32 %v4131, %v4180
        %4182 = vmatmul.f32.gmra.mxu0 %v3678
        %v4183 = vpop.f32.mrf.mxu0
        %v4184 = vadd.f32 %v4134, %v4183
        %4185 = vmatmul.f32.gmra.mxu0 %v3686
        %v4186 = vpop.f32.mrf.mxu0
        %v4187 = vadd.f32 %v4137, %v4186
        %4188 = vmatmul.f32.gmra.mxu0 %v3694
        %v4189 = vpop.f32.mrf.mxu0
        %v4190 = vadd.f32 %v4140, %v4189
        %4191 = vmatmul.f32.gmra.mxu0 %v3702
        %v4192 = vpop.f32.mrf.mxu0
        %v4193 = vadd.f32 %v4143, %v4192
        %4194 = vdwg.mxu0
        %4195 = vmatpush.msra.mxu0 %v3831
        %4196 = vmatpush.msra.mxu0 %v3830
        %4197 = vmatpush.msra.mxu0 %v3829
        %4198 = vmatpush.msra.mxu0 %v3828
        %4199 = vmatpush.msra.mxu0 %v3827
        %4200 = vmatpush.msra.mxu0 %v3826
        %4201 = vmatpush.msra.mxu0 %v3825
        %4202 = vmatpush.msra.mxu0 %v3824
        %4203 = vmatpush.msra.mxu0 %v3823
        %4204 = vmatpush.msra.mxu0 %v3822
        %4205 = vmatpush.msra.mxu0 %v3821
        %4206 = vmatpush.msra.mxu0 %v3820
        %4207 = vmatpush.msra.mxu0 %v3819
        %4208 = vmatpush.msra.mxu0 %v3818
        %4209 = vmatpush.msra.mxu0 %v3817
        %4210 = vmatpush.msra.mxu0 %v3816
        %4211 = vmatmul.f32.gmra.mxu0 %v3623
        %v4212 = vpop.f32.mrf.mxu0
        %v4213 = vadd.f32 %v4163, %v4212
        %4214 = vmatmul.f32.gmra.mxu0 %v3631
        %v4215 = vpop.f32.mrf.mxu0
        %v4216 = vadd.f32 %v4166, %v4215
        %4217 = vmatmul.f32.gmra.mxu0 %v3639
        %v4218 = vpop.f32.mrf.mxu0
        %v4219 = vadd.f32 %v4169, %v4218
        %4220 = vmatmul.f32.gmra.mxu0 %v3647
        %v4221 = vpop.f32.mrf.mxu0
        %v4222 = vadd.f32 %v4172, %v4221
        %4223 = vmatmul.f32.gmra.mxu0 %v3655
        %v4224 = vpop.f32.mrf.mxu0
        %v4225 = vadd.f32 %v4175, %v4224
        %4226 = vmatmul.f32.gmra.mxu0 %v3663
        %v4227 = vpop.f32.mrf.mxu0
        %v4228 = vadd.f32 %v4178, %v4227
        %4229 = vmatmul.f32.gmra.mxu0 %v3671
        %v4230 = vpop.f32.mrf.mxu0
        %v4231 = vadd.f32 %v4181, %v4230
        %4232 = vmatmul.f32.gmra.mxu0 %v3679
        %v4233 = vpop.f32.mrf.mxu0
        %v4234 = vadd.f32 %v4184, %v4233
        %4235 = vmatmul.f32.gmra.mxu0 %v3687
        %v4236 = vpop.f32.mrf.mxu0
        %v4237 = vadd.f32 %v4187, %v4236
        %4238 = vmatmul.f32.gmra.mxu0 %v3695
        %v4239 = vpop.f32.mrf.mxu0
        %v4240 = vadd.f32 %v4190, %v4239
        %4241 = vmatmul.f32.gmra.mxu0 %v3703
        %v4242 = vpop.f32.mrf.mxu0
        %v4243 = vadd.f32 %v4193, %v4242
        %4244 = vdwg.mxu0
        %v4245 = vsub.f32 0.0, %v714
        %v4246 = vsub.f32 0.0, %v717
        %v4247 = vsub.f32 0.0, %v720
        %v4248 = vsub.f32 0.0, %v723
        %v4249 = vsub.f32 0.0, %v726
        %v4250 = vsub.f32 0.0, %v729
        %v4251 = vsub.f32 0.0, %v732
        %v4252 = vsub.f32 0.0, %v735
        %v4253 = vsub.f32 0.0, %v738
        %v4254 = vsub.f32 0.0, %v741
        %v4255 = vsub.f32 0.0, %v744
        %v4256 = vmul.f32 %v4245, 1.442695
        %v4257 = vpow.pop %v4256
        %v4258 = vmul.f32 %v4246, 1.442695
        %v4259 = vpow.pop %v4258
        %v4260 = vmul.f32 %v4247, 1.442695
        %v4261 = vpow.pop %v4260
        %v4262 = vmul.f32 %v4248, 1.442695
        %v4263 = vpow.pop %v4262
        %v4264 = vmul.f32 %v4249, 1.442695
        %v4265 = vpow.pop %v4264
        %v4266 = vmul.f32 %v4250, 1.442695
        %v4267 = vpow.pop %v4266
        %v4268 = vmul.f32 %v4251, 1.442695
        %v4269 = vpow.pop %v4268
        %v4270 = vmul.f32 %v4252, 1.442695
        %v4271 = vpow.pop %v4270
        %v4272 = vmul.f32 %v4253, 1.442695
        %v4273 = vpow.pop %v4272
        %v4274 = vmul.f32 %v4254, 1.442695
        %v4275 = vpow.pop %v4274
        %v4276 = vmul.f32 %v4255, 1.442695
        %v4277 = vpow.pop %v4276
        %v4278 = vadd.f32 %v4257, 1.0
        %v4279 = vadd.f32 %v4259, 1.0
        %v4280 = vadd.f32 %v4261, 1.0
        %v4281 = vadd.f32 %v4263, 1.0
        %v4282 = vadd.f32 %v4265, 1.0
        %v4283 = vadd.f32 %v4267, 1.0
        %v4284 = vadd.f32 %v4269, 1.0
        %v4285 = vadd.f32 %v4271, 1.0
        %v4286 = vadd.f32 %v4273, 1.0
        %v4287 = vadd.f32 %v4275, 1.0
        %v4288 = vadd.f32 %v4277, 1.0
        %v4289 = vrcp.pop %v4278
        %v4290 = vmul.f32 %v4278, %v4289
        %v4291 = vsub.f32 1.0, %v4290
        %v4292 = vmul.f32 %v4289, %v4291
        %v4293 = vadd.f32 %v4289, %v4292
        %vm4294 = vweird.f32 %v4278
        %vm4295 = vweird.f32 %v4289
        %vm4296 = vmor %vm4294, %vm4295
        %v4297 = vsel %vm4296, %v4289, %v4293
        %v4298 = vand.u32 2147483647, %v4278
        %vm4299 = vcmp.eq.f32.partialorder %v4298, 8.507059e+37
        %v4300 = vand.u32 %v4278, 2147483648
        %v4301 = vor.u32 1.1754944e-38, %v4300
        %v4302 = vsel %vm4299, %v4301, %v4297
        %v4303 = vmul.f32 1.0, %v4302
        %v4304 = vrcp.pop %v4279
        %v4305 = vmul.f32 %v4279, %v4304
        %v4306 = vsub.f32 1.0, %v4305
        %v4307 = vmul.f32 %v4304, %v4306
        %v4308 = vadd.f32 %v4304, %v4307
        %vm4309 = vweird.f32 %v4279
        %vm4310 = vweird.f32 %v4304
        %vm4311 = vmor %vm4309, %vm4310
        %v4312 = vsel %vm4311, %v4304, %v4308
        %v4313 = vand.u32 2147483647, %v4279
        %vm4314 = vcmp.eq.f32.partialorder %v4313, 8.507059e+37
        %v4315 = vand.u32 %v4279, 2147483648
        %v4316 = vor.u32 1.1754944e-38, %v4315
        %v4317 = vsel %vm4314, %v4316, %v4312
        %v4318 = vmul.f32 1.0, %v4317
        %v4319 = vrcp.pop %v4280
        %v4320 = vmul.f32 %v4280, %v4319
        %v4321 = vsub.f32 1.0, %v4320
        %v4322 = vmul.f32 %v4319, %v4321
        %v4323 = vadd.f32 %v4319, %v4322
        %vm4324 = vweird.f32 %v4280
        %vm4325 = vweird.f32 %v4319
        %vm4326 = vmor %vm4324, %vm4325
        %v4327 = vsel %vm4326, %v4319, %v4323
        %v4328 = vand.u32 2147483647, %v4280
        %vm4329 = vcmp.eq.f32.partialorder %v4328, 8.507059e+37
        %v4330 = vand.u32 %v4280, 2147483648
        %v4331 = vor.u32 1.1754944e-38, %v4330
        %v4332 = vsel %vm4329, %v4331, %v4327
        %v4333 = vmul.f32 1.0, %v4332
        %v4334 = vrcp.pop %v4281
        %v4335 = vmul.f32 %v4281, %v4334
        %v4336 = vsub.f32 1.0, %v4335
        %v4337 = vmul.f32 %v4334, %v4336
        %v4338 = vadd.f32 %v4334, %v4337
        %vm4339 = vweird.f32 %v4281
        %vm4340 = vweird.f32 %v4334
        %vm4341 = vmor %vm4339, %vm4340
        %v4342 = vsel %vm4341, %v4334, %v4338
        %v4343 = vand.u32 2147483647, %v4281
        %vm4344 = vcmp.eq.f32.partialorder %v4343, 8.507059e+37
        %v4345 = vand.u32 %v4281, 2147483648
        %v4346 = vor.u32 1.1754944e-38, %v4345
        %v4347 = vsel %vm4344, %v4346, %v4342
        %v4348 = vmul.f32 1.0, %v4347
        %v4349 = vrcp.pop %v4282
        %v4350 = vmul.f32 %v4282, %v4349
        %v4351 = vsub.f32 1.0, %v4350
        %v4352 = vmul.f32 %v4349, %v4351
        %v4353 = vadd.f32 %v4349, %v4352
        %vm4354 = vweird.f32 %v4282
        %vm4355 = vweird.f32 %v4349
        %vm4356 = vmor %vm4354, %vm4355
        %v4357 = vsel %vm4356, %v4349, %v4353
        %v4358 = vand.u32 2147483647, %v4282
        %vm4359 = vcmp.eq.f32.partialorder %v4358, 8.507059e+37
        %v4360 = vand.u32 %v4282, 2147483648
        %v4361 = vor.u32 1.1754944e-38, %v4360
        %v4362 = vsel %vm4359, %v4361, %v4357
        %v4363 = vmul.f32 1.0, %v4362
        %v4364 = vrcp.pop %v4283
        %v4365 = vmul.f32 %v4283, %v4364
        %v4366 = vsub.f32 1.0, %v4365
        %v4367 = vmul.f32 %v4364, %v4366
        %v4368 = vadd.f32 %v4364, %v4367
        %vm4369 = vweird.f32 %v4283
        %vm4370 = vweird.f32 %v4364
        %vm4371 = vmor %vm4369, %vm4370
        %v4372 = vsel %vm4371, %v4364, %v4368
        %v4373 = vand.u32 2147483647, %v4283
        %vm4374 = vcmp.eq.f32.partialorder %v4373, 8.507059e+37
        %v4375 = vand.u32 %v4283, 2147483648
        %v4376 = vor.u32 1.1754944e-38, %v4375
        %v4377 = vsel %vm4374, %v4376, %v4372
        %v4378 = vmul.f32 1.0, %v4377
        %v4379 = vrcp.pop %v4284
        %v4380 = vmul.f32 %v4284, %v4379
        %v4381 = vsub.f32 1.0, %v4380
        %v4382 = vmul.f32 %v4379, %v4381
        %v4383 = vadd.f32 %v4379, %v4382
        %vm4384 = vweird.f32 %v4284
        %vm4385 = vweird.f32 %v4379
        %vm4386 = vmor %vm4384, %vm4385
        %v4387 = vsel %vm4386, %v4379, %v4383
        %v4388 = vand.u32 2147483647, %v4284
        %vm4389 = vcmp.eq.f32.partialorder %v4388, 8.507059e+37
        %v4390 = vand.u32 %v4284, 2147483648
        %v4391 = vor.u32 1.1754944e-38, %v4390
        %v4392 = vsel %vm4389, %v4391, %v4387
        %v4393 = vmul.f32 1.0, %v4392
        %v4394 = vrcp.pop %v4285
        %v4395 = vmul.f32 %v4285, %v4394
        %v4396 = vsub.f32 1.0, %v4395
        %v4397 = vmul.f32 %v4394, %v4396
        %v4398 = vadd.f32 %v4394, %v4397
        %vm4399 = vweird.f32 %v4285
        %vm4400 = vweird.f32 %v4394
        %vm4401 = vmor %vm4399, %vm4400
        %v4402 = vsel %vm4401, %v4394, %v4398
        %v4403 = vand.u32 2147483647, %v4285
        %vm4404 = vcmp.eq.f32.partialorder %v4403, 8.507059e+37
        %v4405 = vand.u32 %v4285, 2147483648
        %v4406 = vor.u32 1.1754944e-38, %v4405
        %v4407 = vsel %vm4404, %v4406, %v4402
        %v4408 = vmul.f32 1.0, %v4407
        %v4409 = vrcp.pop %v4286
        %v4410 = vmul.f32 %v4286, %v4409
        %v4411 = vsub.f32 1.0, %v4410
        %v4412 = vmul.f32 %v4409, %v4411
        %v4413 = vadd.f32 %v4409, %v4412
        %vm4414 = vweird.f32 %v4286
        %vm4415 = vweird.f32 %v4409
        %vm4416 = vmor %vm4414, %vm4415
        %v4417 = vsel %vm4416, %v4409, %v4413
        %v4418 = vand.u32 2147483647, %v4286
        %vm4419 = vcmp.eq.f32.partialorder %v4418, 8.507059e+37
        %v4420 = vand.u32 %v4286, 2147483648
        %v4421 = vor.u32 1.1754944e-38, %v4420
        %v4422 = vsel %vm4419, %v4421, %v4417
        %v4423 = vmul.f32 1.0, %v4422
        %v4424 = vrcp.pop %v4287
        %v4425 = vmul.f32 %v4287, %v4424
        %v4426 = vsub.f32 1.0, %v4425
        %v4427 = vmul.f32 %v4424, %v4426
        %v4428 = vadd.f32 %v4424, %v4427
        %vm4429 = vweird.f32 %v4287
        %vm4430 = vweird.f32 %v4424
        %vm4431 = vmor %vm4429, %vm4430
        %v4432 = vsel %vm4431, %v4424, %v4428
        %v4433 = vand.u32 2147483647, %v4287
        %vm4434 = vcmp.eq.f32.partialorder %v4433, 8.507059e+37
        %v4435 = vand.u32 %v4287, 2147483648
        %v4436 = vor.u32 1.1754944e-38, %v4435
        %v4437 = vsel %vm4434, %v4436, %v4432
        %v4438 = vmul.f32 1.0, %v4437
        %v4439 = vrcp.pop %v4288
        %v4440 = vmul.f32 %v4288, %v4439
        %v4441 = vsub.f32 1.0, %v4440
        %v4442 = vmul.f32 %v4439, %v4441
        %v4443 = vadd.f32 %v4439, %v4442
        %vm4444 = vweird.f32 %v4288
        %vm4445 = vweird.f32 %v4439
        %vm4446 = vmor %vm4444, %vm4445
        %v4447 = vsel %vm4446, %v4439, %v4443
        %v4448 = vand.u32 2147483647, %v4288
        %vm4449 = vcmp.eq.f32.partialorder %v4448, 8.507059e+37
        %v4450 = vand.u32 %v4288, 2147483648
        %v4451 = vor.u32 1.1754944e-38, %v4450
        %v4452 = vsel %vm4449, %v4451, %v4447
        %v4453 = vmul.f32 1.0, %v4452
        %v4454 = vmul.f32 %v714, %v4303
        %v4455 = vmul.f32 %v717, %v4318
        %v4456 = vmul.f32 %v720, %v4333
        %v4457 = vmul.f32 %v723, %v4348
        %v4458 = vmul.f32 %v726, %v4363
        %v4459 = vmul.f32 %v729, %v4378
        %v4460 = vmul.f32 %v732, %v4393
        %v4461 = vmul.f32 %v735, %v4408
        %v4462 = vmul.f32 %v738, %v4423
        %v4463 = vmul.f32 %v741, %v4438
        %v4464 = vmul.f32 %v744, %v4453
        %v4465 = vmul.f32 %v4213, %v4454
        %v4466 = vmul.f32 %v4216, %v4455
        %v4467 = vmul.f32 %v4219, %v4456
        %v4468 = vmul.f32 %v4222, %v4457
        %v4469 = vmul.f32 %v4225, %v4458
        %v4470 = vmul.f32 %v4228, %v4459
        %v4471 = vmul.f32 %v4231, %v4460
        %v4472 = vmul.f32 %v4234, %v4461
        %v4473 = vmul.f32 %v4237, %v4462
        %v4474 = vmul.f32 %v4240, %v4463
        %v4475 = vmul.f32 %v4243, %v4464
        %v4476 = vld [vmem:[%s9] sm:$0xff]
        %v4477 = vld [vmem:[%s9 + $0x8] sm:$0xff]
        %v4478 = vld [vmem:[%s9 + $0x10] sm:$0xff]
        %v4479 = vld [vmem:[%s9 + $0x18] sm:$0xff]
        %v4480 = vld [vmem:[%s9 + $0x20] sm:$0xff]
        %v4481 = vld [vmem:[%s9 + $0x28] sm:$0xff]
        %v4482 = vld [vmem:[%s9 + $0x30] sm:$0xff]
        %v4483 = vld [vmem:[%s9 + $0x38] sm:$0xff]
        %v4485 = vsel %vm423, %v4465, 0
        %v4488 = vsel %vm423, %v4466, 0
        %v4491 = vsel %vm423, %v4467, 0
        %v4494 = vsel %vm423, %v4468, 0
        %v4497 = vsel %vm423, %v4469, 0
        %v4500 = vsel %vm423, %v4470, 0
        %v4503 = vsel %vm423, %v4471, 0
        %v4506 = vsel %vm423, %v4472, 0
        %v4509 = vsel %vm423, %v4473, 0
        %v4512 = vsel %vm423, %v4474, 0
        %v4515 = vsel %vm423, %v4475, 0
        %4517 = vmatpush.msra.mxu0 0.0
        %4518 = vmatpush.msra.mxu0 0.0
        %4519 = vmatpush.msra.mxu0 0.0
        %4520 = vmatpush.msra.mxu0 0.0
        %4521 = vmatpush.msra.mxu0 0.0
        %4522 = vmatpush.msra.mxu0 0.0
        %4523 = vmatpush.msra.mxu0 0.0
        %4524 = vmatpush.msra.mxu0 0.0
        %4525 = vmatpush.msra.mxu0 %v4483
        %4526 = vmatpush.msra.mxu0 %v4482
        %4527 = vmatpush.msra.mxu0 %v4481
        %4528 = vmatpush.msra.mxu0 %v4480
        %4529 = vmatpush.msra.mxu0 %v4479
        %4530 = vmatpush.msra.mxu0 %v4478
        %4531 = vmatpush.msra.mxu0 %v4477
        %4532 = vmatpush.msra.mxu0 %v4476
        %4533 = vmatmul.f32.gmra.mxu0 %v4485
        %v4534 = vpop.f32.mrf.mxu0
        %v4535 = vadd.f32 0.0, %v4534
        %4536 = vmatmul.f32.gmra.mxu0 %v4488
        %v4537 = vpop.f32.mrf.mxu0
        %v4538 = vadd.f32 0.0, %v4537
        %4539 = vmatmul.f32.gmra.mxu0 %v4491
        %v4540 = vpop.f32.mrf.mxu0
        %v4541 = vadd.f32 0.0, %v4540
        %4542 = vmatmul.f32.gmra.mxu0 %v4494
        %v4543 = vpop.f32.mrf.mxu0
        %v4544 = vadd.f32 0.0, %v4543
        %4545 = vmatmul.f32.gmra.mxu0 %v4497
        %v4546 = vpop.f32.mrf.mxu0
        %v4547 = vadd.f32 0.0, %v4546
        %4548 = vmatmul.f32.gmra.mxu0 %v4500
        %v4549 = vpop.f32.mrf.mxu0
        %v4550 = vadd.f32 0.0, %v4549
        %4551 = vmatmul.f32.gmra.mxu0 %v4503
        %v4552 = vpop.f32.mrf.mxu0
        %v4553 = vadd.f32 0.0, %v4552
        %4554 = vmatmul.f32.gmra.mxu0 %v4506
        %v4555 = vpop.f32.mrf.mxu0
        %v4556 = vadd.f32 0.0, %v4555
        %4557 = vmatmul.f32.gmra.mxu0 %v4509
        %v4558 = vpop.f32.mrf.mxu0
        %v4559 = vadd.f32 0.0, %v4558
        %4560 = vmatmul.f32.gmra.mxu0 %v4512
        %v4561 = vpop.f32.mrf.mxu0
        %v4562 = vadd.f32 0.0, %v4561
        %4563 = vmatmul.f32.gmra.mxu0 %v4515
        %v4564 = vpop.f32.mrf.mxu0
        %v4565 = vadd.f32 0.0, %v4564
        %4566 = vdwg.mxu0
        %v4567 = vadd.f32 %v412, %v4535
        %v4568 = vadd.f32 %v413, %v4538
        %v4569 = vadd.f32 %v414, %v4541
        %v4570 = vadd.f32 %v415, %v4544
        %v4571 = vadd.f32 %v416, %v4547
        %v4572 = vadd.f32 %v417, %v4550
        %v4573 = vadd.f32 %v418, %v4553
        %v4574 = vadd.f32 %v419, %v4556
        %v4575 = vadd.f32 %v420, %v4559
        %v4576 = vadd.f32 %v421, %v4562
        %v4577 = vadd.f32 %v422, %v4565
        %v4578 = vmul.f32 %v4567, %v4567
        %v4579 = vmul.f32 %v4568, %v4568
        %v4580 = vmul.f32 %v4569, %v4569
        %v4581 = vmul.f32 %v4570, %v4570
        %v4582 = vmul.f32 %v4571, %v4571
        %v4583 = vmul.f32 %v4572, %v4572
        %v4584 = vmul.f32 %v4573, %v4573
        %v4585 = vmul.f32 %v4574, %v4574
        %v4586 = vmul.f32 %v4575, %v4575
        %v4587 = vmul.f32 %v4576, %v4576
        %v4588 = vmul.f32 %v4577, %v4577
        %4589 = vadd.xlane.f32.xlu0 %v4578
        %v4590 = vpop.xlane.xlu0 %4589
        %4591 = vadd.xlane.f32.xlu0 %v4579
        %v4592 = vpop.xlane.xlu0 %4591
        %4593 = vadd.xlane.f32.xlu0 %v4580
        %v4594 = vpop.xlane.xlu0 %4593
        %4595 = vadd.xlane.f32.xlu0 %v4581
        %v4596 = vpop.xlane.xlu0 %4595
        %4597 = vadd.xlane.f32.xlu0 %v4582
        %v4598 = vpop.xlane.xlu0 %4597
        %4599 = vadd.xlane.f32.xlu0 %v4583
        %v4600 = vpop.xlane.xlu0 %4599
        %4601 = vadd.xlane.f32.xlu0 %v4584
        %v4602 = vpop.xlane.xlu0 %4601
        %4603 = vadd.xlane.f32.xlu0 %v4585
        %v4604 = vpop.xlane.xlu0 %4603
        %4605 = vadd.xlane.f32.xlu0 %v4586
        %v4606 = vpop.xlane.xlu0 %4605
        %4607 = vadd.xlane.f32.xlu0 %v4587
        %v4608 = vpop.xlane.xlu0 %4607
        %4609 = vadd.xlane.f32.xlu0 %v4588
        %v4610 = vpop.xlane.xlu0 %4609
        %v4611 = vmul.f32 %v4590, 0.03125
        %v4612 = vmul.f32 %v4592, 0.03125
        %v4613 = vmul.f32 %v4594, 0.03125
        %v4614 = vmul.f32 %v4596, 0.03125
        %v4615 = vmul.f32 %v4598, 0.03125
        %v4616 = vmul.f32 %v4600, 0.03125
        %v4617 = vmul.f32 %v4602, 0.03125
        %v4618 = vmul.f32 %v4604, 0.03125
        %v4619 = vmul.f32 %v4606, 0.03125
        %v4620 = vmul.f32 %v4608, 0.03125
        %v4621 = vmul.f32 %v4610, 0.03125
        %v4622 = vadd.f32 %v4611, 1e-05
        %v4623 = vadd.f32 %v4612, 1e-05
        %v4624 = vadd.f32 %v4613, 1e-05
        %v4625 = vadd.f32 %v4614, 1e-05
        %v4626 = vadd.f32 %v4615, 1e-05
        %v4627 = vadd.f32 %v4616, 1e-05
        %v4628 = vadd.f32 %v4617, 1e-05
        %v4629 = vadd.f32 %v4618, 1e-05
        %v4630 = vadd.f32 %v4619, 1e-05
        %v4631 = vadd.f32 %v4620, 1e-05
        %v4632 = vadd.f32 %v4621, 1e-05
        %v4633 = vrsqrt.pop %v4622
        %v4634 = vmul.f32 %v4633, %v4622
        %v4635 = vmul.f32 %v4634, %v4633
        %v4636 = vmul.f32 0.5, %v4635
        %v4637 = vsub.f32 1.5, %v4636
        %v4638 = vmul.f32 %v4633, %v4637
        %vm4639 = vweird.f32 %v4622
        %vm4640 = vweird.f32 %v4633
        %vm4641 = vmor %vm4639, %vm4640
        %v4642 = vsel %vm4641, %v4633, %v4638
        %v4643 = vrsqrt.pop %v4623
        %v4644 = vmul.f32 %v4643, %v4623
        %v4645 = vmul.f32 %v4644, %v4643
        %v4646 = vmul.f32 0.5, %v4645
        %v4647 = vsub.f32 1.5, %v4646
        %v4648 = vmul.f32 %v4643, %v4647
        %vm4649 = vweird.f32 %v4623
        %vm4650 = vweird.f32 %v4643
        %vm4651 = vmor %vm4649, %vm4650
        %v4652 = vsel %vm4651, %v4643, %v4648
        %v4653 = vrsqrt.pop %v4624
        %v4654 = vmul.f32 %v4653, %v4624
        %v4655 = vmul.f32 %v4654, %v4653
        %v4656 = vmul.f32 0.5, %v4655
        %v4657 = vsub.f32 1.5, %v4656
        %v4658 = vmul.f32 %v4653, %v4657
        %vm4659 = vweird.f32 %v4624
        %vm4660 = vweird.f32 %v4653
        %vm4661 = vmor %vm4659, %vm4660
        %v4662 = vsel %vm4661, %v4653, %v4658
        %v4663 = vrsqrt.pop %v4625
        %v4664 = vmul.f32 %v4663, %v4625
        %v4665 = vmul.f32 %v4664, %v4663
        %v4666 = vmul.f32 0.5, %v4665
        %v4667 = vsub.f32 1.5, %v4666
        %v4668 = vmul.f32 %v4663, %v4667
        %vm4669 = vweird.f32 %v4625
        %vm4670 = vweird.f32 %v4663
        %vm4671 = vmor %vm4669, %vm4670
        %v4672 = vsel %vm4671, %v4663, %v4668
        %v4673 = vrsqrt.pop %v4626
        %v4674 = vmul.f32 %v4673, %v4626
        %v4675 = vmul.f32 %v4674, %v4673
        %v4676 = vmul.f32 0.5, %v4675
        %v4677 = vsub.f32 1.5, %v4676
        %v4678 = vmul.f32 %v4673, %v4677
        %vm4679 = vweird.f32 %v4626
        %vm4680 = vweird.f32 %v4673
        %vm4681 = vmor %vm4679, %vm4680
        %v4682 = vsel %vm4681, %v4673, %v4678
        %v4683 = vrsqrt.pop %v4627
        %v4684 = vmul.f32 %v4683, %v4627
        %v4685 = vmul.f32 %v4684, %v4683
        %v4686 = vmul.f32 0.5, %v4685
        %v4687 = vsub.f32 1.5, %v4686
        %v4688 = vmul.f32 %v4683, %v4687
        %vm4689 = vweird.f32 %v4627
        %vm4690 = vweird.f32 %v4683
        %vm4691 = vmor %vm4689, %vm4690
        %v4692 = vsel %vm4691, %v4683, %v4688
        %v4693 = vrsqrt.pop %v4628
        %v4694 = vmul.f32 %v4693, %v4628
        %v4695 = vmul.f32 %v4694, %v4693
        %v4696 = vmul.f32 0.5, %v4695
        %v4697 = vsub.f32 1.5, %v4696
        %v4698 = vmul.f32 %v4693, %v4697
        %vm4699 = vweird.f32 %v4628
        %vm4700 = vweird.f32 %v4693
        %vm4701 = vmor %vm4699, %vm4700
        %v4702 = vsel %vm4701, %v4693, %v4698
        %v4703 = vrsqrt.pop %v4629
        %v4704 = vmul.f32 %v4703, %v4629
        %v4705 = vmul.f32 %v4704, %v4703
        %v4706 = vmul.f32 0.5, %v4705
        %v4707 = vsub.f32 1.5, %v4706
        %v4708 = vmul.f32 %v4703, %v4707
        %vm4709 = vweird.f32 %v4629
        %vm4710 = vweird.f32 %v4703
        %vm4711 = vmor %vm4709, %vm4710
        %v4712 = vsel %vm4711, %v4703, %v4708
        %v4713 = vrsqrt.pop %v4630
        %v4714 = vmul.f32 %v4713, %v4630
        %v4715 = vmul.f32 %v4714, %v4713
        %v4716 = vmul.f32 0.5, %v4715
        %v4717 = vsub.f32 1.5, %v4716
        %v4718 = vmul.f32 %v4713, %v4717
        %vm4719 = vweird.f32 %v4630
        %vm4720 = vweird.f32 %v4713
        %vm4721 = vmor %vm4719, %vm4720
        %v4722 = vsel %vm4721, %v4713, %v4718
        %v4723 = vrsqrt.pop %v4631
        %v4724 = vmul.f32 %v4723, %v4631
        %v4725 = vmul.f32 %v4724, %v4723
        %v4726 = vmul.f32 0.5, %v4725
        %v4727 = vsub.f32 1.5, %v4726
        %v4728 = vmul.f32 %v4723, %v4727
        %vm4729 = vweird.f32 %v4631
        %vm4730 = vweird.f32 %v4723
        %vm4731 = vmor %vm4729, %vm4730
        %v4732 = vsel %vm4731, %v4723, %v4728
        %v4733 = vrsqrt.pop %v4632
        %v4734 = vmul.f32 %v4733, %v4632
        %v4735 = vmul.f32 %v4734, %v4733
        %v4736 = vmul.f32 0.5, %v4735
        %v4737 = vsub.f32 1.5, %v4736
        %v4738 = vmul.f32 %v4733, %v4737
        %vm4739 = vweird.f32 %v4632
        %vm4740 = vweird.f32 %v4733
        %vm4741 = vmor %vm4739, %vm4740
        %v4742 = vsel %vm4741, %v4733, %v4738
        %v4743 = vmul.f32 %v4567, %v4642
        %v4744 = vmul.f32 %v4568, %v4652
        %v4745 = vmul.f32 %v4569, %v4662
        %v4746 = vmul.f32 %v4570, %v4672
        %v4747 = vmul.f32 %v4571, %v4682
        %v4748 = vmul.f32 %v4572, %v4692
        %v4749 = vmul.f32 %v4573, %v4702
        %v4750 = vmul.f32 %v4574, %v4712
        %v4751 = vmul.f32 %v4575, %v4722
        %v4752 = vmul.f32 %v4576, %v4732
        %v4753 = vmul.f32 %v4577, %v4742
        %v4754 = vld [vmem:[%s1 + $0x1] sm:$0x1]
        %v4755 = vperm.slane %v4754, 0
        %v4756 = vmul.f32 %v4743, %v4755
        %v4757 = vmul.f32 %v4744, %v4755
        %v4758 = vmul.f32 %v4745, %v4755
        %v4759 = vmul.f32 %v4746, %v4755
        %v4760 = vmul.f32 %v4747, %v4755
        %v4761 = vmul.f32 %v4748, %v4755
        %v4762 = vmul.f32 %v4749, %v4755
        %v4763 = vmul.f32 %v4750, %v4755
        %v4764 = vmul.f32 %v4751, %v4755
        %v4765 = vmul.f32 %v4752, %v4755
        %v4766 = vmul.f32 %v4753, %v4755
        %s4767 = scalar_lea.vmem %s2, 256
        %v4768 = vld [vmem:[%s4767] sm:$0xff]
        %v4769 = vld [vmem:[%s4767 + $0x8] sm:$0xff]
        %v4770 = vld [vmem:[%s4767 + $0x10] sm:$0xff]
        %v4771 = vld [vmem:[%s4767 + $0x18] sm:$0xff]
        %v4772 = vld [vmem:[%s4767 + $0x20] sm:$0xff]
        %v4773 = vld [vmem:[%s4767 + $0x28] sm:$0xff]
        %v4774 = vld [vmem:[%s4767 + $0x30] sm:$0xff]
        %v4775 = vld [vmem:[%s4767 + $0x38] sm:$0xff]
        %v4776 = vld [vmem:[%s4767 + $0x40] sm:$0xff]
        %v4777 = vld [vmem:[%s4767 + $0x48] sm:$0xff]
        %v4778 = vld [vmem:[%s4767 + $0x50] sm:$0xff]
        %v4779 = vld [vmem:[%s4767 + $0x58] sm:$0xff]
        %v4780 = vld [vmem:[%s4767 + $0x60] sm:$0xff]
        %v4781 = vld [vmem:[%s4767 + $0x68] sm:$0xff]
        %v4782 = vld [vmem:[%s4767 + $0x70] sm:$0xff]
        %v4783 = vld [vmem:[%s4767 + $0x78] sm:$0xff]
        %v4784 = vld [vmem:[%s4767 + $0x80] sm:$0xff]
        %v4785 = vld [vmem:[%s4767 + $0x88] sm:$0xff]
        %v4786 = vld [vmem:[%s4767 + $0x90] sm:$0xff]
        %v4787 = vld [vmem:[%s4767 + $0x98] sm:$0xff]
        %v4788 = vld [vmem:[%s4767 + $0xa0] sm:$0xff]
        %v4789 = vld [vmem:[%s4767 + $0xa8] sm:$0xff]
        %v4790 = vld [vmem:[%s4767 + $0xb0] sm:$0xff]
        %v4791 = vld [vmem:[%s4767 + $0xb8] sm:$0xff]
        %v4792 = vld [vmem:[%s4767 + $0xc0] sm:$0xff]
        %v4793 = vld [vmem:[%s4767 + $0xc8] sm:$0xff]
        %v4794 = vld [vmem:[%s4767 + $0xd0] sm:$0xff]
        %v4795 = vld [vmem:[%s4767 + $0xd8] sm:$0xff]
        %v4796 = vld [vmem:[%s4767 + $0xe0] sm:$0xff]
        %v4797 = vld [vmem:[%s4767 + $0xe8] sm:$0xff]
        %v4798 = vld [vmem:[%s4767 + $0xf0] sm:$0xff]
        %v4799 = vld [vmem:[%s4767 + $0xf8] sm:$0xff]
        %4800 = vmatpush.msra.mxu0 %v4798
        %4801 = vmatpush.msra.mxu0 %v4796
        %4802 = vmatpush.msra.mxu0 %v4794
        %4803 = vmatpush.msra.mxu0 %v4792
        %4804 = vmatpush.msra.mxu0 %v4790
        %4805 = vmatpush.msra.mxu0 %v4788
        %4806 = vmatpush.msra.mxu0 %v4786
        %4807 = vmatpush.msra.mxu0 %v4784
        %4808 = vmatpush.msra.mxu0 %v4782
        %4809 = vmatpush.msra.mxu0 %v4780
        %4810 = vmatpush.msra.mxu0 %v4778
        %4811 = vmatpush.msra.mxu0 %v4776
        %4812 = vmatpush.msra.mxu0 %v4774
        %4813 = vmatpush.msra.mxu0 %v4772
        %4814 = vmatpush.msra.mxu0 %v4770
        %4815 = vmatpush.msra.mxu0 %v4768
        %4816 = vmatmul.f32.gmra.mxu0 %v4756
        %v4817 = vpop.f32.mrf.mxu0
        %v4818 = vadd.f32 0.0, %v4817
        %4819 = vmatmul.f32.gmra.mxu0 %v4757
        %v4820 = vpop.f32.mrf.mxu0
        %v4821 = vadd.f32 0.0, %v4820
        %4822 = vmatmul.f32.gmra.mxu0 %v4758
        %v4823 = vpop.f32.mrf.mxu0
        %v4824 = vadd.f32 0.0, %v4823
        %4825 = vmatmul.f32.gmra.mxu0 %v4759
        %v4826 = vpop.f32.mrf.mxu0
        %v4827 = vadd.f32 0.0, %v4826
        %4828 = vmatmul.f32.gmra.mxu0 %v4760
        %v4829 = vpop.f32.mrf.mxu0
        %v4830 = vadd.f32 0.0, %v4829
        %4831 = vmatmul.f32.gmra.mxu0 %v4761
        %v4832 = vpop.f32.mrf.mxu0
        %v4833 = vadd.f32 0.0, %v4832
        %4834 = vmatmul.f32.gmra.mxu0 %v4762
        %v4835 = vpop.f32.mrf.mxu0
        %v4836 = vadd.f32 0.0, %v4835
        %4837 = vmatmul.f32.gmra.mxu0 %v4763
        %v4838 = vpop.f32.mrf.mxu0
        %v4839 = vadd.f32 0.0, %v4838
        %4840 = vmatmul.f32.gmra.mxu0 %v4764
        %v4841 = vpop.f32.mrf.mxu0
        %v4842 = vadd.f32 0.0, %v4841
        %4843 = vmatmul.f32.gmra.mxu0 %v4765
        %v4844 = vpop.f32.mrf.mxu0
        %v4845 = vadd.f32 0.0, %v4844
        %4846 = vmatmul.f32.gmra.mxu0 %v4766
        %v4847 = vpop.f32.mrf.mxu0
        %v4848 = vadd.f32 0.0, %v4847
        %4849 = vdwg.mxu0
        %4850 = vmatpush.msra.mxu0 %v4799
        %4851 = vmatpush.msra.mxu0 %v4797
        %4852 = vmatpush.msra.mxu0 %v4795
        %4853 = vmatpush.msra.mxu0 %v4793
        %4854 = vmatpush.msra.mxu0 %v4791
        %4855 = vmatpush.msra.mxu0 %v4789
        %4856 = vmatpush.msra.mxu0 %v4787
        %4857 = vmatpush.msra.mxu0 %v4785
        %4858 = vmatpush.msra.mxu0 %v4783
        %4859 = vmatpush.msra.mxu0 %v4781
        %4860 = vmatpush.msra.mxu0 %v4779
        %4861 = vmatpush.msra.mxu0 %v4777
        %4862 = vmatpush.msra.mxu0 %v4775
        %4863 = vmatpush.msra.mxu0 %v4773
        %4864 = vmatpush.msra.mxu0 %v4771
        %4865 = vmatpush.msra.mxu0 %v4769
        %4866 = vmatmul.f32.gmra.mxu0 %v4756
        %v4867 = vpop.f32.mrf.mxu0
        %v4868 = vadd.f32 0.0, %v4867
        %4869 = vmatmul.f32.gmra.mxu0 %v4757
        %v4870 = vpop.f32.mrf.mxu0
        %v4871 = vadd.f32 0.0, %v4870
        %4872 = vmatmul.f32.gmra.mxu0 %v4758
        %v4873 = vpop.f32.mrf.mxu0
        %v4874 = vadd.f32 0.0, %v4873
        %4875 = vmatmul.f32.gmra.mxu0 %v4759
        %v4876 = vpop.f32.mrf.mxu0
        %v4877 = vadd.f32 0.0, %v4876
        %4878 = vmatmul.f32.gmra.mxu0 %v4760
        %v4879 = vpop.f32.mrf.mxu0
        %v4880 = vadd.f32 0.0, %v4879
        %4881 = vmatmul.f32.gmra.mxu0 %v4761
        %v4882 = vpop.f32.mrf.mxu0
        %v4883 = vadd.f32 0.0, %v4882
        %4884 = vmatmul.f32.gmra.mxu0 %v4762
        %v4885 = vpop.f32.mrf.mxu0
        %v4886 = vadd.f32 0.0, %v4885
        %4887 = vmatmul.f32.gmra.mxu0 %v4763
        %v4888 = vpop.f32.mrf.mxu0
        %v4889 = vadd.f32 0.0, %v4888
        %4890 = vmatmul.f32.gmra.mxu0 %v4764
        %v4891 = vpop.f32.mrf.mxu0
        %v4892 = vadd.f32 0.0, %v4891
        %4893 = vmatmul.f32.gmra.mxu0 %v4765
        %v4894 = vpop.f32.mrf.mxu0
        %v4895 = vadd.f32 0.0, %v4894
        %4896 = vmatmul.f32.gmra.mxu0 %v4766
        %v4897 = vpop.f32.mrf.mxu0
        %v4898 = vadd.f32 0.0, %v4897
        %4899 = vdwg.mxu0
        %4900 = vst.msk [vmem:[#allocation2 + $0x8] sm:$0xff] %vm423, %v4818
        %4901 = vst.msk [vmem:[#allocation2 + $0x10] sm:$0xff] %vm423, %v4821
        %4902 = vst.msk [vmem:[#allocation2 + $0x18] sm:$0xff] %vm423, %v4824
        %4903 = vst.msk [vmem:[#allocation2 + $0x20] sm:$0xff] %vm423, %v4827
        %4904 = vst.msk [vmem:[#allocation2 + $0x28] sm:$0xff] %vm423, %v4830
        %4905 = vst.msk [vmem:[#allocation2 + $0x30] sm:$0xff] %vm423, %v4833
        %4906 = vst.msk [vmem:[#allocation2 + $0x38] sm:$0xff] %vm423, %v4836
        %4907 = vst.msk [vmem:[#allocation2 + $0x40] sm:$0xff] %vm423, %v4839
        %4908 = vst.msk [vmem:[#allocation2 + $0x48] sm:$0xff] %vm423, %v4842
        %4909 = vst.msk [vmem:[#allocation2 + $0x50] sm:$0xff] %vm423, %v4845
        %4910 = vst.msk [vmem:[#allocation2 + $0x58] sm:$0xff] %vm423, %v4848
        %v4911 = vld [vmem:[%s3 + $0x4] sm:$0x1]
        %v4912 = vld [vmem:[#allocation2 + $0x5] sm:$0xff]
        %v4913 = vld [vmem:[#allocation2 + $0xd] sm:$0xff]
        %v4914 = vld [vmem:[#allocation2 + $0x15] sm:$0xff]
        %v4915 = vld [vmem:[#allocation2 + $0x1d] sm:$0xff]
        %v4916 = vld [vmem:[#allocation2 + $0x25] sm:$0xff]
        %v4917 = vld [vmem:[#allocation2 + $0x2d] sm:$0xff]
        %v4918 = vld [vmem:[#allocation2 + $0x35] sm:$0xff]
        %v4919 = vld [vmem:[#allocation2 + $0x3d] sm:$0xff]
        %v4920 = vld [vmem:[#allocation2 + $0x45] sm:$0xff]
        %v4921 = vld [vmem:[#allocation2 + $0x4d] sm:$0xff]
        %v4922 = vld [vmem:[#allocation2 + $0x55] sm:$0xff]
        %v4923 = vperm.slane %v4911, 0
        %v4924 = vmul.f32 %v4912, %v4923
        %v4925 = vmul.f32 %v4913, %v4923
        %v4926 = vmul.f32 %v4914, %v4923
        %v4927 = vmul.f32 %v4915, %v4923
        %v4928 = vmul.f32 %v4916, %v4923
        %v4929 = vmul.f32 %v4917, %v4923
        %v4930 = vmul.f32 %v4918, %v4923
        %v4931 = vmul.f32 %v4919, %v4923
        %v4932 = vmul.f32 %v4920, %v4923
        %v4933 = vmul.f32 %v4921, %v4923
        %v4934 = vmul.f32 %v4922, %v4923
        %v4935 = vadd.f32 %v4924, 0.0
        %v4936 = vadd.f32 %v4925, 0.0
        %v4937 = vadd.f32 %v4926, 0.0
        %v4938 = vadd.f32 %v4927, 0.0
        %v4939 = vadd.f32 %v4928, 0.0
        %v4940 = vadd.f32 %v4929, 0.0
        %v4941 = vadd.f32 %v4930, 0.0
        %v4942 = vadd.f32 %v4931, 0.0
        %v4943 = vadd.f32 %v4932, 0.0
        %v4944 = vadd.f32 %v4933, 0.0
        %v4945 = vadd.f32 %v4934, 0.0
        %v4946 = vld [vmem:[%s3 + $0x5] sm:$0x1]
        %v4947 = vld [vmem:[#allocation2 + $0x6] sm:$0xff]
        %v4948 = vld [vmem:[#allocation2 + $0xe] sm:$0xff]
        %v4949 = vld [vmem:[#allocation2 + $0x16] sm:$0xff]
        %v4950 = vld [vmem:[#allocation2 + $0x1e] sm:$0xff]
        %v4951 = vld [vmem:[#allocation2 + $0x26] sm:$0xff]
        %v4952 = vld [vmem:[#allocation2 + $0x2e] sm:$0xff]
        %v4953 = vld [vmem:[#allocation2 + $0x36] sm:$0xff]
        %v4954 = vld [vmem:[#allocation2 + $0x3e] sm:$0xff]
        %v4955 = vld [vmem:[#allocation2 + $0x46] sm:$0xff]
        %v4956 = vld [vmem:[#allocation2 + $0x4e] sm:$0xff]
        %v4957 = vld [vmem:[#allocation2 + $0x56] sm:$0xff]
        %v4958 = vperm.slane %v4946, 0
        %v4959 = vmul.f32 %v4947, %v4958
        %v4960 = vmul.f32 %v4948, %v4958
        %v4961 = vmul.f32 %v4949, %v4958
        %v4962 = vmul.f32 %v4950, %v4958
        %v4963 = vmul.f32 %v4951, %v4958
        %v4964 = vmul.f32 %v4952, %v4958
        %v4965 = vmul.f32 %v4953, %v4958
        %v4966 = vmul.f32 %v4954, %v4958
        %v4967 = vmul.f32 %v4955, %v4958
        %v4968 = vmul.f32 %v4956, %v4958
        %v4969 = vmul.f32 %v4957, %v4958
        %v4970 = vadd.f32 %v4935, %v4959
        %v4971 = vadd.f32 %v4936, %v4960
        %v4972 = vadd.f32 %v4937, %v4961
        %v4973 = vadd.f32 %v4938, %v4962
        %v4974 = vadd.f32 %v4939, %v4963
        %v4975 = vadd.f32 %v4940, %v4964
        %v4976 = vadd.f32 %v4941, %v4965
        %v4977 = vadd.f32 %v4942, %v4966
        %v4978 = vadd.f32 %v4943, %v4967
        %v4979 = vadd.f32 %v4944, %v4968
        %v4980 = vadd.f32 %v4945, %v4969
        %v4981 = vld [vmem:[%s3 + $0x6] sm:$0x1]
        %v4982 = vld [vmem:[#allocation2 + $0x7] sm:$0xff]
        %v4983 = vld [vmem:[#allocation2 + $0xf] sm:$0xff]
        %v4984 = vld [vmem:[#allocation2 + $0x17] sm:$0xff]
        %v4985 = vld [vmem:[#allocation2 + $0x1f] sm:$0xff]
        %v4986 = vld [vmem:[#allocation2 + $0x27] sm:$0xff]
        %v4987 = vld [vmem:[#allocation2 + $0x2f] sm:$0xff]
        %v4988 = vld [vmem:[#allocation2 + $0x37] sm:$0xff]
        %v4989 = vld [vmem:[#allocation2 + $0x3f] sm:$0xff]
        %v4990 = vld [vmem:[#allocation2 + $0x47] sm:$0xff]
        %v4991 = vld [vmem:[#allocation2 + $0x4f] sm:$0xff]
        %v4992 = vld [vmem:[#allocation2 + $0x57] sm:$0xff]
        %v4993 = vperm.slane %v4981, 0
        %v4994 = vmul.f32 %v4982, %v4993
        %v4995 = vmul.f32 %v4983, %v4993
        %v4996 = vmul.f32 %v4984, %v4993
        %v4997 = vmul.f32 %v4985, %v4993
        %v4998 = vmul.f32 %v4986, %v4993
        %v4999 = vmul.f32 %v4987, %v4993
        %v5000 = vmul.f32 %v4988, %v4993
        %v5001 = vmul.f32 %v4989, %v4993
        %v5002 = vmul.f32 %v4990, %v4993
        %v5003 = vmul.f32 %v4991, %v4993
        %v5004 = vmul.f32 %v4992, %v4993
        %v5005 = vadd.f32 %v4970, %v4994
        %v5006 = vadd.f32 %v4971, %v4995
        %v5007 = vadd.f32 %v4972, %v4996
        %v5008 = vadd.f32 %v4973, %v4997
        %v5009 = vadd.f32 %v4974, %v4998
        %v5010 = vadd.f32 %v4975, %v4999
        %v5011 = vadd.f32 %v4976, %v5000
        %v5012 = vadd.f32 %v4977, %v5001
        %v5013 = vadd.f32 %v4978, %v5002
        %v5014 = vadd.f32 %v4979, %v5003
        %v5015 = vadd.f32 %v4980, %v5004
        %v5016 = vld [vmem:[%s3 + $0x7] sm:$0x1]
        %v5017 = vld [vmem:[#allocation2 + $0x8] sm:$0xff]
        %v5018 = vld [vmem:[#allocation2 + $0x10] sm:$0xff]
        %v5019 = vld [vmem:[#allocation2 + $0x18] sm:$0xff]
        %v5020 = vld [vmem:[#allocation2 + $0x20] sm:$0xff]
        %v5021 = vld [vmem:[#allocation2 + $0x28] sm:$0xff]
        %v5022 = vld [vmem:[#allocation2 + $0x30] sm:$0xff]
        %v5023 = vld [vmem:[#allocation2 + $0x38] sm:$0xff]
        %v5024 = vld [vmem:[#allocation2 + $0x40] sm:$0xff]
        %v5025 = vld [vmem:[#allocation2 + $0x48] sm:$0xff]
        %v5026 = vld [vmem:[#allocation2 + $0x50] sm:$0xff]
        %v5027 = vld [vmem:[#allocation2 + $0x58] sm:$0xff]
        %v5028 = vperm.slane %v5016, 0
        %v5029 = vmul.f32 %v5017, %v5028
        %v5030 = vmul.f32 %v5018, %v5028
        %v5031 = vmul.f32 %v5019, %v5028
        %v5032 = vmul.f32 %v5020, %v5028
        %v5033 = vmul.f32 %v5021, %v5028
        %v5034 = vmul.f32 %v5022, %v5028
        %v5035 = vmul.f32 %v5023, %v5028
        %v5036 = vmul.f32 %v5024, %v5028
        %v5037 = vmul.f32 %v5025, %v5028
        %v5038 = vmul.f32 %v5026, %v5028
        %v5039 = vmul.f32 %v5027, %v5028
        %v5040 = vadd.f32 %v5005, %v5029
        %v5041 = vadd.f32 %v5006, %v5030
        %v5042 = vadd.f32 %v5007, %v5031
        %v5043 = vadd.f32 %v5008, %v5032
        %v5044 = vadd.f32 %v5009, %v5033
        %v5045 = vadd.f32 %v5010, %v5034
        %v5046 = vadd.f32 %v5011, %v5035
        %v5047 = vadd.f32 %v5012, %v5036
        %v5048 = vadd.f32 %v5013, %v5037
        %v5049 = vadd.f32 %v5014, %v5038
        %v5050 = vadd.f32 %v5015, %v5039
        %v5051 = vld [vmem:[%s4 + $0x1] sm:$0x1]
        %v5052 = vperm.slane %v5051, 0
        %v5053 = vadd.f32 %v5040, %v5052
        %v5054 = vadd.f32 %v5041, %v5052
        %v5055 = vadd.f32 %v5042, %v5052
        %v5056 = vadd.f32 %v5043, %v5052
        %v5057 = vadd.f32 %v5044, %v5052
        %v5058 = vadd.f32 %v5045, %v5052
        %v5059 = vadd.f32 %v5046, %v5052
        %v5060 = vadd.f32 %v5047, %v5052
        %v5061 = vadd.f32 %v5048, %v5052
        %v5062 = vadd.f32 %v5049, %v5052
        %v5063 = vadd.f32 %v5050, %v5052
        %v5064 = vsub.f32 0.0, %v5053
        %v5065 = vsub.f32 0.0, %v5054
        %v5066 = vsub.f32 0.0, %v5055
        %v5067 = vsub.f32 0.0, %v5056
        %v5068 = vsub.f32 0.0, %v5057
        %v5069 = vsub.f32 0.0, %v5058
        %v5070 = vsub.f32 0.0, %v5059
        %v5071 = vsub.f32 0.0, %v5060
        %v5072 = vsub.f32 0.0, %v5061
        %v5073 = vsub.f32 0.0, %v5062
        %v5074 = vsub.f32 0.0, %v5063
        %v5075 = vmul.f32 %v5064, 1.442695
        %v5076 = vpow.pop %v5075
        %v5077 = vmul.f32 %v5065, 1.442695
        %v5078 = vpow.pop %v5077
        %v5079 = vmul.f32 %v5066, 1.442695
        %v5080 = vpow.pop %v5079
        %v5081 = vmul.f32 %v5067, 1.442695
        %v5082 = vpow.pop %v5081
        %v5083 = vmul.f32 %v5068, 1.442695
        %v5084 = vpow.pop %v5083
        %v5085 = vmul.f32 %v5069, 1.442695
        %v5086 = vpow.pop %v5085
        %v5087 = vmul.f32 %v5070, 1.442695
        %v5088 = vpow.pop %v5087
        %v5089 = vmul.f32 %v5071, 1.442695
        %v5090 = vpow.pop %v5089
        %v5091 = vmul.f32 %v5072, 1.442695
        %v5092 = vpow.pop %v5091
        %v5093 = vmul.f32 %v5073, 1.442695
        %v5094 = vpow.pop %v5093
        %v5095 = vmul.f32 %v5074, 1.442695
        %v5096 = vpow.pop %v5095
        %v5097 = vadd.f32 %v5076, 1.0
        %v5098 = vadd.f32 %v5078, 1.0
        %v5099 = vadd.f32 %v5080, 1.0
        %v5100 = vadd.f32 %v5082, 1.0
        %v5101 = vadd.f32 %v5084, 1.0
        %v5102 = vadd.f32 %v5086, 1.0
        %v5103 = vadd.f32 %v5088, 1.0
        %v5104 = vadd.f32 %v5090, 1.0
        %v5105 = vadd.f32 %v5092, 1.0
        %v5106 = vadd.f32 %v5094, 1.0
        %v5107 = vadd.f32 %v5096, 1.0
        %v5108 = vrcp.pop %v5097
        %v5109 = vmul.f32 %v5097, %v5108
        %v5110 = vsub.f32 1.0, %v5109
        %v5111 = vmul.f32 %v5108, %v5110
        %v5112 = vadd.f32 %v5108, %v5111
        %vm5113 = vweird.f32 %v5097
        %vm5114 = vweird.f32 %v5108
        %vm5115 = vmor %vm5113, %vm5114
        %v5116 = vsel %vm5115, %v5108, %v5112
        %v5117 = vand.u32 2147483647, %v5097
        %vm5118 = vcmp.eq.f32.partialorder %v5117, 8.507059e+37
        %v5119 = vand.u32 %v5097, 2147483648
        %v5120 = vor.u32 1.1754944e-38, %v5119
        %v5121 = vsel %vm5118, %v5120, %v5116
        %v5122 = vmul.f32 1.0, %v5121
        %v5123 = vrcp.pop %v5098
        %v5124 = vmul.f32 %v5098, %v5123
        %v5125 = vsub.f32 1.0, %v5124
        %v5126 = vmul.f32 %v5123, %v5125
        %v5127 = vadd.f32 %v5123, %v5126
        %vm5128 = vweird.f32 %v5098
        %vm5129 = vweird.f32 %v5123
        %vm5130 = vmor %vm5128, %vm5129
        %v5131 = vsel %vm5130, %v5123, %v5127
        %v5132 = vand.u32 2147483647, %v5098
        %vm5133 = vcmp.eq.f32.partialorder %v5132, 8.507059e+37
        %v5134 = vand.u32 %v5098, 2147483648
        %v5135 = vor.u32 1.1754944e-38, %v5134
        %v5136 = vsel %vm5133, %v5135, %v5131
        %v5137 = vmul.f32 1.0, %v5136
        %v5138 = vrcp.pop %v5099
        %v5139 = vmul.f32 %v5099, %v5138
        %v5140 = vsub.f32 1.0, %v5139
        %v5141 = vmul.f32 %v5138, %v5140
        %v5142 = vadd.f32 %v5138, %v5141
        %vm5143 = vweird.f32 %v5099
        %vm5144 = vweird.f32 %v5138
        %vm5145 = vmor %vm5143, %vm5144
        %v5146 = vsel %vm5145, %v5138, %v5142
        %v5147 = vand.u32 2147483647, %v5099
        %vm5148 = vcmp.eq.f32.partialorder %v5147, 8.507059e+37
        %v5149 = vand.u32 %v5099, 2147483648
        %v5150 = vor.u32 1.1754944e-38, %v5149
        %v5151 = vsel %vm5148, %v5150, %v5146
        %v5152 = vmul.f32 1.0, %v5151
        %v5153 = vrcp.pop %v5100
        %v5154 = vmul.f32 %v5100, %v5153
        %v5155 = vsub.f32 1.0, %v5154
        %v5156 = vmul.f32 %v5153, %v5155
        %v5157 = vadd.f32 %v5153, %v5156
        %vm5158 = vweird.f32 %v5100
        %vm5159 = vweird.f32 %v5153
        %vm5160 = vmor %vm5158, %vm5159
        %v5161 = vsel %vm5160, %v5153, %v5157
        %v5162 = vand.u32 2147483647, %v5100
        %vm5163 = vcmp.eq.f32.partialorder %v5162, 8.507059e+37
        %v5164 = vand.u32 %v5100, 2147483648
        %v5165 = vor.u32 1.1754944e-38, %v5164
        %v5166 = vsel %vm5163, %v5165, %v5161
        %v5167 = vmul.f32 1.0, %v5166
        %v5168 = vrcp.pop %v5101
        %v5169 = vmul.f32 %v5101, %v5168
        %v5170 = vsub.f32 1.0, %v5169
        %v5171 = vmul.f32 %v5168, %v5170
        %v5172 = vadd.f32 %v5168, %v5171
        %vm5173 = vweird.f32 %v5101
        %vm5174 = vweird.f32 %v5168
        %vm5175 = vmor %vm5173, %vm5174
        %v5176 = vsel %vm5175, %v5168, %v5172
        %v5177 = vand.u32 2147483647, %v5101
        %vm5178 = vcmp.eq.f32.partialorder %v5177, 8.507059e+37
        %v5179 = vand.u32 %v5101, 2147483648
        %v5180 = vor.u32 1.1754944e-38, %v5179
        %v5181 = vsel %vm5178, %v5180, %v5176
        %v5182 = vmul.f32 1.0, %v5181
        %v5183 = vrcp.pop %v5102
        %v5184 = vmul.f32 %v5102, %v5183
        %v5185 = vsub.f32 1.0, %v5184
        %v5186 = vmul.f32 %v5183, %v5185
        %v5187 = vadd.f32 %v5183, %v5186
        %vm5188 = vweird.f32 %v5102
        %vm5189 = vweird.f32 %v5183
        %vm5190 = vmor %vm5188, %vm5189
        %v5191 = vsel %vm5190, %v5183, %v5187
        %v5192 = vand.u32 2147483647, %v5102
        %vm5193 = vcmp.eq.f32.partialorder %v5192, 8.507059e+37
        %v5194 = vand.u32 %v5102, 2147483648
        %v5195 = vor.u32 1.1754944e-38, %v5194
        %v5196 = vsel %vm5193, %v5195, %v5191
        %v5197 = vmul.f32 1.0, %v5196
        %v5198 = vrcp.pop %v5103
        %v5199 = vmul.f32 %v5103, %v5198
        %v5200 = vsub.f32 1.0, %v5199
        %v5201 = vmul.f32 %v5198, %v5200
        %v5202 = vadd.f32 %v5198, %v5201
        %vm5203 = vweird.f32 %v5103
        %vm5204 = vweird.f32 %v5198
        %vm5205 = vmor %vm5203, %vm5204
        %v5206 = vsel %vm5205, %v5198, %v5202
        %v5207 = vand.u32 2147483647, %v5103
        %vm5208 = vcmp.eq.f32.partialorder %v5207, 8.507059e+37
        %v5209 = vand.u32 %v5103, 2147483648
        %v5210 = vor.u32 1.1754944e-38, %v5209
        %v5211 = vsel %vm5208, %v5210, %v5206
        %v5212 = vmul.f32 1.0, %v5211
        %v5213 = vrcp.pop %v5104
        %v5214 = vmul.f32 %v5104, %v5213
        %v5215 = vsub.f32 1.0, %v5214
        %v5216 = vmul.f32 %v5213, %v5215
        %v5217 = vadd.f32 %v5213, %v5216
        %vm5218 = vweird.f32 %v5104
        %vm5219 = vweird.f32 %v5213
        %vm5220 = vmor %vm5218, %vm5219
        %v5221 = vsel %vm5220, %v5213, %v5217
        %v5222 = vand.u32 2147483647, %v5104
        %vm5223 = vcmp.eq.f32.partialorder %v5222, 8.507059e+37
        %v5224 = vand.u32 %v5104, 2147483648
        %v5225 = vor.u32 1.1754944e-38, %v5224
        %v5226 = vsel %vm5223, %v5225, %v5221
        %v5227 = vmul.f32 1.0, %v5226
        %v5228 = vrcp.pop %v5105
        %v5229 = vmul.f32 %v5105, %v5228
        %v5230 = vsub.f32 1.0, %v5229
        %v5231 = vmul.f32 %v5228, %v5230
        %v5232 = vadd.f32 %v5228, %v5231
        %vm5233 = vweird.f32 %v5105
        %vm5234 = vweird.f32 %v5228
        %vm5235 = vmor %vm5233, %vm5234
        %v5236 = vsel %vm5235, %v5228, %v5232
        %v5237 = vand.u32 2147483647, %v5105
        %vm5238 = vcmp.eq.f32.partialorder %v5237, 8.507059e+37
        %v5239 = vand.u32 %v5105, 2147483648
        %v5240 = vor.u32 1.1754944e-38, %v5239
        %v5241 = vsel %vm5238, %v5240, %v5236
        %v5242 = vmul.f32 1.0, %v5241
        %v5243 = vrcp.pop %v5106
        %v5244 = vmul.f32 %v5106, %v5243
        %v5245 = vsub.f32 1.0, %v5244
        %v5246 = vmul.f32 %v5243, %v5245
        %v5247 = vadd.f32 %v5243, %v5246
        %vm5248 = vweird.f32 %v5106
        %vm5249 = vweird.f32 %v5243
        %vm5250 = vmor %vm5248, %vm5249
        %v5251 = vsel %vm5250, %v5243, %v5247
        %v5252 = vand.u32 2147483647, %v5106
        %vm5253 = vcmp.eq.f32.partialorder %v5252, 8.507059e+37
        %v5254 = vand.u32 %v5106, 2147483648
        %v5255 = vor.u32 1.1754944e-38, %v5254
        %v5256 = vsel %vm5253, %v5255, %v5251
        %v5257 = vmul.f32 1.0, %v5256
        %v5258 = vrcp.pop %v5107
        %v5259 = vmul.f32 %v5107, %v5258
        %v5260 = vsub.f32 1.0, %v5259
        %v5261 = vmul.f32 %v5258, %v5260
        %v5262 = vadd.f32 %v5258, %v5261
        %vm5263 = vweird.f32 %v5107
        %vm5264 = vweird.f32 %v5258
        %vm5265 = vmor %vm5263, %vm5264
        %v5266 = vsel %vm5265, %v5258, %v5262
        %v5267 = vand.u32 2147483647, %v5107
        %vm5268 = vcmp.eq.f32.partialorder %v5267, 8.507059e+37
        %v5269 = vand.u32 %v5107, 2147483648
        %v5270 = vor.u32 1.1754944e-38, %v5269
        %v5271 = vsel %vm5268, %v5270, %v5266
        %v5272 = vmul.f32 1.0, %v5271
        %v5273 = vmul.f32 %v5053, %v5122
        %v5274 = vmul.f32 %v5054, %v5137
        %v5275 = vmul.f32 %v5055, %v5152
        %v5276 = vmul.f32 %v5056, %v5167
        %v5277 = vmul.f32 %v5057, %v5182
        %v5278 = vmul.f32 %v5058, %v5197
        %v5279 = vmul.f32 %v5059, %v5212
        %v5280 = vmul.f32 %v5060, %v5227
        %v5281 = vmul.f32 %v5061, %v5242
        %v5282 = vmul.f32 %v5062, %v5257
        %v5283 = vmul.f32 %v5063, %v5272
        %s5284 = scalar_lea.vmem %s5, 192
        %v5285 = vld [vmem:[%s5284] sm:$0xff]
        %v5286 = vld [vmem:[%s5284 + $0x8] sm:$0xff]
        %v5287 = vld [vmem:[%s5284 + $0x10] sm:$0xff]
        %v5288 = vld [vmem:[%s5284 + $0x18] sm:$0xff]
        %v5289 = vld [vmem:[%s5284 + $0x20] sm:$0xff]
        %v5290 = vld [vmem:[%s5284 + $0x28] sm:$0xff]
        %v5291 = vld [vmem:[%s5284 + $0x30] sm:$0xff]
        %v5292 = vld [vmem:[%s5284 + $0x38] sm:$0xff]
        %v5293 = vld [vmem:[%s5284 + $0x40] sm:$0xff]
        %v5294 = vld [vmem:[%s5284 + $0x48] sm:$0xff]
        %v5295 = vld [vmem:[%s5284 + $0x50] sm:$0xff]
        %v5296 = vld [vmem:[%s5284 + $0x58] sm:$0xff]
        %v5297 = vld [vmem:[%s5284 + $0x60] sm:$0xff]
        %v5298 = vld [vmem:[%s5284 + $0x68] sm:$0xff]
        %v5299 = vld [vmem:[%s5284 + $0x70] sm:$0xff]
        %v5300 = vld [vmem:[%s5284 + $0x78] sm:$0xff]
        %v5301 = vld [vmem:[%s5284 + $0x80] sm:$0xff]
        %v5302 = vld [vmem:[%s5284 + $0x88] sm:$0xff]
        %v5303 = vld [vmem:[%s5284 + $0x90] sm:$0xff]
        %v5304 = vld [vmem:[%s5284 + $0x98] sm:$0xff]
        %v5305 = vld [vmem:[%s5284 + $0xa0] sm:$0xff]
        %v5306 = vld [vmem:[%s5284 + $0xa8] sm:$0xff]
        %v5307 = vld [vmem:[%s5284 + $0xb0] sm:$0xff]
        %v5308 = vld [vmem:[%s5284 + $0xb8] sm:$0xff]
        %v5310 = vsel %vm423, %v5273, 0
        %v5313 = vsel %vm423, %v5274, 0
        %v5316 = vsel %vm423, %v5275, 0
        %v5319 = vsel %vm423, %v5276, 0
        %v5322 = vsel %vm423, %v5277, 0
        %v5325 = vsel %vm423, %v5278, 0
        %v5328 = vsel %vm423, %v5279, 0
        %v5331 = vsel %vm423, %v5280, 0
        %v5334 = vsel %vm423, %v5281, 0
        %v5337 = vsel %vm423, %v5282, 0
        %v5340 = vsel %vm423, %v5283, 0
        %5342 = vmatpush.msra.mxu0 0.0
        %5343 = vmatpush.msra.mxu0 0.0
        %5344 = vmatpush.msra.mxu0 0.0
        %5345 = vmatpush.msra.mxu0 0.0
        %5346 = vmatpush.msra.mxu0 0.0
        %5347 = vmatpush.msra.mxu0 0.0
        %5348 = vmatpush.msra.mxu0 0.0
        %5349 = vmatpush.msra.mxu0 0.0
        %5350 = vmatpush.msra.mxu0 %v5306
        %5351 = vmatpush.msra.mxu0 %v5303
        %5352 = vmatpush.msra.mxu0 %v5300
        %5353 = vmatpush.msra.mxu0 %v5297
        %5354 = vmatpush.msra.mxu0 %v5294
        %5355 = vmatpush.msra.mxu0 %v5291
        %5356 = vmatpush.msra.mxu0 %v5288
        %5357 = vmatpush.msra.mxu0 %v5285
        %5358 = vmatmul.f32.gmra.mxu0 %v5310
        %v5359 = vpop.f32.mrf.mxu0
        %v5360 = vadd.f32 0.0, %v5359
        %5361 = vmatmul.f32.gmra.mxu0 %v5313
        %v5362 = vpop.f32.mrf.mxu0
        %v5363 = vadd.f32 0.0, %v5362
        %5364 = vmatmul.f32.gmra.mxu0 %v5316
        %v5365 = vpop.f32.mrf.mxu0
        %v5366 = vadd.f32 0.0, %v5365
        %5367 = vmatmul.f32.gmra.mxu0 %v5319
        %v5368 = vpop.f32.mrf.mxu0
        %v5369 = vadd.f32 0.0, %v5368
        %5370 = vmatmul.f32.gmra.mxu0 %v5322
        %v5371 = vpop.f32.mrf.mxu0
        %v5372 = vadd.f32 0.0, %v5371
        %5373 = vmatmul.f32.gmra.mxu0 %v5325
        %v5374 = vpop.f32.mrf.mxu0
        %v5375 = vadd.f32 0.0, %v5374
        %5376 = vmatmul.f32.gmra.mxu0 %v5328
        %v5377 = vpop.f32.mrf.mxu0
        %v5378 = vadd.f32 0.0, %v5377
        %5379 = vmatmul.f32.gmra.mxu0 %v5331
        %v5380 = vpop.f32.mrf.mxu0
        %v5381 = vadd.f32 0.0, %v5380
        %5382 = vmatmul.f32.gmra.mxu0 %v5334
        %v5383 = vpop.f32.mrf.mxu0
        %v5384 = vadd.f32 0.0, %v5383
        %5385 = vmatmul.f32.gmra.mxu0 %v5337
        %v5386 = vpop.f32.mrf.mxu0
        %v5387 = vadd.f32 0.0, %v5386
        %5388 = vmatmul.f32.gmra.mxu0 %v5340
        %v5389 = vpop.f32.mrf.mxu0
        %v5390 = vadd.f32 0.0, %v5389
        %5391 = vdwg.mxu0
        %5392 = vmatpush.msra.mxu0 0.0
        %5393 = vmatpush.msra.mxu0 0.0
        %5394 = vmatpush.msra.mxu0 0.0
        %5395 = vmatpush.msra.mxu0 0.0
        %5396 = vmatpush.msra.mxu0 0.0
        %5397 = vmatpush.msra.mxu0 0.0
        %5398 = vmatpush.msra.mxu0 0.0
        %5399 = vmatpush.msra.mxu0 0.0
        %5400 = vmatpush.msra.mxu0 %v5307
        %5401 = vmatpush.msra.mxu0 %v5304
        %5402 = vmatpush.msra.mxu0 %v5301
        %5403 = vmatpush.msra.mxu0 %v5298
        %5404 = vmatpush.msra.mxu0 %v5295
        %5405 = vmatpush.msra.mxu0 %v5292
        %5406 = vmatpush.msra.mxu0 %v5289
        %5407 = vmatpush.msra.mxu0 %v5286
        %5408 = vmatmul.f32.gmra.mxu0 %v5310
        %v5409 = vpop.f32.mrf.mxu0
        %v5410 = vadd.f32 0.0, %v5409
        %5411 = vmatmul.f32.gmra.mxu0 %v5313
        %v5412 = vpop.f32.mrf.mxu0
        %v5413 = vadd.f32 0.0, %v5412
        %5414 = vmatmul.f32.gmra.mxu0 %v5316
        %v5415 = vpop.f32.mrf.mxu0
        %v5416 = vadd.f32 0.0, %v5415
        %5417 = vmatmul.f32.gmra.mxu0 %v5319
        %v5418 = vpop.f32.mrf.mxu0
        %v5419 = vadd.f32 0.0, %v5418
        %5420 = vmatmul.f32.gmra.mxu0 %v5322
        %v5421 = vpop.f32.mrf.mxu0
        %v5422 = vadd.f32 0.0, %v5421
        %5423 = vmatmul.f32.gmra.mxu0 %v5325
        %v5424 = vpop.f32.mrf.mxu0
        %v5425 = vadd.f32 0.0, %v5424
        %5426 = vmatmul.f32.gmra.mxu0 %v5328
        %v5427 = vpop.f32.mrf.mxu0
        %v5428 = vadd.f32 0.0, %v5427
        %5429 = vmatmul.f32.gmra.mxu0 %v5331
        %v5430 = vpop.f32.mrf.mxu0
        %v5431 = vadd.f32 0.0, %v5430
        %5432 = vmatmul.f32.gmra.mxu0 %v5334
        %v5433 = vpop.f32.mrf.mxu0
        %v5434 = vadd.f32 0.0, %v5433
        %5435 = vmatmul.f32.gmra.mxu0 %v5337
        %v5436 = vpop.f32.mrf.mxu0
        %v5437 = vadd.f32 0.0, %v5436
        %5438 = vmatmul.f32.gmra.mxu0 %v5340
        %v5439 = vpop.f32.mrf.mxu0
        %v5440 = vadd.f32 0.0, %v5439
        %5441 = vdwg.mxu0
        %5442 = vmatpush.msra.mxu0 0.0
        %5443 = vmatpush.msra.mxu0 0.0
        %5444 = vmatpush.msra.mxu0 0.0
        %5445 = vmatpush.msra.mxu0 0.0
        %5446 = vmatpush.msra.mxu0 0.0
        %5447 = vmatpush.msra.mxu0 0.0
        %5448 = vmatpush.msra.mxu0 0.0
        %5449 = vmatpush.msra.mxu0 0.0
        %5450 = vmatpush.msra.mxu0 %v5308
        %5451 = vmatpush.msra.mxu0 %v5305
        %5452 = vmatpush.msra.mxu0 %v5302
        %5453 = vmatpush.msra.mxu0 %v5299
        %5454 = vmatpush.msra.mxu0 %v5296
        %5455 = vmatpush.msra.mxu0 %v5293
        %5456 = vmatpush.msra.mxu0 %v5290
        %5457 = vmatpush.msra.mxu0 %v5287
        %5458 = vmatmul.f32.gmra.mxu0 %v5310
        %v5459 = vpop.f32.mrf.mxu0
        %v5460 = vadd.f32 0.0, %v5459
        %5461 = vmatmul.f32.gmra.mxu0 %v5313
        %v5462 = vpop.f32.mrf.mxu0
        %v5463 = vadd.f32 0.0, %v5462
        %5464 = vmatmul.f32.gmra.mxu0 %v5316
        %v5465 = vpop.f32.mrf.mxu0
        %v5466 = vadd.f32 0.0, %v5465
        %5467 = vmatmul.f32.gmra.mxu0 %v5319
        %v5468 = vpop.f32.mrf.mxu0
        %v5469 = vadd.f32 0.0, %v5468
        %5470 = vmatmul.f32.gmra.mxu0 %v5322
        %v5471 = vpop.f32.mrf.mxu0
        %v5472 = vadd.f32 0.0, %v5471
        %5473 = vmatmul.f32.gmra.mxu0 %v5325
        %v5474 = vpop.f32.mrf.mxu0
        %v5475 = vadd.f32 0.0, %v5474
        %5476 = vmatmul.f32.gmra.mxu0 %v5328
        %v5477 = vpop.f32.mrf.mxu0
        %v5478 = vadd.f32 0.0, %v5477
        %5479 = vmatmul.f32.gmra.mxu0 %v5331
        %v5480 = vpop.f32.mrf.mxu0
        %v5481 = vadd.f32 0.0, %v5480
        %5482 = vmatmul.f32.gmra.mxu0 %v5334
        %v5483 = vpop.f32.mrf.mxu0
        %v5484 = vadd.f32 0.0, %v5483
        %5485 = vmatmul.f32.gmra.mxu0 %v5337
        %v5486 = vpop.f32.mrf.mxu0
        %v5487 = vadd.f32 0.0, %v5486
        %5488 = vmatmul.f32.gmra.mxu0 %v5340
        %v5489 = vpop.f32.mrf.mxu0
        %v5490 = vadd.f32 0.0, %v5489
        %5491 = vdwg.mxu0
        %v5492 = vld [vmem:[%s6 + $0x1] sm:$0x1]
        %v5493 = vperm.slane %v5492, 0
        %v5494 = vadd.f32 %v5360, %v5493
        %v5495 = vadd.f32 %v5363, %v5493
        %v5496 = vadd.f32 %v5366, %v5493
        %v5497 = vadd.f32 %v5369, %v5493
        %v5498 = vadd.f32 %v5372, %v5493
        %v5499 = vadd.f32 %v5375, %v5493
        %v5500 = vadd.f32 %v5378, %v5493
        %v5501 = vadd.f32 %v5381, %v5493
        %v5502 = vadd.f32 %v5384, %v5493
        %v5503 = vadd.f32 %v5387, %v5493
        %v5504 = vadd.f32 %v5390, %v5493
        %v5505 = vmax.f32 %v5494, 0.0
        %v5506 = vmax.f32 %v5495, 0.0
        %v5507 = vmax.f32 %v5496, 0.0
        %v5508 = vmax.f32 %v5497, 0.0
        %v5509 = vmax.f32 %v5498, 0.0
        %v5510 = vmax.f32 %v5499, 0.0
        %v5511 = vmax.f32 %v5500, 0.0
        %v5512 = vmax.f32 %v5501, 0.0
        %v5513 = vmax.f32 %v5502, 0.0
        %v5514 = vmax.f32 %v5503, 0.0
        %v5515 = vmax.f32 %v5504, 0.0
        %v5516 = vand.u32 2147483647, %v5494
        %v5517 = vand.u32 2147483647, %v5495
        %v5518 = vand.u32 2147483647, %v5496
        %v5519 = vand.u32 2147483647, %v5497
        %v5520 = vand.u32 2147483647, %v5498
        %v5521 = vand.u32 2147483647, %v5499
        %v5522 = vand.u32 2147483647, %v5500
        %v5523 = vand.u32 2147483647, %v5501
        %v5524 = vand.u32 2147483647, %v5502
        %v5525 = vand.u32 2147483647, %v5503
        %v5526 = vand.u32 2147483647, %v5504
        %v5527 = vsub.f32 0.0, %v5516
        %v5528 = vsub.f32 0.0, %v5517
        %v5529 = vsub.f32 0.0, %v5518
        %v5530 = vsub.f32 0.0, %v5519
        %v5531 = vsub.f32 0.0, %v5520
        %v5532 = vsub.f32 0.0, %v5521
        %v5533 = vsub.f32 0.0, %v5522
        %v5534 = vsub.f32 0.0, %v5523
        %v5535 = vsub.f32 0.0, %v5524
        %v5536 = vsub.f32 0.0, %v5525
        %v5537 = vsub.f32 0.0, %v5526
        %v5538 = vmul.f32 %v5527, 1.442695
        %v5539 = vpow.pop %v5538
        %v5540 = vmul.f32 %v5528, 1.442695
        %v5541 = vpow.pop %v5540
        %v5542 = vmul.f32 %v5529, 1.442695
        %v5543 = vpow.pop %v5542
        %v5544 = vmul.f32 %v5530, 1.442695
        %v5545 = vpow.pop %v5544
        %v5546 = vmul.f32 %v5531, 1.442695
        %v5547 = vpow.pop %v5546
        %v5548 = vmul.f32 %v5532, 1.442695
        %v5549 = vpow.pop %v5548
        %v5550 = vmul.f32 %v5533, 1.442695
        %v5551 = vpow.pop %v5550
        %v5552 = vmul.f32 %v5534, 1.442695
        %v5553 = vpow.pop %v5552
        %v5554 = vmul.f32 %v5535, 1.442695
        %v5555 = vpow.pop %v5554
        %v5556 = vmul.f32 %v5536, 1.442695
        %v5557 = vpow.pop %v5556
        %v5558 = vmul.f32 %v5537, 1.442695
        %v5559 = vpow.pop %v5558
        %v5560 = vadd.f32 %v5539, 1.0
        %v5561 = vadd.f32 %v5541, 1.0
        %v5562 = vadd.f32 %v5543, 1.0
        %v5563 = vadd.f32 %v5545, 1.0
        %v5564 = vadd.f32 %v5547, 1.0
        %v5565 = vadd.f32 %v5549, 1.0
        %v5566 = vadd.f32 %v5551, 1.0
        %v5567 = vadd.f32 %v5553, 1.0
        %v5568 = vadd.f32 %v5555, 1.0
        %v5569 = vadd.f32 %v5557, 1.0
        %v5570 = vadd.f32 %v5559, 1.0
        %v5571 = vlog2.pop %v5560
        %v5572 = vmul.f32 %v5571, 0.6931472
        %v5573 = vlog2.pop %v5561
        %v5574 = vmul.f32 %v5573, 0.6931472
        %v5575 = vlog2.pop %v5562
        %v5576 = vmul.f32 %v5575, 0.6931472
        %v5577 = vlog2.pop %v5563
        %v5578 = vmul.f32 %v5577, 0.6931472
        %v5579 = vlog2.pop %v5564
        %v5580 = vmul.f32 %v5579, 0.6931472
        %v5581 = vlog2.pop %v5565
        %v5582 = vmul.f32 %v5581, 0.6931472
        %v5583 = vlog2.pop %v5566
        %v5584 = vmul.f32 %v5583, 0.6931472
        %v5585 = vlog2.pop %v5567
        %v5586 = vmul.f32 %v5585, 0.6931472
        %v5587 = vlog2.pop %v5568
        %v5588 = vmul.f32 %v5587, 0.6931472
        %v5589 = vlog2.pop %v5569
        %v5590 = vmul.f32 %v5589, 0.6931472
        %v5591 = vlog2.pop %v5570
        %v5592 = vmul.f32 %v5591, 0.6931472
        %v5593 = vadd.f32 %v5505, %v5572
        %v5594 = vadd.f32 %v5506, %v5574
        %v5595 = vadd.f32 %v5507, %v5576
        %v5596 = vadd.f32 %v5508, %v5578
        %v5597 = vadd.f32 %v5509, %v5580
        %v5598 = vadd.f32 %v5510, %v5582
        %v5599 = vadd.f32 %v5511, %v5584
        %v5600 = vadd.f32 %v5512, %v5586
        %v5601 = vadd.f32 %v5513, %v5588
        %v5602 = vadd.f32 %v5514, %v5590
        %v5603 = vadd.f32 %v5515, %v5592
        %s5604 = scalar_lea.vmem %s7, 1
        %v5605 = vld [vmem:[%s5604] ss:$2 sm:$0xff]
        %5617 = vrot.lane.b32.xlu0 %v5593, 64
        %v5618 = vpop.permute.xlu0 %5617
        %5619 = vrot.lane.b32.xlu0 %v5594, 64
        %v5620 = vpop.permute.xlu0 %5619
        %5621 = vrot.lane.b32.xlu0 %v5595, 64
        %v5622 = vpop.permute.xlu0 %5621
        %5623 = vrot.lane.b32.xlu0 %v5596, 64
        %v5624 = vpop.permute.xlu0 %5623
        %5625 = vrot.lane.b32.xlu0 %v5597, 64
        %v5626 = vpop.permute.xlu0 %5625
        %5627 = vrot.lane.b32.xlu0 %v5598, 64
        %v5628 = vpop.permute.xlu0 %5627
        %5629 = vrot.lane.b32.xlu0 %v5599, 64
        %v5630 = vpop.permute.xlu0 %5629
        %5631 = vrot.lane.b32.xlu0 %v5600, 64
        %v5632 = vpop.permute.xlu0 %5631
        %5633 = vrot.lane.b32.xlu0 %v5601, 64
        %v5634 = vpop.permute.xlu0 %5633
        %5635 = vrot.lane.b32.xlu0 %v5602, 64
        %v5636 = vpop.permute.xlu0 %5635
        %5637 = vrot.lane.b32.xlu0 %v5603, 64
        %v5638 = vpop.permute.xlu0 %5637
        %v5650 = vsel %vm423, %v5593, %v5618
        %v5651 = vsel %vm423, %v5594, %v5620
        %v5652 = vsel %vm423, %v5595, %v5622
        %v5653 = vsel %vm423, %v5596, %v5624
        %v5654 = vsel %vm423, %v5597, %v5626
        %v5655 = vsel %vm423, %v5598, %v5628
        %v5656 = vsel %vm423, %v5599, %v5630
        %v5657 = vsel %vm423, %v5600, %v5632
        %v5658 = vsel %vm423, %v5601, %v5634
        %v5659 = vsel %vm423, %v5602, %v5636
        %v5660 = vsel %vm423, %v5603, %v5638
        %v5662 = vperm.slane %v5605, 0
        %v5663 = vperm.slane %v5605, 1
        %v5664 = vperm.slane %v5605, 2
        %v5665 = vperm.slane %v5605, 3
        %v5666 = vperm.slane %v5605, 4
        %v5667 = vperm.slane %v5605, 5
        %v5668 = vperm.slane %v5605, 6
        %v5669 = vperm.slane %v5605, 7
        %v5678 = vmul.f32 %v5650, %v5662
        %v5679 = vmul.f32 %v5650, %v5663
        %v5680 = vmul.f32 %v5650, %v5664
        %v5681 = vmul.f32 %v5650, %v5665
        %v5682 = vmul.f32 %v5650, %v5666
        %v5683 = vmul.f32 %v5650, %v5667
        %v5684 = vmul.f32 %v5650, %v5668
        %v5685 = vmul.f32 %v5650, %v5669
        %v5686 = vmul.f32 %v5651, %v5662
        %v5687 = vmul.f32 %v5651, %v5663
        %v5688 = vmul.f32 %v5651, %v5664
        %v5689 = vmul.f32 %v5651, %v5665
        %v5690 = vmul.f32 %v5651, %v5666
        %v5691 = vmul.f32 %v5651, %v5667
        %v5692 = vmul.f32 %v5651, %v5668
        %v5693 = vmul.f32 %v5651, %v5669
        %v5694 = vmul.f32 %v5652, %v5662
        %v5695 = vmul.f32 %v5652, %v5663
        %v5696 = vmul.f32 %v5652, %v5664
        %v5697 = vmul.f32 %v5652, %v5665
        %v5698 = vmul.f32 %v5652, %v5666
        %v5699 = vmul.f32 %v5652, %v5667
        %v5700 = vmul.f32 %v5652, %v5668
        %v5701 = vmul.f32 %v5652, %v5669
        %v5702 = vmul.f32 %v5653, %v5662
        %v5703 = vmul.f32 %v5653, %v5663
        %v5704 = vmul.f32 %v5653, %v5664
        %v5705 = vmul.f32 %v5653, %v5665
        %v5706 = vmul.f32 %v5653, %v5666
        %v5707 = vmul.f32 %v5653, %v5667
        %v5708 = vmul.f32 %v5653, %v5668
        %v5709 = vmul.f32 %v5653, %v5669
        %v5710 = vmul.f32 %v5654, %v5662
        %v5711 = vmul.f32 %v5654, %v5663
        %v5712 = vmul.f32 %v5654, %v5664
        %v5713 = vmul.f32 %v5654, %v5665
        %v5714 = vmul.f32 %v5654, %v5666
        %v5715 = vmul.f32 %v5654, %v5667
        %v5716 = vmul.f32 %v5654, %v5668
        %v5717 = vmul.f32 %v5654, %v5669
        %v5718 = vmul.f32 %v5655, %v5662
        %v5719 = vmul.f32 %v5655, %v5663
        %v5720 = vmul.f32 %v5655, %v5664
        %v5721 = vmul.f32 %v5655, %v5665
        %v5722 = vmul.f32 %v5655, %v5666
        %v5723 = vmul.f32 %v5655, %v5667
        %v5724 = vmul.f32 %v5655, %v5668
        %v5725 = vmul.f32 %v5655, %v5669
        %v5726 = vmul.f32 %v5656, %v5662
        %v5727 = vmul.f32 %v5656, %v5663
        %v5728 = vmul.f32 %v5656, %v5664
        %v5729 = vmul.f32 %v5656, %v5665
        %v5730 = vmul.f32 %v5656, %v5666
        %v5731 = vmul.f32 %v5656, %v5667
        %v5732 = vmul.f32 %v5656, %v5668
        %v5733 = vmul.f32 %v5656, %v5669
        %v5734 = vmul.f32 %v5657, %v5662
        %v5735 = vmul.f32 %v5657, %v5663
        %v5736 = vmul.f32 %v5657, %v5664
        %v5737 = vmul.f32 %v5657, %v5665
        %v5738 = vmul.f32 %v5657, %v5666
        %v5739 = vmul.f32 %v5657, %v5667
        %v5740 = vmul.f32 %v5657, %v5668
        %v5741 = vmul.f32 %v5657, %v5669
        %v5742 = vmul.f32 %v5658, %v5662
        %v5743 = vmul.f32 %v5658, %v5663
        %v5744 = vmul.f32 %v5658, %v5664
        %v5745 = vmul.f32 %v5658, %v5665
        %v5746 = vmul.f32 %v5658, %v5666
        %v5747 = vmul.f32 %v5658, %v5667
        %v5748 = vmul.f32 %v5658, %v5668
        %v5749 = vmul.f32 %v5658, %v5669
        %v5750 = vmul.f32 %v5659, %v5662
        %v5751 = vmul.f32 %v5659, %v5663
        %v5752 = vmul.f32 %v5659, %v5664
        %v5753 = vmul.f32 %v5659, %v5665
        %v5754 = vmul.f32 %v5659, %v5666
        %v5755 = vmul.f32 %v5659, %v5667
        %v5756 = vmul.f32 %v5659, %v5668
        %v5757 = vmul.f32 %v5659, %v5669
        %v5758 = vmul.f32 %v5660, %v5662
        %v5759 = vmul.f32 %v5660, %v5663
        %v5760 = vmul.f32 %v5660, %v5664
        %v5761 = vmul.f32 %v5660, %v5665
        %v5762 = vmul.f32 %v5660, %v5666
        %v5763 = vmul.f32 %v5660, %v5667
        %v5764 = vmul.f32 %v5660, %v5668
        %v5765 = vmul.f32 %v5660, %v5669
        %v5766 = vmul.f32 %v5678, 1.442695
        %v5767 = vpow.pop %v5766
        %v5768 = vmul.f32 %v5679, 1.442695
        %v5769 = vpow.pop %v5768
        %v5770 = vmul.f32 %v5680, 1.442695
        %v5771 = vpow.pop %v5770
        %v5772 = vmul.f32 %v5681, 1.442695
        %v5773 = vpow.pop %v5772
        %v5774 = vmul.f32 %v5682, 1.442695
        %v5775 = vpow.pop %v5774
        %v5776 = vmul.f32 %v5683, 1.442695
        %v5777 = vpow.pop %v5776
        %v5778 = vmul.f32 %v5684, 1.442695
        %v5779 = vpow.pop %v5778
        %v5780 = vmul.f32 %v5685, 1.442695
        %v5781 = vpow.pop %v5780
        %v5782 = vmul.f32 %v5686, 1.442695
        %v5783 = vpow.pop %v5782
        %v5784 = vmul.f32 %v5687, 1.442695
        %v5785 = vpow.pop %v5784
        %v5786 = vmul.f32 %v5688, 1.442695
        %v5787 = vpow.pop %v5786
        %v5788 = vmul.f32 %v5689, 1.442695
        %v5789 = vpow.pop %v5788
        %v5790 = vmul.f32 %v5690, 1.442695
        %v5791 = vpow.pop %v5790
        %v5792 = vmul.f32 %v5691, 1.442695
        %v5793 = vpow.pop %v5792
        %v5794 = vmul.f32 %v5692, 1.442695
        %v5795 = vpow.pop %v5794
        %v5796 = vmul.f32 %v5693, 1.442695
        %v5797 = vpow.pop %v5796
        %v5798 = vmul.f32 %v5694, 1.442695
        %v5799 = vpow.pop %v5798
        %v5800 = vmul.f32 %v5695, 1.442695
        %v5801 = vpow.pop %v5800
        %v5802 = vmul.f32 %v5696, 1.442695
        %v5803 = vpow.pop %v5802
        %v5804 = vmul.f32 %v5697, 1.442695
        %v5805 = vpow.pop %v5804
        %v5806 = vmul.f32 %v5698, 1.442695
        %v5807 = vpow.pop %v5806
        %v5808 = vmul.f32 %v5699, 1.442695
        %v5809 = vpow.pop %v5808
        %v5810 = vmul.f32 %v5700, 1.442695
        %v5811 = vpow.pop %v5810
        %v5812 = vmul.f32 %v5701, 1.442695
        %v5813 = vpow.pop %v5812
        %v5814 = vmul.f32 %v5702, 1.442695
        %v5815 = vpow.pop %v5814
        %v5816 = vmul.f32 %v5703, 1.442695
        %v5817 = vpow.pop %v5816
        %v5818 = vmul.f32 %v5704, 1.442695
        %v5819 = vpow.pop %v5818
        %v5820 = vmul.f32 %v5705, 1.442695
        %v5821 = vpow.pop %v5820
        %v5822 = vmul.f32 %v5706, 1.442695
        %v5823 = vpow.pop %v5822
        %v5824 = vmul.f32 %v5707, 1.442695
        %v5825 = vpow.pop %v5824
        %v5826 = vmul.f32 %v5708, 1.442695
        %v5827 = vpow.pop %v5826
        %v5828 = vmul.f32 %v5709, 1.442695
        %v5829 = vpow.pop %v5828
        %v5830 = vmul.f32 %v5710, 1.442695
        %v5831 = vpow.pop %v5830
        %v5832 = vmul.f32 %v5711, 1.442695
        %v5833 = vpow.pop %v5832
        %v5834 = vmul.f32 %v5712, 1.442695
        %v5835 = vpow.pop %v5834
        %v5836 = vmul.f32 %v5713, 1.442695
        %v5837 = vpow.pop %v5836
        %v5838 = vmul.f32 %v5714, 1.442695
        %v5839 = vpow.pop %v5838
        %v5840 = vmul.f32 %v5715, 1.442695
        %v5841 = vpow.pop %v5840
        %v5842 = vmul.f32 %v5716, 1.442695
        %v5843 = vpow.pop %v5842
        %v5844 = vmul.f32 %v5717, 1.442695
        %v5845 = vpow.pop %v5844
        %v5846 = vmul.f32 %v5718, 1.442695
        %v5847 = vpow.pop %v5846
        %v5848 = vmul.f32 %v5719, 1.442695
        %v5849 = vpow.pop %v5848
        %v5850 = vmul.f32 %v5720, 1.442695
        %v5851 = vpow.pop %v5850
        %v5852 = vmul.f32 %v5721, 1.442695
        %v5853 = vpow.pop %v5852
        %v5854 = vmul.f32 %v5722, 1.442695
        %v5855 = vpow.pop %v5854
        %v5856 = vmul.f32 %v5723, 1.442695
        %v5857 = vpow.pop %v5856
        %v5858 = vmul.f32 %v5724, 1.442695
        %v5859 = vpow.pop %v5858
        %v5860 = vmul.f32 %v5725, 1.442695
        %v5861 = vpow.pop %v5860
        %v5862 = vmul.f32 %v5726, 1.442695
        %v5863 = vpow.pop %v5862
        %v5864 = vmul.f32 %v5727, 1.442695
        %v5865 = vpow.pop %v5864
        %v5866 = vmul.f32 %v5728, 1.442695
        %v5867 = vpow.pop %v5866
        %v5868 = vmul.f32 %v5729, 1.442695
        %v5869 = vpow.pop %v5868
        %v5870 = vmul.f32 %v5730, 1.442695
        %v5871 = vpow.pop %v5870
        %v5872 = vmul.f32 %v5731, 1.442695
        %v5873 = vpow.pop %v5872
        %v5874 = vmul.f32 %v5732, 1.442695
        %v5875 = vpow.pop %v5874
        %v5876 = vmul.f32 %v5733, 1.442695
        %v5877 = vpow.pop %v5876
        %v5878 = vmul.f32 %v5734, 1.442695
        %v5879 = vpow.pop %v5878
        %v5880 = vmul.f32 %v5735, 1.442695
        %v5881 = vpow.pop %v5880
        %v5882 = vmul.f32 %v5736, 1.442695
        %v5883 = vpow.pop %v5882
        %v5884 = vmul.f32 %v5737, 1.442695
        %v5885 = vpow.pop %v5884
        %v5886 = vmul.f32 %v5738, 1.442695
        %v5887 = vpow.pop %v5886
        %v5888 = vmul.f32 %v5739, 1.442695
        %v5889 = vpow.pop %v5888
        %v5890 = vmul.f32 %v5740, 1.442695
        %v5891 = vpow.pop %v5890
        %v5892 = vmul.f32 %v5741, 1.442695
        %v5893 = vpow.pop %v5892
        %v5894 = vmul.f32 %v5742, 1.442695
        %v5895 = vpow.pop %v5894
        %v5896 = vmul.f32 %v5743, 1.442695
        %v5897 = vpow.pop %v5896
        %v5898 = vmul.f32 %v5744, 1.442695
        %v5899 = vpow.pop %v5898
        %v5900 = vmul.f32 %v5745, 1.442695
        %v5901 = vpow.pop %v5900
        %v5902 = vmul.f32 %v5746, 1.442695
        %v5903 = vpow.pop %v5902
        %v5904 = vmul.f32 %v5747, 1.442695
        %v5905 = vpow.pop %v5904
        %v5906 = vmul.f32 %v5748, 1.442695
        %v5907 = vpow.pop %v5906
        %v5908 = vmul.f32 %v5749, 1.442695
        %v5909 = vpow.pop %v5908
        %v5910 = vmul.f32 %v5750, 1.442695
        %v5911 = vpow.pop %v5910
        %v5912 = vmul.f32 %v5751, 1.442695
        %v5913 = vpow.pop %v5912
        %v5914 = vmul.f32 %v5752, 1.442695
        %v5915 = vpow.pop %v5914
        %v5916 = vmul.f32 %v5753, 1.442695
        %v5917 = vpow.pop %v5916
        %v5918 = vmul.f32 %v5754, 1.442695
        %v5919 = vpow.pop %v5918
        %v5920 = vmul.f32 %v5755, 1.442695
        %v5921 = vpow.pop %v5920
        %v5922 = vmul.f32 %v5756, 1.442695
        %v5923 = vpow.pop %v5922
        %v5924 = vmul.f32 %v5757, 1.442695
        %v5925 = vpow.pop %v5924
        %v5926 = vmul.f32 %v5758, 1.442695
        %v5927 = vpow.pop %v5926
        %v5928 = vmul.f32 %v5759, 1.442695
        %v5929 = vpow.pop %v5928
        %v5930 = vmul.f32 %v5760, 1.442695
        %v5931 = vpow.pop %v5930
        %v5932 = vmul.f32 %v5761, 1.442695
        %v5933 = vpow.pop %v5932
        %v5934 = vmul.f32 %v5762, 1.442695
        %v5935 = vpow.pop %v5934
        %v5936 = vmul.f32 %v5763, 1.442695
        %v5937 = vpow.pop %v5936
        %v5938 = vmul.f32 %v5764, 1.442695
        %v5939 = vpow.pop %v5938
        %v5940 = vmul.f32 %v5765, 1.442695
        %v5941 = vpow.pop %v5940
        %5942 = vst [vmem:[#allocation3] sm:$0xff] %v5767
        %5943 = vst [vmem:[#allocation3 + $0x8] sm:$0xff] %v5769
        %5944 = vst [vmem:[#allocation3 + $0x10] sm:$0xff] %v5771
        %5945 = vst [vmem:[#allocation3 + $0x18] sm:$0xff] %v5773
        %5946 = vst [vmem:[#allocation3 + $0x20] sm:$0xff] %v5775
        %5947 = vst [vmem:[#allocation3 + $0x28] sm:$0xff] %v5777
        %5948 = vst [vmem:[#allocation3 + $0x30] sm:$0xff] %v5779
        %5949 = vst [vmem:[#allocation3 + $0x38] sm:$0xff] %v5781
        %5950 = vst [vmem:[#allocation3 + $0x40] sm:$0xff] %v5783
        %5951 = vst [vmem:[#allocation3 + $0x48] sm:$0xff] %v5785
        %5952 = vst [vmem:[#allocation3 + $0x50] sm:$0xff] %v5787
        %5953 = vst [vmem:[#allocation3 + $0x58] sm:$0xff] %v5789
        %5954 = vst [vmem:[#allocation3 + $0x60] sm:$0xff] %v5791
        %5955 = vst [vmem:[#allocation3 + $0x68] sm:$0xff] %v5793
        %5956 = vst [vmem:[#allocation3 + $0x70] sm:$0xff] %v5795
        %5957 = vst [vmem:[#allocation3 + $0x78] sm:$0xff] %v5797
        %5958 = vst [vmem:[#allocation3 + $0x80] sm:$0xff] %v5799
        %5959 = vst [vmem:[#allocation3 + $0x88] sm:$0xff] %v5801
        %5960 = vst [vmem:[#allocation3 + $0x90] sm:$0xff] %v5803
        %5961 = vst [vmem:[#allocation3 + $0x98] sm:$0xff] %v5805
        %5962 = vst [vmem:[#allocation3 + $0xa0] sm:$0xff] %v5807
        %5963 = vst [vmem:[#allocation3 + $0xa8] sm:$0xff] %v5809
        %5964 = vst [vmem:[#allocation3 + $0xb0] sm:$0xff] %v5811
        %5965 = vst [vmem:[#allocation3 + $0xb8] sm:$0xff] %v5813
        %5966 = vst [vmem:[#allocation3 + $0xc0] sm:$0xff] %v5815
        %5967 = vst [vmem:[#allocation3 + $0xc8] sm:$0xff] %v5817
        %5968 = vst [vmem:[#allocation3 + $0xd0] sm:$0xff] %v5819
        %5969 = vst [vmem:[#allocation3 + $0xd8] sm:$0xff] %v5821
        %5970 = vst [vmem:[#allocation3 + $0xe0] sm:$0xff] %v5823
        %5971 = vst [vmem:[#allocation3 + $0xe8] sm:$0xff] %v5825
        %5972 = vst [vmem:[#allocation3 + $0xf0] sm:$0xff] %v5827
        %5973 = vst [vmem:[#allocation3 + $0xf8] sm:$0xff] %v5829
        %5974 = vst [vmem:[#allocation3 + $0x100] sm:$0xff] %v5831
        %5975 = vst [vmem:[#allocation3 + $0x108] sm:$0xff] %v5833
        %5976 = vst [vmem:[#allocation3 + $0x110] sm:$0xff] %v5835
        %5977 = vst [vmem:[#allocation3 + $0x118] sm:$0xff] %v5837
        %5978 = vst [vmem:[#allocation3 + $0x120] sm:$0xff] %v5839
        %5979 = vst [vmem:[#allocation3 + $0x128] sm:$0xff] %v5841
        %5980 = vst [vmem:[#allocation3 + $0x130] sm:$0xff] %v5843
        %5981 = vst [vmem:[#allocation3 + $0x138] sm:$0xff] %v5845
        %5982 = vst [vmem:[#allocation3 + $0x140] sm:$0xff] %v5847
        %5983 = vst [vmem:[#allocation3 + $0x148] sm:$0xff] %v5849
        %5984 = vst [vmem:[#allocation3 + $0x150] sm:$0xff] %v5851
        %5985 = vst [vmem:[#allocation3 + $0x158] sm:$0xff] %v5853
        %5986 = vst [vmem:[#allocation3 + $0x160] sm:$0xff] %v5855
        %5987 = vst [vmem:[#allocation3 + $0x168] sm:$0xff] %v5857
        %5988 = vst [vmem:[#allocation3 + $0x170] sm:$0xff] %v5859
        %5989 = vst [vmem:[#allocation3 + $0x178] sm:$0xff] %v5861
        %5990 = vst [vmem:[#allocation3 + $0x180] sm:$0xff] %v5863
        %5991 = vst [vmem:[#allocation3 + $0x188] sm:$0xff] %v5865
        %5992 = vst [vmem:[#allocation3 + $0x190] sm:$0xff] %v5867
        %5993 = vst [vmem:[#allocation3 + $0x198] sm:$0xff] %v5869
        %5994 = vst [vmem:[#allocation3 + $0x1a0] sm:$0xff] %v5871
        %5995 = vst [vmem:[#allocation3 + $0x1a8] sm:$0xff] %v5873
        %5996 = vst [vmem:[#allocation3 + $0x1b0] sm:$0xff] %v5875
        %5997 = vst [vmem:[#allocation3 + $0x1b8] sm:$0xff] %v5877
        %5998 = vst [vmem:[#allocation3 + $0x1c0] sm:$0xff] %v5879
        %5999 = vst [vmem:[#allocation3 + $0x1c8] sm:$0xff] %v5881
        %6000 = vst [vmem:[#allocation3 + $0x1d0] sm:$0xff] %v5883
        %6001 = vst [vmem:[#allocation3 + $0x1d8] sm:$0xff] %v5885
        %6002 = vst [vmem:[#allocation3 + $0x1e0] sm:$0xff] %v5887
        %6003 = vst [vmem:[#allocation3 + $0x1e8] sm:$0xff] %v5889
        %6004 = vst [vmem:[#allocation3 + $0x1f0] sm:$0xff] %v5891
        %6005 = vst [vmem:[#allocation3 + $0x1f8] sm:$0xff] %v5893
        %6006 = vst [vmem:[#allocation3 + $0x200] sm:$0xff] %v5895
        %6007 = vst [vmem:[#allocation3 + $0x208] sm:$0xff] %v5897
        %6008 = vst [vmem:[#allocation3 + $0x210] sm:$0xff] %v5899
        %6009 = vst [vmem:[#allocation3 + $0x218] sm:$0xff] %v5901
        %6010 = vst [vmem:[#allocation3 + $0x220] sm:$0xff] %v5903
        %6011 = vst [vmem:[#allocation3 + $0x228] sm:$0xff] %v5905
        %6012 = vst [vmem:[#allocation3 + $0x230] sm:$0xff] %v5907
        %6013 = vst [vmem:[#allocation3 + $0x238] sm:$0xff] %v5909
        %6014 = vst [vmem:[#allocation3 + $0x240] sm:$0xff] %v5911
        %6015 = vst [vmem:[#allocation3 + $0x248] sm:$0xff] %v5913
        %6016 = vst [vmem:[#allocation3 + $0x250] sm:$0xff] %v5915
        %6017 = vst [vmem:[#allocation3 + $0x258] sm:$0xff] %v5917
        %6018 = vst [vmem:[#allocation3 + $0x260] sm:$0xff] %v5919
        %6019 = vst [vmem:[#allocation3 + $0x268] sm:$0xff] %v5921
        %6020 = vst [vmem:[#allocation3 + $0x270] sm:$0xff] %v5923
        %6021 = vst [vmem:[#allocation3 + $0x278] sm:$0xff] %v5925
        %6022 = vst [vmem:[#allocation3 + $0x280] sm:$0xff] %v5927
        %6023 = vst [vmem:[#allocation3 + $0x288] sm:$0xff] %v5929
        %6024 = vst [vmem:[#allocation3 + $0x290] sm:$0xff] %v5931
        %6025 = vst [vmem:[#allocation3 + $0x298] sm:$0xff] %v5933
        %6026 = vst [vmem:[#allocation3 + $0x2a0] sm:$0xff] %v5935
        %6027 = vst [vmem:[#allocation3 + $0x2a8] sm:$0xff] %v5937
        %6028 = vst [vmem:[#allocation3 + $0x2b0] sm:$0xff] %v5939
        %6029 = vst [vmem:[#allocation3 + $0x2b8] sm:$0xff] %v5941
        %v6030 = vld [vmem:[%s10] sm:$0xff]
        %v6031 = vld [vmem:[%s10 + $0x8] sm:$0xff]
        %v6032 = vld [vmem:[%s10 + $0x10] sm:$0xff]
        %v6033 = vld [vmem:[%s10 + $0x18] sm:$0xff]
        %v6034 = vld [vmem:[%s10 + $0x20] sm:$0xff]
        %v6035 = vld [vmem:[%s10 + $0x28] sm:$0xff]
        %v6036 = vld [vmem:[%s10 + $0x30] sm:$0xff]
        %v6037 = vld [vmem:[%s10 + $0x38] sm:$0xff]
        %v6038 = vld [vmem:[%s10 + $0x40] sm:$0xff]
        %v6039 = vld [vmem:[%s10 + $0x48] sm:$0xff]
        %v6040 = vld [vmem:[%s10 + $0x50] sm:$0xff]
        %v6041 = vld [vmem:[%s10 + $0x58] sm:$0xff]
        %v6042 = vld [vmem:[%s10 + $0x60] sm:$0xff]
        %v6043 = vld [vmem:[%s10 + $0x68] sm:$0xff]
        %v6044 = vld [vmem:[%s10 + $0x70] sm:$0xff]
        %v6045 = vld [vmem:[%s10 + $0x78] sm:$0xff]
        %v6047 = vsel %vm1890, %v5410, 0
        %v6050 = vsel %vm1890, %v5413, 0
        %v6053 = vsel %vm1890, %v5416, 0
        %v6056 = vsel %vm1890, %v5419, 0
        %v6059 = vsel %vm1890, %v5422, 0
        %v6062 = vsel %vm1890, %v5425, 0
        %v6065 = vsel %vm1890, %v5428, 0
        %v6068 = vsel %vm1890, %v5431, 0
        %v6071 = vsel %vm1890, %v5434, 0
        %v6074 = vsel %vm1890, %v5437, 0
        %v6077 = vsel %vm1890, %v5440, 0
        %6079 = vmatpush.msra.mxu0 0.0
        %6080 = vmatpush.msra.mxu0 0.0
        %6081 = vmatpush.msra.mxu0 0.0
        %6082 = vmatpush.msra.mxu0 0.0
        %6083 = vmatpush.msra.mxu0 0.0
        %6084 = vmatpush.msra.mxu0 0.0
        %6085 = vmatpush.msra.mxu0 0.0
        %6086 = vmatpush.msra.mxu0 0.0
        %6087 = vmatpush.msra.mxu0 0.0
        %6088 = vmatpush.msra.mxu0 0.0
        %6089 = vmatpush.msra.mxu0 0.0
        %6090 = vmatpush.msra.mxu0 0.0
        %6091 = vmatpush.msra.mxu0 0.0
        %6092 = vmatpush.msra.mxu0 0.0
        %6093 = vmatpush.msra.mxu0 %v6038
        %6094 = vmatpush.msra.mxu0 %v6030
        %6095 = vmatmul.f32.gmra.mxu0 %v6047
        %v6096 = vpop.f32.mrf.mxu0
        %v6097 = vadd.f32 0.0, %v6096
        %6098 = vmatmul.f32.gmra.mxu0 %v6050
        %v6099 = vpop.f32.mrf.mxu0
        %v6100 = vadd.f32 0.0, %v6099
        %6101 = vmatmul.f32.gmra.mxu0 %v6053
        %v6102 = vpop.f32.mrf.mxu0
        %v6103 = vadd.f32 0.0, %v6102
        %6104 = vmatmul.f32.gmra.mxu0 %v6056
        %v6105 = vpop.f32.mrf.mxu0
        %v6106 = vadd.f32 0.0, %v6105
        %6107 = vmatmul.f32.gmra.mxu0 %v6059
        %v6108 = vpop.f32.mrf.mxu0
        %v6109 = vadd.f32 0.0, %v6108
        %6110 = vmatmul.f32.gmra.mxu0 %v6062
        %v6111 = vpop.f32.mrf.mxu0
        %v6112 = vadd.f32 0.0, %v6111
        %6113 = vmatmul.f32.gmra.mxu0 %v6065
        %v6114 = vpop.f32.mrf.mxu0
        %v6115 = vadd.f32 0.0, %v6114
        %6116 = vmatmul.f32.gmra.mxu0 %v6068
        %v6117 = vpop.f32.mrf.mxu0
        %v6118 = vadd.f32 0.0, %v6117
        %6119 = vmatmul.f32.gmra.mxu0 %v6071
        %v6120 = vpop.f32.mrf.mxu0
        %v6121 = vadd.f32 0.0, %v6120
        %6122 = vmatmul.f32.gmra.mxu0 %v6074
        %v6123 = vpop.f32.mrf.mxu0
        %v6124 = vadd.f32 0.0, %v6123
        %6125 = vmatmul.f32.gmra.mxu0 %v6077
        %v6126 = vpop.f32.mrf.mxu0
        %v6127 = vadd.f32 0.0, %v6126
        %6128 = vdwg.mxu0
        %6129 = vmatpush.msra.mxu0 0.0
        %6130 = vmatpush.msra.mxu0 0.0
        %6131 = vmatpush.msra.mxu0 0.0
        %6132 = vmatpush.msra.mxu0 0.0
        %6133 = vmatpush.msra.mxu0 0.0
        %6134 = vmatpush.msra.mxu0 0.0
        %6135 = vmatpush.msra.mxu0 0.0
        %6136 = vmatpush.msra.mxu0 0.0
        %6137 = vmatpush.msra.mxu0 0.0
        %6138 = vmatpush.msra.mxu0 0.0
        %6139 = vmatpush.msra.mxu0 0.0
        %6140 = vmatpush.msra.mxu0 0.0
        %6141 = vmatpush.msra.mxu0 0.0
        %6142 = vmatpush.msra.mxu0 0.0
        %6143 = vmatpush.msra.mxu0 %v6039
        %6144 = vmatpush.msra.mxu0 %v6031
        %6145 = vmatmul.f32.gmra.mxu0 %v6047
        %v6146 = vpop.f32.mrf.mxu0
        %v6147 = vadd.f32 0.0, %v6146
        %6148 = vmatmul.f32.gmra.mxu0 %v6050
        %v6149 = vpop.f32.mrf.mxu0
        %v6150 = vadd.f32 0.0, %v6149
        %6151 = vmatmul.f32.gmra.mxu0 %v6053
        %v6152 = vpop.f32.mrf.mxu0
        %v6153 = vadd.f32 0.0, %v6152
        %6154 = vmatmul.f32.gmra.mxu0 %v6056
        %v6155 = vpop.f32.mrf.mxu0
        %v6156 = vadd.f32 0.0, %v6155
        %6157 = vmatmul.f32.gmra.mxu0 %v6059
        %v6158 = vpop.f32.mrf.mxu0
        %v6159 = vadd.f32 0.0, %v6158
        %6160 = vmatmul.f32.gmra.mxu0 %v6062
        %v6161 = vpop.f32.mrf.mxu0
        %v6162 = vadd.f32 0.0, %v6161
        %6163 = vmatmul.f32.gmra.mxu0 %v6065
        %v6164 = vpop.f32.mrf.mxu0
        %v6165 = vadd.f32 0.0, %v6164
        %6166 = vmatmul.f32.gmra.mxu0 %v6068
        %v6167 = vpop.f32.mrf.mxu0
        %v6168 = vadd.f32 0.0, %v6167
        %6169 = vmatmul.f32.gmra.mxu0 %v6071
        %v6170 = vpop.f32.mrf.mxu0
        %v6171 = vadd.f32 0.0, %v6170
        %6172 = vmatmul.f32.gmra.mxu0 %v6074
        %v6173 = vpop.f32.mrf.mxu0
        %v6174 = vadd.f32 0.0, %v6173
        %6175 = vmatmul.f32.gmra.mxu0 %v6077
        %v6176 = vpop.f32.mrf.mxu0
        %v6177 = vadd.f32 0.0, %v6176
        %6178 = vdwg.mxu0
        %6179 = vmatpush.msra.mxu0 0.0
        %6180 = vmatpush.msra.mxu0 0.0
        %6181 = vmatpush.msra.mxu0 0.0
        %6182 = vmatpush.msra.mxu0 0.0
        %6183 = vmatpush.msra.mxu0 0.0
        %6184 = vmatpush.msra.mxu0 0.0
        %6185 = vmatpush.msra.mxu0 0.0
        %6186 = vmatpush.msra.mxu0 0.0
        %6187 = vmatpush.msra.mxu0 0.0
        %6188 = vmatpush.msra.mxu0 0.0
        %6189 = vmatpush.msra.mxu0 0.0
        %6190 = vmatpush.msra.mxu0 0.0
        %6191 = vmatpush.msra.mxu0 0.0
        %6192 = vmatpush.msra.mxu0 0.0
        %6193 = vmatpush.msra.mxu0 %v6040
        %6194 = vmatpush.msra.mxu0 %v6032
        %6195 = vmatmul.f32.gmra.mxu0 %v6047
        %v6196 = vpop.f32.mrf.mxu0
        %v6197 = vadd.f32 0.0, %v6196
        %6198 = vmatmul.f32.gmra.mxu0 %v6050
        %v6199 = vpop.f32.mrf.mxu0
        %v6200 = vadd.f32 0.0, %v6199
        %6201 = vmatmul.f32.gmra.mxu0 %v6053
        %v6202 = vpop.f32.mrf.mxu0
        %v6203 = vadd.f32 0.0, %v6202
        %6204 = vmatmul.f32.gmra.mxu0 %v6056
        %v6205 = vpop.f32.mrf.mxu0
        %v6206 = vadd.f32 0.0, %v6205
        %6207 = vmatmul.f32.gmra.mxu0 %v6059
        %v6208 = vpop.f32.mrf.mxu0
        %v6209 = vadd.f32 0.0, %v6208
        %6210 = vmatmul.f32.gmra.mxu0 %v6062
        %v6211 = vpop.f32.mrf.mxu0
        %v6212 = vadd.f32 0.0, %v6211
        %6213 = vmatmul.f32.gmra.mxu0 %v6065
        %v6214 = vpop.f32.mrf.mxu0
        %v6215 = vadd.f32 0.0, %v6214
        %6216 = vmatmul.f32.gmra.mxu0 %v6068
        %v6217 = vpop.f32.mrf.mxu0
        %v6218 = vadd.f32 0.0, %v6217
        %6219 = vmatmul.f32.gmra.mxu0 %v6071
        %v6220 = vpop.f32.mrf.mxu0
        %v6221 = vadd.f32 0.0, %v6220
        %6222 = vmatmul.f32.gmra.mxu0 %v6074
        %v6223 = vpop.f32.mrf.mxu0
        %v6224 = vadd.f32 0.0, %v6223
        %6225 = vmatmul.f32.gmra.mxu0 %v6077
        %v6226 = vpop.f32.mrf.mxu0
        %v6227 = vadd.f32 0.0, %v6226
        %6228 = vdwg.mxu0
        %6229 = vmatpush.msra.mxu0 0.0
        %6230 = vmatpush.msra.mxu0 0.0
        %6231 = vmatpush.msra.mxu0 0.0
        %6232 = vmatpush.msra.mxu0 0.0
        %6233 = vmatpush.msra.mxu0 0.0
        %6234 = vmatpush.msra.mxu0 0.0
        %6235 = vmatpush.msra.mxu0 0.0
        %6236 = vmatpush.msra.mxu0 0.0
        %6237 = vmatpush.msra.mxu0 0.0
        %6238 = vmatpush.msra.mxu0 0.0
        %6239 = vmatpush.msra.mxu0 0.0
        %6240 = vmatpush.msra.mxu0 0.0
        %6241 = vmatpush.msra.mxu0 0.0
        %6242 = vmatpush.msra.mxu0 0.0
        %6243 = vmatpush.msra.mxu0 %v6041
        %6244 = vmatpush.msra.mxu0 %v6033
        %6245 = vmatmul.f32.gmra.mxu0 %v6047
        %v6246 = vpop.f32.mrf.mxu0
        %v6247 = vadd.f32 0.0, %v6246
        %6248 = vmatmul.f32.gmra.mxu0 %v6050
        %v6249 = vpop.f32.mrf.mxu0
        %v6250 = vadd.f32 0.0, %v6249
        %6251 = vmatmul.f32.gmra.mxu0 %v6053
        %v6252 = vpop.f32.mrf.mxu0
        %v6253 = vadd.f32 0.0, %v6252
        %6254 = vmatmul.f32.gmra.mxu0 %v6056
        %v6255 = vpop.f32.mrf.mxu0
        %v6256 = vadd.f32 0.0, %v6255
        %6257 = vmatmul.f32.gmra.mxu0 %v6059
        %v6258 = vpop.f32.mrf.mxu0
        %v6259 = vadd.f32 0.0, %v6258
        %6260 = vmatmul.f32.gmra.mxu0 %v6062
        %v6261 = vpop.f32.mrf.mxu0
        %v6262 = vadd.f32 0.0, %v6261
        %6263 = vmatmul.f32.gmra.mxu0 %v6065
        %v6264 = vpop.f32.mrf.mxu0
        %v6265 = vadd.f32 0.0, %v6264
        %6266 = vmatmul.f32.gmra.mxu0 %v6068
        %v6267 = vpop.f32.mrf.mxu0
        %v6268 = vadd.f32 0.0, %v6267
        %6269 = vmatmul.f32.gmra.mxu0 %v6071
        %v6270 = vpop.f32.mrf.mxu0
        %v6271 = vadd.f32 0.0, %v6270
        %6272 = vmatmul.f32.gmra.mxu0 %v6074
        %v6273 = vpop.f32.mrf.mxu0
        %v6274 = vadd.f32 0.0, %v6273
        %6275 = vmatmul.f32.gmra.mxu0 %v6077
        %v6276 = vpop.f32.mrf.mxu0
        %v6277 = vadd.f32 0.0, %v6276
        %6278 = vdwg.mxu0
        %6279 = vmatpush.msra.mxu0 0.0
        %6280 = vmatpush.msra.mxu0 0.0
        %6281 = vmatpush.msra.mxu0 0.0
        %6282 = vmatpush.msra.mxu0 0.0
        %6283 = vmatpush.msra.mxu0 0.0
        %6284 = vmatpush.msra.mxu0 0.0
        %6285 = vmatpush.msra.mxu0 0.0
        %6286 = vmatpush.msra.mxu0 0.0
        %6287 = vmatpush.msra.mxu0 0.0
        %6288 = vmatpush.msra.mxu0 0.0
        %6289 = vmatpush.msra.mxu0 0.0
        %6290 = vmatpush.msra.mxu0 0.0
        %6291 = vmatpush.msra.mxu0 0.0
        %6292 = vmatpush.msra.mxu0 0.0
        %6293 = vmatpush.msra.mxu0 %v6042
        %6294 = vmatpush.msra.mxu0 %v6034
        %6295 = vmatmul.f32.gmra.mxu0 %v6047
        %v6296 = vpop.f32.mrf.mxu0
        %v6297 = vadd.f32 0.0, %v6296
        %6298 = vmatmul.f32.gmra.mxu0 %v6050
        %v6299 = vpop.f32.mrf.mxu0
        %v6300 = vadd.f32 0.0, %v6299
        %6301 = vmatmul.f32.gmra.mxu0 %v6053
        %v6302 = vpop.f32.mrf.mxu0
        %v6303 = vadd.f32 0.0, %v6302
        %6304 = vmatmul.f32.gmra.mxu0 %v6056
        %v6305 = vpop.f32.mrf.mxu0
        %v6306 = vadd.f32 0.0, %v6305
        %6307 = vmatmul.f32.gmra.mxu0 %v6059
        %v6308 = vpop.f32.mrf.mxu0
        %v6309 = vadd.f32 0.0, %v6308
        %6310 = vmatmul.f32.gmra.mxu0 %v6062
        %v6311 = vpop.f32.mrf.mxu0
        %v6312 = vadd.f32 0.0, %v6311
        %6313 = vmatmul.f32.gmra.mxu0 %v6065
        %v6314 = vpop.f32.mrf.mxu0
        %v6315 = vadd.f32 0.0, %v6314
        %6316 = vmatmul.f32.gmra.mxu0 %v6068
        %v6317 = vpop.f32.mrf.mxu0
        %v6318 = vadd.f32 0.0, %v6317
        %6319 = vmatmul.f32.gmra.mxu0 %v6071
        %v6320 = vpop.f32.mrf.mxu0
        %v6321 = vadd.f32 0.0, %v6320
        %6322 = vmatmul.f32.gmra.mxu0 %v6074
        %v6323 = vpop.f32.mrf.mxu0
        %v6324 = vadd.f32 0.0, %v6323
        %6325 = vmatmul.f32.gmra.mxu0 %v6077
        %v6326 = vpop.f32.mrf.mxu0
        %v6327 = vadd.f32 0.0, %v6326
        %6328 = vdwg.mxu0
        %6329 = vmatpush.msra.mxu0 0.0
        %6330 = vmatpush.msra.mxu0 0.0
        %6331 = vmatpush.msra.mxu0 0.0
        %6332 = vmatpush.msra.mxu0 0.0
        %6333 = vmatpush.msra.mxu0 0.0
        %6334 = vmatpush.msra.mxu0 0.0
        %6335 = vmatpush.msra.mxu0 0.0
        %6336 = vmatpush.msra.mxu0 0.0
        %6337 = vmatpush.msra.mxu0 0.0
        %6338 = vmatpush.msra.mxu0 0.0
        %6339 = vmatpush.msra.mxu0 0.0
        %6340 = vmatpush.msra.mxu0 0.0
        %6341 = vmatpush.msra.mxu0 0.0
        %6342 = vmatpush.msra.mxu0 0.0
        %6343 = vmatpush.msra.mxu0 %v6043
        %6344 = vmatpush.msra.mxu0 %v6035
        %6345 = vmatmul.f32.gmra.mxu0 %v6047
        %v6346 = vpop.f32.mrf.mxu0
        %v6347 = vadd.f32 0.0, %v6346
        %6348 = vmatmul.f32.gmra.mxu0 %v6050
        %v6349 = vpop.f32.mrf.mxu0
        %v6350 = vadd.f32 0.0, %v6349
        %6351 = vmatmul.f32.gmra.mxu0 %v6053
        %v6352 = vpop.f32.mrf.mxu0
        %v6353 = vadd.f32 0.0, %v6352
        %6354 = vmatmul.f32.gmra.mxu0 %v6056
        %v6355 = vpop.f32.mrf.mxu0
        %v6356 = vadd.f32 0.0, %v6355
        %6357 = vmatmul.f32.gmra.mxu0 %v6059
        %v6358 = vpop.f32.mrf.mxu0
        %v6359 = vadd.f32 0.0, %v6358
        %6360 = vmatmul.f32.gmra.mxu0 %v6062
        %v6361 = vpop.f32.mrf.mxu0
        %v6362 = vadd.f32 0.0, %v6361
        %6363 = vmatmul.f32.gmra.mxu0 %v6065
        %v6364 = vpop.f32.mrf.mxu0
        %v6365 = vadd.f32 0.0, %v6364
        %6366 = vmatmul.f32.gmra.mxu0 %v6068
        %v6367 = vpop.f32.mrf.mxu0
        %v6368 = vadd.f32 0.0, %v6367
        %6369 = vmatmul.f32.gmra.mxu0 %v6071
        %v6370 = vpop.f32.mrf.mxu0
        %v6371 = vadd.f32 0.0, %v6370
        %6372 = vmatmul.f32.gmra.mxu0 %v6074
        %v6373 = vpop.f32.mrf.mxu0
        %v6374 = vadd.f32 0.0, %v6373
        %6375 = vmatmul.f32.gmra.mxu0 %v6077
        %v6376 = vpop.f32.mrf.mxu0
        %v6377 = vadd.f32 0.0, %v6376
        %6378 = vdwg.mxu0
        %6379 = vmatpush.msra.mxu0 0.0
        %6380 = vmatpush.msra.mxu0 0.0
        %6381 = vmatpush.msra.mxu0 0.0
        %6382 = vmatpush.msra.mxu0 0.0
        %6383 = vmatpush.msra.mxu0 0.0
        %6384 = vmatpush.msra.mxu0 0.0
        %6385 = vmatpush.msra.mxu0 0.0
        %6386 = vmatpush.msra.mxu0 0.0
        %6387 = vmatpush.msra.mxu0 0.0
        %6388 = vmatpush.msra.mxu0 0.0
        %6389 = vmatpush.msra.mxu0 0.0
        %6390 = vmatpush.msra.mxu0 0.0
        %6391 = vmatpush.msra.mxu0 0.0
        %6392 = vmatpush.msra.mxu0 0.0
        %6393 = vmatpush.msra.mxu0 %v6044
        %6394 = vmatpush.msra.mxu0 %v6036
        %6395 = vmatmul.f32.gmra.mxu0 %v6047
        %v6396 = vpop.f32.mrf.mxu0
        %v6397 = vadd.f32 0.0, %v6396
        %6398 = vmatmul.f32.gmra.mxu0 %v6050
        %v6399 = vpop.f32.mrf.mxu0
        %v6400 = vadd.f32 0.0, %v6399
        %6401 = vmatmul.f32.gmra.mxu0 %v6053
        %v6402 = vpop.f32.mrf.mxu0
        %v6403 = vadd.f32 0.0, %v6402
        %6404 = vmatmul.f32.gmra.mxu0 %v6056
        %v6405 = vpop.f32.mrf.mxu0
        %v6406 = vadd.f32 0.0, %v6405
        %6407 = vmatmul.f32.gmra.mxu0 %v6059
        %v6408 = vpop.f32.mrf.mxu0
        %v6409 = vadd.f32 0.0, %v6408
        %6410 = vmatmul.f32.gmra.mxu0 %v6062
        %v6411 = vpop.f32.mrf.mxu0
        %v6412 = vadd.f32 0.0, %v6411
        %6413 = vmatmul.f32.gmra.mxu0 %v6065
        %v6414 = vpop.f32.mrf.mxu0
        %v6415 = vadd.f32 0.0, %v6414
        %6416 = vmatmul.f32.gmra.mxu0 %v6068
        %v6417 = vpop.f32.mrf.mxu0
        %v6418 = vadd.f32 0.0, %v6417
        %6419 = vmatmul.f32.gmra.mxu0 %v6071
        %v6420 = vpop.f32.mrf.mxu0
        %v6421 = vadd.f32 0.0, %v6420
        %6422 = vmatmul.f32.gmra.mxu0 %v6074
        %v6423 = vpop.f32.mrf.mxu0
        %v6424 = vadd.f32 0.0, %v6423
        %6425 = vmatmul.f32.gmra.mxu0 %v6077
        %v6426 = vpop.f32.mrf.mxu0
        %v6427 = vadd.f32 0.0, %v6426
        %6428 = vdwg.mxu0
        %6429 = vmatpush.msra.mxu0 0.0
        %6430 = vmatpush.msra.mxu0 0.0
        %6431 = vmatpush.msra.mxu0 0.0
        %6432 = vmatpush.msra.mxu0 0.0
        %6433 = vmatpush.msra.mxu0 0.0
        %6434 = vmatpush.msra.mxu0 0.0
        %6435 = vmatpush.msra.mxu0 0.0
        %6436 = vmatpush.msra.mxu0 0.0
        %6437 = vmatpush.msra.mxu0 0.0
        %6438 = vmatpush.msra.mxu0 0.0
        %6439 = vmatpush.msra.mxu0 0.0
        %6440 = vmatpush.msra.mxu0 0.0
        %6441 = vmatpush.msra.mxu0 0.0
        %6442 = vmatpush.msra.mxu0 0.0
        %6443 = vmatpush.msra.mxu0 %v6045
        %6444 = vmatpush.msra.mxu0 %v6037
        %6445 = vmatmul.f32.gmra.mxu0 %v6047
        %v6446 = vpop.f32.mrf.mxu0
        %v6447 = vadd.f32 0.0, %v6446
        %6448 = vmatmul.f32.gmra.mxu0 %v6050
        %v6449 = vpop.f32.mrf.mxu0
        %v6450 = vadd.f32 0.0, %v6449
        %6451 = vmatmul.f32.gmra.mxu0 %v6053
        %v6452 = vpop.f32.mrf.mxu0
        %v6453 = vadd.f32 0.0, %v6452
        %6454 = vmatmul.f32.gmra.mxu0 %v6056
        %v6455 = vpop.f32.mrf.mxu0
        %v6456 = vadd.f32 0.0, %v6455
        %6457 = vmatmul.f32.gmra.mxu0 %v6059
        %v6458 = vpop.f32.mrf.mxu0
        %v6459 = vadd.f32 0.0, %v6458
        %6460 = vmatmul.f32.gmra.mxu0 %v6062
        %v6461 = vpop.f32.mrf.mxu0
        %v6462 = vadd.f32 0.0, %v6461
        %6463 = vmatmul.f32.gmra.mxu0 %v6065
        %v6464 = vpop.f32.mrf.mxu0
        %v6465 = vadd.f32 0.0, %v6464
        %6466 = vmatmul.f32.gmra.mxu0 %v6068
        %v6467 = vpop.f32.mrf.mxu0
        %v6468 = vadd.f32 0.0, %v6467
        %6469 = vmatmul.f32.gmra.mxu0 %v6071
        %v6470 = vpop.f32.mrf.mxu0
        %v6471 = vadd.f32 0.0, %v6470
        %6472 = vmatmul.f32.gmra.mxu0 %v6074
        %v6473 = vpop.f32.mrf.mxu0
        %v6474 = vadd.f32 0.0, %v6473
        %6475 = vmatmul.f32.gmra.mxu0 %v6077
        %v6476 = vpop.f32.mrf.mxu0
        %v6477 = vadd.f32 0.0, %v6476
        %6478 = vdwg.mxu0
        %v6479 = vmul.f32 %v5593, %v5273
        %v6480 = vmul.f32 %v5594, %v5274
        %v6481 = vmul.f32 %v5595, %v5275
        %v6482 = vmul.f32 %v5596, %v5276
        %v6483 = vmul.f32 %v5597, %v5277
        %v6484 = vmul.f32 %v5598, %v5278
        %v6485 = vmul.f32 %v5599, %v5279
        %v6486 = vmul.f32 %v5600, %v5280
        %v6487 = vmul.f32 %v5601, %v5281
        %v6488 = vmul.f32 %v5602, %v5282
        %v6489 = vmul.f32 %v5603, %v5283
        %6501 = vrot.lane.b32.xlu0 %v6479, 64
        %v6502 = vpop.permute.xlu0 %6501
        %6503 = vrot.lane.b32.xlu0 %v6480, 64
        %v6504 = vpop.permute.xlu0 %6503
        %6505 = vrot.lane.b32.xlu0 %v6481, 64
        %v6506 = vpop.permute.xlu0 %6505
        %6507 = vrot.lane.b32.xlu0 %v6482, 64
        %v6508 = vpop.permute.xlu0 %6507
        %6509 = vrot.lane.b32.xlu0 %v6483, 64
        %v6510 = vpop.permute.xlu0 %6509
        %6511 = vrot.lane.b32.xlu0 %v6484, 64
        %v6512 = vpop.permute.xlu0 %6511
        %6513 = vrot.lane.b32.xlu0 %v6485, 64
        %v6514 = vpop.permute.xlu0 %6513
        %6515 = vrot.lane.b32.xlu0 %v6486, 64
        %v6516 = vpop.permute.xlu0 %6515
        %6517 = vrot.lane.b32.xlu0 %v6487, 64
        %v6518 = vpop.permute.xlu0 %6517
        %6519 = vrot.lane.b32.xlu0 %v6488, 64
        %v6520 = vpop.permute.xlu0 %6519
        %6521 = vrot.lane.b32.xlu0 %v6489, 64
        %v6522 = vpop.permute.xlu0 %6521
        %v6534 = vsel %vm423, %v6479, %v6502
        %v6535 = vsel %vm423, %v6480, %v6504
        %v6536 = vsel %vm423, %v6481, %v6506
        %v6537 = vsel %vm423, %v6482, %v6508
        %v6538 = vsel %vm423, %v6483, %v6510
        %v6539 = vsel %vm423, %v6484, %v6512
        %v6540 = vsel %vm423, %v6485, %v6514
        %v6541 = vsel %vm423, %v6486, %v6516
        %v6542 = vsel %vm423, %v6487, %v6518
        %v6543 = vsel %vm423, %v6488, %v6520
        %v6544 = vsel %vm423, %v6489, %v6522
        %v6545 = vmul.f32 %v6534, %v6097
        %v6546 = vmul.f32 %v6534, %v6147
        %v6547 = vmul.f32 %v6534, %v6197
        %v6548 = vmul.f32 %v6534, %v6247
        %v6549 = vmul.f32 %v6534, %v6297
        %v6550 = vmul.f32 %v6534, %v6347
        %v6551 = vmul.f32 %v6534, %v6397
        %v6552 = vmul.f32 %v6534, %v6447
        %v6553 = vmul.f32 %v6535, %v6100
        %v6554 = vmul.f32 %v6535, %v6150
        %v6555 = vmul.f32 %v6535, %v6200
        %v6556 = vmul.f32 %v6535, %v6250
        %v6557 = vmul.f32 %v6535, %v6300
        %v6558 = vmul.f32 %v6535, %v6350
        %v6559 = vmul.f32 %v6535, %v6400
        %v6560 = vmul.f32 %v6535, %v6450
        %v6561 = vmul.f32 %v6536, %v6103
        %v6562 = vmul.f32 %v6536, %v6153
        %v6563 = vmul.f32 %v6536, %v6203
        %v6564 = vmul.f32 %v6536, %v6253
        %v6565 = vmul.f32 %v6536, %v6303
        %v6566 = vmul.f32 %v6536, %v6353
        %v6567 = vmul.f32 %v6536, %v6403
        %v6568 = vmul.f32 %v6536, %v6453
        %v6569 = vmul.f32 %v6537, %v6106
        %v6570 = vmul.f32 %v6537, %v6156
        %v6571 = vmul.f32 %v6537, %v6206
        %v6572 = vmul.f32 %v6537, %v6256
        %v6573 = vmul.f32 %v6537, %v6306
        %v6574 = vmul.f32 %v6537, %v6356
        %v6575 = vmul.f32 %v6537, %v6406
        %v6576 = vmul.f32 %v6537, %v6456
        %v6577 = vmul.f32 %v6538, %v6109
        %v6578 = vmul.f32 %v6538, %v6159
        %v6579 = vmul.f32 %v6538, %v6209
        %v6580 = vmul.f32 %v6538, %v6259
        %v6581 = vmul.f32 %v6538, %v6309
        %v6582 = vmul.f32 %v6538, %v6359
        %v6583 = vmul.f32 %v6538, %v6409
        %v6584 = vmul.f32 %v6538, %v6459
        %v6585 = vmul.f32 %v6539, %v6112
        %v6586 = vmul.f32 %v6539, %v6162
        %v6587 = vmul.f32 %v6539, %v6212
        %v6588 = vmul.f32 %v6539, %v6262
        %v6589 = vmul.f32 %v6539, %v6312
        %v6590 = vmul.f32 %v6539, %v6362
        %v6591 = vmul.f32 %v6539, %v6412
        %v6592 = vmul.f32 %v6539, %v6462
        %v6593 = vmul.f32 %v6540, %v6115
        %v6594 = vmul.f32 %v6540, %v6165
        %v6595 = vmul.f32 %v6540, %v6215
        %v6596 = vmul.f32 %v6540, %v6265
        %v6597 = vmul.f32 %v6540, %v6315
        %v6598 = vmul.f32 %v6540, %v6365
        %v6599 = vmul.f32 %v6540, %v6415
        %v6600 = vmul.f32 %v6540, %v6465
        %v6601 = vmul.f32 %v6541, %v6118
        %v6602 = vmul.f32 %v6541, %v6168
        %v6603 = vmul.f32 %v6541, %v6218
        %v6604 = vmul.f32 %v6541, %v6268
        %v6605 = vmul.f32 %v6541, %v6318
        %v6606 = vmul.f32 %v6541, %v6368
        %v6607 = vmul.f32 %v6541, %v6418
        %v6608 = vmul.f32 %v6541, %v6468
        %v6609 = vmul.f32 %v6542, %v6121
        %v6610 = vmul.f32 %v6542, %v6171
        %v6611 = vmul.f32 %v6542, %v6221
        %v6612 = vmul.f32 %v6542, %v6271
        %v6613 = vmul.f32 %v6542, %v6321
        %v6614 = vmul.f32 %v6542, %v6371
        %v6615 = vmul.f32 %v6542, %v6421
        %v6616 = vmul.f32 %v6542, %v6471
        %v6617 = vmul.f32 %v6543, %v6124
        %v6618 = vmul.f32 %v6543, %v6174
        %v6619 = vmul.f32 %v6543, %v6224
        %v6620 = vmul.f32 %v6543, %v6274
        %v6621 = vmul.f32 %v6543, %v6324
        %v6622 = vmul.f32 %v6543, %v6374
        %v6623 = vmul.f32 %v6543, %v6424
        %v6624 = vmul.f32 %v6543, %v6474
        %v6625 = vmul.f32 %v6544, %v6127
        %v6626 = vmul.f32 %v6544, %v6177
        %v6627 = vmul.f32 %v6544, %v6227
        %v6628 = vmul.f32 %v6544, %v6277
        %v6629 = vmul.f32 %v6544, %v6327
        %v6630 = vmul.f32 %v6544, %v6377
        %v6631 = vmul.f32 %v6544, %v6427
        %v6632 = vmul.f32 %v6544, %v6477
        %6633 = vst [vmem:[#allocation4] sm:$0xff] %v6545
        %6634 = vst [vmem:[#allocation4 + $0x8] sm:$0xff] %v6546
        %6635 = vst [vmem:[#allocation4 + $0x10] sm:$0xff] %v6547
        %6636 = vst [vmem:[#allocation4 + $0x18] sm:$0xff] %v6548
        %6637 = vst [vmem:[#allocation4 + $0x20] sm:$0xff] %v6549
        %6638 = vst [vmem:[#allocation4 + $0x28] sm:$0xff] %v6550
        %6639 = vst [vmem:[#allocation4 + $0x30] sm:$0xff] %v6551
        %6640 = vst [vmem:[#allocation4 + $0x38] sm:$0xff] %v6552
        %6641 = vst [vmem:[#allocation4 + $0x40] sm:$0xff] %v6553
        %6642 = vst [vmem:[#allocation4 + $0x48] sm:$0xff] %v6554
        %6643 = vst [vmem:[#allocation4 + $0x50] sm:$0xff] %v6555
        %6644 = vst [vmem:[#allocation4 + $0x58] sm:$0xff] %v6556
        %6645 = vst [vmem:[#allocation4 + $0x60] sm:$0xff] %v6557
        %6646 = vst [vmem:[#allocation4 + $0x68] sm:$0xff] %v6558
        %6647 = vst [vmem:[#allocation4 + $0x70] sm:$0xff] %v6559
        %6648 = vst [vmem:[#allocation4 + $0x78] sm:$0xff] %v6560
        %6649 = vst [vmem:[#allocation4 + $0x80] sm:$0xff] %v6561
        %6650 = vst [vmem:[#allocation4 + $0x88] sm:$0xff] %v6562
        %6651 = vst [vmem:[#allocation4 + $0x90] sm:$0xff] %v6563
        %6652 = vst [vmem:[#allocation4 + $0x98] sm:$0xff] %v6564
        %6653 = vst [vmem:[#allocation4 + $0xa0] sm:$0xff] %v6565
        %6654 = vst [vmem:[#allocation4 + $0xa8] sm:$0xff] %v6566
        %6655 = vst [vmem:[#allocation4 + $0xb0] sm:$0xff] %v6567
        %6656 = vst [vmem:[#allocation4 + $0xb8] sm:$0xff] %v6568
        %6657 = vst [vmem:[#allocation4 + $0xc0] sm:$0xff] %v6569
        %6658 = vst [vmem:[#allocation4 + $0xc8] sm:$0xff] %v6570
        %6659 = vst [vmem:[#allocation4 + $0xd0] sm:$0xff] %v6571
        %6660 = vst [vmem:[#allocation4 + $0xd8] sm:$0xff] %v6572
        %6661 = vst [vmem:[#allocation4 + $0xe0] sm:$0xff] %v6573
        %6662 = vst [vmem:[#allocation4 + $0xe8] sm:$0xff] %v6574
        %6663 = vst [vmem:[#allocation4 + $0xf0] sm:$0xff] %v6575
        %6664 = vst [vmem:[#allocation4 + $0xf8] sm:$0xff] %v6576
        %6665 = vst [vmem:[#allocation4 + $0x100] sm:$0xff] %v6577
        %6666 = vst [vmem:[#allocation4 + $0x108] sm:$0xff] %v6578
        %6667 = vst [vmem:[#allocation4 + $0x110] sm:$0xff] %v6579
        %6668 = vst [vmem:[#allocation4 + $0x118] sm:$0xff] %v6580
        %6669 = vst [vmem:[#allocation4 + $0x120] sm:$0xff] %v6581
        %6670 = vst [vmem:[#allocation4 + $0x128] sm:$0xff] %v6582
        %6671 = vst [vmem:[#allocation4 + $0x130] sm:$0xff] %v6583
        %6672 = vst [vmem:[#allocation4 + $0x138] sm:$0xff] %v6584
        %6673 = vst [vmem:[#allocation4 + $0x140] sm:$0xff] %v6585
        %6674 = vst [vmem:[#allocation4 + $0x148] sm:$0xff] %v6586
        %6675 = vst [vmem:[#allocation4 + $0x150] sm:$0xff] %v6587
        %6676 = vst [vmem:[#allocation4 + $0x158] sm:$0xff] %v6588
        %6677 = vst [vmem:[#allocation4 + $0x160] sm:$0xff] %v6589
        %6678 = vst [vmem:[#allocation4 + $0x168] sm:$0xff] %v6590
        %6679 = vst [vmem:[#allocation4 + $0x170] sm:$0xff] %v6591
        %6680 = vst [vmem:[#allocation4 + $0x178] sm:$0xff] %v6592
        %6681 = vst [vmem:[#allocation4 + $0x180] sm:$0xff] %v6593
        %6682 = vst [vmem:[#allocation4 + $0x188] sm:$0xff] %v6594
        %6683 = vst [vmem:[#allocation4 + $0x190] sm:$0xff] %v6595
        %6684 = vst [vmem:[#allocation4 + $0x198] sm:$0xff] %v6596
        %6685 = vst [vmem:[#allocation4 + $0x1a0] sm:$0xff] %v6597
        %6686 = vst [vmem:[#allocation4 + $0x1a8] sm:$0xff] %v6598
        %6687 = vst [vmem:[#allocation4 + $0x1b0] sm:$0xff] %v6599
        %6688 = vst [vmem:[#allocation4 + $0x1b8] sm:$0xff] %v6600
        %6689 = vst [vmem:[#allocation4 + $0x1c0] sm:$0xff] %v6601
        %6690 = vst [vmem:[#allocation4 + $0x1c8] sm:$0xff] %v6602
        %6691 = vst [vmem:[#allocation4 + $0x1d0] sm:$0xff] %v6603
        %6692 = vst [vmem:[#allocation4 + $0x1d8] sm:$0xff] %v6604
        %6693 = vst [vmem:[#allocation4 + $0x1e0] sm:$0xff] %v6605
        %6694 = vst [vmem:[#allocation4 + $0x1e8] sm:$0xff] %v6606
        %6695 = vst [vmem:[#allocation4 + $0x1f0] sm:$0xff] %v6607
        %6696 = vst [vmem:[#allocation4 + $0x1f8] sm:$0xff] %v6608
        %6697 = vst [vmem:[#allocation4 + $0x200] sm:$0xff] %v6609
        %6698 = vst [vmem:[#allocation4 + $0x208] sm:$0xff] %v6610
        %6699 = vst [vmem:[#allocation4 + $0x210] sm:$0xff] %v6611
        %6700 = vst [vmem:[#allocation4 + $0x218] sm:$0xff] %v6612
        %6701 = vst [vmem:[#allocation4 + $0x220] sm:$0xff] %v6613
        %6702 = vst [vmem:[#allocation4 + $0x228] sm:$0xff] %v6614
        %6703 = vst [vmem:[#allocation4 + $0x230] sm:$0xff] %v6615
        %6704 = vst [vmem:[#allocation4 + $0x238] sm:$0xff] %v6616
        %6705 = vst [vmem:[#allocation4 + $0x240] sm:$0xff] %v6617
        %6706 = vst [vmem:[#allocation4 + $0x248] sm:$0xff] %v6618
        %6707 = vst [vmem:[#allocation4 + $0x250] sm:$0xff] %v6619
        %6708 = vst [vmem:[#allocation4 + $0x258] sm:$0xff] %v6620
        %6709 = vst [vmem:[#allocation4 + $0x260] sm:$0xff] %v6621
        %6710 = vst [vmem:[#allocation4 + $0x268] sm:$0xff] %v6622
        %6711 = vst [vmem:[#allocation4 + $0x270] sm:$0xff] %v6623
        %6712 = vst [vmem:[#allocation4 + $0x278] sm:$0xff] %v6624
        %6713 = vst [vmem:[#allocation4 + $0x280] sm:$0xff] %v6625
        %6714 = vst [vmem:[#allocation4 + $0x288] sm:$0xff] %v6626
        %6715 = vst [vmem:[#allocation4 + $0x290] sm:$0xff] %v6627
        %6716 = vst [vmem:[#allocation4 + $0x298] sm:$0xff] %v6628
        %6717 = vst [vmem:[#allocation4 + $0x2a0] sm:$0xff] %v6629
        %6718 = vst [vmem:[#allocation4 + $0x2a8] sm:$0xff] %v6630
        %6719 = vst [vmem:[#allocation4 + $0x2b0] sm:$0xff] %v6631
        %6720 = vst [vmem:[#allocation4 + $0x2b8] sm:$0xff] %v6632
        loop: start=0, step=1, limit=11
        $region76: #{tpu_custom_call.1} parent=67 // loop_pre_header
          _
        $region77: #{tpu_custom_call.1} parent=67 // loop_header
          %s6722 = sphi 0, %s6726
          %p6723 = scmp.ge.s32.totalorder %s6722, 11
          %v6727 = vphi 0.0, %v7042
          %v6728 = vphi 0.0, %v7043
          %v6729 = vphi 0.0, %v7044
          %v6730 = vphi 0.0, %v7045
          %v6731 = vphi 0.0, %v7046
          %v6732 = vphi 0.0, %v7047
          %v6733 = vphi 0.0, %v7048
          %v6734 = vphi 0.0, %v7049
        $region78: #{tpu_custom_call.1} parent=67 // loop_header_branch
          %6725 = sbr.rel (%p6723) target = $region82
        $region79: #{tpu_custom_call.1} parent=67 // loop_body
          %s6735 = smul.u32 %s6722, 8
          %s6736 = sshra.s32 %s6735, 3
          %s6737 = sand.u32 %s6735, 7
          %s6738 = smul.u32 %s6736, 8
          %s6739 = smul.addr %s6738, 8
          %s6740 = scalar_lea.vmem [#allocation3], %s6739
          %v6741 = vld [vmem:[%s6740] sm:$0xff]
          %v6742 = vld [vmem:[%s6740 + $0x8] sm:$0xff]
          %v6743 = vld [vmem:[%s6740 + $0x10] sm:$0xff]
          %v6744 = vld [vmem:[%s6740 + $0x18] sm:$0xff]
          %v6745 = vld [vmem:[%s6740 + $0x20] sm:$0xff]
          %v6746 = vld [vmem:[%s6740 + $0x28] sm:$0xff]
          %v6747 = vld [vmem:[%s6740 + $0x30] sm:$0xff]
          %v6748 = vld [vmem:[%s6740 + $0x38] sm:$0xff]
          %s6749 = smul.addr %s6738, 8
          %s6750 = scalar_lea.vmem [#allocation4], %s6749
          %v6751 = vld [vmem:[%s6750] sm:$0xff]
          %v6752 = vld [vmem:[%s6750 + $0x8] sm:$0xff]
          %v6753 = vld [vmem:[%s6750 + $0x10] sm:$0xff]
          %v6754 = vld [vmem:[%s6750 + $0x18] sm:$0xff]
          %v6755 = vld [vmem:[%s6750 + $0x20] sm:$0xff]
          %v6756 = vld [vmem:[%s6750 + $0x28] sm:$0xff]
          %v6757 = vld [vmem:[%s6750 + $0x30] sm:$0xff]
          %v6758 = vld [vmem:[%s6750 + $0x38] sm:$0xff]
          %v6767 = vrot.slane %v6741, 7
          %v6768 = vrot.slane %v6742, 7
          %v6769 = vrot.slane %v6743, 7
          %v6770 = vrot.slane %v6744, 7
          %v6771 = vrot.slane %v6745, 7
          %v6772 = vrot.slane %v6746, 7
          %v6773 = vrot.slane %v6747, 7
          %v6774 = vrot.slane %v6748, 7
          %vm6783 = vcmask 1040384
          %v6784 = vsel %vm6783, 1.0, %v6767
          %v6785 = vsel %vm6783, 1.0, %v6768
          %v6786 = vsel %vm6783, 1.0, %v6769
          %v6787 = vsel %vm6783, 1.0, %v6770
          %v6788 = vsel %vm6783, 1.0, %v6771
          %v6789 = vsel %vm6783, 1.0, %v6772
          %v6790 = vsel %vm6783, 1.0, %v6773
          %v6791 = vsel %vm6783, 1.0, %v6774
          %v6800 = vrot.slane %v6751, 7
          %v6801 = vrot.slane %v6752, 7
          %v6802 = vrot.slane %v6753, 7
          %v6803 = vrot.slane %v6754, 7
          %v6804 = vrot.slane %v6755, 7
          %v6805 = vrot.slane %v6756, 7
          %v6806 = vrot.slane %v6757, 7
          %v6807 = vrot.slane %v6758, 7
          %v6816 = vsel %vm6783, 0.0, %v6800
          %v6817 = vsel %vm6783, 0.0, %v6801
          %v6818 = vsel %vm6783, 0.0, %v6802
          %v6819 = vsel %vm6783, 0.0, %v6803
          %v6820 = vsel %vm6783, 0.0, %v6804
          %v6821 = vsel %vm6783, 0.0, %v6805
          %v6822 = vsel %vm6783, 0.0, %v6806
          %v6823 = vsel %vm6783, 0.0, %v6807
          %v6824 = vmul.f32 %v6741, %v6816
          %v6825 = vmul.f32 %v6742, %v6817
          %v6826 = vmul.f32 %v6743, %v6818
          %v6827 = vmul.f32 %v6744, %v6819
          %v6828 = vmul.f32 %v6745, %v6820
          %v6829 = vmul.f32 %v6746, %v6821
          %v6830 = vmul.f32 %v6747, %v6822
          %v6831 = vmul.f32 %v6748, %v6823
          %v6832 = vadd.f32 %v6824, %v6751
          %v6833 = vadd.f32 %v6825, %v6752
          %v6834 = vadd.f32 %v6826, %v6753
          %v6835 = vadd.f32 %v6827, %v6754
          %v6836 = vadd.f32 %v6828, %v6755
          %v6837 = vadd.f32 %v6829, %v6756
          %v6838 = vadd.f32 %v6830, %v6757
          %v6839 = vadd.f32 %v6831, %v6758
          %v6840 = vmul.f32 %v6741, %v6784
          %v6841 = vmul.f32 %v6742, %v6785
          %v6842 = vmul.f32 %v6743, %v6786
          %v6843 = vmul.f32 %v6744, %v6787
          %v6844 = vmul.f32 %v6745, %v6788
          %v6845 = vmul.f32 %v6746, %v6789
          %v6846 = vmul.f32 %v6747, %v6790
          %v6847 = vmul.f32 %v6748, %v6791
          %v6856 = vrot.slane %v6840, 6
          %v6857 = vrot.slane %v6841, 6
          %v6858 = vrot.slane %v6842, 6
          %v6859 = vrot.slane %v6843, 6
          %v6860 = vrot.slane %v6844, 6
          %v6861 = vrot.slane %v6845, 6
          %v6862 = vrot.slane %v6846, 6
          %v6863 = vrot.slane %v6847, 6
          %vm6872 = vcmask 1041408
          %v6873 = vsel %vm6872, 1.0, %v6856
          %v6874 = vsel %vm6872, 1.0, %v6857
          %v6875 = vsel %vm6872, 1.0, %v6858
          %v6876 = vsel %vm6872, 1.0, %v6859
          %v6877 = vsel %vm6872, 1.0, %v6860
          %v6878 = vsel %vm6872, 1.0, %v6861
          %v6879 = vsel %vm6872, 1.0, %v6862
          %v6880 = vsel %vm6872, 1.0, %v6863
          %v6889 = vrot.slane %v6832, 6
          %v6890 = vrot.slane %v6833, 6
          %v6891 = vrot.slane %v6834, 6
          %v6892 = vrot.slane %v6835, 6
          %v6893 = vrot.slane %v6836, 6
          %v6894 = vrot.slane %v6837, 6
          %v6895 = vrot.slane %v6838, 6
          %v6896 = vrot.slane %v6839, 6
          %v6905 = vsel %vm6872, 0.0, %v6889
          %v6906 = vsel %vm6872, 0.0, %v6890
          %v6907 = vsel %vm6872, 0.0, %v6891
          %v6908 = vsel %vm6872, 0.0, %v6892
          %v6909 = vsel %vm6872, 0.0, %v6893
          %v6910 = vsel %vm6872, 0.0, %v6894
          %v6911 = vsel %vm6872, 0.0, %v6895
          %v6912 = vsel %vm6872, 0.0, %v6896
          %v6913 = vmul.f32 %v6840, %v6905
          %v6914 = vmul.f32 %v6841, %v6906
          %v6915 = vmul.f32 %v6842, %v6907
          %v6916 = vmul.f32 %v6843, %v6908
          %v6917 = vmul.f32 %v6844, %v6909
          %v6918 = vmul.f32 %v6845, %v6910
          %v6919 = vmul.f32 %v6846, %v6911
          %v6920 = vmul.f32 %v6847, %v6912
          %v6921 = vadd.f32 %v6913, %v6832
          %v6922 = vadd.f32 %v6914, %v6833
          %v6923 = vadd.f32 %v6915, %v6834
          %v6924 = vadd.f32 %v6916, %v6835
          %v6925 = vadd.f32 %v6917, %v6836
          %v6926 = vadd.f32 %v6918, %v6837
          %v6927 = vadd.f32 %v6919, %v6838
          %v6928 = vadd.f32 %v6920, %v6839
          %v6929 = vmul.f32 %v6840, %v6873
          %v6930 = vmul.f32 %v6841, %v6874
          %v6931 = vmul.f32 %v6842, %v6875
          %v6932 = vmul.f32 %v6843, %v6876
          %v6933 = vmul.f32 %v6844, %v6877
          %v6934 = vmul.f32 %v6845, %v6878
          %v6935 = vmul.f32 %v6846, %v6879
          %v6936 = vmul.f32 %v6847, %v6880
          %v6945 = vrot.slane %v6929, 4
          %v6946 = vrot.slane %v6930, 4
          %v6947 = vrot.slane %v6931, 4
          %v6948 = vrot.slane %v6932, 4
          %v6949 = vrot.slane %v6933, 4
          %v6950 = vrot.slane %v6934, 4
          %v6951 = vrot.slane %v6935, 4
          %v6952 = vrot.slane %v6936, 4
          %vm6961 = vcmask 1043456
          %v6962 = vsel %vm6961, 1.0, %v6945
          %v6963 = vsel %vm6961, 1.0, %v6946
          %v6964 = vsel %vm6961, 1.0, %v6947
          %v6965 = vsel %vm6961, 1.0, %v6948
          %v6966 = vsel %vm6961, 1.0, %v6949
          %v6967 = vsel %vm6961, 1.0, %v6950
          %v6968 = vsel %vm6961, 1.0, %v6951
          %v6969 = vsel %vm6961, 1.0, %v6952
          %v6978 = vrot.slane %v6921, 4
          %v6979 = vrot.slane %v6922, 4
          %v6980 = vrot.slane %v6923, 4
          %v6981 = vrot.slane %v6924, 4
          %v6982 = vrot.slane %v6925, 4
          %v6983 = vrot.slane %v6926, 4
          %v6984 = vrot.slane %v6927, 4
          %v6985 = vrot.slane %v6928, 4
          %v6994 = vsel %vm6961, 0.0, %v6978
          %v6995 = vsel %vm6961, 0.0, %v6979
          %v6996 = vsel %vm6961, 0.0, %v6980
          %v6997 = vsel %vm6961, 0.0, %v6981
          %v6998 = vsel %vm6961, 0.0, %v6982
          %v6999 = vsel %vm6961, 0.0, %v6983
          %v7000 = vsel %vm6961, 0.0, %v6984
          %v7001 = vsel %vm6961, 0.0, %v6985
          %v7002 = vmul.f32 %v6929, %v6994
          %v7003 = vmul.f32 %v6930, %v6995
          %v7004 = vmul.f32 %v6931, %v6996
          %v7005 = vmul.f32 %v6932, %v6997
          %v7006 = vmul.f32 %v6933, %v6998
          %v7007 = vmul.f32 %v6934, %v6999
          %v7008 = vmul.f32 %v6935, %v7000
          %v7009 = vmul.f32 %v6936, %v7001
          %v7010 = vadd.f32 %v7002, %v6921
          %v7011 = vadd.f32 %v7003, %v6922
          %v7012 = vadd.f32 %v7004, %v6923
          %v7013 = vadd.f32 %v7005, %v6924
          %v7014 = vadd.f32 %v7006, %v6925
          %v7015 = vadd.f32 %v7007, %v6926
          %v7016 = vadd.f32 %v7008, %v6927
          %v7017 = vadd.f32 %v7009, %v6928
          %v7018 = vmul.f32 %v6929, %v6962
          %v7019 = vmul.f32 %v6930, %v6963
          %v7020 = vmul.f32 %v6931, %v6964
          %v7021 = vmul.f32 %v6932, %v6965
          %v7022 = vmul.f32 %v6933, %v6966
          %v7023 = vmul.f32 %v6934, %v6967
          %v7024 = vmul.f32 %v6935, %v6968
          %v7025 = vmul.f32 %v6936, %v6969
          %v7026 = vperm.slane %v6727, 7
          %v7027 = vperm.slane %v6728, 7
          %v7028 = vperm.slane %v6729, 7
          %v7029 = vperm.slane %v6730, 7
          %v7030 = vperm.slane %v6731, 7
          %v7031 = vperm.slane %v6732, 7
          %v7032 = vperm.slane %v6733, 7
          %v7033 = vperm.slane %v6734, 7
          %v7034 = vmul.f32 %v7018, %v7026
          %v7035 = vmul.f32 %v7019, %v7027
          %v7036 = vmul.f32 %v7020, %v7028
          %v7037 = vmul.f32 %v7021, %v7029
          %v7038 = vmul.f32 %v7022, %v7030
          %v7039 = vmul.f32 %v7023, %v7031
          %v7040 = vmul.f32 %v7024, %v7032
          %v7041 = vmul.f32 %v7025, %v7033
          %v7042 = vadd.f32 %v7034, %v7010
          %v7043 = vadd.f32 %v7035, %v7011
          %v7044 = vadd.f32 %v7036, %v7012
          %v7045 = vadd.f32 %v7037, %v7013
          %v7046 = vadd.f32 %v7038, %v7014
          %v7047 = vadd.f32 %v7039, %v7015
          %v7048 = vadd.f32 %v7040, %v7016
          %v7049 = vadd.f32 %v7041, %v7017
          %7050 = vst [vmem:[%s6750] sm:$0xff] %v7042
          %7051 = vst [vmem:[%s6750 + $0x8] sm:$0xff] %v7043
          %7052 = vst [vmem:[%s6750 + $0x10] sm:$0xff] %v7044
          %7053 = vst [vmem:[%s6750 + $0x18] sm:$0xff] %v7045
          %7054 = vst [vmem:[%s6750 + $0x20] sm:$0xff] %v7046
          %7055 = vst [vmem:[%s6750 + $0x28] sm:$0xff] %v7047
          %7056 = vst [vmem:[%s6750 + $0x30] sm:$0xff] %v7048
          %7057 = vst [vmem:[%s6750 + $0x38] sm:$0xff] %v7049
        $region80: #{tpu_custom_call.1} parent=67 // loop_footer
          %s6726 = sadd.s32 1, %s6722
        $region81: #{tpu_custom_call.1} parent=67 // loop_footer_branch
          %6721 = sbr.rel target = $region77
        $region82: #{tpu_custom_call.1} parent=67 // loop_exit
          _
        %v7058 = vld [vmem:[%s10] sm:$0xff]
        %v7059 = vld [vmem:[%s10 + $0x8] sm:$0xff]
        %v7060 = vld [vmem:[%s10 + $0x10] sm:$0xff]
        %v7061 = vld [vmem:[%s10 + $0x18] sm:$0xff]
        %v7062 = vld [vmem:[%s10 + $0x20] sm:$0xff]
        %v7063 = vld [vmem:[%s10 + $0x28] sm:$0xff]
        %v7064 = vld [vmem:[%s10 + $0x30] sm:$0xff]
        %v7065 = vld [vmem:[%s10 + $0x38] sm:$0xff]
        %v7066 = vld [vmem:[%s10 + $0x40] sm:$0xff]
        %v7067 = vld [vmem:[%s10 + $0x48] sm:$0xff]
        %v7068 = vld [vmem:[%s10 + $0x50] sm:$0xff]
        %v7069 = vld [vmem:[%s10 + $0x58] sm:$0xff]
        %v7070 = vld [vmem:[%s10 + $0x60] sm:$0xff]
        %v7071 = vld [vmem:[%s10 + $0x68] sm:$0xff]
        %v7072 = vld [vmem:[%s10 + $0x70] sm:$0xff]
        %v7073 = vld [vmem:[%s10 + $0x78] sm:$0xff]
        %v7075 = vsel %vm1890, %v5460, 0
        %v7078 = vsel %vm1890, %v5463, 0
        %v7081 = vsel %vm1890, %v5466, 0
        %v7084 = vsel %vm1890, %v5469, 0
        %v7087 = vsel %vm1890, %v5472, 0
        %v7090 = vsel %vm1890, %v5475, 0
        %v7093 = vsel %vm1890, %v5478, 0
        %v7096 = vsel %vm1890, %v5481, 0
        %v7099 = vsel %vm1890, %v5484, 0
        %v7102 = vsel %vm1890, %v5487, 0
        %v7105 = vsel %vm1890, %v5490, 0
        %7107 = vmatpush.msra.mxu0 0.0
        %7108 = vmatpush.msra.mxu0 0.0
        %7109 = vmatpush.msra.mxu0 0.0
        %7110 = vmatpush.msra.mxu0 0.0
        %7111 = vmatpush.msra.mxu0 0.0
        %7112 = vmatpush.msra.mxu0 0.0
        %7113 = vmatpush.msra.mxu0 0.0
        %7114 = vmatpush.msra.mxu0 0.0
        %7115 = vmatpush.msra.mxu0 0.0
        %7116 = vmatpush.msra.mxu0 0.0
        %7117 = vmatpush.msra.mxu0 0.0
        %7118 = vmatpush.msra.mxu0 0.0
        %7119 = vmatpush.msra.mxu0 0.0
        %7120 = vmatpush.msra.mxu0 0.0
        %7121 = vmatpush.msra.mxu0 %v7066
        %7122 = vmatpush.msra.mxu0 %v7058
        %7123 = vmatmul.f32.gmra.mxu0 %v7075
        %v7124 = vpop.f32.mrf.mxu0
        %v7125 = vadd.f32 0.0, %v7124
        %7126 = vmatmul.f32.gmra.mxu0 %v7078
        %v7127 = vpop.f32.mrf.mxu0
        %v7128 = vadd.f32 0.0, %v7127
        %7129 = vmatmul.f32.gmra.mxu0 %v7081
        %v7130 = vpop.f32.mrf.mxu0
        %v7131 = vadd.f32 0.0, %v7130
        %7132 = vmatmul.f32.gmra.mxu0 %v7084
        %v7133 = vpop.f32.mrf.mxu0
        %v7134 = vadd.f32 0.0, %v7133
        %7135 = vmatmul.f32.gmra.mxu0 %v7087
        %v7136 = vpop.f32.mrf.mxu0
        %v7137 = vadd.f32 0.0, %v7136
        %7138 = vmatmul.f32.gmra.mxu0 %v7090
        %v7139 = vpop.f32.mrf.mxu0
        %v7140 = vadd.f32 0.0, %v7139
        %7141 = vmatmul.f32.gmra.mxu0 %v7093
        %v7142 = vpop.f32.mrf.mxu0
        %v7143 = vadd.f32 0.0, %v7142
        %7144 = vmatmul.f32.gmra.mxu0 %v7096
        %v7145 = vpop.f32.mrf.mxu0
        %v7146 = vadd.f32 0.0, %v7145
        %7147 = vmatmul.f32.gmra.mxu0 %v7099
        %v7148 = vpop.f32.mrf.mxu0
        %v7149 = vadd.f32 0.0, %v7148
        %7150 = vmatmul.f32.gmra.mxu0 %v7102
        %v7151 = vpop.f32.mrf.mxu0
        %v7152 = vadd.f32 0.0, %v7151
        %7153 = vmatmul.f32.gmra.mxu0 %v7105
        %v7154 = vpop.f32.mrf.mxu0
        %v7155 = vadd.f32 0.0, %v7154
        %7156 = vdwg.mxu0
        %7157 = vmatpush.msra.mxu0 0.0
        %7158 = vmatpush.msra.mxu0 0.0
        %7159 = vmatpush.msra.mxu0 0.0
        %7160 = vmatpush.msra.mxu0 0.0
        %7161 = vmatpush.msra.mxu0 0.0
        %7162 = vmatpush.msra.mxu0 0.0
        %7163 = vmatpush.msra.mxu0 0.0
        %7164 = vmatpush.msra.mxu0 0.0
        %7165 = vmatpush.msra.mxu0 0.0
        %7166 = vmatpush.msra.mxu0 0.0
        %7167 = vmatpush.msra.mxu0 0.0
        %7168 = vmatpush.msra.mxu0 0.0
        %7169 = vmatpush.msra.mxu0 0.0
        %7170 = vmatpush.msra.mxu0 0.0
        %7171 = vmatpush.msra.mxu0 %v7067
        %7172 = vmatpush.msra.mxu0 %v7059
        %7173 = vmatmul.f32.gmra.mxu0 %v7075
        %v7174 = vpop.f32.mrf.mxu0
        %v7175 = vadd.f32 0.0, %v7174
        %7176 = vmatmul.f32.gmra.mxu0 %v7078
        %v7177 = vpop.f32.mrf.mxu0
        %v7178 = vadd.f32 0.0, %v7177
        %7179 = vmatmul.f32.gmra.mxu0 %v7081
        %v7180 = vpop.f32.mrf.mxu0
        %v7181 = vadd.f32 0.0, %v7180
        %7182 = vmatmul.f32.gmra.mxu0 %v7084
        %v7183 = vpop.f32.mrf.mxu0
        %v7184 = vadd.f32 0.0, %v7183
        %7185 = vmatmul.f32.gmra.mxu0 %v7087
        %v7186 = vpop.f32.mrf.mxu0
        %v7187 = vadd.f32 0.0, %v7186
        %7188 = vmatmul.f32.gmra.mxu0 %v7090
        %v7189 = vpop.f32.mrf.mxu0
        %v7190 = vadd.f32 0.0, %v7189
        %7191 = vmatmul.f32.gmra.mxu0 %v7093
        %v7192 = vpop.f32.mrf.mxu0
        %v7193 = vadd.f32 0.0, %v7192
        %7194 = vmatmul.f32.gmra.mxu0 %v7096
        %v7195 = vpop.f32.mrf.mxu0
        %v7196 = vadd.f32 0.0, %v7195
        %7197 = vmatmul.f32.gmra.mxu0 %v7099
        %v7198 = vpop.f32.mrf.mxu0
        %v7199 = vadd.f32 0.0, %v7198
        %7200 = vmatmul.f32.gmra.mxu0 %v7102
        %v7201 = vpop.f32.mrf.mxu0
        %v7202 = vadd.f32 0.0, %v7201
        %7203 = vmatmul.f32.gmra.mxu0 %v7105
        %v7204 = vpop.f32.mrf.mxu0
        %v7205 = vadd.f32 0.0, %v7204
        %7206 = vdwg.mxu0
        %7207 = vmatpush.msra.mxu0 0.0
        %7208 = vmatpush.msra.mxu0 0.0
        %7209 = vmatpush.msra.mxu0 0.0
        %7210 = vmatpush.msra.mxu0 0.0
        %7211 = vmatpush.msra.mxu0 0.0
        %7212 = vmatpush.msra.mxu0 0.0
        %7213 = vmatpush.msra.mxu0 0.0
        %7214 = vmatpush.msra.mxu0 0.0
        %7215 = vmatpush.msra.mxu0 0.0
        %7216 = vmatpush.msra.mxu0 0.0
        %7217 = vmatpush.msra.mxu0 0.0
        %7218 = vmatpush.msra.mxu0 0.0
        %7219 = vmatpush.msra.mxu0 0.0
        %7220 = vmatpush.msra.mxu0 0.0
        %7221 = vmatpush.msra.mxu0 %v7068
        %7222 = vmatpush.msra.mxu0 %v7060
        %7223 = vmatmul.f32.gmra.mxu0 %v7075
        %v7224 = vpop.f32.mrf.mxu0
        %v7225 = vadd.f32 0.0, %v7224
        %7226 = vmatmul.f32.gmra.mxu0 %v7078
        %v7227 = vpop.f32.mrf.mxu0
        %v7228 = vadd.f32 0.0, %v7227
        %7229 = vmatmul.f32.gmra.mxu0 %v7081
        %v7230 = vpop.f32.mrf.mxu0
        %v7231 = vadd.f32 0.0, %v7230
        %7232 = vmatmul.f32.gmra.mxu0 %v7084
        %v7233 = vpop.f32.mrf.mxu0
        %v7234 = vadd.f32 0.0, %v7233
        %7235 = vmatmul.f32.gmra.mxu0 %v7087
        %v7236 = vpop.f32.mrf.mxu0
        %v7237 = vadd.f32 0.0, %v7236
        %7238 = vmatmul.f32.gmra.mxu0 %v7090
        %v7239 = vpop.f32.mrf.mxu0
        %v7240 = vadd.f32 0.0, %v7239
        %7241 = vmatmul.f32.gmra.mxu0 %v7093
        %v7242 = vpop.f32.mrf.mxu0
        %v7243 = vadd.f32 0.0, %v7242
        %7244 = vmatmul.f32.gmra.mxu0 %v7096
        %v7245 = vpop.f32.mrf.mxu0
        %v7246 = vadd.f32 0.0, %v7245
        %7247 = vmatmul.f32.gmra.mxu0 %v7099
        %v7248 = vpop.f32.mrf.mxu0
        %v7249 = vadd.f32 0.0, %v7248
        %7250 = vmatmul.f32.gmra.mxu0 %v7102
        %v7251 = vpop.f32.mrf.mxu0
        %v7252 = vadd.f32 0.0, %v7251
        %7253 = vmatmul.f32.gmra.mxu0 %v7105
        %v7254 = vpop.f32.mrf.mxu0
        %v7255 = vadd.f32 0.0, %v7254
        %7256 = vdwg.mxu0
        %7257 = vmatpush.msra.mxu0 0.0
        %7258 = vmatpush.msra.mxu0 0.0
        %7259 = vmatpush.msra.mxu0 0.0
        %7260 = vmatpush.msra.mxu0 0.0
        %7261 = vmatpush.msra.mxu0 0.0
        %7262 = vmatpush.msra.mxu0 0.0
        %7263 = vmatpush.msra.mxu0 0.0
        %7264 = vmatpush.msra.mxu0 0.0
        %7265 = vmatpush.msra.mxu0 0.0
        %7266 = vmatpush.msra.mxu0 0.0
        %7267 = vmatpush.msra.mxu0 0.0
        %7268 = vmatpush.msra.mxu0 0.0
        %7269 = vmatpush.msra.mxu0 0.0
        %7270 = vmatpush.msra.mxu0 0.0
        %7271 = vmatpush.msra.mxu0 %v7069
        %7272 = vmatpush.msra.mxu0 %v7061
        %7273 = vmatmul.f32.gmra.mxu0 %v7075
        %v7274 = vpop.f32.mrf.mxu0
        %v7275 = vadd.f32 0.0, %v7274
        %7276 = vmatmul.f32.gmra.mxu0 %v7078
        %v7277 = vpop.f32.mrf.mxu0
        %v7278 = vadd.f32 0.0, %v7277
        %7279 = vmatmul.f32.gmra.mxu0 %v7081
        %v7280 = vpop.f32.mrf.mxu0
        %v7281 = vadd.f32 0.0, %v7280
        %7282 = vmatmul.f32.gmra.mxu0 %v7084
        %v7283 = vpop.f32.mrf.mxu0
        %v7284 = vadd.f32 0.0, %v7283
        %7285 = vmatmul.f32.gmra.mxu0 %v7087
        %v7286 = vpop.f32.mrf.mxu0
        %v7287 = vadd.f32 0.0, %v7286
        %7288 = vmatmul.f32.gmra.mxu0 %v7090
        %v7289 = vpop.f32.mrf.mxu0
        %v7290 = vadd.f32 0.0, %v7289
        %7291 = vmatmul.f32.gmra.mxu0 %v7093
        %v7292 = vpop.f32.mrf.mxu0
        %v7293 = vadd.f32 0.0, %v7292
        %7294 = vmatmul.f32.gmra.mxu0 %v7096
        %v7295 = vpop.f32.mrf.mxu0
        %v7296 = vadd.f32 0.0, %v7295
        %7297 = vmatmul.f32.gmra.mxu0 %v7099
        %v7298 = vpop.f32.mrf.mxu0
        %v7299 = vadd.f32 0.0, %v7298
        %7300 = vmatmul.f32.gmra.mxu0 %v7102
        %v7301 = vpop.f32.mrf.mxu0
        %v7302 = vadd.f32 0.0, %v7301
        %7303 = vmatmul.f32.gmra.mxu0 %v7105
        %v7304 = vpop.f32.mrf.mxu0
        %v7305 = vadd.f32 0.0, %v7304
        %7306 = vdwg.mxu0
        %7307 = vmatpush.msra.mxu0 0.0
        %7308 = vmatpush.msra.mxu0 0.0
        %7309 = vmatpush.msra.mxu0 0.0
        %7310 = vmatpush.msra.mxu0 0.0
        %7311 = vmatpush.msra.mxu0 0.0
        %7312 = vmatpush.msra.mxu0 0.0
        %7313 = vmatpush.msra.mxu0 0.0
        %7314 = vmatpush.msra.mxu0 0.0
        %7315 = vmatpush.msra.mxu0 0.0
        %7316 = vmatpush.msra.mxu0 0.0
        %7317 = vmatpush.msra.mxu0 0.0
        %7318 = vmatpush.msra.mxu0 0.0
        %7319 = vmatpush.msra.mxu0 0.0
        %7320 = vmatpush.msra.mxu0 0.0
        %7321 = vmatpush.msra.mxu0 %v7070
        %7322 = vmatpush.msra.mxu0 %v7062
        %7323 = vmatmul.f32.gmra.mxu0 %v7075
        %v7324 = vpop.f32.mrf.mxu0
        %v7325 = vadd.f32 0.0, %v7324
        %7326 = vmatmul.f32.gmra.mxu0 %v7078
        %v7327 = vpop.f32.mrf.mxu0
        %v7328 = vadd.f32 0.0, %v7327
        %7329 = vmatmul.f32.gmra.mxu0 %v7081
        %v7330 = vpop.f32.mrf.mxu0
        %v7331 = vadd.f32 0.0, %v7330
        %7332 = vmatmul.f32.gmra.mxu0 %v7084
        %v7333 = vpop.f32.mrf.mxu0
        %v7334 = vadd.f32 0.0, %v7333
        %7335 = vmatmul.f32.gmra.mxu0 %v7087
        %v7336 = vpop.f32.mrf.mxu0
        %v7337 = vadd.f32 0.0, %v7336
        %7338 = vmatmul.f32.gmra.mxu0 %v7090
        %v7339 = vpop.f32.mrf.mxu0
        %v7340 = vadd.f32 0.0, %v7339
        %7341 = vmatmul.f32.gmra.mxu0 %v7093
        %v7342 = vpop.f32.mrf.mxu0
        %v7343 = vadd.f32 0.0, %v7342
        %7344 = vmatmul.f32.gmra.mxu0 %v7096
        %v7345 = vpop.f32.mrf.mxu0
        %v7346 = vadd.f32 0.0, %v7345
        %7347 = vmatmul.f32.gmra.mxu0 %v7099
        %v7348 = vpop.f32.mrf.mxu0
        %v7349 = vadd.f32 0.0, %v7348
        %7350 = vmatmul.f32.gmra.mxu0 %v7102
        %v7351 = vpop.f32.mrf.mxu0
        %v7352 = vadd.f32 0.0, %v7351
        %7353 = vmatmul.f32.gmra.mxu0 %v7105
        %v7354 = vpop.f32.mrf.mxu0
        %v7355 = vadd.f32 0.0, %v7354
        %7356 = vdwg.mxu0
        %7357 = vmatpush.msra.mxu0 0.0
        %7358 = vmatpush.msra.mxu0 0.0
        %7359 = vmatpush.msra.mxu0 0.0
        %7360 = vmatpush.msra.mxu0 0.0
        %7361 = vmatpush.msra.mxu0 0.0
        %7362 = vmatpush.msra.mxu0 0.0
        %7363 = vmatpush.msra.mxu0 0.0
        %7364 = vmatpush.msra.mxu0 0.0
        %7365 = vmatpush.msra.mxu0 0.0
        %7366 = vmatpush.msra.mxu0 0.0
        %7367 = vmatpush.msra.mxu0 0.0
        %7368 = vmatpush.msra.mxu0 0.0
        %7369 = vmatpush.msra.mxu0 0.0
        %7370 = vmatpush.msra.mxu0 0.0
        %7371 = vmatpush.msra.mxu0 %v7071
        %7372 = vmatpush.msra.mxu0 %v7063
        %7373 = vmatmul.f32.gmra.mxu0 %v7075
        %v7374 = vpop.f32.mrf.mxu0
        %v7375 = vadd.f32 0.0, %v7374
        %7376 = vmatmul.f32.gmra.mxu0 %v7078
        %v7377 = vpop.f32.mrf.mxu0
        %v7378 = vadd.f32 0.0, %v7377
        %7379 = vmatmul.f32.gmra.mxu0 %v7081
        %v7380 = vpop.f32.mrf.mxu0
        %v7381 = vadd.f32 0.0, %v7380
        %7382 = vmatmul.f32.gmra.mxu0 %v7084
        %v7383 = vpop.f32.mrf.mxu0
        %v7384 = vadd.f32 0.0, %v7383
        %7385 = vmatmul.f32.gmra.mxu0 %v7087
        %v7386 = vpop.f32.mrf.mxu0
        %v7387 = vadd.f32 0.0, %v7386
        %7388 = vmatmul.f32.gmra.mxu0 %v7090
        %v7389 = vpop.f32.mrf.mxu0
        %v7390 = vadd.f32 0.0, %v7389
        %7391 = vmatmul.f32.gmra.mxu0 %v7093
        %v7392 = vpop.f32.mrf.mxu0
        %v7393 = vadd.f32 0.0, %v7392
        %7394 = vmatmul.f32.gmra.mxu0 %v7096
        %v7395 = vpop.f32.mrf.mxu0
        %v7396 = vadd.f32 0.0, %v7395
        %7397 = vmatmul.f32.gmra.mxu0 %v7099
        %v7398 = vpop.f32.mrf.mxu0
        %v7399 = vadd.f32 0.0, %v7398
        %7400 = vmatmul.f32.gmra.mxu0 %v7102
        %v7401 = vpop.f32.mrf.mxu0
        %v7402 = vadd.f32 0.0, %v7401
        %7403 = vmatmul.f32.gmra.mxu0 %v7105
        %v7404 = vpop.f32.mrf.mxu0
        %v7405 = vadd.f32 0.0, %v7404
        %7406 = vdwg.mxu0
        %7407 = vmatpush.msra.mxu0 0.0
        %7408 = vmatpush.msra.mxu0 0.0
        %7409 = vmatpush.msra.mxu0 0.0
        %7410 = vmatpush.msra.mxu0 0.0
        %7411 = vmatpush.msra.mxu0 0.0
        %7412 = vmatpush.msra.mxu0 0.0
        %7413 = vmatpush.msra.mxu0 0.0
        %7414 = vmatpush.msra.mxu0 0.0
        %7415 = vmatpush.msra.mxu0 0.0
        %7416 = vmatpush.msra.mxu0 0.0
        %7417 = vmatpush.msra.mxu0 0.0
        %7418 = vmatpush.msra.mxu0 0.0
        %7419 = vmatpush.msra.mxu0 0.0
        %7420 = vmatpush.msra.mxu0 0.0
        %7421 = vmatpush.msra.mxu0 %v7072
        %7422 = vmatpush.msra.mxu0 %v7064
        %7423 = vmatmul.f32.gmra.mxu0 %v7075
        %v7424 = vpop.f32.mrf.mxu0
        %v7425 = vadd.f32 0.0, %v7424
        %7426 = vmatmul.f32.gmra.mxu0 %v7078
        %v7427 = vpop.f32.mrf.mxu0
        %v7428 = vadd.f32 0.0, %v7427
        %7429 = vmatmul.f32.gmra.mxu0 %v7081
        %v7430 = vpop.f32.mrf.mxu0
        %v7431 = vadd.f32 0.0, %v7430
        %7432 = vmatmul.f32.gmra.mxu0 %v7084
        %v7433 = vpop.f32.mrf.mxu0
        %v7434 = vadd.f32 0.0, %v7433
        %7435 = vmatmul.f32.gmra.mxu0 %v7087
        %v7436 = vpop.f32.mrf.mxu0
        %v7437 = vadd.f32 0.0, %v7436
        %7438 = vmatmul.f32.gmra.mxu0 %v7090
        %v7439 = vpop.f32.mrf.mxu0
        %v7440 = vadd.f32 0.0, %v7439
        %7441 = vmatmul.f32.gmra.mxu0 %v7093
        %v7442 = vpop.f32.mrf.mxu0
        %v7443 = vadd.f32 0.0, %v7442
        %7444 = vmatmul.f32.gmra.mxu0 %v7096
        %v7445 = vpop.f32.mrf.mxu0
        %v7446 = vadd.f32 0.0, %v7445
        %7447 = vmatmul.f32.gmra.mxu0 %v7099
        %v7448 = vpop.f32.mrf.mxu0
        %v7449 = vadd.f32 0.0, %v7448
        %7450 = vmatmul.f32.gmra.mxu0 %v7102
        %v7451 = vpop.f32.mrf.mxu0
        %v7452 = vadd.f32 0.0, %v7451
        %7453 = vmatmul.f32.gmra.mxu0 %v7105
        %v7454 = vpop.f32.mrf.mxu0
        %v7455 = vadd.f32 0.0, %v7454
        %7456 = vdwg.mxu0
        %7457 = vmatpush.msra.mxu0 0.0
        %7458 = vmatpush.msra.mxu0 0.0
        %7459 = vmatpush.msra.mxu0 0.0
        %7460 = vmatpush.msra.mxu0 0.0
        %7461 = vmatpush.msra.mxu0 0.0
        %7462 = vmatpush.msra.mxu0 0.0
        %7463 = vmatpush.msra.mxu0 0.0
        %7464 = vmatpush.msra.mxu0 0.0
        %7465 = vmatpush.msra.mxu0 0.0
        %7466 = vmatpush.msra.mxu0 0.0
        %7467 = vmatpush.msra.mxu0 0.0
        %7468 = vmatpush.msra.mxu0 0.0
        %7469 = vmatpush.msra.mxu0 0.0
        %7470 = vmatpush.msra.mxu0 0.0
        %7471 = vmatpush.msra.mxu0 %v7073
        %7472 = vmatpush.msra.mxu0 %v7065
        %7473 = vmatmul.f32.gmra.mxu0 %v7075
        %v7474 = vpop.f32.mrf.mxu0
        %v7475 = vadd.f32 0.0, %v7474
        %7476 = vmatmul.f32.gmra.mxu0 %v7078
        %v7477 = vpop.f32.mrf.mxu0
        %v7478 = vadd.f32 0.0, %v7477
        %7479 = vmatmul.f32.gmra.mxu0 %v7081
        %v7480 = vpop.f32.mrf.mxu0
        %v7481 = vadd.f32 0.0, %v7480
        %7482 = vmatmul.f32.gmra.mxu0 %v7084
        %v7483 = vpop.f32.mrf.mxu0
        %v7484 = vadd.f32 0.0, %v7483
        %7485 = vmatmul.f32.gmra.mxu0 %v7087
        %v7486 = vpop.f32.mrf.mxu0
        %v7487 = vadd.f32 0.0, %v7486
        %7488 = vmatmul.f32.gmra.mxu0 %v7090
        %v7489 = vpop.f32.mrf.mxu0
        %v7490 = vadd.f32 0.0, %v7489
        %7491 = vmatmul.f32.gmra.mxu0 %v7093
        %v7492 = vpop.f32.mrf.mxu0
        %v7493 = vadd.f32 0.0, %v7492
        %7494 = vmatmul.f32.gmra.mxu0 %v7096
        %v7495 = vpop.f32.mrf.mxu0
        %v7496 = vadd.f32 0.0, %v7495
        %7497 = vmatmul.f32.gmra.mxu0 %v7099
        %v7498 = vpop.f32.mrf.mxu0
        %v7499 = vadd.f32 0.0, %v7498
        %7500 = vmatmul.f32.gmra.mxu0 %v7102
        %v7501 = vpop.f32.mrf.mxu0
        %v7502 = vadd.f32 0.0, %v7501
        %7503 = vmatmul.f32.gmra.mxu0 %v7105
        %v7504 = vpop.f32.mrf.mxu0
        %v7505 = vadd.f32 0.0, %v7504
        %7506 = vdwg.mxu0
        %v7507 = vld [vmem:[#allocation4] sm:$0xff]
        %v7508 = vld [vmem:[#allocation4 + $0x8] sm:$0xff]
        %v7509 = vld [vmem:[#allocation4 + $0x10] sm:$0xff]
        %v7510 = vld [vmem:[#allocation4 + $0x18] sm:$0xff]
        %v7511 = vld [vmem:[#allocation4 + $0x20] sm:$0xff]
        %v7512 = vld [vmem:[#allocation4 + $0x28] sm:$0xff]
        %v7513 = vld [vmem:[#allocation4 + $0x30] sm:$0xff]
        %v7514 = vld [vmem:[#allocation4 + $0x38] sm:$0xff]
        %v7515 = vld [vmem:[#allocation4 + $0x40] sm:$0xff]
        %v7516 = vld [vmem:[#allocation4 + $0x48] sm:$0xff]
        %v7517 = vld [vmem:[#allocation4 + $0x50] sm:$0xff]
        %v7518 = vld [vmem:[#allocation4 + $0x58] sm:$0xff]
        %v7519 = vld [vmem:[#allocation4 + $0x60] sm:$0xff]
        %v7520 = vld [vmem:[#allocation4 + $0x68] sm:$0xff]
        %v7521 = vld [vmem:[#allocation4 + $0x70] sm:$0xff]
        %v7522 = vld [vmem:[#allocation4 + $0x78] sm:$0xff]
        %v7523 = vld [vmem:[#allocation4 + $0x80] sm:$0xff]
        %v7524 = vld [vmem:[#allocation4 + $0x88] sm:$0xff]
        %v7525 = vld [vmem:[#allocation4 + $0x90] sm:$0xff]
        %v7526 = vld [vmem:[#allocation4 + $0x98] sm:$0xff]
        %v7527 = vld [vmem:[#allocation4 + $0xa0] sm:$0xff]
        %v7528 = vld [vmem:[#allocation4 + $0xa8] sm:$0xff]
        %v7529 = vld [vmem:[#allocation4 + $0xb0] sm:$0xff]
        %v7530 = vld [vmem:[#allocation4 + $0xb8] sm:$0xff]
        %v7531 = vld [vmem:[#allocation4 + $0xc0] sm:$0xff]
        %v7532 = vld [vmem:[#allocation4 + $0xc8] sm:$0xff]
        %v7533 = vld [vmem:[#allocation4 + $0xd0] sm:$0xff]
        %v7534 = vld [vmem:[#allocation4 + $0xd8] sm:$0xff]
        %v7535 = vld [vmem:[#allocation4 + $0xe0] sm:$0xff]
        %v7536 = vld [vmem:[#allocation4 + $0xe8] sm:$0xff]
        %v7537 = vld [vmem:[#allocation4 + $0xf0] sm:$0xff]
        %v7538 = vld [vmem:[#allocation4 + $0xf8] sm:$0xff]
        %v7539 = vld [vmem:[#allocation4 + $0x100] sm:$0xff]
        %v7540 = vld [vmem:[#allocation4 + $0x108] sm:$0xff]
        %v7541 = vld [vmem:[#allocation4 + $0x110] sm:$0xff]
        %v7542 = vld [vmem:[#allocation4 + $0x118] sm:$0xff]
        %v7543 = vld [vmem:[#allocation4 + $0x120] sm:$0xff]
        %v7544 = vld [vmem:[#allocation4 + $0x128] sm:$0xff]
        %v7545 = vld [vmem:[#allocation4 + $0x130] sm:$0xff]
        %v7546 = vld [vmem:[#allocation4 + $0x138] sm:$0xff]
        %v7547 = vld [vmem:[#allocation4 + $0x140] sm:$0xff]
        %v7548 = vld [vmem:[#allocation4 + $0x148] sm:$0xff]
        %v7549 = vld [vmem:[#allocation4 + $0x150] sm:$0xff]
        %v7550 = vld [vmem:[#allocation4 + $0x158] sm:$0xff]
        %v7551 = vld [vmem:[#allocation4 + $0x160] sm:$0xff]
        %v7552 = vld [vmem:[#allocation4 + $0x168] sm:$0xff]
        %v7553 = vld [vmem:[#allocation4 + $0x170] sm:$0xff]
        %v7554 = vld [vmem:[#allocation4 + $0x178] sm:$0xff]
        %v7555 = vld [vmem:[#allocation4 + $0x180] sm:$0xff]
        %v7556 = vld [vmem:[#allocation4 + $0x188] sm:$0xff]
        %v7557 = vld [vmem:[#allocation4 + $0x190] sm:$0xff]
        %v7558 = vld [vmem:[#allocation4 + $0x198] sm:$0xff]
        %v7559 = vld [vmem:[#allocation4 + $0x1a0] sm:$0xff]
        %v7560 = vld [vmem:[#allocation4 + $0x1a8] sm:$0xff]
        %v7561 = vld [vmem:[#allocation4 + $0x1b0] sm:$0xff]
        %v7562 = vld [vmem:[#allocation4 + $0x1b8] sm:$0xff]
        %v7563 = vld [vmem:[#allocation4 + $0x1c0] sm:$0xff]
        %v7564 = vld [vmem:[#allocation4 + $0x1c8] sm:$0xff]
        %v7565 = vld [vmem:[#allocation4 + $0x1d0] sm:$0xff]
        %v7566 = vld [vmem:[#allocation4 + $0x1d8] sm:$0xff]
        %v7567 = vld [vmem:[#allocation4 + $0x1e0] sm:$0xff]
        %v7568 = vld [vmem:[#allocation4 + $0x1e8] sm:$0xff]
        %v7569 = vld [vmem:[#allocation4 + $0x1f0] sm:$0xff]
        %v7570 = vld [vmem:[#allocation4 + $0x1f8] sm:$0xff]
        %v7571 = vld [vmem:[#allocation4 + $0x200] sm:$0xff]
        %v7572 = vld [vmem:[#allocation4 + $0x208] sm:$0xff]
        %v7573 = vld [vmem:[#allocation4 + $0x210] sm:$0xff]
        %v7574 = vld [vmem:[#allocation4 + $0x218] sm:$0xff]
        %v7575 = vld [vmem:[#allocation4 + $0x220] sm:$0xff]
        %v7576 = vld [vmem:[#allocation4 + $0x228] sm:$0xff]
        %v7577 = vld [vmem:[#allocation4 + $0x230] sm:$0xff]
        %v7578 = vld [vmem:[#allocation4 + $0x238] sm:$0xff]
        %v7579 = vld [vmem:[#allocation4 + $0x240] sm:$0xff]
        %v7580 = vld [vmem:[#allocation4 + $0x248] sm:$0xff]
        %v7581 = vld [vmem:[#allocation4 + $0x250] sm:$0xff]
        %v7582 = vld [vmem:[#allocation4 + $0x258] sm:$0xff]
        %v7583 = vld [vmem:[#allocation4 + $0x260] sm:$0xff]
        %v7584 = vld [vmem:[#allocation4 + $0x268] sm:$0xff]
        %v7585 = vld [vmem:[#allocation4 + $0x270] sm:$0xff]
        %v7586 = vld [vmem:[#allocation4 + $0x278] sm:$0xff]
        %v7587 = vld [vmem:[#allocation4 + $0x280] sm:$0xff]
        %v7588 = vld [vmem:[#allocation4 + $0x288] sm:$0xff]
        %v7589 = vld [vmem:[#allocation4 + $0x290] sm:$0xff]
        %v7590 = vld [vmem:[#allocation4 + $0x298] sm:$0xff]
        %v7591 = vld [vmem:[#allocation4 + $0x2a0] sm:$0xff]
        %v7592 = vld [vmem:[#allocation4 + $0x2a8] sm:$0xff]
        %v7593 = vld [vmem:[#allocation4 + $0x2b0] sm:$0xff]
        %v7594 = vld [vmem:[#allocation4 + $0x2b8] sm:$0xff]
        %v7595 = vmul.f32 %v7507, %v7125
        %v7596 = vmul.f32 %v7508, %v7175
        %v7597 = vmul.f32 %v7509, %v7225
        %v7598 = vmul.f32 %v7510, %v7275
        %v7599 = vmul.f32 %v7511, %v7325
        %v7600 = vmul.f32 %v7512, %v7375
        %v7601 = vmul.f32 %v7513, %v7425
        %v7602 = vmul.f32 %v7514, %v7475
        %v7603 = vmul.f32 %v7515, %v7128
        %v7604 = vmul.f32 %v7516, %v7178
        %v7605 = vmul.f32 %v7517, %v7228
        %v7606 = vmul.f32 %v7518, %v7278
        %v7607 = vmul.f32 %v7519, %v7328
        %v7608 = vmul.f32 %v7520, %v7378
        %v7609 = vmul.f32 %v7521, %v7428
        %v7610 = vmul.f32 %v7522, %v7478
        %v7611 = vmul.f32 %v7523, %v7131
        %v7612 = vmul.f32 %v7524, %v7181
        %v7613 = vmul.f32 %v7525, %v7231
        %v7614 = vmul.f32 %v7526, %v7281
        %v7615 = vmul.f32 %v7527, %v7331
        %v7616 = vmul.f32 %v7528, %v7381
        %v7617 = vmul.f32 %v7529, %v7431
        %v7618 = vmul.f32 %v7530, %v7481
        %v7619 = vmul.f32 %v7531, %v7134
        %v7620 = vmul.f32 %v7532, %v7184
        %v7621 = vmul.f32 %v7533, %v7234
        %v7622 = vmul.f32 %v7534, %v7284
        %v7623 = vmul.f32 %v7535, %v7334
        %v7624 = vmul.f32 %v7536, %v7384
        %v7625 = vmul.f32 %v7537, %v7434
        %v7626 = vmul.f32 %v7538, %v7484
        %v7627 = vmul.f32 %v7539, %v7137
        %v7628 = vmul.f32 %v7540, %v7187
        %v7629 = vmul.f32 %v7541, %v7237
        %v7630 = vmul.f32 %v7542, %v7287
        %v7631 = vmul.f32 %v7543, %v7337
        %v7632 = vmul.f32 %v7544, %v7387
        %v7633 = vmul.f32 %v7545, %v7437
        %v7634 = vmul.f32 %v7546, %v7487
        %v7635 = vmul.f32 %v7547, %v7140
        %v7636 = vmul.f32 %v7548, %v7190
        %v7637 = vmul.f32 %v7549, %v7240
        %v7638 = vmul.f32 %v7550, %v7290
        %v7639 = vmul.f32 %v7551, %v7340
        %v7640 = vmul.f32 %v7552, %v7390
        %v7641 = vmul.f32 %v7553, %v7440
        %v7642 = vmul.f32 %v7554, %v7490
        %v7643 = vmul.f32 %v7555, %v7143
        %v7644 = vmul.f32 %v7556, %v7193
        %v7645 = vmul.f32 %v7557, %v7243
        %v7646 = vmul.f32 %v7558, %v7293
        %v7647 = vmul.f32 %v7559, %v7343
        %v7648 = vmul.f32 %v7560, %v7393
        %v7649 = vmul.f32 %v7561, %v7443
        %v7650 = vmul.f32 %v7562, %v7493
        %v7651 = vmul.f32 %v7563, %v7146
        %v7652 = vmul.f32 %v7564, %v7196
        %v7653 = vmul.f32 %v7565, %v7246
        %v7654 = vmul.f32 %v7566, %v7296
        %v7655 = vmul.f32 %v7567, %v7346
        %v7656 = vmul.f32 %v7568, %v7396
        %v7657 = vmul.f32 %v7569, %v7446
        %v7658 = vmul.f32 %v7570, %v7496
        %v7659 = vmul.f32 %v7571, %v7149
        %v7660 = vmul.f32 %v7572, %v7199
        %v7661 = vmul.f32 %v7573, %v7249
        %v7662 = vmul.f32 %v7574, %v7299
        %v7663 = vmul.f32 %v7575, %v7349
        %v7664 = vmul.f32 %v7576, %v7399
        %v7665 = vmul.f32 %v7577, %v7449
        %v7666 = vmul.f32 %v7578, %v7499
        %v7667 = vmul.f32 %v7579, %v7152
        %v7668 = vmul.f32 %v7580, %v7202
        %v7669 = vmul.f32 %v7581, %v7252
        %v7670 = vmul.f32 %v7582, %v7302
        %v7671 = vmul.f32 %v7583, %v7352
        %v7672 = vmul.f32 %v7584, %v7402
        %v7673 = vmul.f32 %v7585, %v7452
        %v7674 = vmul.f32 %v7586, %v7502
        %v7675 = vmul.f32 %v7587, %v7155
        %v7676 = vmul.f32 %v7588, %v7205
        %v7677 = vmul.f32 %v7589, %v7255
        %v7678 = vmul.f32 %v7590, %v7305
        %v7679 = vmul.f32 %v7591, %v7355
        %v7680 = vmul.f32 %v7592, %v7405
        %v7681 = vmul.f32 %v7593, %v7455
        %v7682 = vmul.f32 %v7594, %v7505
        %7683 = vst [vmem:[#allocation3] sm:$0xff] %v7595
        %7684 = vst [vmem:[#allocation3 + $0x8] sm:$0xff] %v7596
        %7685 = vst [vmem:[#allocation3 + $0x10] sm:$0xff] %v7597
        %7686 = vst [vmem:[#allocation3 + $0x18] sm:$0xff] %v7598
        %7687 = vst [vmem:[#allocation3 + $0x20] sm:$0xff] %v7599
        %7688 = vst [vmem:[#allocation3 + $0x28] sm:$0xff] %v7600
        %7689 = vst [vmem:[#allocation3 + $0x30] sm:$0xff] %v7601
        %7690 = vst [vmem:[#allocation3 + $0x38] sm:$0xff] %v7602
        %7691 = vst [vmem:[#allocation3 + $0x40] sm:$0xff] %v7603
        %7692 = vst [vmem:[#allocation3 + $0x48] sm:$0xff] %v7604
        %7693 = vst [vmem:[#allocation3 + $0x50] sm:$0xff] %v7605
        %7694 = vst [vmem:[#allocation3 + $0x58] sm:$0xff] %v7606
        %7695 = vst [vmem:[#allocation3 + $0x60] sm:$0xff] %v7607
        %7696 = vst [vmem:[#allocation3 + $0x68] sm:$0xff] %v7608
        %7697 = vst [vmem:[#allocation3 + $0x70] sm:$0xff] %v7609
        %7698 = vst [vmem:[#allocation3 + $0x78] sm:$0xff] %v7610
        %7699 = vst [vmem:[#allocation3 + $0x80] sm:$0xff] %v7611
        %7700 = vst [vmem:[#allocation3 + $0x88] sm:$0xff] %v7612
        %7701 = vst [vmem:[#allocation3 + $0x90] sm:$0xff] %v7613
        %7702 = vst [vmem:[#allocation3 + $0x98] sm:$0xff] %v7614
        %7703 = vst [vmem:[#allocation3 + $0xa0] sm:$0xff] %v7615
        %7704 = vst [vmem:[#allocation3 + $0xa8] sm:$0xff] %v7616
        %7705 = vst [vmem:[#allocation3 + $0xb0] sm:$0xff] %v7617
        %7706 = vst [vmem:[#allocation3 + $0xb8] sm:$0xff] %v7618
        %7707 = vst [vmem:[#allocation3 + $0xc0] sm:$0xff] %v7619
        %7708 = vst [vmem:[#allocation3 + $0xc8] sm:$0xff] %v7620
        %7709 = vst [vmem:[#allocation3 + $0xd0] sm:$0xff] %v7621
        %7710 = vst [vmem:[#allocation3 + $0xd8] sm:$0xff] %v7622
        %7711 = vst [vmem:[#allocation3 + $0xe0] sm:$0xff] %v7623
        %7712 = vst [vmem:[#allocation3 + $0xe8] sm:$0xff] %v7624
        %7713 = vst [vmem:[#allocation3 + $0xf0] sm:$0xff] %v7625
        %7714 = vst [vmem:[#allocation3 + $0xf8] sm:$0xff] %v7626
        %7715 = vst [vmem:[#allocation3 + $0x100] sm:$0xff] %v7627
        %7716 = vst [vmem:[#allocation3 + $0x108] sm:$0xff] %v7628
        %7717 = vst [vmem:[#allocation3 + $0x110] sm:$0xff] %v7629
        %7718 = vst [vmem:[#allocation3 + $0x118] sm:$0xff] %v7630
        %7719 = vst [vmem:[#allocation3 + $0x120] sm:$0xff] %v7631
        %7720 = vst [vmem:[#allocation3 + $0x128] sm:$0xff] %v7632
        %7721 = vst [vmem:[#allocation3 + $0x130] sm:$0xff] %v7633
        %7722 = vst [vmem:[#allocation3 + $0x138] sm:$0xff] %v7634
        %7723 = vst [vmem:[#allocation3 + $0x140] sm:$0xff] %v7635
        %7724 = vst [vmem:[#allocation3 + $0x148] sm:$0xff] %v7636
        %7725 = vst [vmem:[#allocation3 + $0x150] sm:$0xff] %v7637
        %7726 = vst [vmem:[#allocation3 + $0x158] sm:$0xff] %v7638
        %7727 = vst [vmem:[#allocation3 + $0x160] sm:$0xff] %v7639
        %7728 = vst [vmem:[#allocation3 + $0x168] sm:$0xff] %v7640
        %7729 = vst [vmem:[#allocation3 + $0x170] sm:$0xff] %v7641
        %7730 = vst [vmem:[#allocation3 + $0x178] sm:$0xff] %v7642
        %7731 = vst [vmem:[#allocation3 + $0x180] sm:$0xff] %v7643
        %7732 = vst [vmem:[#allocation3 + $0x188] sm:$0xff] %v7644
        %7733 = vst [vmem:[#allocation3 + $0x190] sm:$0xff] %v7645
        %7734 = vst [vmem:[#allocation3 + $0x198] sm:$0xff] %v7646
        %7735 = vst [vmem:[#allocation3 + $0x1a0] sm:$0xff] %v7647
        %7736 = vst [vmem:[#allocation3 + $0x1a8] sm:$0xff] %v7648
        %7737 = vst [vmem:[#allocation3 + $0x1b0] sm:$0xff] %v7649
        %7738 = vst [vmem:[#allocation3 + $0x1b8] sm:$0xff] %v7650
        %7739 = vst [vmem:[#allocation3 + $0x1c0] sm:$0xff] %v7651
        %7740 = vst [vmem:[#allocation3 + $0x1c8] sm:$0xff] %v7652
        %7741 = vst [vmem:[#allocation3 + $0x1d0] sm:$0xff] %v7653
        %7742 = vst [vmem:[#allocation3 + $0x1d8] sm:$0xff] %v7654
        %7743 = vst [vmem:[#allocation3 + $0x1e0] sm:$0xff] %v7655
        %7744 = vst [vmem:[#allocation3 + $0x1e8] sm:$0xff] %v7656
        %7745 = vst [vmem:[#allocation3 + $0x1f0] sm:$0xff] %v7657
        %7746 = vst [vmem:[#allocation3 + $0x1f8] sm:$0xff] %v7658
        %7747 = vst [vmem:[#allocation3 + $0x200] sm:$0xff] %v7659
        %7748 = vst [vmem:[#allocation3 + $0x208] sm:$0xff] %v7660
        %7749 = vst [vmem:[#allocation3 + $0x210] sm:$0xff] %v7661
        %7750 = vst [vmem:[#allocation3 + $0x218] sm:$0xff] %v7662
        %7751 = vst [vmem:[#allocation3 + $0x220] sm:$0xff] %v7663
        %7752 = vst [vmem:[#allocation3 + $0x228] sm:$0xff] %v7664
        %7753 = vst [vmem:[#allocation3 + $0x230] sm:$0xff] %v7665
        %7754 = vst [vmem:[#allocation3 + $0x238] sm:$0xff] %v7666
        %7755 = vst [vmem:[#allocation3 + $0x240] sm:$0xff] %v7667
        %7756 = vst [vmem:[#allocation3 + $0x248] sm:$0xff] %v7668
        %7757 = vst [vmem:[#allocation3 + $0x250] sm:$0xff] %v7669
        %7758 = vst [vmem:[#allocation3 + $0x258] sm:$0xff] %v7670
        %7759 = vst [vmem:[#allocation3 + $0x260] sm:$0xff] %v7671
        %7760 = vst [vmem:[#allocation3 + $0x268] sm:$0xff] %v7672
        %7761 = vst [vmem:[#allocation3 + $0x270] sm:$0xff] %v7673
        %7762 = vst [vmem:[#allocation3 + $0x278] sm:$0xff] %v7674
        %7763 = vst [vmem:[#allocation3 + $0x280] sm:$0xff] %v7675
        %7764 = vst [vmem:[#allocation3 + $0x288] sm:$0xff] %v7676
        %7765 = vst [vmem:[#allocation3 + $0x290] sm:$0xff] %v7677
        %7766 = vst [vmem:[#allocation3 + $0x298] sm:$0xff] %v7678
        %7767 = vst [vmem:[#allocation3 + $0x2a0] sm:$0xff] %v7679
        %7768 = vst [vmem:[#allocation3 + $0x2a8] sm:$0xff] %v7680
        %7769 = vst [vmem:[#allocation3 + $0x2b0] sm:$0xff] %v7681
        %7770 = vst [vmem:[#allocation3 + $0x2b8] sm:$0xff] %v7682
        %v7771 = vld [vmem:[#allocation3] sm:$0xff]
        %v7772 = vld [vmem:[#allocation3 + $0x8] sm:$0xff]
        %v7773 = vld [vmem:[#allocation3 + $0x10] sm:$0xff]
        %v7774 = vld [vmem:[#allocation3 + $0x18] sm:$0xff]
        %v7775 = vld [vmem:[#allocation3 + $0x20] sm:$0xff]
        %v7776 = vld [vmem:[#allocation3 + $0x28] sm:$0xff]
        %v7777 = vld [vmem:[#allocation3 + $0x30] sm:$0xff]
        %v7778 = vld [vmem:[#allocation3 + $0x38] sm:$0xff]
        %v7779 = vld [vmem:[#allocation3 + $0x40] sm:$0xff]
        %v7780 = vld [vmem:[#allocation3 + $0x48] sm:$0xff]
        %v7781 = vld [vmem:[#allocation3 + $0x50] sm:$0xff]
        %v7782 = vld [vmem:[#allocation3 + $0x58] sm:$0xff]
        %v7783 = vld [vmem:[#allocation3 + $0x60] sm:$0xff]
        %v7784 = vld [vmem:[#allocation3 + $0x68] sm:$0xff]
        %v7785 = vld [vmem:[#allocation3 + $0x70] sm:$0xff]
        %v7786 = vld [vmem:[#allocation3 + $0x78] sm:$0xff]
        %v7787 = vld [vmem:[#allocation3 + $0x80] sm:$0xff]
        %v7788 = vld [vmem:[#allocation3 + $0x88] sm:$0xff]
        %v7789 = vld [vmem:[#allocation3 + $0x90] sm:$0xff]
        %v7790 = vld [vmem:[#allocation3 + $0x98] sm:$0xff]
        %v7791 = vld [vmem:[#allocation3 + $0xa0] sm:$0xff]
        %v7792 = vld [vmem:[#allocation3 + $0xa8] sm:$0xff]
        %v7793 = vld [vmem:[#allocation3 + $0xb0] sm:$0xff]
        %v7794 = vld [vmem:[#allocation3 + $0xb8] sm:$0xff]
        %v7795 = vld [vmem:[#allocation3 + $0xc0] sm:$0xff]
        %v7796 = vld [vmem:[#allocation3 + $0xc8] sm:$0xff]
        %v7797 = vld [vmem:[#allocation3 + $0xd0] sm:$0xff]
        %v7798 = vld [vmem:[#allocation3 + $0xd8] sm:$0xff]
        %v7799 = vld [vmem:[#allocation3 + $0xe0] sm:$0xff]
        %v7800 = vld [vmem:[#allocation3 + $0xe8] sm:$0xff]
        %v7801 = vld [vmem:[#allocation3 + $0xf0] sm:$0xff]
        %v7802 = vld [vmem:[#allocation3 + $0xf8] sm:$0xff]
        %v7803 = vld [vmem:[#allocation3 + $0x100] sm:$0xff]
        %v7804 = vld [vmem:[#allocation3 + $0x108] sm:$0xff]
        %v7805 = vld [vmem:[#allocation3 + $0x110] sm:$0xff]
        %v7806 = vld [vmem:[#allocation3 + $0x118] sm:$0xff]
        %v7807 = vld [vmem:[#allocation3 + $0x120] sm:$0xff]
        %v7808 = vld [vmem:[#allocation3 + $0x128] sm:$0xff]
        %v7809 = vld [vmem:[#allocation3 + $0x130] sm:$0xff]
        %v7810 = vld [vmem:[#allocation3 + $0x138] sm:$0xff]
        %v7811 = vld [vmem:[#allocation3 + $0x140] sm:$0xff]
        %v7812 = vld [vmem:[#allocation3 + $0x148] sm:$0xff]
        %v7813 = vld [vmem:[#allocation3 + $0x150] sm:$0xff]
        %v7814 = vld [vmem:[#allocation3 + $0x158] sm:$0xff]
        %v7815 = vld [vmem:[#allocation3 + $0x160] sm:$0xff]
        %v7816 = vld [vmem:[#allocation3 + $0x168] sm:$0xff]
        %v7817 = vld [vmem:[#allocation3 + $0x170] sm:$0xff]
        %v7818 = vld [vmem:[#allocation3 + $0x178] sm:$0xff]
        %v7819 = vld [vmem:[#allocation3 + $0x180] sm:$0xff]
        %v7820 = vld [vmem:[#allocation3 + $0x188] sm:$0xff]
        %v7821 = vld [vmem:[#allocation3 + $0x190] sm:$0xff]
        %v7822 = vld [vmem:[#allocation3 + $0x198] sm:$0xff]
        %v7823 = vld [vmem:[#allocation3 + $0x1a0] sm:$0xff]
        %v7824 = vld [vmem:[#allocation3 + $0x1a8] sm:$0xff]
        %v7825 = vld [vmem:[#allocation3 + $0x1b0] sm:$0xff]
        %v7826 = vld [vmem:[#allocation3 + $0x1b8] sm:$0xff]
        %v7827 = vld [vmem:[#allocation3 + $0x1c0] sm:$0xff]
        %v7828 = vld [vmem:[#allocation3 + $0x1c8] sm:$0xff]
        %v7829 = vld [vmem:[#allocation3 + $0x1d0] sm:$0xff]
        %v7830 = vld [vmem:[#allocation3 + $0x1d8] sm:$0xff]
        %v7831 = vld [vmem:[#allocation3 + $0x1e0] sm:$0xff]
        %v7832 = vld [vmem:[#allocation3 + $0x1e8] sm:$0xff]
        %v7833 = vld [vmem:[#allocation3 + $0x1f0] sm:$0xff]
        %v7834 = vld [vmem:[#allocation3 + $0x1f8] sm:$0xff]
        %v7835 = vld [vmem:[#allocation3 + $0x200] sm:$0xff]
        %v7836 = vld [vmem:[#allocation3 + $0x208] sm:$0xff]
        %v7837 = vld [vmem:[#allocation3 + $0x210] sm:$0xff]
        %v7838 = vld [vmem:[#allocation3 + $0x218] sm:$0xff]
        %v7839 = vld [vmem:[#allocation3 + $0x220] sm:$0xff]
        %v7840 = vld [vmem:[#allocation3 + $0x228] sm:$0xff]
        %v7841 = vld [vmem:[#allocation3 + $0x230] sm:$0xff]
        %v7842 = vld [vmem:[#allocation3 + $0x238] sm:$0xff]
        %v7843 = vld [vmem:[#allocation3 + $0x240] sm:$0xff]
        %v7844 = vld [vmem:[#allocation3 + $0x248] sm:$0xff]
        %v7845 = vld [vmem:[#allocation3 + $0x250] sm:$0xff]
        %v7846 = vld [vmem:[#allocation3 + $0x258] sm:$0xff]
        %v7847 = vld [vmem:[#allocation3 + $0x260] sm:$0xff]
        %v7848 = vld [vmem:[#allocation3 + $0x268] sm:$0xff]
        %v7849 = vld [vmem:[#allocation3 + $0x270] sm:$0xff]
        %v7850 = vld [vmem:[#allocation3 + $0x278] sm:$0xff]
        %v7851 = vld [vmem:[#allocation3 + $0x280] sm:$0xff]
        %v7852 = vld [vmem:[#allocation3 + $0x288] sm:$0xff]
        %v7853 = vld [vmem:[#allocation3 + $0x290] sm:$0xff]
        %v7854 = vld [vmem:[#allocation3 + $0x298] sm:$0xff]
        %v7855 = vld [vmem:[#allocation3 + $0x2a0] sm:$0xff]
        %v7856 = vld [vmem:[#allocation3 + $0x2a8] sm:$0xff]
        %v7857 = vld [vmem:[#allocation3 + $0x2b0] sm:$0xff]
        %v7858 = vld [vmem:[#allocation3 + $0x2b8] sm:$0xff]
        %v7859 = vld [vmem:[%s11] sm:$0xff]
        %v7860 = vld [vmem:[%s11 + $0x8] sm:$0xff]
        %v7861 = vld [vmem:[%s11 + $0x10] sm:$0xff]
        %v7862 = vld [vmem:[%s11 + $0x18] sm:$0xff]
        %v7863 = vld [vmem:[%s11 + $0x20] sm:$0xff]
        %v7864 = vld [vmem:[%s11 + $0x28] sm:$0xff]
        %v7865 = vld [vmem:[%s11 + $0x30] sm:$0xff]
        %v7866 = vld [vmem:[%s11 + $0x38] sm:$0xff]
        %v7867 = vld [vmem:[%s11 + $0x40] sm:$0xff]
        %v7868 = vld [vmem:[%s11 + $0x48] sm:$0xff]
        %v7869 = vld [vmem:[%s11 + $0x50] sm:$0xff]
        %v7870 = vld [vmem:[%s11 + $0x58] sm:$0xff]
        %v7871 = vld [vmem:[%s11 + $0x60] sm:$0xff]
        %v7872 = vld [vmem:[%s11 + $0x68] sm:$0xff]
        %v7873 = vld [vmem:[%s11 + $0x70] sm:$0xff]
        %v7874 = vld [vmem:[%s11 + $0x78] sm:$0xff]
        %v7875 = vld [vmem:[%s11 + $0x80] sm:$0xff]
        %v7876 = vld [vmem:[%s11 + $0x88] sm:$0xff]
        %v7877 = vld [vmem:[%s11 + $0x90] sm:$0xff]
        %v7878 = vld [vmem:[%s11 + $0x98] sm:$0xff]
        %v7879 = vld [vmem:[%s11 + $0xa0] sm:$0xff]
        %v7880 = vld [vmem:[%s11 + $0xa8] sm:$0xff]
        %v7881 = vld [vmem:[%s11 + $0xb0] sm:$0xff]
        %v7882 = vld [vmem:[%s11 + $0xb8] sm:$0xff]
        %v7883 = vld [vmem:[%s11 + $0xc0] sm:$0xff]
        %v7884 = vld [vmem:[%s11 + $0xc8] sm:$0xff]
        %v7885 = vld [vmem:[%s11 + $0xd0] sm:$0xff]
        %v7886 = vld [vmem:[%s11 + $0xd8] sm:$0xff]
        %v7887 = vld [vmem:[%s11 + $0xe0] sm:$0xff]
        %v7888 = vld [vmem:[%s11 + $0xe8] sm:$0xff]
        %v7889 = vld [vmem:[%s11 + $0xf0] sm:$0xff]
        %v7890 = vld [vmem:[%s11 + $0xf8] sm:$0xff]
        %v7891 = vld [vmem:[%s11 + $0x100] sm:$0xff]
        %v7892 = vld [vmem:[%s11 + $0x108] sm:$0xff]
        %v7893 = vld [vmem:[%s11 + $0x110] sm:$0xff]
        %v7894 = vld [vmem:[%s11 + $0x118] sm:$0xff]
        %v7895 = vld [vmem:[%s11 + $0x120] sm:$0xff]
        %v7896 = vld [vmem:[%s11 + $0x128] sm:$0xff]
        %v7897 = vld [vmem:[%s11 + $0x130] sm:$0xff]
        %v7898 = vld [vmem:[%s11 + $0x138] sm:$0xff]
        %v7899 = vld [vmem:[%s11 + $0x140] sm:$0xff]
        %v7900 = vld [vmem:[%s11 + $0x148] sm:$0xff]
        %v7901 = vld [vmem:[%s11 + $0x150] sm:$0xff]
        %v7902 = vld [vmem:[%s11 + $0x158] sm:$0xff]
        %v7903 = vld [vmem:[%s11 + $0x160] sm:$0xff]
        %v7904 = vld [vmem:[%s11 + $0x168] sm:$0xff]
        %v7905 = vld [vmem:[%s11 + $0x170] sm:$0xff]
        %v7906 = vld [vmem:[%s11 + $0x178] sm:$0xff]
        %v7907 = vld [vmem:[%s11 + $0x180] sm:$0xff]
        %v7908 = vld [vmem:[%s11 + $0x188] sm:$0xff]
        %v7909 = vld [vmem:[%s11 + $0x190] sm:$0xff]
        %v7910 = vld [vmem:[%s11 + $0x198] sm:$0xff]
        %v7911 = vld [vmem:[%s11 + $0x1a0] sm:$0xff]
        %v7912 = vld [vmem:[%s11 + $0x1a8] sm:$0xff]
        %v7913 = vld [vmem:[%s11 + $0x1b0] sm:$0xff]
        %v7914 = vld [vmem:[%s11 + $0x1b8] sm:$0xff]
        %v7915 = vld [vmem:[%s11 + $0x1c0] sm:$0xff]
        %v7916 = vld [vmem:[%s11 + $0x1c8] sm:$0xff]
        %v7917 = vld [vmem:[%s11 + $0x1d0] sm:$0xff]
        %v7918 = vld [vmem:[%s11 + $0x1d8] sm:$0xff]
        %v7919 = vld [vmem:[%s11 + $0x1e0] sm:$0xff]
        %v7920 = vld [vmem:[%s11 + $0x1e8] sm:$0xff]
        %v7921 = vld [vmem:[%s11 + $0x1f0] sm:$0xff]
        %v7922 = vld [vmem:[%s11 + $0x1f8] sm:$0xff]
        %v7923 = vld [vmem:[%s11 + $0x200] sm:$0xff]
        %v7924 = vld [vmem:[%s11 + $0x208] sm:$0xff]
        %v7925 = vld [vmem:[%s11 + $0x210] sm:$0xff]
        %v7926 = vld [vmem:[%s11 + $0x218] sm:$0xff]
        %v7927 = vld [vmem:[%s11 + $0x220] sm:$0xff]
        %v7928 = vld [vmem:[%s11 + $0x228] sm:$0xff]
        %v7929 = vld [vmem:[%s11 + $0x230] sm:$0xff]
        %v7930 = vld [vmem:[%s11 + $0x238] sm:$0xff]
        %v7931 = vld [vmem:[%s11 + $0x240] sm:$0xff]
        %v7932 = vld [vmem:[%s11 + $0x248] sm:$0xff]
        %v7933 = vld [vmem:[%s11 + $0x250] sm:$0xff]
        %v7934 = vld [vmem:[%s11 + $0x258] sm:$0xff]
        %v7935 = vld [vmem:[%s11 + $0x260] sm:$0xff]
        %v7936 = vld [vmem:[%s11 + $0x268] sm:$0xff]
        %v7937 = vld [vmem:[%s11 + $0x270] sm:$0xff]
        %v7938 = vld [vmem:[%s11 + $0x278] sm:$0xff]
        %v7939 = vld [vmem:[%s11 + $0x280] sm:$0xff]
        %v7940 = vld [vmem:[%s11 + $0x288] sm:$0xff]
        %v7941 = vld [vmem:[%s11 + $0x290] sm:$0xff]
        %v7942 = vld [vmem:[%s11 + $0x298] sm:$0xff]
        %v7943 = vld [vmem:[%s11 + $0x2a0] sm:$0xff]
        %v7944 = vld [vmem:[%s11 + $0x2a8] sm:$0xff]
        %v7945 = vld [vmem:[%s11 + $0x2b0] sm:$0xff]
        %v7946 = vld [vmem:[%s11 + $0x2b8] sm:$0xff]
        %v7947 = vld [vmem:[%s11 + $0x2c0] sm:$0xff]
        %v7948 = vld [vmem:[%s11 + $0x2c8] sm:$0xff]
        %v7949 = vld [vmem:[%s11 + $0x2d0] sm:$0xff]
        %v7950 = vld [vmem:[%s11 + $0x2d8] sm:$0xff]
        %v7951 = vld [vmem:[%s11 + $0x2e0] sm:$0xff]
        %v7952 = vld [vmem:[%s11 + $0x2e8] sm:$0xff]
        %v7953 = vld [vmem:[%s11 + $0x2f0] sm:$0xff]
        %v7954 = vld [vmem:[%s11 + $0x2f8] sm:$0xff]
        %v7955 = vld [vmem:[%s11 + $0x300] sm:$0xff]
        %v7956 = vld [vmem:[%s11 + $0x308] sm:$0xff]
        %v7957 = vld [vmem:[%s11 + $0x310] sm:$0xff]
        %v7958 = vld [vmem:[%s11 + $0x318] sm:$0xff]
        %v7959 = vld [vmem:[%s11 + $0x320] sm:$0xff]
        %v7960 = vld [vmem:[%s11 + $0x328] sm:$0xff]
        %v7961 = vld [vmem:[%s11 + $0x330] sm:$0xff]
        %v7962 = vld [vmem:[%s11 + $0x338] sm:$0xff]
        %v7963 = vld [vmem:[%s11 + $0x340] sm:$0xff]
        %v7964 = vld [vmem:[%s11 + $0x348] sm:$0xff]
        %v7965 = vld [vmem:[%s11 + $0x350] sm:$0xff]
        %v7966 = vld [vmem:[%s11 + $0x358] sm:$0xff]
        %v7967 = vld [vmem:[%s11 + $0x360] sm:$0xff]
        %v7968 = vld [vmem:[%s11 + $0x368] sm:$0xff]
        %v7969 = vld [vmem:[%s11 + $0x370] sm:$0xff]
        %v7970 = vld [vmem:[%s11 + $0x378] sm:$0xff]
        %v7971 = vld [vmem:[%s11 + $0x380] sm:$0xff]
        %v7972 = vld [vmem:[%s11 + $0x388] sm:$0xff]
        %v7973 = vld [vmem:[%s11 + $0x390] sm:$0xff]
        %v7974 = vld [vmem:[%s11 + $0x398] sm:$0xff]
        %v7975 = vld [vmem:[%s11 + $0x3a0] sm:$0xff]
        %v7976 = vld [vmem:[%s11 + $0x3a8] sm:$0xff]
        %v7977 = vld [vmem:[%s11 + $0x3b0] sm:$0xff]
        %v7978 = vld [vmem:[%s11 + $0x3b8] sm:$0xff]
        %v7979 = vld [vmem:[%s11 + $0x3c0] sm:$0xff]
        %v7980 = vld [vmem:[%s11 + $0x3c8] sm:$0xff]
        %v7981 = vld [vmem:[%s11 + $0x3d0] sm:$0xff]
        %v7982 = vld [vmem:[%s11 + $0x3d8] sm:$0xff]
        %v7983 = vld [vmem:[%s11 + $0x3e0] sm:$0xff]
        %v7984 = vld [vmem:[%s11 + $0x3e8] sm:$0xff]
        %v7985 = vld [vmem:[%s11 + $0x3f0] sm:$0xff]
        %v7986 = vld [vmem:[%s11 + $0x3f8] sm:$0xff]
        %v7987 = vld [vmem:[%s8 + $0x1] sm:$0x1]
        %v7988 = vperm.slane %v7987, 0
        %v7989 = vmul.f32 %v5273, %v7988
        %v7990 = vmul.f32 %v5274, %v7988
        %v7991 = vmul.f32 %v5275, %v7988
        %v7992 = vmul.f32 %v5276, %v7988
        %v7993 = vmul.f32 %v5277, %v7988
        %v7994 = vmul.f32 %v5278, %v7988
        %v7995 = vmul.f32 %v5279, %v7988
        %v7996 = vmul.f32 %v5280, %v7988
        %v7997 = vmul.f32 %v5281, %v7988
        %v7998 = vmul.f32 %v5282, %v7988
        %v7999 = vmul.f32 %v5283, %v7988
        %8000 = vmatpush.msra.mxu0 %v7874
        %8001 = vmatpush.msra.mxu0 %v7873
        %8002 = vmatpush.msra.mxu0 %v7872
        %8003 = vmatpush.msra.mxu0 %v7871
        %8004 = vmatpush.msra.mxu0 %v7870
        %8005 = vmatpush.msra.mxu0 %v7869
        %8006 = vmatpush.msra.mxu0 %v7868
        %8007 = vmatpush.msra.mxu0 %v7867
        %8008 = vmatpush.msra.mxu0 %v7866
        %8009 = vmatpush.msra.mxu0 %v7865
        %8010 = vmatpush.msra.mxu0 %v7864
        %8011 = vmatpush.msra.mxu0 %v7863
        %8012 = vmatpush.msra.mxu0 %v7862
        %8013 = vmatpush.msra.mxu0 %v7861
        %8014 = vmatpush.msra.mxu0 %v7860
        %8015 = vmatpush.msra.mxu0 %v7859
        %8016 = vmatmul.f32.gmra.mxu0 %v7771
        %v8017 = vpop.f32.mrf.mxu0
        %v8018 = vadd.f32 %v7989, %v8017
        %8019 = vmatmul.f32.gmra.mxu0 %v7779
        %v8020 = vpop.f32.mrf.mxu0
        %v8021 = vadd.f32 %v7990, %v8020
        %8022 = vmatmul.f32.gmra.mxu0 %v7787
        %v8023 = vpop.f32.mrf.mxu0
        %v8024 = vadd.f32 %v7991, %v8023
        %8025 = vmatmul.f32.gmra.mxu0 %v7795
        %v8026 = vpop.f32.mrf.mxu0
        %v8027 = vadd.f32 %v7992, %v8026
        %8028 = vmatmul.f32.gmra.mxu0 %v7803
        %v8029 = vpop.f32.mrf.mxu0
        %v8030 = vadd.f32 %v7993, %v8029
        %8031 = vmatmul.f32.gmra.mxu0 %v7811
        %v8032 = vpop.f32.mrf.mxu0
        %v8033 = vadd.f32 %v7994, %v8032
        %8034 = vmatmul.f32.gmra.mxu0 %v7819
        %v8035 = vpop.f32.mrf.mxu0
        %v8036 = vadd.f32 %v7995, %v8035
        %8037 = vmatmul.f32.gmra.mxu0 %v7827
        %v8038 = vpop.f32.mrf.mxu0
        %v8039 = vadd.f32 %v7996, %v8038
        %8040 = vmatmul.f32.gmra.mxu0 %v7835
        %v8041 = vpop.f32.mrf.mxu0
        %v8042 = vadd.f32 %v7997, %v8041
        %8043 = vmatmul.f32.gmra.mxu0 %v7843
        %v8044 = vpop.f32.mrf.mxu0
        %v8045 = vadd.f32 %v7998, %v8044
        %8046 = vmatmul.f32.gmra.mxu0 %v7851
        %v8047 = vpop.f32.mrf.mxu0
        %v8048 = vadd.f32 %v7999, %v8047
        %8049 = vdwg.mxu0
        %8050 = vmatpush.msra.mxu0 %v7890
        %8051 = vmatpush.msra.mxu0 %v7889
        %8052 = vmatpush.msra.mxu0 %v7888
        %8053 = vmatpush.msra.mxu0 %v7887
        %8054 = vmatpush.msra.mxu0 %v7886
        %8055 = vmatpush.msra.mxu0 %v7885
        %8056 = vmatpush.msra.mxu0 %v7884
        %8057 = vmatpush.msra.mxu0 %v7883
        %8058 = vmatpush.msra.mxu0 %v7882
        %8059 = vmatpush.msra.mxu0 %v7881
        %8060 = vmatpush.msra.mxu0 %v7880
        %8061 = vmatpush.msra.mxu0 %v7879
        %8062 = vmatpush.msra.mxu0 %v7878
        %8063 = vmatpush.msra.mxu0 %v7877
        %8064 = vmatpush.msra.mxu0 %v7876
        %8065 = vmatpush.msra.mxu0 %v7875
        %8066 = vmatmul.f32.gmra.mxu0 %v7772
        %v8067 = vpop.f32.mrf.mxu0
        %v8068 = vadd.f32 %v8018, %v8067
        %8069 = vmatmul.f32.gmra.mxu0 %v7780
        %v8070 = vpop.f32.mrf.mxu0
        %v8071 = vadd.f32 %v8021, %v8070
        %8072 = vmatmul.f32.gmra.mxu0 %v7788
        %v8073 = vpop.f32.mrf.mxu0
        %v8074 = vadd.f32 %v8024, %v8073
        %8075 = vmatmul.f32.gmra.mxu0 %v7796
        %v8076 = vpop.f32.mrf.mxu0
        %v8077 = vadd.f32 %v8027, %v8076
        %8078 = vmatmul.f32.gmra.mxu0 %v7804
        %v8079 = vpop.f32.mrf.mxu0
        %v8080 = vadd.f32 %v8030, %v8079
        %8081 = vmatmul.f32.gmra.mxu0 %v7812
        %v8082 = vpop.f32.mrf.mxu0
        %v8083 = vadd.f32 %v8033, %v8082
        %8084 = vmatmul.f32.gmra.mxu0 %v7820
        %v8085 = vpop.f32.mrf.mxu0
        %v8086 = vadd.f32 %v8036, %v8085
        %8087 = vmatmul.f32.gmra.mxu0 %v7828
        %v8088 = vpop.f32.mrf.mxu0
        %v8089 = vadd.f32 %v8039, %v8088
        %8090 = vmatmul.f32.gmra.mxu0 %v7836
        %v8091 = vpop.f32.mrf.mxu0
        %v8092 = vadd.f32 %v8042, %v8091
        %8093 = vmatmul.f32.gmra.mxu0 %v7844
        %v8094 = vpop.f32.mrf.mxu0
        %v8095 = vadd.f32 %v8045, %v8094
        %8096 = vmatmul.f32.gmra.mxu0 %v7852
        %v8097 = vpop.f32.mrf.mxu0
        %v8098 = vadd.f32 %v8048, %v8097
        %8099 = vdwg.mxu0
        %8100 = vmatpush.msra.mxu0 %v7906
        %8101 = vmatpush.msra.mxu0 %v7905
        %8102 = vmatpush.msra.mxu0 %v7904
        %8103 = vmatpush.msra.mxu0 %v7903
        %8104 = vmatpush.msra.mxu0 %v7902
        %8105 = vmatpush.msra.mxu0 %v7901
        %8106 = vmatpush.msra.mxu0 %v7900
        %8107 = vmatpush.msra.mxu0 %v7899
        %8108 = vmatpush.msra.mxu0 %v7898
        %8109 = vmatpush.msra.mxu0 %v7897
        %8110 = vmatpush.msra.mxu0 %v7896
        %8111 = vmatpush.msra.mxu0 %v7895
        %8112 = vmatpush.msra.mxu0 %v7894
        %8113 = vmatpush.msra.mxu0 %v7893
        %8114 = vmatpush.msra.mxu0 %v7892
        %8115 = vmatpush.msra.mxu0 %v7891
        %8116 = vmatmul.f32.gmra.mxu0 %v7773
        %v8117 = vpop.f32.mrf.mxu0
        %v8118 = vadd.f32 %v8068, %v8117
        %8119 = vmatmul.f32.gmra.mxu0 %v7781
        %v8120 = vpop.f32.mrf.mxu0
        %v8121 = vadd.f32 %v8071, %v8120
        %8122 = vmatmul.f32.gmra.mxu0 %v7789
        %v8123 = vpop.f32.mrf.mxu0
        %v8124 = vadd.f32 %v8074, %v8123
        %8125 = vmatmul.f32.gmra.mxu0 %v7797
        %v8126 = vpop.f32.mrf.mxu0
        %v8127 = vadd.f32 %v8077, %v8126
        %8128 = vmatmul.f32.gmra.mxu0 %v7805
        %v8129 = vpop.f32.mrf.mxu0
        %v8130 = vadd.f32 %v8080, %v8129
        %8131 = vmatmul.f32.gmra.mxu0 %v7813
        %v8132 = vpop.f32.mrf.mxu0
        %v8133 = vadd.f32 %v8083, %v8132
        %8134 = vmatmul.f32.gmra.mxu0 %v7821
        %v8135 = vpop.f32.mrf.mxu0
        %v8136 = vadd.f32 %v8086, %v8135
        %8137 = vmatmul.f32.gmra.mxu0 %v7829
        %v8138 = vpop.f32.mrf.mxu0
        %v8139 = vadd.f32 %v8089, %v8138
        %8140 = vmatmul.f32.gmra.mxu0 %v7837
        %v8141 = vpop.f32.mrf.mxu0
        %v8142 = vadd.f32 %v8092, %v8141
        %8143 = vmatmul.f32.gmra.mxu0 %v7845
        %v8144 = vpop.f32.mrf.mxu0
        %v8145 = vadd.f32 %v8095, %v8144
        %8146 = vmatmul.f32.gmra.mxu0 %v7853
        %v8147 = vpop.f32.mrf.mxu0
        %v8148 = vadd.f32 %v8098, %v8147
        %8149 = vdwg.mxu0
        %8150 = vmatpush.msra.mxu0 %v7922
        %8151 = vmatpush.msra.mxu0 %v7921
        %8152 = vmatpush.msra.mxu0 %v7920
        %8153 = vmatpush.msra.mxu0 %v7919
        %8154 = vmatpush.msra.mxu0 %v7918
        %8155 = vmatpush.msra.mxu0 %v7917
        %8156 = vmatpush.msra.mxu0 %v7916
        %8157 = vmatpush.msra.mxu0 %v7915
        %8158 = vmatpush.msra.mxu0 %v7914
        %8159 = vmatpush.msra.mxu0 %v7913
        %8160 = vmatpush.msra.mxu0 %v7912
        %8161 = vmatpush.msra.mxu0 %v7911
        %8162 = vmatpush.msra.mxu0 %v7910
        %8163 = vmatpush.msra.mxu0 %v7909
        %8164 = vmatpush.msra.mxu0 %v7908
        %8165 = vmatpush.msra.mxu0 %v7907
        %8166 = vmatmul.f32.gmra.mxu0 %v7774
        %v8167 = vpop.f32.mrf.mxu0
        %v8168 = vadd.f32 %v8118, %v8167
        %8169 = vmatmul.f32.gmra.mxu0 %v7782
        %v8170 = vpop.f32.mrf.mxu0
        %v8171 = vadd.f32 %v8121, %v8170
        %8172 = vmatmul.f32.gmra.mxu0 %v7790
        %v8173 = vpop.f32.mrf.mxu0
        %v8174 = vadd.f32 %v8124, %v8173
        %8175 = vmatmul.f32.gmra.mxu0 %v7798
        %v8176 = vpop.f32.mrf.mxu0
        %v8177 = vadd.f32 %v8127, %v8176
        %8178 = vmatmul.f32.gmra.mxu0 %v7806
        %v8179 = vpop.f32.mrf.mxu0
        %v8180 = vadd.f32 %v8130, %v8179
        %8181 = vmatmul.f32.gmra.mxu0 %v7814
        %v8182 = vpop.f32.mrf.mxu0
        %v8183 = vadd.f32 %v8133, %v8182
        %8184 = vmatmul.f32.gmra.mxu0 %v7822
        %v8185 = vpop.f32.mrf.mxu0
        %v8186 = vadd.f32 %v8136, %v8185
        %8187 = vmatmul.f32.gmra.mxu0 %v7830
        %v8188 = vpop.f32.mrf.mxu0
        %v8189 = vadd.f32 %v8139, %v8188
        %8190 = vmatmul.f32.gmra.mxu0 %v7838
        %v8191 = vpop.f32.mrf.mxu0
        %v8192 = vadd.f32 %v8142, %v8191
        %8193 = vmatmul.f32.gmra.mxu0 %v7846
        %v8194 = vpop.f32.mrf.mxu0
        %v8195 = vadd.f32 %v8145, %v8194
        %8196 = vmatmul.f32.gmra.mxu0 %v7854
        %v8197 = vpop.f32.mrf.mxu0
        %v8198 = vadd.f32 %v8148, %v8197
        %8199 = vdwg.mxu0
        %8200 = vmatpush.msra.mxu0 %v7938
        %8201 = vmatpush.msra.mxu0 %v7937
        %8202 = vmatpush.msra.mxu0 %v7936
        %8203 = vmatpush.msra.mxu0 %v7935
        %8204 = vmatpush.msra.mxu0 %v7934
        %8205 = vmatpush.msra.mxu0 %v7933
        %8206 = vmatpush.msra.mxu0 %v7932
        %8207 = vmatpush.msra.mxu0 %v7931
        %8208 = vmatpush.msra.mxu0 %v7930
        %8209 = vmatpush.msra.mxu0 %v7929
        %8210 = vmatpush.msra.mxu0 %v7928
        %8211 = vmatpush.msra.mxu0 %v7927
        %8212 = vmatpush.msra.mxu0 %v7926
        %8213 = vmatpush.msra.mxu0 %v7925
        %8214 = vmatpush.msra.mxu0 %v7924
        %8215 = vmatpush.msra.mxu0 %v7923
        %8216 = vmatmul.f32.gmra.mxu0 %v7775
        %v8217 = vpop.f32.mrf.mxu0
        %v8218 = vadd.f32 %v8168, %v8217
        %8219 = vmatmul.f32.gmra.mxu0 %v7783
        %v8220 = vpop.f32.mrf.mxu0
        %v8221 = vadd.f32 %v8171, %v8220
        %8222 = vmatmul.f32.gmra.mxu0 %v7791
        %v8223 = vpop.f32.mrf.mxu0
        %v8224 = vadd.f32 %v8174, %v8223
        %8225 = vmatmul.f32.gmra.mxu0 %v7799
        %v8226 = vpop.f32.mrf.mxu0
        %v8227 = vadd.f32 %v8177, %v8226
        %8228 = vmatmul.f32.gmra.mxu0 %v7807
        %v8229 = vpop.f32.mrf.mxu0
        %v8230 = vadd.f32 %v8180, %v8229
        %8231 = vmatmul.f32.gmra.mxu0 %v7815
        %v8232 = vpop.f32.mrf.mxu0
        %v8233 = vadd.f32 %v8183, %v8232
        %8234 = vmatmul.f32.gmra.mxu0 %v7823
        %v8235 = vpop.f32.mrf.mxu0
        %v8236 = vadd.f32 %v8186, %v8235
        %8237 = vmatmul.f32.gmra.mxu0 %v7831
        %v8238 = vpop.f32.mrf.mxu0
        %v8239 = vadd.f32 %v8189, %v8238
        %8240 = vmatmul.f32.gmra.mxu0 %v7839
        %v8241 = vpop.f32.mrf.mxu0
        %v8242 = vadd.f32 %v8192, %v8241
        %8243 = vmatmul.f32.gmra.mxu0 %v7847
        %v8244 = vpop.f32.mrf.mxu0
        %v8245 = vadd.f32 %v8195, %v8244
        %8246 = vmatmul.f32.gmra.mxu0 %v7855
        %v8247 = vpop.f32.mrf.mxu0
        %v8248 = vadd.f32 %v8198, %v8247
        %8249 = vdwg.mxu0
        %8250 = vmatpush.msra.mxu0 %v7954
        %8251 = vmatpush.msra.mxu0 %v7953
        %8252 = vmatpush.msra.mxu0 %v7952
        %8253 = vmatpush.msra.mxu0 %v7951
        %8254 = vmatpush.msra.mxu0 %v7950
        %8255 = vmatpush.msra.mxu0 %v7949
        %8256 = vmatpush.msra.mxu0 %v7948
        %8257 = vmatpush.msra.mxu0 %v7947
        %8258 = vmatpush.msra.mxu0 %v7946
        %8259 = vmatpush.msra.mxu0 %v7945
        %8260 = vmatpush.msra.mxu0 %v7944
        %8261 = vmatpush.msra.mxu0 %v7943
        %8262 = vmatpush.msra.mxu0 %v7942
        %8263 = vmatpush.msra.mxu0 %v7941
        %8264 = vmatpush.msra.mxu0 %v7940
        %8265 = vmatpush.msra.mxu0 %v7939
        %8266 = vmatmul.f32.gmra.mxu0 %v7776
        %v8267 = vpop.f32.mrf.mxu0
        %v8268 = vadd.f32 %v8218, %v8267
        %8269 = vmatmul.f32.gmra.mxu0 %v7784
        %v8270 = vpop.f32.mrf.mxu0
        %v8271 = vadd.f32 %v8221, %v8270
        %8272 = vmatmul.f32.gmra.mxu0 %v7792
        %v8273 = vpop.f32.mrf.mxu0
        %v8274 = vadd.f32 %v8224, %v8273
        %8275 = vmatmul.f32.gmra.mxu0 %v7800
        %v8276 = vpop.f32.mrf.mxu0
        %v8277 = vadd.f32 %v8227, %v8276
        %8278 = vmatmul.f32.gmra.mxu0 %v7808
        %v8279 = vpop.f32.mrf.mxu0
        %v8280 = vadd.f32 %v8230, %v8279
        %8281 = vmatmul.f32.gmra.mxu0 %v7816
        %v8282 = vpop.f32.mrf.mxu0
        %v8283 = vadd.f32 %v8233, %v8282
        %8284 = vmatmul.f32.gmra.mxu0 %v7824
        %v8285 = vpop.f32.mrf.mxu0
        %v8286 = vadd.f32 %v8236, %v8285
        %8287 = vmatmul.f32.gmra.mxu0 %v7832
        %v8288 = vpop.f32.mrf.mxu0
        %v8289 = vadd.f32 %v8239, %v8288
        %8290 = vmatmul.f32.gmra.mxu0 %v7840
        %v8291 = vpop.f32.mrf.mxu0
        %v8292 = vadd.f32 %v8242, %v8291
        %8293 = vmatmul.f32.gmra.mxu0 %v7848
        %v8294 = vpop.f32.mrf.mxu0
        %v8295 = vadd.f32 %v8245, %v8294
        %8296 = vmatmul.f32.gmra.mxu0 %v7856
        %v8297 = vpop.f32.mrf.mxu0
        %v8298 = vadd.f32 %v8248, %v8297
        %8299 = vdwg.mxu0
        %8300 = vmatpush.msra.mxu0 %v7970
        %8301 = vmatpush.msra.mxu0 %v7969
        %8302 = vmatpush.msra.mxu0 %v7968
        %8303 = vmatpush.msra.mxu0 %v7967
        %8304 = vmatpush.msra.mxu0 %v7966
        %8305 = vmatpush.msra.mxu0 %v7965
        %8306 = vmatpush.msra.mxu0 %v7964
        %8307 = vmatpush.msra.mxu0 %v7963
        %8308 = vmatpush.msra.mxu0 %v7962
        %8309 = vmatpush.msra.mxu0 %v7961
        %8310 = vmatpush.msra.mxu0 %v7960
        %8311 = vmatpush.msra.mxu0 %v7959
        %8312 = vmatpush.msra.mxu0 %v7958
        %8313 = vmatpush.msra.mxu0 %v7957
        %8314 = vmatpush.msra.mxu0 %v7956
        %8315 = vmatpush.msra.mxu0 %v7955
        %8316 = vmatmul.f32.gmra.mxu0 %v7777
        %v8317 = vpop.f32.mrf.mxu0
        %v8318 = vadd.f32 %v8268, %v8317
        %8319 = vmatmul.f32.gmra.mxu0 %v7785
        %v8320 = vpop.f32.mrf.mxu0
        %v8321 = vadd.f32 %v8271, %v8320
        %8322 = vmatmul.f32.gmra.mxu0 %v7793
        %v8323 = vpop.f32.mrf.mxu0
        %v8324 = vadd.f32 %v8274, %v8323
        %8325 = vmatmul.f32.gmra.mxu0 %v7801
        %v8326 = vpop.f32.mrf.mxu0
        %v8327 = vadd.f32 %v8277, %v8326
        %8328 = vmatmul.f32.gmra.mxu0 %v7809
        %v8329 = vpop.f32.mrf.mxu0
        %v8330 = vadd.f32 %v8280, %v8329
        %8331 = vmatmul.f32.gmra.mxu0 %v7817
        %v8332 = vpop.f32.mrf.mxu0
        %v8333 = vadd.f32 %v8283, %v8332
        %8334 = vmatmul.f32.gmra.mxu0 %v7825
        %v8335 = vpop.f32.mrf.mxu0
        %v8336 = vadd.f32 %v8286, %v8335
        %8337 = vmatmul.f32.gmra.mxu0 %v7833
        %v8338 = vpop.f32.mrf.mxu0
        %v8339 = vadd.f32 %v8289, %v8338
        %8340 = vmatmul.f32.gmra.mxu0 %v7841
        %v8341 = vpop.f32.mrf.mxu0
        %v8342 = vadd.f32 %v8292, %v8341
        %8343 = vmatmul.f32.gmra.mxu0 %v7849
        %v8344 = vpop.f32.mrf.mxu0
        %v8345 = vadd.f32 %v8295, %v8344
        %8346 = vmatmul.f32.gmra.mxu0 %v7857
        %v8347 = vpop.f32.mrf.mxu0
        %v8348 = vadd.f32 %v8298, %v8347
        %8349 = vdwg.mxu0
        %8350 = vmatpush.msra.mxu0 %v7986
        %8351 = vmatpush.msra.mxu0 %v7985
        %8352 = vmatpush.msra.mxu0 %v7984
        %8353 = vmatpush.msra.mxu0 %v7983
        %8354 = vmatpush.msra.mxu0 %v7982
        %8355 = vmatpush.msra.mxu0 %v7981
        %8356 = vmatpush.msra.mxu0 %v7980
        %8357 = vmatpush.msra.mxu0 %v7979
        %8358 = vmatpush.msra.mxu0 %v7978
        %8359 = vmatpush.msra.mxu0 %v7977
        %8360 = vmatpush.msra.mxu0 %v7976
        %8361 = vmatpush.msra.mxu0 %v7975
        %8362 = vmatpush.msra.mxu0 %v7974
        %8363 = vmatpush.msra.mxu0 %v7973
        %8364 = vmatpush.msra.mxu0 %v7972
        %8365 = vmatpush.msra.mxu0 %v7971
        %8366 = vmatmul.f32.gmra.mxu0 %v7778
        %v8367 = vpop.f32.mrf.mxu0
        %v8368 = vadd.f32 %v8318, %v8367
        %8369 = vmatmul.f32.gmra.mxu0 %v7786
        %v8370 = vpop.f32.mrf.mxu0
        %v8371 = vadd.f32 %v8321, %v8370
        %8372 = vmatmul.f32.gmra.mxu0 %v7794
        %v8373 = vpop.f32.mrf.mxu0
        %v8374 = vadd.f32 %v8324, %v8373
        %8375 = vmatmul.f32.gmra.mxu0 %v7802
        %v8376 = vpop.f32.mrf.mxu0
        %v8377 = vadd.f32 %v8327, %v8376
        %8378 = vmatmul.f32.gmra.mxu0 %v7810
        %v8379 = vpop.f32.mrf.mxu0
        %v8380 = vadd.f32 %v8330, %v8379
        %8381 = vmatmul.f32.gmra.mxu0 %v7818
        %v8382 = vpop.f32.mrf.mxu0
        %v8383 = vadd.f32 %v8333, %v8382
        %8384 = vmatmul.f32.gmra.mxu0 %v7826
        %v8385 = vpop.f32.mrf.mxu0
        %v8386 = vadd.f32 %v8336, %v8385
        %8387 = vmatmul.f32.gmra.mxu0 %v7834
        %v8388 = vpop.f32.mrf.mxu0
        %v8389 = vadd.f32 %v8339, %v8388
        %8390 = vmatmul.f32.gmra.mxu0 %v7842
        %v8391 = vpop.f32.mrf.mxu0
        %v8392 = vadd.f32 %v8342, %v8391
        %8393 = vmatmul.f32.gmra.mxu0 %v7850
        %v8394 = vpop.f32.mrf.mxu0
        %v8395 = vadd.f32 %v8345, %v8394
        %8396 = vmatmul.f32.gmra.mxu0 %v7858
        %v8397 = vpop.f32.mrf.mxu0
        %v8398 = vadd.f32 %v8348, %v8397
        %8399 = vdwg.mxu0
        %v8400 = vsub.f32 0.0, %v4868
        %v8401 = vsub.f32 0.0, %v4871
        %v8402 = vsub.f32 0.0, %v4874
        %v8403 = vsub.f32 0.0, %v4877
        %v8404 = vsub.f32 0.0, %v4880
        %v8405 = vsub.f32 0.0, %v4883
        %v8406 = vsub.f32 0.0, %v4886
        %v8407 = vsub.f32 0.0, %v4889
        %v8408 = vsub.f32 0.0, %v4892
        %v8409 = vsub.f32 0.0, %v4895
        %v8410 = vsub.f32 0.0, %v4898
        %v8411 = vmul.f32 %v8400, 1.442695
        %v8412 = vpow.pop %v8411
        %v8413 = vmul.f32 %v8401, 1.442695
        %v8414 = vpow.pop %v8413
        %v8415 = vmul.f32 %v8402, 1.442695
        %v8416 = vpow.pop %v8415
        %v8417 = vmul.f32 %v8403, 1.442695
        %v8418 = vpow.pop %v8417
        %v8419 = vmul.f32 %v8404, 1.442695
        %v8420 = vpow.pop %v8419
        %v8421 = vmul.f32 %v8405, 1.442695
        %v8422 = vpow.pop %v8421
        %v8423 = vmul.f32 %v8406, 1.442695
        %v8424 = vpow.pop %v8423
        %v8425 = vmul.f32 %v8407, 1.442695
        %v8426 = vpow.pop %v8425
        %v8427 = vmul.f32 %v8408, 1.442695
        %v8428 = vpow.pop %v8427
        %v8429 = vmul.f32 %v8409, 1.442695
        %v8430 = vpow.pop %v8429
        %v8431 = vmul.f32 %v8410, 1.442695
        %v8432 = vpow.pop %v8431
        %v8433 = vadd.f32 %v8412, 1.0
        %v8434 = vadd.f32 %v8414, 1.0
        %v8435 = vadd.f32 %v8416, 1.0
        %v8436 = vadd.f32 %v8418, 1.0
        %v8437 = vadd.f32 %v8420, 1.0
        %v8438 = vadd.f32 %v8422, 1.0
        %v8439 = vadd.f32 %v8424, 1.0
        %v8440 = vadd.f32 %v8426, 1.0
        %v8441 = vadd.f32 %v8428, 1.0
        %v8442 = vadd.f32 %v8430, 1.0
        %v8443 = vadd.f32 %v8432, 1.0
        %v8444 = vrcp.pop %v8433
        %v8445 = vmul.f32 %v8433, %v8444
        %v8446 = vsub.f32 1.0, %v8445
        %v8447 = vmul.f32 %v8444, %v8446
        %v8448 = vadd.f32 %v8444, %v8447
        %vm8449 = vweird.f32 %v8433
        %vm8450 = vweird.f32 %v8444
        %vm8451 = vmor %vm8449, %vm8450
        %v8452 = vsel %vm8451, %v8444, %v8448
        %v8453 = vand.u32 2147483647, %v8433
        %vm8454 = vcmp.eq.f32.partialorder %v8453, 8.507059e+37
        %v8455 = vand.u32 %v8433, 2147483648
        %v8456 = vor.u32 1.1754944e-38, %v8455
        %v8457 = vsel %vm8454, %v8456, %v8452
        %v8458 = vmul.f32 1.0, %v8457
        %v8459 = vrcp.pop %v8434
        %v8460 = vmul.f32 %v8434, %v8459
        %v8461 = vsub.f32 1.0, %v8460
        %v8462 = vmul.f32 %v8459, %v8461
        %v8463 = vadd.f32 %v8459, %v8462
        %vm8464 = vweird.f32 %v8434
        %vm8465 = vweird.f32 %v8459
        %vm8466 = vmor %vm8464, %vm8465
        %v8467 = vsel %vm8466, %v8459, %v8463
        %v8468 = vand.u32 2147483647, %v8434
        %vm8469 = vcmp.eq.f32.partialorder %v8468, 8.507059e+37
        %v8470 = vand.u32 %v8434, 2147483648
        %v8471 = vor.u32 1.1754944e-38, %v8470
        %v8472 = vsel %vm8469, %v8471, %v8467
        %v8473 = vmul.f32 1.0, %v8472
        %v8474 = vrcp.pop %v8435
        %v8475 = vmul.f32 %v8435, %v8474
        %v8476 = vsub.f32 1.0, %v8475
        %v8477 = vmul.f32 %v8474, %v8476
        %v8478 = vadd.f32 %v8474, %v8477
        %vm8479 = vweird.f32 %v8435
        %vm8480 = vweird.f32 %v8474
        %vm8481 = vmor %vm8479, %vm8480
        %v8482 = vsel %vm8481, %v8474, %v8478
        %v8483 = vand.u32 2147483647, %v8435
        %vm8484 = vcmp.eq.f32.partialorder %v8483, 8.507059e+37
        %v8485 = vand.u32 %v8435, 2147483648
        %v8486 = vor.u32 1.1754944e-38, %v8485
        %v8487 = vsel %vm8484, %v8486, %v8482
        %v8488 = vmul.f32 1.0, %v8487
        %v8489 = vrcp.pop %v8436
        %v8490 = vmul.f32 %v8436, %v8489
        %v8491 = vsub.f32 1.0, %v8490
        %v8492 = vmul.f32 %v8489, %v8491
        %v8493 = vadd.f32 %v8489, %v8492
        %vm8494 = vweird.f32 %v8436
        %vm8495 = vweird.f32 %v8489
        %vm8496 = vmor %vm8494, %vm8495
        %v8497 = vsel %vm8496, %v8489, %v8493
        %v8498 = vand.u32 2147483647, %v8436
        %vm8499 = vcmp.eq.f32.partialorder %v8498, 8.507059e+37
        %v8500 = vand.u32 %v8436, 2147483648
        %v8501 = vor.u32 1.1754944e-38, %v8500
        %v8502 = vsel %vm8499, %v8501, %v8497
        %v8503 = vmul.f32 1.0, %v8502
        %v8504 = vrcp.pop %v8437
        %v8505 = vmul.f32 %v8437, %v8504
        %v8506 = vsub.f32 1.0, %v8505
        %v8507 = vmul.f32 %v8504, %v8506
        %v8508 = vadd.f32 %v8504, %v8507
        %vm8509 = vweird.f32 %v8437
        %vm8510 = vweird.f32 %v8504
        %vm8511 = vmor %vm8509, %vm8510
        %v8512 = vsel %vm8511, %v8504, %v8508
        %v8513 = vand.u32 2147483647, %v8437
        %vm8514 = vcmp.eq.f32.partialorder %v8513, 8.507059e+37
        %v8515 = vand.u32 %v8437, 2147483648
        %v8516 = vor.u32 1.1754944e-38, %v8515
        %v8517 = vsel %vm8514, %v8516, %v8512
        %v8518 = vmul.f32 1.0, %v8517
        %v8519 = vrcp.pop %v8438
        %v8520 = vmul.f32 %v8438, %v8519
        %v8521 = vsub.f32 1.0, %v8520
        %v8522 = vmul.f32 %v8519, %v8521
        %v8523 = vadd.f32 %v8519, %v8522
        %vm8524 = vweird.f32 %v8438
        %vm8525 = vweird.f32 %v8519
        %vm8526 = vmor %vm8524, %vm8525
        %v8527 = vsel %vm8526, %v8519, %v8523
        %v8528 = vand.u32 2147483647, %v8438
        %vm8529 = vcmp.eq.f32.partialorder %v8528, 8.507059e+37
        %v8530 = vand.u32 %v8438, 2147483648
        %v8531 = vor.u32 1.1754944e-38, %v8530
        %v8532 = vsel %vm8529, %v8531, %v8527
        %v8533 = vmul.f32 1.0, %v8532
        %v8534 = vrcp.pop %v8439
        %v8535 = vmul.f32 %v8439, %v8534
        %v8536 = vsub.f32 1.0, %v8535
        %v8537 = vmul.f32 %v8534, %v8536
        %v8538 = vadd.f32 %v8534, %v8537
        %vm8539 = vweird.f32 %v8439
        %vm8540 = vweird.f32 %v8534
        %vm8541 = vmor %vm8539, %vm8540
        %v8542 = vsel %vm8541, %v8534, %v8538
        %v8543 = vand.u32 2147483647, %v8439
        %vm8544 = vcmp.eq.f32.partialorder %v8543, 8.507059e+37
        %v8545 = vand.u32 %v8439, 2147483648
        %v8546 = vor.u32 1.1754944e-38, %v8545
        %v8547 = vsel %vm8544, %v8546, %v8542
        %v8548 = vmul.f32 1.0, %v8547
        %v8549 = vrcp.pop %v8440
        %v8550 = vmul.f32 %v8440, %v8549
        %v8551 = vsub.f32 1.0, %v8550
        %v8552 = vmul.f32 %v8549, %v8551
        %v8553 = vadd.f32 %v8549, %v8552
        %vm8554 = vweird.f32 %v8440
        %vm8555 = vweird.f32 %v8549
        %vm8556 = vmor %vm8554, %vm8555
        %v8557 = vsel %vm8556, %v8549, %v8553
        %v8558 = vand.u32 2147483647, %v8440
        %vm8559 = vcmp.eq.f32.partialorder %v8558, 8.507059e+37
        %v8560 = vand.u32 %v8440, 2147483648
        %v8561 = vor.u32 1.1754944e-38, %v8560
        %v8562 = vsel %vm8559, %v8561, %v8557
        %v8563 = vmul.f32 1.0, %v8562
        %v8564 = vrcp.pop %v8441
        %v8565 = vmul.f32 %v8441, %v8564
        %v8566 = vsub.f32 1.0, %v8565
        %v8567 = vmul.f32 %v8564, %v8566
        %v8568 = vadd.f32 %v8564, %v8567
        %vm8569 = vweird.f32 %v8441
        %vm8570 = vweird.f32 %v8564
        %vm8571 = vmor %vm8569, %vm8570
        %v8572 = vsel %vm8571, %v8564, %v8568
        %v8573 = vand.u32 2147483647, %v8441
        %vm8574 = vcmp.eq.f32.partialorder %v8573, 8.507059e+37
        %v8575 = vand.u32 %v8441, 2147483648
        %v8576 = vor.u32 1.1754944e-38, %v8575
        %v8577 = vsel %vm8574, %v8576, %v8572
        %v8578 = vmul.f32 1.0, %v8577
        %v8579 = vrcp.pop %v8442
        %v8580 = vmul.f32 %v8442, %v8579
        %v8581 = vsub.f32 1.0, %v8580
        %v8582 = vmul.f32 %v8579, %v8581
        %v8583 = vadd.f32 %v8579, %v8582
        %vm8584 = vweird.f32 %v8442
        %vm8585 = vweird.f32 %v8579
        %vm8586 = vmor %vm8584, %vm8585
        %v8587 = vsel %vm8586, %v8579, %v8583
        %v8588 = vand.u32 2147483647, %v8442
        %vm8589 = vcmp.eq.f32.partialorder %v8588, 8.507059e+37
        %v8590 = vand.u32 %v8442, 2147483648
        %v8591 = vor.u32 1.1754944e-38, %v8590
        %v8592 = vsel %vm8589, %v8591, %v8587
        %v8593 = vmul.f32 1.0, %v8592
        %v8594 = vrcp.pop %v8443
        %v8595 = vmul.f32 %v8443, %v8594
        %v8596 = vsub.f32 1.0, %v8595
        %v8597 = vmul.f32 %v8594, %v8596
        %v8598 = vadd.f32 %v8594, %v8597
        %vm8599 = vweird.f32 %v8443
        %vm8600 = vweird.f32 %v8594
        %vm8601 = vmor %vm8599, %vm8600
        %v8602 = vsel %vm8601, %v8594, %v8598
        %v8603 = vand.u32 2147483647, %v8443
        %vm8604 = vcmp.eq.f32.partialorder %v8603, 8.507059e+37
        %v8605 = vand.u32 %v8443, 2147483648
        %v8606 = vor.u32 1.1754944e-38, %v8605
        %v8607 = vsel %vm8604, %v8606, %v8602
        %v8608 = vmul.f32 1.0, %v8607
        %v8609 = vmul.f32 %v4868, %v8458
        %v8610 = vmul.f32 %v4871, %v8473
        %v8611 = vmul.f32 %v4874, %v8488
        %v8612 = vmul.f32 %v4877, %v8503
        %v8613 = vmul.f32 %v4880, %v8518
        %v8614 = vmul.f32 %v4883, %v8533
        %v8615 = vmul.f32 %v4886, %v8548
        %v8616 = vmul.f32 %v4889, %v8563
        %v8617 = vmul.f32 %v4892, %v8578
        %v8618 = vmul.f32 %v4895, %v8593
        %v8619 = vmul.f32 %v4898, %v8608
        %v8620 = vmul.f32 %v8368, %v8609
        %v8621 = vmul.f32 %v8371, %v8610
        %v8622 = vmul.f32 %v8374, %v8611
        %v8623 = vmul.f32 %v8377, %v8612
        %v8624 = vmul.f32 %v8380, %v8613
        %v8625 = vmul.f32 %v8383, %v8614
        %v8626 = vmul.f32 %v8386, %v8615
        %v8627 = vmul.f32 %v8389, %v8616
        %v8628 = vmul.f32 %v8392, %v8617
        %v8629 = vmul.f32 %v8395, %v8618
        %v8630 = vmul.f32 %v8398, %v8619
        %s8631 = scalar_lea.vmem %s9, 64
        %v8632 = vld [vmem:[%s8631] sm:$0xff]
        %v8633 = vld [vmem:[%s8631 + $0x8] sm:$0xff]
        %v8634 = vld [vmem:[%s8631 + $0x10] sm:$0xff]
        %v8635 = vld [vmem:[%s8631 + $0x18] sm:$0xff]
        %v8636 = vld [vmem:[%s8631 + $0x20] sm:$0xff]
        %v8637 = vld [vmem:[%s8631 + $0x28] sm:$0xff]
        %v8638 = vld [vmem:[%s8631 + $0x30] sm:$0xff]
        %v8639 = vld [vmem:[%s8631 + $0x38] sm:$0xff]
        %v8641 = vsel %vm423, %v8620, 0
        %v8644 = vsel %vm423, %v8621, 0
        %v8647 = vsel %vm423, %v8622, 0
        %v8650 = vsel %vm423, %v8623, 0
        %v8653 = vsel %vm423, %v8624, 0
        %v8656 = vsel %vm423, %v8625, 0
        %v8659 = vsel %vm423, %v8626, 0
        %v8662 = vsel %vm423, %v8627, 0
        %v8665 = vsel %vm423, %v8628, 0
        %v8668 = vsel %vm423, %v8629, 0
        %v8671 = vsel %vm423, %v8630, 0
        %8673 = vmatpush.msra.mxu0 0.0
        %8674 = vmatpush.msra.mxu0 0.0
        %8675 = vmatpush.msra.mxu0 0.0
        %8676 = vmatpush.msra.mxu0 0.0
        %8677 = vmatpush.msra.mxu0 0.0
        %8678 = vmatpush.msra.mxu0 0.0
        %8679 = vmatpush.msra.mxu0 0.0
        %8680 = vmatpush.msra.mxu0 0.0
        %8681 = vmatpush.msra.mxu0 %v8639
        %8682 = vmatpush.msra.mxu0 %v8638
        %8683 = vmatpush.msra.mxu0 %v8637
        %8684 = vmatpush.msra.mxu0 %v8636
        %8685 = vmatpush.msra.mxu0 %v8635
        %8686 = vmatpush.msra.mxu0 %v8634
        %8687 = vmatpush.msra.mxu0 %v8633
        %8688 = vmatpush.msra.mxu0 %v8632
        %8689 = vmatmul.f32.gmra.mxu0 %v8641
        %v8690 = vpop.f32.mrf.mxu0
        %v8691 = vadd.f32 0.0, %v8690
        %8692 = vmatmul.f32.gmra.mxu0 %v8644
        %v8693 = vpop.f32.mrf.mxu0
        %v8694 = vadd.f32 0.0, %v8693
        %8695 = vmatmul.f32.gmra.mxu0 %v8647
        %v8696 = vpop.f32.mrf.mxu0
        %v8697 = vadd.f32 0.0, %v8696
        %8698 = vmatmul.f32.gmra.mxu0 %v8650
        %v8699 = vpop.f32.mrf.mxu0
        %v8700 = vadd.f32 0.0, %v8699
        %8701 = vmatmul.f32.gmra.mxu0 %v8653
        %v8702 = vpop.f32.mrf.mxu0
        %v8703 = vadd.f32 0.0, %v8702
        %8704 = vmatmul.f32.gmra.mxu0 %v8656
        %v8705 = vpop.f32.mrf.mxu0
        %v8706 = vadd.f32 0.0, %v8705
        %8707 = vmatmul.f32.gmra.mxu0 %v8659
        %v8708 = vpop.f32.mrf.mxu0
        %v8709 = vadd.f32 0.0, %v8708
        %8710 = vmatmul.f32.gmra.mxu0 %v8662
        %v8711 = vpop.f32.mrf.mxu0
        %v8712 = vadd.f32 0.0, %v8711
        %8713 = vmatmul.f32.gmra.mxu0 %v8665
        %v8714 = vpop.f32.mrf.mxu0
        %v8715 = vadd.f32 0.0, %v8714
        %8716 = vmatmul.f32.gmra.mxu0 %v8668
        %v8717 = vpop.f32.mrf.mxu0
        %v8718 = vadd.f32 0.0, %v8717
        %8719 = vmatmul.f32.gmra.mxu0 %v8671
        %v8720 = vpop.f32.mrf.mxu0
        %v8721 = vadd.f32 0.0, %v8720
        %8722 = vdwg.mxu0
        %v8723 = vadd.f32 %v4567, %v8691
        %v8724 = vadd.f32 %v4568, %v8694
        %v8725 = vadd.f32 %v4569, %v8697
        %v8726 = vadd.f32 %v4570, %v8700
        %v8727 = vadd.f32 %v4571, %v8703
        %v8728 = vadd.f32 %v4572, %v8706
        %v8729 = vadd.f32 %v4573, %v8709
        %v8730 = vadd.f32 %v4574, %v8712
        %v8731 = vadd.f32 %v4575, %v8715
        %v8732 = vadd.f32 %v4576, %v8718
        %v8733 = vadd.f32 %v4577, %v8721
        %8734 = vst [vmem:[%s406] sm:$0xff] %v8723
        %8735 = vst [vmem:[%s406 + $0x8] sm:$0xff] %v8724
        %8736 = vst [vmem:[%s406 + $0x10] sm:$0xff] %v8725
        %8737 = vst [vmem:[%s406 + $0x18] sm:$0xff] %v8726
        %8738 = vst [vmem:[%s406 + $0x20] sm:$0xff] %v8727
        %8739 = vst [vmem:[%s406 + $0x28] sm:$0xff] %v8728
        %8740 = vst [vmem:[%s406 + $0x30] sm:$0xff] %v8729
        %8741 = vst [vmem:[%s406 + $0x38] sm:$0xff] %v8730
        %8742 = vst [vmem:[%s406 + $0x40] sm:$0xff] %v8731
        %8743 = vst [vmem:[%s406 + $0x48] sm:$0xff] %v8732
        %8744 = vst [vmem:[%s406 + $0x50] sm:$0xff] %v8733
        %s8745 = sand.u32 %s291, 1
        %s8746 = scalar_lea.sflag [#allocation6], %s8745
        %s8747 = sand.u32 %s291, 1
        %s8748 = smul.addr %s8747, 88
        %s8749 = scalar_lea.vmem [#allocation5], %s8748
        // Predicated region
        $region83: #{tpu_custom_call.1} parent=67 // pred_check
          %p8750 = pneg %p301
        $region84: #{tpu_custom_call.1} parent=67 // pred_check_branch
          %8752 = sbr.rel (%p8750) target = $region86
        $region85: #{tpu_custom_call.1} parent=67 // pred_region
          %8754 = vsyncadd %s8746, 0
          %s8755 = smul.addr %s26, 11
          %s8756 = smul.addr %s8755, 8
          %s8757 = scalar_lea.hbm %s12, %s8756
          %s8758 = sshll.u32 %s8749, 4
          %s8759 = int_to_ptr.vmem [resolvable:$true] %s8758
          %s8760 = sshll.u32 %s8757, 4
          %s8761 = int_to_ptr.hbm [resolvable:$true] %s8760
          %8766 = dma.vmem_to_hbm [thread:$0]  %s8759, 1408, %s8761, %s8746, 128, 128, 8
        $region86: #{tpu_custom_call.1} parent=67 // pred_fallthru
          _
      $region68: #{tpu_custom_call.1} parent=5 // pred_fallthru
        _
      %p8767 = scmp.le.s32.totalorder 2, %s21
      // Predicated region
      $region87: #{tpu_custom_call.1} parent=5 // pred_check
        %p8768 = pneg %p8767
      $region88: #{tpu_custom_call.1} parent=5 // pred_check_branch
        %8770 = sbr.rel (%p8768) target = $region90
      $region89: #{tpu_custom_call.1} parent=5 // pred_region
        %s8771 = ssub.s32 %s21, 2
        // Predicated region
        $region91: #{tpu_custom_call.1} parent=89 // pred_check
          %p8772 = pneg %p307
        $region92: #{tpu_custom_call.1} parent=89 // pred_check_branch
          %8774 = sbr.rel (%p8772) target = $region94
        $region93: #{tpu_custom_call.1} parent=89 // pred_region
          %s8775 = sand.u32 %s292, 1
          %s8776 = scalar_lea.sflag [#allocation6], %s8775
          %s8777 = sand.u32 %s292, 1
          %s8778 = smul.addr %s8777, 88
          %s8779 = scalar_lea.vmem [#allocation5], %s8778
          %8781 = dma.done %s8776, 1408
        $region94: #{tpu_custom_call.1} parent=89 // pred_fallthru
          _
      $region90: #{tpu_custom_call.1} parent=5 // pred_fallthru
        _
    $region6: #{tpu_custom_call.1} parent=1 // loop_footer
      %s25 = sadd.s32 1, %s21
    $region7: #{tpu_custom_call.1} parent=1 // loop_footer_branch
      %20 = sbr.rel target = $region3
    $region8: #{tpu_custom_call.1} parent=1 // loop_exit
      _
    %8782 = vsyncpa [#allocation6], 1
    %s8783 = scalar_lea.sflag [#allocation6], 1
    %8784 = vsyncpa %s8783, 1

</llo_original>
